<compile_context>
chip_gen: v6e
topology: v6e:2x2x1
jax: 0.10.0
libtpu: 0.0.40
codegen_flags: <defaults>
</compile_context>

<pallas_src>
import math

import jax
import jax.numpy as jnp
from jax.experimental import pallas as pl
from jax.experimental.pallas import tpu as pltpu  # noqa: F401  (TPU backend assumed)

# ----------------------- small synthetic config -----------------------
VOCAB = 100
HIDDEN = 32            # embed_size
N_HEADS = 2
HEAD_DIM = HIDDEN // N_HEADS
FFN = 64
N_LAYERS = 2
MAX_POS = 16
SEQ = 8                # text_size (power of two -> exact 1/SEQ in f32 below)
BATCH = 2
CANDS = 3              # cand_size
K_QUEUE = 8            # K   (K % batch == 0)
MOMENTUM = 0.999       # m
TEMP = 0.07            # T
INV_TEMP = 1.0 / TEMP
LN_EPS = 1e-12
NEG_INF = -1e9         # cross-sequence separator (sequences packed into one call)
ATTN_SCALE = 1.0 / math.sqrt(HEAD_DIM)

# order in which (packed) encoder weights are fed to the fused kernels
ENC_WEIGHT_NAMES = (
    "emb_ln",      # (2, H)        [gamma; beta] of the embedding LayerNorm
    "wqkv",        # (L, H, 3H)    packed Q|K|V projection (all heads)
    "bqkv",        # (L, 1, 3H)
    "wo",          # (L, H, H)     full attention output projection
    "ln_vecs",     # (L, 6, H)     rows: bo, ln1_g, ln1_b, b2, ln2_g, ln2_b
    "w1",          # (L, H, F)
    "b1",          # (L, 1, F)
    "w2",          # (L, F, H)
    "pooler_w",    # (H, H)
    "pooler_b",    # (1, H)
)
NW = len(ENC_WEIGHT_NAMES)


# ----------------------- pallas_call plumbing -----------------------
def _zero_map(nd):
    def idx(i):
        return (0,) * nd
    return idx


def _fused_call(kernel, inputs, out_shapes):
    """One grid=(1,) pallas_call with every operand fully resident in VMEM."""
    out_shape = tuple(jax.ShapeDtypeStruct(tuple(s), jnp.float32) for s in out_shapes)
    return pl.pallas_call(
        kernel,
        out_shape=out_shape,
        grid=(1,),
        in_specs=[pl.BlockSpec(tuple(x.shape), _zero_map(x.ndim)) for x in inputs],
        out_specs=[pl.BlockSpec(tuple(s), _zero_map(len(s))) for s in out_shapes],
    )(*inputs)


# ----------------------- fused encoder core -----------------------
def _ln(x, g, b):
    mu = jnp.mean(x, axis=-1, keepdims=True)
    var = jnp.mean((x - mu) ** 2, axis=-1, keepdims=True)
    return (x - mu) * jax.lax.rsqrt(var + LN_EPS) * g + b


def _encoder_core(x_ref, mask_ref, w):
    """Full BERT encoder + pooler + L2-normalize for R = RS/SEQ packed sequences.

    x_ref    : (RS, H)  embedded tokens (word + pos + type), pre-LayerNorm
    mask_ref : (1, RS)  flat attention mask (1 = valid token)
    returns  : (R, H)   L2-normalized pooler output (a VALUE, epilogue added by caller)
    """
    RS = x_ref.shape[0]
    R = RS // SEQ

    emb_ln = w["emb_ln"][...]                                  # (2, H)
    x = _ln(x_ref[...], emb_ln[0:1, :], emb_ln[1:2, :])        # (RS, H)

    # Block-diagonal additive attention bias built in-kernel (VPU iota work,
    # no (RS,RS) HBM traffic).  float-floor seq-id is exact since 1/SEQ is exact.
    rows = jax.lax.broadcasted_iota(jnp.int32, (RS, RS), 0).astype(jnp.float32)
    cols = jax.lax.broadcasted_iota(jnp.int32, (RS, RS), 1).astype(jnp.float32)
    inv_s = 1.0 / SEQ
    same_seq = jnp.floor(rows * inv_s) == jnp.floor(cols * inv_s)
    seq_bias = jnp.where(same_seq, 0.0, NEG_INF)               # (RS, RS)
    key_bias = (mask_ref[...] - 1.0) * 10000.0                 # (1, RS)  HF: (1-mask)*-10000
    bias = seq_bias + key_bias                                 # broadcasts over rows

    for l in range(N_LAYERS):
        # one lane-dense packed QKV matmul: (RS,H)@(H,3H)
        qkv = jnp.dot(x, w["wqkv"][l], preferred_element_type=jnp.float32) + w["bqkv"][l]
        heads = []
        for h in range(N_HEADS):
            lo = h * HEAD_DIM
            q_h = qkv[:, lo:lo + HEAD_DIM]
            k_h = qkv[:, HIDDEN + lo:HIDDEN + lo + HEAD_DIM]
            v_h = qkv[:, 2 * HIDDEN + lo:2 * HIDDEN + lo + HEAD_DIM]
            s = jax.lax.dot_general(q_h, k_h, (((1,), (1,)), ((), ())),
                                    preferred_element_type=jnp.float32) * ATTN_SCALE + bias
            # explicit softmax: divide replaced by EUP approx reciprocal
            s_max = jnp.max(s, axis=-1, keepdims=True)
            e = jnp.exp(s - s_max)
            p = e * pl.reciprocal(jnp.sum(e, axis=-1, keepdims=True), approx=True)
            heads.append(jnp.dot(p, v_h, preferred_element_type=jnp.float32))
        ctx = jnp.concatenate(heads, axis=-1)                  # (RS, H)

        vecs = w["ln_vecs"][l]                                 # (6, H)
        attn_out = jnp.dot(ctx, w["wo"][l], preferred_element_type=jnp.float32) + vecs[0:1, :]
        x1 = _ln(attn_out + x, vecs[1:2, :], vecs[2:3, :])

        hdn = jnp.dot(x1, w["w1"][l], preferred_element_type=jnp.float32) + w["b1"][l]
        # TODO(synk): HuggingFace BERT default is the exact erf GELU; tanh approximation used here.
        hdn = jax.nn.gelu(hdn, approximate=True)
        hdn = jnp.dot(hdn, w["w2"][l], preferred_element_type=jnp.float32) + vecs[3:4, :]
        x = _ln(hdn + x1, vecs[4:5, :], vecs[5:6, :])

    # pooler: select every sequence's CLS row via an in-kernel one-hot matmul
    r_rows = jax.lax.broadcasted_iota(jnp.int32, (R, RS), 0)
    r_cols = jax.lax.broadcasted_iota(jnp.int32, (R, RS), 1)
    cls_sel = (r_cols == r_rows * SEQ).astype(jnp.float32)     # (R, RS)
    cls = jnp.dot(cls_sel, x, preferred_element_type=jnp.float32)           # (R, H)
    pooled = jnp.tanh(jnp.dot(cls, w["pooler_w"][...],
                              preferred_element_type=jnp.float32) + w["pooler_b"][...])
    # F.normalize(dim=1) via rsqrt (EUP) instead of sqrt + divide
    sumsq = jnp.sum(pooled * pooled, axis=-1, keepdims=True)
    return pooled * jax.lax.rsqrt(jnp.maximum(sumsq, 1e-24))


# ----------------------- the two fused kernels -----------------------
def _enc_query_cand_kernel(x_ref, mask_ref, *rest):
    """encoder_q on [query ; candidates] + fused candidate-score epilogue."""
    w = dict(zip(ENC_WEIGHT_NAMES, rest[:NW]))
    emb_ref, score_ref = rest[NW], rest[NW + 1]

    emb = _encoder_core(x_ref, mask_ref, w)                    # (B + B*C, H)
    emb_ref[...] = emb

    # k[b, c] = <cand_emb[b*C + c], q_emb[b]>   (torch.bmm(cand, q.unsqueeze(2)))
    q = emb[:BATCH]                                            # (B, H)
    cands = emb[BATCH:]                                        # (B*C, H)
    full = jax.lax.dot_general(cands, q, (((1,), (1,)), ((), ())),
                               preferred_element_type=jnp.float32)   # (B*C, B)
    i_rows = jax.lax.broadcasted_iota(jnp.int32, (BATCH * CANDS, BATCH), 0)
    i_cols = jax.lax.broadcasted_iota(jnp.int32, (BATCH * CANDS, BATCH), 1)
    mine = jnp.logical_and(i_rows >= i_cols * CANDS, i_rows < (i_cols + 1) * CANDS)
    score_ref[...] = jnp.sum(jnp.where(mine, full, 0.0), axis=1, keepdims=True)  # (B*C, 1)


def _enc_key_logits_kernel(x_ref, mask_ref, q_ref, queue_ref, *rest):
    """encoder_k on the selected candidates + fused contrastive-logits epilogue."""
    w = dict(zip(ENC_WEIGHT_NAMES, rest[:NW]))
    k_ref, logits_ref = rest[NW], rest[NW + 1]

    k_emb = _encoder_core(x_ref, mask_ref, w)                  # (B, H)
    k_ref[...] = k_emb

    q = q_ref[...]                                             # (B, H)
    # direct slice stores (no in-kernel concat)
    logits_ref[:, 0:1] = jnp.sum(q * k_emb, axis=-1, keepdims=True) * INV_TEMP
    logits_ref[:, 1:1 + K_QUEUE] = jnp.dot(q, queue_ref[...],
                                           preferred_element_type=jnp.float32) * INV_TEMP


# ----------------------- synthetic BERT params (packed layout) -----------------------
def init_bert_params(key):
    def nrm(k, shape, std=0.02):
        return jax.random.normal(k, shape, jnp.float32) * std

    keys = iter(jax.random.split(key, 16))
    L, H, F = N_LAYERS, HIDDEN, FFN
    # rows of ln_vecs: bo, ln1_g, ln1_b, b2, ln2_g, ln2_b
    ln_rows = jnp.array([0.0, 1.0, 0.0, 0.0, 1.0, 0.0], jnp.float32)
    return {
        "word_emb": nrm(next(keys), (VOCAB, H)),
        "pos_emb": nrm(next(keys), (MAX_POS, H)),
        "type_emb": nrm(next(keys), (2, H)),
        "emb_ln": jnp.concatenate([jnp.ones((1, H), jnp.float32),
                                   jnp.zeros((1, H), jnp.float32)], axis=0),
        "wqkv": nrm(next(keys), (L, H, 3 * H)),
        "bqkv": jnp.zeros((L, 1, 3 * H), jnp.float32),
        "wo": nrm(next(keys), (L, H, H)),
        "ln_vecs": jnp.tile(ln_rows[None, :, None], (L, 1, H)),
        "w1": nrm(next(keys), (L, H, F)),
        "b1": jnp.zeros((L, 1, F), jnp.float32),
        "w2": nrm(next(keys), (L, F, H)),
        "pooler_w": nrm(next(keys), (H, H)),
        "pooler_b": jnp.zeros((1, H), jnp.float32),
    }


# ----------------------- JAX glue around the kernels -----------------------
def _embed(params, input_ids):
    """Embedding lookup (gather) stays as XLA glue; returns (R*S, H) rows."""
    R, S = input_ids.shape
    x = jnp.take(params["word_emb"], input_ids, axis=0)
    x = x + params["pos_emb"][None, :S, :] + params["type_emb"][0][None, None, :]
    return x.reshape(R * S, HIDDEN)


def momentum_update(params_k, params_q, m):
    """param_k = m * param_k + (1 - m) * param_q  (fused elementwise under jit)."""
    return jax.tree_util.tree_map(lambda pk, pq: pk * m + pq * (1.0 - m),
                                  params_k, params_q)


def forward(params_q, params_k, queue, queue_ptr,
            query_clip_text_id, query_att_mask,
            pos_candidates_text_id, pos_candidates_att_mask):
    B, C, S = pos_candidates_text_id.shape
    assert K_QUEUE % B == 0  # mirrors the PyTorch assert in _dequeue_and_enqueue

    # ---- query + candidate branches (both use encoder_q): ONE fused call ----
    all_ids = jnp.concatenate(
        [query_clip_text_id, pos_candidates_text_id.reshape(B * C, S)], axis=0)
    all_mask = jnp.concatenate(
        [query_att_mask, pos_candidates_att_mask.reshape(B * C, S)], axis=0)
    weights_q = tuple(params_q[n] for n in ENC_WEIGHT_NAMES)
    all_emb, k_scores_col = _fused_call(
        _enc_query_cand_kernel,
        (_embed(params_q, all_ids), all_mask.astype(jnp.float32).reshape(1, -1)) + weights_q,
        ((B + B * C, HIDDEN), (B * C, 1)))
    clip_emb_q = all_emb[:B]

    # ---- no-grad section: momentum update of encoder_k ----
    params_k = momentum_update(params_k, params_q, MOMENTUM)

    # argmax / gather of the best candidate (tiny, stays as XLA glue)
    k0 = jnp.argmax(k_scores_col.reshape(B, C), axis=1)
    idx = jnp.broadcast_to(k0[:, None, None], (B, 1, S)).astype(jnp.int32)
    sel_ids = jnp.take_along_axis(pos_candidates_text_id, idx, axis=1)[:, 0, :]
    sel_mask = jnp.take_along_axis(pos_candidates_att_mask, idx, axis=1)[:, 0, :]

    # ---- key branch (encoder_k) + contrastive logits: ONE fused call ----
    weights_k = tuple(params_k[n] for n in ENC_WEIGHT_NAMES)
    clip_emb_k, logits = _fused_call(
        _enc_key_logits_kernel,
        (_embed(params_k, sel_ids), sel_mask.astype(jnp.float32).reshape(1, -1),
         clip_emb_q, queue) + weights_k,
        ((B, HIDDEN), (B, 1 + K_QUEUE)))
    labels = jnp.zeros((B,), dtype=jnp.int32)

    # ---- dequeue & enqueue (ring-buffer update, XLA glue on donated buffer) ----
    # dynamic_update_slice never clamps because K_QUEUE % B == 0 (asserted above).
    ptr = queue_ptr[0]
    queue = jax.lax.dynamic_update_slice(queue, clip_emb_k.T, (0, ptr))
    queue_ptr = queue_ptr.at[0].set((ptr + B) % K_QUEUE)

    return logits, labels, queue, queue_ptr, params_k


# ----------------------- main -----------------------
if __name__ == "__main__":
    key = jax.random.PRNGKey(0)
    k_par, k_queue, k_q_ids, k_c_ids = jax.random.split(key, 4)

    params_q = init_bert_params(k_par)
    # encoder_k starts from the same "pretrained" weights (real copy so donation is clean)
    params_k = jax.tree_util.tree_map(jnp.copy, params_q)

    queue = jax.random.normal(k_queue, (HIDDEN, K_QUEUE), jnp.float32)
    queue = queue / jnp.maximum(jnp.linalg.norm(queue, axis=0, keepdims=True), 1e-12)
    queue_ptr = jnp.zeros((1,), jnp.int32)

    query_ids = jax.random.randint(k_q_ids, (BATCH, SEQ), 0, VOCAB, jnp.int32)
    query_mask = jnp.ones((BATCH, SEQ), jnp.float32).at[:, -2:].set(0.0)
    cand_ids = jax.random.randint(k_c_ids, (BATCH, CANDS, SEQ), 0, VOCAB, jnp.int32)
    cand_mask = jnp.ones((BATCH, CANDS, SEQ), jnp.float32).at[:, :, -1:].set(0.0)

    # donate params_k and queue so the momentum update / ring-buffer update are in place
    fwd = jax.jit(forward, donate_argnums=(1, 2))
    logits, labels, queue, queue_ptr, params_k = fwd(
        params_q, params_k, queue, queue_ptr,
        query_ids, query_mask, cand_ids, cand_mask)

    jax.block_until_ready((logits, labels, queue, queue_ptr, params_k))
    assert logits.shape == (BATCH, 1 + K_QUEUE)
    assert labels.shape == (BATCH,)
    assert not bool(jnp.any(jnp.isnan(logits)))
    print("KERNEL_OK")
</pallas_src>

<mosaic_0001>
module attributes {stable_mosaic.version = 11 : i64} {
  func.func @_enc_query_cand_kernel(%arg0: i32, %arg1: memref<64x32xf32, #tpu.memory_space<vmem>>, %arg2: memref<1x64xf32, #tpu.memory_space<vmem>>, %arg3: memref<2x32xf32, #tpu.memory_space<vmem>>, %arg4: memref<2x32x96xf32, #tpu.memory_space<vmem>>, %arg5: memref<2x1x96xf32, #tpu.memory_space<vmem>>, %arg6: memref<2x32x32xf32, #tpu.memory_space<vmem>>, %arg7: memref<2x6x32xf32, #tpu.memory_space<vmem>>, %arg8: memref<2x32x64xf32, #tpu.memory_space<vmem>>, %arg9: memref<2x1x64xf32, #tpu.memory_space<vmem>>, %arg10: memref<2x64x32xf32, #tpu.memory_space<vmem>>, %arg11: memref<32x32xf32, #tpu.memory_space<vmem>>, %arg12: memref<1x32xf32, #tpu.memory_space<vmem>>, %arg13: memref<8x32xf32, #tpu.memory_space<vmem>>, %arg14: memref<6x1xf32, #tpu.memory_space<vmem>>) attributes {dimension_semantics = [#tpu.dimension_semantics<arbitrary>], iteration_bounds = array<i64: 1>, scalar_prefetch = 0 : i64, scratch_operands = 0 : i64, tpu.core_type = #tpu.core_type<tc>, window_params = [{pipeline_mode = #tpu.pipeline_mode<synchronous>, transform_indices = @transform_0, window_bounds = array<i64: 64, 32>}, {pipeline_mode = #tpu.pipeline_mode<synchronous>, transform_indices = @transform_1, window_bounds = array<i64: 1, 64>}, {pipeline_mode = #tpu.pipeline_mode<synchronous>, transform_indices = @transform_2, window_bounds = array<i64: 2, 32>}, {pipeline_mode = #tpu.pipeline_mode<synchronous>, transform_indices = @transform_3, window_bounds = array<i64: 2, 32, 96>}, {pipeline_mode = #tpu.pipeline_mode<synchronous>, transform_indices = @transform_4, window_bounds = array<i64: 2, 1, 96>}, {pipeline_mode = #tpu.pipeline_mode<synchronous>, transform_indices = @transform_5, window_bounds = array<i64: 2, 32, 32>}, {pipeline_mode = #tpu.pipeline_mode<synchronous>, transform_indices = @transform_6, window_bounds = array<i64: 2, 6, 32>}, {pipeline_mode = #tpu.pipeline_mode<synchronous>, transform_indices = @transform_7, window_bounds = array<i64: 2, 32, 64>}, {pipeline_mode = #tpu.pipeline_mode<synchronous>, transform_indices = @transform_8, window_bounds = array<i64: 2, 1, 64>}, {pipeline_mode = #tpu.pipeline_mode<synchronous>, transform_indices = @transform_9, window_bounds = array<i64: 2, 64, 32>}, {pipeline_mode = #tpu.pipeline_mode<synchronous>, transform_indices = @transform_10, window_bounds = array<i64: 32, 32>}, {pipeline_mode = #tpu.pipeline_mode<synchronous>, transform_indices = @transform_11, window_bounds = array<i64: 1, 32>}, {pipeline_mode = #tpu.pipeline_mode<synchronous>, transform_indices = @transform_12, window_bounds = array<i64: 8, 32>}, {pipeline_mode = #tpu.pipeline_mode<synchronous>, transform_indices = @transform_13, window_bounds = array<i64: 6, 1>}]} {
    %c0 = arith.constant 0 : index
    %c0_0 = arith.constant 0 : index
    %0 = vector.load %arg3[%c0, %c0_0] : memref<2x32xf32, #tpu.memory_space<vmem>>, vector<2x32xf32>
    %c0_1 = arith.constant 0 : index
    %c0_2 = arith.constant 0 : index
    %1 = vector.load %arg1[%c0_1, %c0_2] : memref<64x32xf32, #tpu.memory_space<vmem>>, vector<64x32xf32>
    %2 = vector.extract_strided_slice %0 {offsets = [0, 0], sizes = [1, 32], strides = [1, 1]} : vector<2x32xf32> to vector<1x32xf32>
    %3 = vector.extract_strided_slice %0 {offsets = [1, 0], sizes = [1, 32], strides = [1, 1]} : vector<2x32xf32> to vector<1x32xf32>
    %cst = arith.constant dense<0.000000e+00> : vector<64xf32>
    %4 = vector.multi_reduction <add>, %1, %cst [1] : vector<64x32xf32> to vector<64xf32>
    %5 = vector.shape_cast %4 : vector<64xf32> to vector<64x1xf32>
    %cst_3 = arith.constant 3.200000e+01 : f32
    %6 = vector.broadcast %cst_3 : f32 to vector<64x1xf32>
    %7 = arith.divf %5, %6 : vector<64x1xf32>
    %8 = vector.broadcast %7 : vector<64x1xf32> to vector<64x32xf32>
    %9 = arith.subf %1, %8 : vector<64x32xf32>
    %10 = arith.mulf %9, %9 : vector<64x32xf32>
    %cst_4 = arith.constant dense<0.000000e+00> : vector<64xf32>
    %11 = vector.multi_reduction <add>, %10, %cst_4 [1] : vector<64x32xf32> to vector<64xf32>
    %12 = vector.shape_cast %11 : vector<64xf32> to vector<64x1xf32>
    %cst_5 = arith.constant 3.200000e+01 : f32
    %13 = vector.broadcast %cst_5 : f32 to vector<64x1xf32>
    %14 = arith.divf %12, %13 : vector<64x1xf32>
    %15 = vector.broadcast %7 : vector<64x1xf32> to vector<64x32xf32>
    %16 = arith.subf %1, %15 : vector<64x32xf32>
    %cst_6 = arith.constant 9.99999996E-13 : f32
    %17 = vector.broadcast %cst_6 : f32 to vector<64x1xf32>
    %18 = arith.addf %14, %17 : vector<64x1xf32>
    %19 = math.rsqrt %18 : vector<64x1xf32>
    %20 = vector.broadcast %19 : vector<64x1xf32> to vector<64x32xf32>
    %21 = arith.mulf %16, %20 : vector<64x32xf32>
    %22 = vector.broadcast %2 : vector<1x32xf32> to vector<64x32xf32>
    %23 = arith.mulf %21, %22 : vector<64x32xf32>
    %24 = vector.broadcast %3 : vector<1x32xf32> to vector<64x32xf32>
    %25 = arith.addf %23, %24 : vector<64x32xf32>
    %26 = tpu.iota {dimensions = array<i32: 0>} : vector<64x64xi32>
    %27 = arith.sitofp %26 : vector<64x64xi32> to vector<64x64xf32>
    %28 = tpu.iota {dimensions = array<i32: 1>} : vector<64x64xi32>
    %29 = arith.sitofp %28 : vector<64x64xi32> to vector<64x64xf32>
    %cst_7 = arith.constant 1.250000e-01 : f32
    %30 = vector.broadcast %cst_7 : f32 to vector<64x64xf32>
    %31 = arith.mulf %27, %30 : vector<64x64xf32>
    %32 = math.floor %31 : vector<64x64xf32>
    %cst_8 = arith.constant 1.250000e-01 : f32
    %33 = vector.broadcast %cst_8 : f32 to vector<64x64xf32>
    %34 = arith.mulf %29, %33 : vector<64x64xf32>
    %35 = math.floor %34 : vector<64x64xf32>
    %36 = arith.cmpf oeq, %32, %35 : vector<64x64xf32>
    %cst_9 = arith.constant 0.000000e+00 : f32
    %cst_10 = arith.constant -1.000000e+09 : f32
    %37 = vector.broadcast %cst_9 : f32 to vector<64x64xf32>
    %38 = vector.broadcast %cst_10 : f32 to vector<64x64xf32>
    %39 = arith.select %36, %37, %38 : vector<64x64xi1>, vector<64x64xf32>
    %c0_11 = arith.constant 0 : index
    %c0_12 = arith.constant 0 : index
    %40 = vector.load %arg2[%c0_11, %c0_12] : memref<1x64xf32, #tpu.memory_space<vmem>>, vector<1x64xf32>
    %cst_13 = arith.constant 1.000000e+00 : f32
    %41 = vector.broadcast %cst_13 : f32 to vector<1x64xf32>
    %42 = arith.subf %40, %41 : vector<1x64xf32>
    %cst_14 = arith.constant 1.000000e+04 : f32
    %43 = vector.broadcast %cst_14 : f32 to vector<1x64xf32>
    %44 = arith.mulf %42, %43 : vector<1x64xf32>
    %45 = vector.broadcast %44 : vector<1x64xf32> to vector<64x64xf32>
    %46 = arith.addf %39, %45 : vector<64x64xf32>
    %c0_15 = arith.constant 0 : index
    %c0_16 = arith.constant 0 : index
    %c0_17 = arith.constant 0 : index
    %47 = vector.load %arg4[%c0_15, %c0_16, %c0_17] : memref<2x32x96xf32, #tpu.memory_space<vmem>>, vector<1x32x96xf32>
    %48 = vector.shape_cast %47 : vector<1x32x96xf32> to vector<32x96xf32>
    %cst_18 = arith.constant dense<0.000000e+00> : vector<64x96xf32>
    %49 = tpu.matmul %25, %48, %cst_18 {dimension_numbers = #tpu.dot_dimension_numbers<[1], [0], [0], [1], [0, 0, 1, 1], [], []>} : vector<64x32xf32>, vector<32x96xf32>, vector<64x96xf32> -> vector<64x96xf32>
    %c0_19 = arith.constant 0 : index
    %c0_20 = arith.constant 0 : index
    %c0_21 = arith.constant 0 : index
    %50 = vector.load %arg5[%c0_19, %c0_20, %c0_21] : memref<2x1x96xf32, #tpu.memory_space<vmem>>, vector<1x1x96xf32>
    %51 = vector.shape_cast %50 : vector<1x1x96xf32> to vector<1x96xf32>
    %52 = vector.broadcast %51 : vector<1x96xf32> to vector<64x96xf32>
    %53 = arith.addf %49, %52 : vector<64x96xf32>
    %54 = vector.extract_strided_slice %53 {offsets = [0, 0], sizes = [64, 16], strides = [1, 1]} : vector<64x96xf32> to vector<64x16xf32>
    %55 = vector.extract_strided_slice %53 {offsets = [0, 32], sizes = [64, 16], strides = [1, 1]} : vector<64x96xf32> to vector<64x16xf32>
    %56 = vector.extract_strided_slice %53 {offsets = [0, 64], sizes = [64, 16], strides = [1, 1]} : vector<64x96xf32> to vector<64x16xf32>
    %cst_22 = arith.constant dense<0.000000e+00> : vector<64x64xf32>
    %57 = tpu.matmul %54, %55, %cst_22 {dimension_numbers = #tpu.dot_dimension_numbers<[1], [1], [0], [0], [0, 0, 1, 0], [], []>} : vector<64x16xf32>, vector<64x16xf32>, vector<64x64xf32> -> vector<64x64xf32>
    %cst_23 = arith.constant 2.500000e-01 : f32
    %58 = vector.broadcast %cst_23 : f32 to vector<64x64xf32>
    %59 = arith.mulf %57, %58 : vector<64x64xf32>
    %60 = arith.addf %59, %46 : vector<64x64xf32>
    %cst_24 = arith.constant dense<0xFF800000> : vector<64xf32>
    %61 = vector.multi_reduction <maximumf>, %60, %cst_24 [1] : vector<64x64xf32> to vector<64xf32>
    %62 = vector.shape_cast %61 : vector<64xf32> to vector<64x1xf32>
    %63 = vector.broadcast %62 : vector<64x1xf32> to vector<64x64xf32>
    %64 = arith.subf %60, %63 : vector<64x64xf32>
    %65 = math.exp %64 : vector<64x64xf32>
    %cst_25 = arith.constant dense<0.000000e+00> : vector<64xf32>
    %66 = vector.multi_reduction <add>, %65, %cst_25 [1] : vector<64x64xf32> to vector<64xf32>
    %67 = vector.shape_cast %66 : vector<64xf32> to vector<64x1xf32>
    %68 = tpu.reciprocal %67 {approx = true} : vector<64x1xf32> -> vector<64x1xf32>
    %69 = vector.broadcast %68 : vector<64x1xf32> to vector<64x64xf32>
    %70 = arith.mulf %65, %69 : vector<64x64xf32>
    %cst_26 = arith.constant dense<0.000000e+00> : vector<64x16xf32>
    %71 = tpu.matmul %70, %56, %cst_26 {dimension_numbers = #tpu.dot_dimension_numbers<[1], [0], [0], [1], [0, 0, 1, 1], [], []>} : vector<64x64xf32>, vector<64x16xf32>, vector<64x16xf32> -> vector<64x16xf32>
    %72 = vector.extract_strided_slice %53 {offsets = [0, 16], sizes = [64, 16], strides = [1, 1]} : vector<64x96xf32> to vector<64x16xf32>
    %73 = vector.extract_strided_slice %53 {offsets = [0, 48], sizes = [64, 16], strides = [1, 1]} : vector<64x96xf32> to vector<64x16xf32>
    %74 = vector.extract_strided_slice %53 {offsets = [0, 80], sizes = [64, 16], strides = [1, 1]} : vector<64x96xf32> to vector<64x16xf32>
    %cst_27 = arith.constant dense<0.000000e+00> : vector<64x64xf32>
    %75 = tpu.matmul %72, %73, %cst_27 {dimension_numbers = #tpu.dot_dimension_numbers<[1], [1], [0], [0], [0, 0, 1, 0], [], []>} : vector<64x16xf32>, vector<64x16xf32>, vector<64x64xf32> -> vector<64x64xf32>
    %cst_28 = arith.constant 2.500000e-01 : f32
    %76 = vector.broadcast %cst_28 : f32 to vector<64x64xf32>
    %77 = arith.mulf %75, %76 : vector<64x64xf32>
    %78 = arith.addf %77, %46 : vector<64x64xf32>
    %cst_29 = arith.constant dense<0xFF800000> : vector<64xf32>
    %79 = vector.multi_reduction <maximumf>, %78, %cst_29 [1] : vector<64x64xf32> to vector<64xf32>
    %80 = vector.shape_cast %79 : vector<64xf32> to vector<64x1xf32>
    %81 = vector.broadcast %80 : vector<64x1xf32> to vector<64x64xf32>
    %82 = arith.subf %78, %81 : vector<64x64xf32>
    %83 = math.exp %82 : vector<64x64xf32>
    %cst_30 = arith.constant dense<0.000000e+00> : vector<64xf32>
    %84 = vector.multi_reduction <add>, %83, %cst_30 [1] : vector<64x64xf32> to vector<64xf32>
    %85 = vector.shape_cast %84 : vector<64xf32> to vector<64x1xf32>
    %86 = tpu.reciprocal %85 {approx = true} : vector<64x1xf32> -> vector<64x1xf32>
    %87 = vector.broadcast %86 : vector<64x1xf32> to vector<64x64xf32>
    %88 = arith.mulf %83, %87 : vector<64x64xf32>
    %cst_31 = arith.constant dense<0.000000e+00> : vector<64x16xf32>
    %89 = tpu.matmul %88, %74, %cst_31 {dimension_numbers = #tpu.dot_dimension_numbers<[1], [0], [0], [1], [0, 0, 1, 1], [], []>} : vector<64x64xf32>, vector<64x16xf32>, vector<64x16xf32> -> vector<64x16xf32>
    %90 = tpu.concatenate %71, %89 in 1 : vector<64x16xf32>, vector<64x16xf32> -> vector<64x32xf32>
    %c0_32 = arith.constant 0 : index
    %c0_33 = arith.constant 0 : index
    %c0_34 = arith.constant 0 : index
    %91 = vector.load %arg7[%c0_32, %c0_33, %c0_34] : memref<2x6x32xf32, #tpu.memory_space<vmem>>, vector<1x6x32xf32>
    %92 = vector.shape_cast %91 : vector<1x6x32xf32> to vector<6x32xf32>
    %c0_35 = arith.constant 0 : index
    %c0_36 = arith.constant 0 : index
    %c0_37 = arith.constant 0 : index
    %93 = vector.load %arg6[%c0_35, %c0_36, %c0_37] : memref<2x32x32xf32, #tpu.memory_space<vmem>>, vector<1x32x32xf32>
    %94 = vector.shape_cast %93 : vector<1x32x32xf32> to vector<32x32xf32>
    %cst_38 = arith.constant dense<0.000000e+00> : vector<64x32xf32>
    %95 = tpu.matmul %90, %94, %cst_38 {dimension_numbers = #tpu.dot_dimension_numbers<[1], [0], [0], [1], [0, 0, 1, 1], [], []>} : vector<64x32xf32>, vector<32x32xf32>, vector<64x32xf32> -> vector<64x32xf32>
    %96 = vector.extract_strided_slice %92 {offsets = [0, 0], sizes = [1, 32], strides = [1, 1]} : vector<6x32xf32> to vector<1x32xf32>
    %97 = vector.broadcast %96 : vector<1x32xf32> to vector<64x32xf32>
    %98 = arith.addf %95, %97 : vector<64x32xf32>
    %99 = arith.addf %98, %25 : vector<64x32xf32>
    %100 = vector.extract_strided_slice %92 {offsets = [1, 0], sizes = [1, 32], strides = [1, 1]} : vector<6x32xf32> to vector<1x32xf32>
    %101 = vector.extract_strided_slice %92 {offsets = [2, 0], sizes = [1, 32], strides = [1, 1]} : vector<6x32xf32> to vector<1x32xf32>
    %cst_39 = arith.constant dense<0.000000e+00> : vector<64xf32>
    %102 = vector.multi_reduction <add>, %99, %cst_39 [1] : vector<64x32xf32> to vector<64xf32>
    %103 = vector.shape_cast %102 : vector<64xf32> to vector<64x1xf32>
    %cst_40 = arith.constant 3.200000e+01 : f32
    %104 = vector.broadcast %cst_40 : f32 to vector<64x1xf32>
    %105 = arith.divf %103, %104 : vector<64x1xf32>
    %106 = vector.broadcast %105 : vector<64x1xf32> to vector<64x32xf32>
    %107 = arith.subf %99, %106 : vector<64x32xf32>
    %108 = arith.mulf %107, %107 : vector<64x32xf32>
    %cst_41 = arith.constant dense<0.000000e+00> : vector<64xf32>
    %109 = vector.multi_reduction <add>, %108, %cst_41 [1] : vector<64x32xf32> to vector<64xf32>
    %110 = vector.shape_cast %109 : vector<64xf32> to vector<64x1xf32>
    %cst_42 = arith.constant 3.200000e+01 : f32
    %111 = vector.broadcast %cst_42 : f32 to vector<64x1xf32>
    %112 = arith.divf %110, %111 : vector<64x1xf32>
    %113 = vector.broadcast %105 : vector<64x1xf32> to vector<64x32xf32>
    %114 = arith.subf %99, %113 : vector<64x32xf32>
    %cst_43 = arith.constant 9.99999996E-13 : f32
    %115 = vector.broadcast %cst_43 : f32 to vector<64x1xf32>
    %116 = arith.addf %112, %115 : vector<64x1xf32>
    %117 = math.rsqrt %116 : vector<64x1xf32>
    %118 = vector.broadcast %117 : vector<64x1xf32> to vector<64x32xf32>
    %119 = arith.mulf %114, %118 : vector<64x32xf32>
    %120 = vector.broadcast %100 : vector<1x32xf32> to vector<64x32xf32>
    %121 = arith.mulf %119, %120 : vector<64x32xf32>
    %122 = vector.broadcast %101 : vector<1x32xf32> to vector<64x32xf32>
    %123 = arith.addf %121, %122 : vector<64x32xf32>
    %c0_44 = arith.constant 0 : index
    %c0_45 = arith.constant 0 : index
    %c0_46 = arith.constant 0 : index
    %124 = vector.load %arg8[%c0_44, %c0_45, %c0_46] : memref<2x32x64xf32, #tpu.memory_space<vmem>>, vector<1x32x64xf32>
    %125 = vector.shape_cast %124 : vector<1x32x64xf32> to vector<32x64xf32>
    %cst_47 = arith.constant dense<0.000000e+00> : vector<64x64xf32>
    %126 = tpu.matmul %123, %125, %cst_47 {dimension_numbers = #tpu.dot_dimension_numbers<[1], [0], [0], [1], [0, 0, 1, 1], [], []>} : vector<64x32xf32>, vector<32x64xf32>, vector<64x64xf32> -> vector<64x64xf32>
    %c0_48 = arith.constant 0 : index
    %c0_49 = arith.constant 0 : index
    %c0_50 = arith.constant 0 : index
    %127 = vector.load %arg9[%c0_48, %c0_49, %c0_50] : memref<2x1x64xf32, #tpu.memory_space<vmem>>, vector<1x1x64xf32>
    %128 = vector.shape_cast %127 : vector<1x1x64xf32> to vector<1x64xf32>
    %129 = vector.broadcast %128 : vector<1x64xf32> to vector<64x64xf32>
    %130 = arith.addf %126, %129 : vector<64x64xf32>
    %131 = arith.mulf %130, %130 : vector<64x64xf32>
    %132 = arith.mulf %130, %131 : vector<64x64xf32>
    %cst_51 = arith.constant 4.471500e-02 : f32
    %133 = vector.broadcast %cst_51 : f32 to vector<64x64xf32>
    %134 = arith.mulf %133, %132 : vector<64x64xf32>
    %135 = arith.addf %130, %134 : vector<64x64xf32>
    %cst_52 = arith.constant 0.797884583 : f32
    %136 = vector.broadcast %cst_52 : f32 to vector<64x64xf32>
    %137 = arith.mulf %136, %135 : vector<64x64xf32>
    %138 = math.tanh %137 : vector<64x64xf32>
    %cst_53 = arith.constant 1.000000e+00 : f32
    %139 = vector.broadcast %cst_53 : f32 to vector<64x64xf32>
    %140 = arith.addf %139, %138 : vector<64x64xf32>
    %cst_54 = arith.constant 5.000000e-01 : f32
    %141 = vector.broadcast %cst_54 : f32 to vector<64x64xf32>
    %142 = arith.mulf %141, %140 : vector<64x64xf32>
    %143 = arith.mulf %130, %142 : vector<64x64xf32>
    %c0_55 = arith.constant 0 : index
    %c0_56 = arith.constant 0 : index
    %c0_57 = arith.constant 0 : index
    %144 = vector.load %arg10[%c0_55, %c0_56, %c0_57] : memref<2x64x32xf32, #tpu.memory_space<vmem>>, vector<1x64x32xf32>
    %145 = vector.shape_cast %144 : vector<1x64x32xf32> to vector<64x32xf32>
    %cst_58 = arith.constant dense<0.000000e+00> : vector<64x32xf32>
    %146 = tpu.matmul %143, %145, %cst_58 {dimension_numbers = #tpu.dot_dimension_numbers<[1], [0], [0], [1], [0, 0, 1, 1], [], []>} : vector<64x64xf32>, vector<64x32xf32>, vector<64x32xf32> -> vector<64x32xf32>
    %147 = vector.extract_strided_slice %92 {offsets = [3, 0], sizes = [1, 32], strides = [1, 1]} : vector<6x32xf32> to vector<1x32xf32>
    %148 = vector.broadcast %147 : vector<1x32xf32> to vector<64x32xf32>
    %149 = arith.addf %146, %148 : vector<64x32xf32>
    %150 = arith.addf %149, %123 : vector<64x32xf32>
    %151 = vector.extract_strided_slice %92 {offsets = [4, 0], sizes = [1, 32], strides = [1, 1]} : vector<6x32xf32> to vector<1x32xf32>
    %152 = vector.extract_strided_slice %92 {offsets = [5, 0], sizes = [1, 32], strides = [1, 1]} : vector<6x32xf32> to vector<1x32xf32>
    %cst_59 = arith.constant dense<0.000000e+00> : vector<64xf32>
    %153 = vector.multi_reduction <add>, %150, %cst_59 [1] : vector<64x32xf32> to vector<64xf32>
    %154 = vector.shape_cast %153 : vector<64xf32> to vector<64x1xf32>
    %cst_60 = arith.constant 3.200000e+01 : f32
    %155 = vector.broadcast %cst_60 : f32 to vector<64x1xf32>
    %156 = arith.divf %154, %155 : vector<64x1xf32>
    %157 = vector.broadcast %156 : vector<64x1xf32> to vector<64x32xf32>
    %158 = arith.subf %150, %157 : vector<64x32xf32>
    %159 = arith.mulf %158, %158 : vector<64x32xf32>
    %cst_61 = arith.constant dense<0.000000e+00> : vector<64xf32>
    %160 = vector.multi_reduction <add>, %159, %cst_61 [1] : vector<64x32xf32> to vector<64xf32>
    %161 = vector.shape_cast %160 : vector<64xf32> to vector<64x1xf32>
    %cst_62 = arith.constant 3.200000e+01 : f32
    %162 = vector.broadcast %cst_62 : f32 to vector<64x1xf32>
    %163 = arith.divf %161, %162 : vector<64x1xf32>
    %164 = vector.broadcast %156 : vector<64x1xf32> to vector<64x32xf32>
    %165 = arith.subf %150, %164 : vector<64x32xf32>
    %cst_63 = arith.constant 9.99999996E-13 : f32
    %166 = vector.broadcast %cst_63 : f32 to vector<64x1xf32>
    %167 = arith.addf %163, %166 : vector<64x1xf32>
    %168 = math.rsqrt %167 : vector<64x1xf32>
    %169 = vector.broadcast %168 : vector<64x1xf32> to vector<64x32xf32>
    %170 = arith.mulf %165, %169 : vector<64x32xf32>
    %171 = vector.broadcast %151 : vector<1x32xf32> to vector<64x32xf32>
    %172 = arith.mulf %170, %171 : vector<64x32xf32>
    %173 = vector.broadcast %152 : vector<1x32xf32> to vector<64x32xf32>
    %174 = arith.addf %172, %173 : vector<64x32xf32>
    %c1 = arith.constant 1 : index
    %c0_64 = arith.constant 0 : index
    %c0_65 = arith.constant 0 : index
    %175 = vector.load %arg4[%c1, %c0_64, %c0_65] : memref<2x32x96xf32, #tpu.memory_space<vmem>>, vector<1x32x96xf32>
    %176 = vector.shape_cast %175 : vector<1x32x96xf32> to vector<32x96xf32>
    %cst_66 = arith.constant dense<0.000000e+00> : vector<64x96xf32>
    %177 = tpu.matmul %174, %176, %cst_66 {dimension_numbers = #tpu.dot_dimension_numbers<[1], [0], [0], [1], [0, 0, 1, 1], [], []>} : vector<64x32xf32>, vector<32x96xf32>, vector<64x96xf32> -> vector<64x96xf32>
    %c1_67 = arith.constant 1 : index
    %c0_68 = arith.constant 0 : index
    %c0_69 = arith.constant 0 : index
    %178 = vector.load %arg5[%c1_67, %c0_68, %c0_69] : memref<2x1x96xf32, #tpu.memory_space<vmem>>, vector<1x1x96xf32>
    %179 = vector.shape_cast %178 : vector<1x1x96xf32> to vector<1x96xf32>
    %180 = vector.broadcast %179 : vector<1x96xf32> to vector<64x96xf32>
    %181 = arith.addf %177, %180 : vector<64x96xf32>
    %182 = vector.extract_strided_slice %181 {offsets = [0, 0], sizes = [64, 16], strides = [1, 1]} : vector<64x96xf32> to vector<64x16xf32>
    %183 = vector.extract_strided_slice %181 {offsets = [0, 32], sizes = [64, 16], strides = [1, 1]} : vector<64x96xf32> to vector<64x16xf32>
    %184 = vector.extract_strided_slice %181 {offsets = [0, 64], sizes = [64, 16], strides = [1, 1]} : vector<64x96xf32> to vector<64x16xf32>
    %cst_70 = arith.constant dense<0.000000e+00> : vector<64x64xf32>
    %185 = tpu.matmul %182, %183, %cst_70 {dimension_numbers = #tpu.dot_dimension_numbers<[1], [1], [0], [0], [0, 0, 1, 0], [], []>} : vector<64x16xf32>, vector<64x16xf32>, vector<64x64xf32> -> vector<64x64xf32>
    %cst_71 = arith.constant 2.500000e-01 : f32
    %186 = vector.broadcast %cst_71 : f32 to vector<64x64xf32>
    %187 = arith.mulf %185, %186 : vector<64x64xf32>
    %188 = arith.addf %187, %46 : vector<64x64xf32>
    %cst_72 = arith.constant dense<0xFF800000> : vector<64xf32>
    %189 = vector.multi_reduction <maximumf>, %188, %cst_72 [1] : vector<64x64xf32> to vector<64xf32>
    %190 = vector.shape_cast %189 : vector<64xf32> to vector<64x1xf32>
    %191 = vector.broadcast %190 : vector<64x1xf32> to vector<64x64xf32>
    %192 = arith.subf %188, %191 : vector<64x64xf32>
    %193 = math.exp %192 : vector<64x64xf32>
    %cst_73 = arith.constant dense<0.000000e+00> : vector<64xf32>
    %194 = vector.multi_reduction <add>, %193, %cst_73 [1] : vector<64x64xf32> to vector<64xf32>
    %195 = vector.shape_cast %194 : vector<64xf32> to vector<64x1xf32>
    %196 = tpu.reciprocal %195 {approx = true} : vector<64x1xf32> -> vector<64x1xf32>
    %197 = vector.broadcast %196 : vector<64x1xf32> to vector<64x64xf32>
    %198 = arith.mulf %193, %197 : vector<64x64xf32>
    %cst_74 = arith.constant dense<0.000000e+00> : vector<64x16xf32>
    %199 = tpu.matmul %198, %184, %cst_74 {dimension_numbers = #tpu.dot_dimension_numbers<[1], [0], [0], [1], [0, 0, 1, 1], [], []>} : vector<64x64xf32>, vector<64x16xf32>, vector<64x16xf32> -> vector<64x16xf32>
    %200 = vector.extract_strided_slice %181 {offsets = [0, 16], sizes = [64, 16], strides = [1, 1]} : vector<64x96xf32> to vector<64x16xf32>
    %201 = vector.extract_strided_slice %181 {offsets = [0, 48], sizes = [64, 16], strides = [1, 1]} : vector<64x96xf32> to vector<64x16xf32>
    %202 = vector.extract_strided_slice %181 {offsets = [0, 80], sizes = [64, 16], strides = [1, 1]} : vector<64x96xf32> to vector<64x16xf32>
    %cst_75 = arith.constant dense<0.000000e+00> : vector<64x64xf32>
    %203 = tpu.matmul %200, %201, %cst_75 {dimension_numbers = #tpu.dot_dimension_numbers<[1], [1], [0], [0], [0, 0, 1, 0], [], []>} : vector<64x16xf32>, vector<64x16xf32>, vector<64x64xf32> -> vector<64x64xf32>
    %cst_76 = arith.constant 2.500000e-01 : f32
    %204 = vector.broadcast %cst_76 : f32 to vector<64x64xf32>
    %205 = arith.mulf %203, %204 : vector<64x64xf32>
    %206 = arith.addf %205, %46 : vector<64x64xf32>
    %cst_77 = arith.constant dense<0xFF800000> : vector<64xf32>
    %207 = vector.multi_reduction <maximumf>, %206, %cst_77 [1] : vector<64x64xf32> to vector<64xf32>
    %208 = vector.shape_cast %207 : vector<64xf32> to vector<64x1xf32>
    %209 = vector.broadcast %208 : vector<64x1xf32> to vector<64x64xf32>
    %210 = arith.subf %206, %209 : vector<64x64xf32>
    %211 = math.exp %210 : vector<64x64xf32>
    %cst_78 = arith.constant dense<0.000000e+00> : vector<64xf32>
    %212 = vector.multi_reduction <add>, %211, %cst_78 [1] : vector<64x64xf32> to vector<64xf32>
    %213 = vector.shape_cast %212 : vector<64xf32> to vector<64x1xf32>
    %214 = tpu.reciprocal %213 {approx = true} : vector<64x1xf32> -> vector<64x1xf32>
    %215 = vector.broadcast %214 : vector<64x1xf32> to vector<64x64xf32>
    %216 = arith.mulf %211, %215 : vector<64x64xf32>
    %cst_79 = arith.constant dense<0.000000e+00> : vector<64x16xf32>
    %217 = tpu.matmul %216, %202, %cst_79 {dimension_numbers = #tpu.dot_dimension_numbers<[1], [0], [0], [1], [0, 0, 1, 1], [], []>} : vector<64x64xf32>, vector<64x16xf32>, vector<64x16xf32> -> vector<64x16xf32>
    %218 = tpu.concatenate %199, %217 in 1 : vector<64x16xf32>, vector<64x16xf32> -> vector<64x32xf32>
    %c1_80 = arith.constant 1 : index
    %c0_81 = arith.constant 0 : index
    %c0_82 = arith.constant 0 : index
    %219 = vector.load %arg7[%c1_80, %c0_81, %c0_82] : memref<2x6x32xf32, #tpu.memory_space<vmem>>, vector<1x6x32xf32>
    %220 = vector.shape_cast %219 : vector<1x6x32xf32> to vector<6x32xf32>
    %c1_83 = arith.constant 1 : index
    %c0_84 = arith.constant 0 : index
    %c0_85 = arith.constant 0 : index
    %221 = vector.load %arg6[%c1_83, %c0_84, %c0_85] : memref<2x32x32xf32, #tpu.memory_space<vmem>>, vector<1x32x32xf32>
    %222 = vector.shape_cast %221 : vector<1x32x32xf32> to vector<32x32xf32>
    %cst_86 = arith.constant dense<0.000000e+00> : vector<64x32xf32>
    %223 = tpu.matmul %218, %222, %cst_86 {dimension_numbers = #tpu.dot_dimension_numbers<[1], [0], [0], [1], [0, 0, 1, 1], [], []>} : vector<64x32xf32>, vector<32x32xf32>, vector<64x32xf32> -> vector<64x32xf32>
    %224 = vector.extract_strided_slice %220 {offsets = [0, 0], sizes = [1, 32], strides = [1, 1]} : vector<6x32xf32> to vector<1x32xf32>
    %225 = vector.broadcast %224 : vector<1x32xf32> to vector<64x32xf32>
    %226 = arith.addf %223, %225 : vector<64x32xf32>
    %227 = arith.addf %226, %174 : vector<64x32xf32>
    %228 = vector.extract_strided_slice %220 {offsets = [1, 0], sizes = [1, 32], strides = [1, 1]} : vector<6x32xf32> to vector<1x32xf32>
    %229 = vector.extract_strided_slice %220 {offsets = [2, 0], sizes = [1, 32], strides = [1, 1]} : vector<6x32xf32> to vector<1x32xf32>
    %cst_87 = arith.constant dense<0.000000e+00> : vector<64xf32>
    %230 = vector.multi_reduction <add>, %227, %cst_87 [1] : vector<64x32xf32> to vector<64xf32>
    %231 = vector.shape_cast %230 : vector<64xf32> to vector<64x1xf32>
    %cst_88 = arith.constant 3.200000e+01 : f32
    %232 = vector.broadcast %cst_88 : f32 to vector<64x1xf32>
    %233 = arith.divf %231, %232 : vector<64x1xf32>
    %234 = vector.broadcast %233 : vector<64x1xf32> to vector<64x32xf32>
    %235 = arith.subf %227, %234 : vector<64x32xf32>
    %236 = arith.mulf %235, %235 : vector<64x32xf32>
    %cst_89 = arith.constant dense<0.000000e+00> : vector<64xf32>
    %237 = vector.multi_reduction <add>, %236, %cst_89 [1] : vector<64x32xf32> to vector<64xf32>
    %238 = vector.shape_cast %237 : vector<64xf32> to vector<64x1xf32>
    %cst_90 = arith.constant 3.200000e+01 : f32
    %239 = vector.broadcast %cst_90 : f32 to vector<64x1xf32>
    %240 = arith.divf %238, %239 : vector<64x1xf32>
    %241 = vector.broadcast %233 : vector<64x1xf32> to vector<64x32xf32>
    %242 = arith.subf %227, %241 : vector<64x32xf32>
    %cst_91 = arith.constant 9.99999996E-13 : f32
    %243 = vector.broadcast %cst_91 : f32 to vector<64x1xf32>
    %244 = arith.addf %240, %243 : vector<64x1xf32>
    %245 = math.rsqrt %244 : vector<64x1xf32>
    %246 = vector.broadcast %245 : vector<64x1xf32> to vector<64x32xf32>
    %247 = arith.mulf %242, %246 : vector<64x32xf32>
    %248 = vector.broadcast %228 : vector<1x32xf32> to vector<64x32xf32>
    %249 = arith.mulf %247, %248 : vector<64x32xf32>
    %250 = vector.broadcast %229 : vector<1x32xf32> to vector<64x32xf32>
    %251 = arith.addf %249, %250 : vector<64x32xf32>
    %c1_92 = arith.constant 1 : index
    %c0_93 = arith.constant 0 : index
    %c0_94 = arith.constant 0 : index
    %252 = vector.load %arg8[%c1_92, %c0_93, %c0_94] : memref<2x32x64xf32, #tpu.memory_space<vmem>>, vector<1x32x64xf32>
    %253 = vector.shape_cast %252 : vector<1x32x64xf32> to vector<32x64xf32>
    %cst_95 = arith.constant dense<0.000000e+00> : vector<64x64xf32>
    %254 = tpu.matmul %251, %253, %cst_95 {dimension_numbers = #tpu.dot_dimension_numbers<[1], [0], [0], [1], [0, 0, 1, 1], [], []>} : vector<64x32xf32>, vector<32x64xf32>, vector<64x64xf32> -> vector<64x64xf32>
    %c1_96 = arith.constant 1 : index
    %c0_97 = arith.constant 0 : index
    %c0_98 = arith.constant 0 : index
    %255 = vector.load %arg9[%c1_96, %c0_97, %c0_98] : memref<2x1x64xf32, #tpu.memory_space<vmem>>, vector<1x1x64xf32>
    %256 = vector.shape_cast %255 : vector<1x1x64xf32> to vector<1x64xf32>
    %257 = vector.broadcast %256 : vector<1x64xf32> to vector<64x64xf32>
    %258 = arith.addf %254, %257 : vector<64x64xf32>
    %259 = arith.mulf %258, %258 : vector<64x64xf32>
    %260 = arith.mulf %258, %259 : vector<64x64xf32>
    %cst_99 = arith.constant 4.471500e-02 : f32
    %261 = vector.broadcast %cst_99 : f32 to vector<64x64xf32>
    %262 = arith.mulf %261, %260 : vector<64x64xf32>
    %263 = arith.addf %258, %262 : vector<64x64xf32>
    %cst_100 = arith.constant 0.797884583 : f32
    %264 = vector.broadcast %cst_100 : f32 to vector<64x64xf32>
    %265 = arith.mulf %264, %263 : vector<64x64xf32>
    %266 = math.tanh %265 : vector<64x64xf32>
    %cst_101 = arith.constant 1.000000e+00 : f32
    %267 = vector.broadcast %cst_101 : f32 to vector<64x64xf32>
    %268 = arith.addf %267, %266 : vector<64x64xf32>
    %cst_102 = arith.constant 5.000000e-01 : f32
    %269 = vector.broadcast %cst_102 : f32 to vector<64x64xf32>
    %270 = arith.mulf %269, %268 : vector<64x64xf32>
    %271 = arith.mulf %258, %270 : vector<64x64xf32>
    %c1_103 = arith.constant 1 : index
    %c0_104 = arith.constant 0 : index
    %c0_105 = arith.constant 0 : index
    %272 = vector.load %arg10[%c1_103, %c0_104, %c0_105] : memref<2x64x32xf32, #tpu.memory_space<vmem>>, vector<1x64x32xf32>
    %273 = vector.shape_cast %272 : vector<1x64x32xf32> to vector<64x32xf32>
    %cst_106 = arith.constant dense<0.000000e+00> : vector<64x32xf32>
    %274 = tpu.matmul %271, %273, %cst_106 {dimension_numbers = #tpu.dot_dimension_numbers<[1], [0], [0], [1], [0, 0, 1, 1], [], []>} : vector<64x64xf32>, vector<64x32xf32>, vector<64x32xf32> -> vector<64x32xf32>
    %275 = vector.extract_strided_slice %220 {offsets = [3, 0], sizes = [1, 32], strides = [1, 1]} : vector<6x32xf32> to vector<1x32xf32>
    %276 = vector.broadcast %275 : vector<1x32xf32> to vector<64x32xf32>
    %277 = arith.addf %274, %276 : vector<64x32xf32>
    %278 = arith.addf %277, %251 : vector<64x32xf32>
    %279 = vector.extract_strided_slice %220 {offsets = [4, 0], sizes = [1, 32], strides = [1, 1]} : vector<6x32xf32> to vector<1x32xf32>
    %280 = vector.extract_strided_slice %220 {offsets = [5, 0], sizes = [1, 32], strides = [1, 1]} : vector<6x32xf32> to vector<1x32xf32>
    %cst_107 = arith.constant dense<0.000000e+00> : vector<64xf32>
    %281 = vector.multi_reduction <add>, %278, %cst_107 [1] : vector<64x32xf32> to vector<64xf32>
    %282 = vector.shape_cast %281 : vector<64xf32> to vector<64x1xf32>
    %cst_108 = arith.constant 3.200000e+01 : f32
    %283 = vector.broadcast %cst_108 : f32 to vector<64x1xf32>
    %284 = arith.divf %282, %283 : vector<64x1xf32>
    %285 = vector.broadcast %284 : vector<64x1xf32> to vector<64x32xf32>
    %286 = arith.subf %278, %285 : vector<64x32xf32>
    %287 = arith.mulf %286, %286 : vector<64x32xf32>
    %cst_109 = arith.constant dense<0.000000e+00> : vector<64xf32>
    %288 = vector.multi_reduction <add>, %287, %cst_109 [1] : vector<64x32xf32> to vector<64xf32>
    %289 = vector.shape_cast %288 : vector<64xf32> to vector<64x1xf32>
    %cst_110 = arith.constant 3.200000e+01 : f32
    %290 = vector.broadcast %cst_110 : f32 to vector<64x1xf32>
    %291 = arith.divf %289, %290 : vector<64x1xf32>
    %292 = vector.broadcast %284 : vector<64x1xf32> to vector<64x32xf32>
    %293 = arith.subf %278, %292 : vector<64x32xf32>
    %cst_111 = arith.constant 9.99999996E-13 : f32
    %294 = vector.broadcast %cst_111 : f32 to vector<64x1xf32>
    %295 = arith.addf %291, %294 : vector<64x1xf32>
    %296 = math.rsqrt %295 : vector<64x1xf32>
    %297 = vector.broadcast %296 : vector<64x1xf32> to vector<64x32xf32>
    %298 = arith.mulf %293, %297 : vector<64x32xf32>
    %299 = vector.broadcast %279 : vector<1x32xf32> to vector<64x32xf32>
    %300 = arith.mulf %298, %299 : vector<64x32xf32>
    %301 = vector.broadcast %280 : vector<1x32xf32> to vector<64x32xf32>
    %302 = arith.addf %300, %301 : vector<64x32xf32>
    %303 = tpu.iota {dimensions = array<i32: 0>} : vector<8x64xi32>
    %304 = tpu.iota {dimensions = array<i32: 1>} : vector<8x64xi32>
    %c8_i32 = arith.constant 8 : i32
    %305 = vector.broadcast %c8_i32 : i32 to vector<8x64xi32>
    %306 = arith.muli %303, %305 : vector<8x64xi32>
    %307 = arith.cmpi eq, %304, %306 : vector<8x64xi32>
    %308 = arith.extui %307 : vector<8x64xi1> to vector<8x64xi32>
    %309 = arith.sitofp %308 : vector<8x64xi32> to vector<8x64xf32>
    %cst_112 = arith.constant dense<0.000000e+00> : vector<8x32xf32>
    %310 = tpu.matmul %309, %302, %cst_112 {dimension_numbers = #tpu.dot_dimension_numbers<[1], [0], [0], [1], [0, 0, 1, 1], [], []>} : vector<8x64xf32>, vector<64x32xf32>, vector<8x32xf32> -> vector<8x32xf32>
    %c0_113 = arith.constant 0 : index
    %c0_114 = arith.constant 0 : index
    %311 = vector.load %arg11[%c0_113, %c0_114] : memref<32x32xf32, #tpu.memory_space<vmem>>, vector<32x32xf32>
    %cst_115 = arith.constant dense<0.000000e+00> : vector<8x32xf32>
    %312 = tpu.matmul %310, %311, %cst_115 {dimension_numbers = #tpu.dot_dimension_numbers<[1], [0], [0], [1], [0, 0, 1, 1], [], []>} : vector<8x32xf32>, vector<32x32xf32>, vector<8x32xf32> -> vector<8x32xf32>
    %c0_116 = arith.constant 0 : index
    %c0_117 = arith.constant 0 : index
    %313 = vector.load %arg12[%c0_116, %c0_117] : memref<1x32xf32, #tpu.memory_space<vmem>>, vector<1x32xf32>
    %314 = vector.broadcast %313 : vector<1x32xf32> to vector<8x32xf32>
    %315 = arith.addf %312, %314 : vector<8x32xf32>
    %316 = math.tanh %315 : vector<8x32xf32>
    %317 = arith.mulf %316, %316 : vector<8x32xf32>
    %cst_118 = arith.constant dense<0.000000e+00> : vector<8xf32>
    %318 = vector.multi_reduction <add>, %317, %cst_118 [1] : vector<8x32xf32> to vector<8xf32>
    %319 = vector.shape_cast %318 : vector<8xf32> to vector<8x1xf32>
    %cst_119 = arith.constant 1.000000e-24 : f32
    %320 = vector.broadcast %cst_119 : f32 to vector<8x1xf32>
    %321 = arith.maximumf %319, %320 : vector<8x1xf32>
    %322 = math.rsqrt %321 : vector<8x1xf32>
    %323 = vector.broadcast %322 : vector<8x1xf32> to vector<8x32xf32>
    %324 = arith.mulf %316, %323 : vector<8x32xf32>
    %c0_120 = arith.constant 0 : index
    %c0_121 = arith.constant 0 : index
    %325 = vector.load %arg13[%c0_120, %c0_121] : memref<8x32xf32, #tpu.memory_space<vmem>>, vector<8x32xf32>
    tpu.vector_store %arg13[%c0_120, %c0_121], %324 {strides = array<i32>} : memref<8x32xf32, #tpu.memory_space<vmem>>, vector<8x32xf32>,
    %326 = vector.extract_strided_slice %324 {offsets = [0, 0], sizes = [2, 32], strides = [1, 1]} : vector<8x32xf32> to vector<2x32xf32>
    %327 = vector.extract_strided_slice %324 {offsets = [2, 0], sizes = [6, 32], strides = [1, 1]} : vector<8x32xf32> to vector<6x32xf32>
    %cst_122 = arith.constant dense<0.000000e+00> : vector<6x2xf32>
    %328 = tpu.matmul %327, %326, %cst_122 {dimension_numbers = #tpu.dot_dimension_numbers<[1], [1], [0], [0], [0, 0, 1, 0], [], []>} : vector<6x32xf32>, vector<2x32xf32>, vector<6x2xf32> -> vector<6x2xf32>
    %329 = tpu.iota {dimensions = array<i32: 0>} : vector<6x2xi32>
    %330 = tpu.iota {dimensions = array<i32: 1>} : vector<6x2xi32>
    %c3_i32 = arith.constant 3 : i32
    %331 = vector.broadcast %c3_i32 : i32 to vector<6x2xi32>
    %332 = arith.muli %330, %331 : vector<6x2xi32>
    %333 = arith.cmpi sge, %329, %332 : vector<6x2xi32>
    %c1_i32 = arith.constant 1 : i32
    %334 = vector.broadcast %c1_i32 : i32 to vector<6x2xi32>
    %335 = arith.addi %330, %334 : vector<6x2xi32>
    %c3_i32_123 = arith.constant 3 : i32
    %336 = vector.broadcast %c3_i32_123 : i32 to vector<6x2xi32>
    %337 = arith.muli %335, %336 : vector<6x2xi32>
    %338 = arith.cmpi slt, %329, %337 : vector<6x2xi32>
    %339 = arith.andi %333, %338 : vector<6x2xi1>
    %cst_124 = arith.constant 0.000000e+00 : f32
    %340 = vector.broadcast %cst_124 : f32 to vector<6x2xf32>
    %341 = arith.select %339, %328, %340 : vector<6x2xi1>, vector<6x2xf32>
    %cst_125 = arith.constant dense<0.000000e+00> : vector<6xf32>
    %342 = vector.multi_reduction <add>, %341, %cst_125 [1] : vector<6x2xf32> to vector<6xf32>
    %343 = vector.shape_cast %342 : vector<6xf32> to vector<6x1xf32>
    %c0_126 = arith.constant 0 : index
    %c0_127 = arith.constant 0 : index
    %344 = vector.load %arg14[%c0_126, %c0_127] : memref<6x1xf32, #tpu.memory_space<vmem>>, vector<6x1xf32>
    tpu.vector_store %arg14[%c0_126, %c0_127], %343 {strides = array<i32>} : memref<6x1xf32, #tpu.memory_space<vmem>>, vector<6x1xf32>,
    return
  }
  func.func @transform_0(%arg0: i32) -> (i32, i32) {
    %c0_i32 = arith.constant 0 : i32
    %c0_i32_0 = arith.constant 0 : i32
    %c0_i32_1 = arith.constant 0 : i32
    return %c0_i32, %c0_i32_0 : i32, i32
  }
  func.func @transform_1(%arg0: i32) -> (i32, i32) {
    %c0_i32 = arith.constant 0 : i32
    %c0_i32_0 = arith.constant 0 : i32
    %c0_i32_1 = arith.constant 0 : i32
    return %c0_i32, %c0_i32_0 : i32, i32
  }
  func.func @transform_2(%arg0: i32) -> (i32, i32) {
    %c0_i32 = arith.constant 0 : i32
    %c0_i32_0 = arith.constant 0 : i32
    %c0_i32_1 = arith.constant 0 : i32
    return %c0_i32, %c0_i32_0 : i32, i32
  }
  func.func @transform_3(%arg0: i32) -> (i32, i32, i32) {
    %c0_i32 = arith.constant 0 : i32
    %c0_i32_0 = arith.constant 0 : i32
    %c0_i32_1 = arith.constant 0 : i32
    %c0_i32_2 = arith.constant 0 : i32
    return %c0_i32, %c0_i32_0, %c0_i32_1 : i32, i32, i32
  }
  func.func @transform_4(%arg0: i32) -> (i32, i32, i32) {
    %c0_i32 = arith.constant 0 : i32
    %c0_i32_0 = arith.constant 0 : i32
    %c0_i32_1 = arith.constant 0 : i32
    %c0_i32_2 = arith.constant 0 : i32
    return %c0_i32, %c0_i32_0, %c0_i32_1 : i32, i32, i32
  }
  func.func @transform_5(%arg0: i32) -> (i32, i32, i32) {
    %c0_i32 = arith.constant 0 : i32
    %c0_i32_0 = arith.constant 0 : i32
    %c0_i32_1 = arith.constant 0 : i32
    %c0_i32_2 = arith.constant 0 : i32
    return %c0_i32, %c0_i32_0, %c0_i32_1 : i32, i32, i32
  }
  func.func @transform_6(%arg0: i32) -> (i32, i32, i32) {
    %c0_i32 = arith.constant 0 : i32
    %c0_i32_0 = arith.constant 0 : i32
    %c0_i32_1 = arith.constant 0 : i32
    %c0_i32_2 = arith.constant 0 : i32
    return %c0_i32, %c0_i32_0, %c0_i32_1 : i32, i32, i32
  }
  func.func @transform_7(%arg0: i32) -> (i32, i32, i32) {
    %c0_i32 = arith.constant 0 : i32
    %c0_i32_0 = arith.constant 0 : i32
    %c0_i32_1 = arith.constant 0 : i32
    %c0_i32_2 = arith.constant 0 : i32
    return %c0_i32, %c0_i32_0, %c0_i32_1 : i32, i32, i32
  }
  func.func @transform_8(%arg0: i32) -> (i32, i32, i32) {
    %c0_i32 = arith.constant 0 : i32
    %c0_i32_0 = arith.constant 0 : i32
    %c0_i32_1 = arith.constant 0 : i32
    %c0_i32_2 = arith.constant 0 : i32
    return %c0_i32, %c0_i32_0, %c0_i32_1 : i32, i32, i32
  }
  func.func @transform_9(%arg0: i32) -> (i32, i32, i32) {
    %c0_i32 = arith.constant 0 : i32
    %c0_i32_0 = arith.constant 0 : i32
    %c0_i32_1 = arith.constant 0 : i32
    %c0_i32_2 = arith.constant 0 : i32
    return %c0_i32, %c0_i32_0, %c0_i32_1 : i32, i32, i32
  }
  func.func @transform_10(%arg0: i32) -> (i32, i32) {
    %c0_i32 = arith.constant 0 : i32
    %c0_i32_0 = arith.constant 0 : i32
    %c0_i32_1 = arith.constant 0 : i32
    return %c0_i32, %c0_i32_0 : i32, i32
  }
  func.func @transform_11(%arg0: i32) -> (i32, i32) {
    %c0_i32 = arith.constant 0 : i32
    %c0_i32_0 = arith.constant 0 : i32
    %c0_i32_1 = arith.constant 0 : i32
    return %c0_i32, %c0_i32_0 : i32, i32
  }
  func.func @transform_12(%arg0: i32) -> (i32, i32) {
    %c0_i32 = arith.constant 0 : i32
    %c0_i32_0 = arith.constant 0 : i32
    %c0_i32_1 = arith.constant 0 : i32
    return %c0_i32, %c0_i32_0 : i32, i32
  }
  func.func @transform_13(%arg0: i32) -> (i32, i32) {
    %c0_i32 = arith.constant 0 : i32
    %c0_i32_0 = arith.constant 0 : i32
    %c0_i32_1 = arith.constant 0 : i32
    return %c0_i32, %c0_i32_0 : i32, i32
  }
}

module attributes {stable_mosaic.version = 11 : i64} {
  func.func @_enc_key_logits_kernel(%arg0: i32, %arg1: memref<16x32xf32, #tpu.memory_space<vmem>>, %arg2: memref<1x16xf32, #tpu.memory_space<vmem>>, %arg3: memref<2x32xf32, #tpu.memory_space<vmem>>, %arg4: memref<32x8xf32, #tpu.memory_space<vmem>>, %arg5: memref<2x32xf32, #tpu.memory_space<vmem>>, %arg6: memref<2x32x96xf32, #tpu.memory_space<vmem>>, %arg7: memref<2x1x96xf32, #tpu.memory_space<vmem>>, %arg8: memref<2x32x32xf32, #tpu.memory_space<vmem>>, %arg9: memref<2x6x32xf32, #tpu.memory_space<vmem>>, %arg10: memref<2x32x64xf32, #tpu.memory_space<vmem>>, %arg11: memref<2x1x64xf32, #tpu.memory_space<vmem>>, %arg12: memref<2x64x32xf32, #tpu.memory_space<vmem>>, %arg13: memref<32x32xf32, #tpu.memory_space<vmem>>, %arg14: memref<1x32xf32, #tpu.memory_space<vmem>>, %arg15: memref<2x32xf32, #tpu.memory_space<vmem>>, %arg16: memref<2x9xf32, #tpu.memory_space<vmem>>) attributes {dimension_semantics = [#tpu.dimension_semantics<arbitrary>], iteration_bounds = array<i64: 1>, scalar_prefetch = 0 : i64, scratch_operands = 0 : i64, tpu.core_type = #tpu.core_type<tc>, window_params = [{pipeline_mode = #tpu.pipeline_mode<synchronous>, transform_indices = @transform_0, window_bounds = array<i64: 16, 32>}, {pipeline_mode = #tpu.pipeline_mode<synchronous>, transform_indices = @transform_1, window_bounds = array<i64: 1, 16>}, {pipeline_mode = #tpu.pipeline_mode<synchronous>, transform_indices = @transform_2, window_bounds = array<i64: 2, 32>}, {pipeline_mode = #tpu.pipeline_mode<synchronous>, transform_indices = @transform_3, window_bounds = array<i64: 32, 8>}, {pipeline_mode = #tpu.pipeline_mode<synchronous>, transform_indices = @transform_4, window_bounds = array<i64: 2, 32>}, {pipeline_mode = #tpu.pipeline_mode<synchronous>, transform_indices = @transform_5, window_bounds = array<i64: 2, 32, 96>}, {pipeline_mode = #tpu.pipeline_mode<synchronous>, transform_indices = @transform_6, window_bounds = array<i64: 2, 1, 96>}, {pipeline_mode = #tpu.pipeline_mode<synchronous>, transform_indices = @transform_7, window_bounds = array<i64: 2, 32, 32>}, {pipeline_mode = #tpu.pipeline_mode<synchronous>, transform_indices = @transform_8, window_bounds = array<i64: 2, 6, 32>}, {pipeline_mode = #tpu.pipeline_mode<synchronous>, transform_indices = @transform_9, window_bounds = array<i64: 2, 32, 64>}, {pipeline_mode = #tpu.pipeline_mode<synchronous>, transform_indices = @transform_10, window_bounds = array<i64: 2, 1, 64>}, {pipeline_mode = #tpu.pipeline_mode<synchronous>, transform_indices = @transform_11, window_bounds = array<i64: 2, 64, 32>}, {pipeline_mode = #tpu.pipeline_mode<synchronous>, transform_indices = @transform_12, window_bounds = array<i64: 32, 32>}, {pipeline_mode = #tpu.pipeline_mode<synchronous>, transform_indices = @transform_13, window_bounds = array<i64: 1, 32>}, {pipeline_mode = #tpu.pipeline_mode<synchronous>, transform_indices = @transform_14, window_bounds = array<i64: 2, 32>}, {pipeline_mode = #tpu.pipeline_mode<synchronous>, transform_indices = @transform_15, window_bounds = array<i64: 2, 9>}]} {
    %c0 = arith.constant 0 : index
    %c0_0 = arith.constant 0 : index
    %0 = vector.load %arg5[%c0, %c0_0] : memref<2x32xf32, #tpu.memory_space<vmem>>, vector<2x32xf32>
    %c0_1 = arith.constant 0 : index
    %c0_2 = arith.constant 0 : index
    %1 = vector.load %arg1[%c0_1, %c0_2] : memref<16x32xf32, #tpu.memory_space<vmem>>, vector<16x32xf32>
    %2 = vector.extract_strided_slice %0 {offsets = [0, 0], sizes = [1, 32], strides = [1, 1]} : vector<2x32xf32> to vector<1x32xf32>
    %3 = vector.extract_strided_slice %0 {offsets = [1, 0], sizes = [1, 32], strides = [1, 1]} : vector<2x32xf32> to vector<1x32xf32>
    %cst = arith.constant dense<0.000000e+00> : vector<16xf32>
    %4 = vector.multi_reduction <add>, %1, %cst [1] : vector<16x32xf32> to vector<16xf32>
    %5 = vector.shape_cast %4 : vector<16xf32> to vector<16x1xf32>
    %cst_3 = arith.constant 3.200000e+01 : f32
    %6 = vector.broadcast %cst_3 : f32 to vector<16x1xf32>
    %7 = arith.divf %5, %6 : vector<16x1xf32>
    %8 = vector.broadcast %7 : vector<16x1xf32> to vector<16x32xf32>
    %9 = arith.subf %1, %8 : vector<16x32xf32>
    %10 = arith.mulf %9, %9 : vector<16x32xf32>
    %cst_4 = arith.constant dense<0.000000e+00> : vector<16xf32>
    %11 = vector.multi_reduction <add>, %10, %cst_4 [1] : vector<16x32xf32> to vector<16xf32>
    %12 = vector.shape_cast %11 : vector<16xf32> to vector<16x1xf32>
    %cst_5 = arith.constant 3.200000e+01 : f32
    %13 = vector.broadcast %cst_5 : f32 to vector<16x1xf32>
    %14 = arith.divf %12, %13 : vector<16x1xf32>
    %15 = vector.broadcast %7 : vector<16x1xf32> to vector<16x32xf32>
    %16 = arith.subf %1, %15 : vector<16x32xf32>
    %cst_6 = arith.constant 9.99999996E-13 : f32
    %17 = vector.broadcast %cst_6 : f32 to vector<16x1xf32>
    %18 = arith.addf %14, %17 : vector<16x1xf32>
    %19 = math.rsqrt %18 : vector<16x1xf32>
    %20 = vector.broadcast %19 : vector<16x1xf32> to vector<16x32xf32>
    %21 = arith.mulf %16, %20 : vector<16x32xf32>
    %22 = vector.broadcast %2 : vector<1x32xf32> to vector<16x32xf32>
    %23 = arith.mulf %21, %22 : vector<16x32xf32>
    %24 = vector.broadcast %3 : vector<1x32xf32> to vector<16x32xf32>
    %25 = arith.addf %23, %24 : vector<16x32xf32>
    %26 = tpu.iota {dimensions = array<i32: 0>} : vector<16x16xi32>
    %27 = arith.sitofp %26 : vector<16x16xi32> to vector<16x16xf32>
    %28 = tpu.iota {dimensions = array<i32: 1>} : vector<16x16xi32>
    %29 = arith.sitofp %28 : vector<16x16xi32> to vector<16x16xf32>
    %cst_7 = arith.constant 1.250000e-01 : f32
    %30 = vector.broadcast %cst_7 : f32 to vector<16x16xf32>
    %31 = arith.mulf %27, %30 : vector<16x16xf32>
    %32 = math.floor %31 : vector<16x16xf32>
    %cst_8 = arith.constant 1.250000e-01 : f32
    %33 = vector.broadcast %cst_8 : f32 to vector<16x16xf32>
    %34 = arith.mulf %29, %33 : vector<16x16xf32>
    %35 = math.floor %34 : vector<16x16xf32>
    %36 = arith.cmpf oeq, %32, %35 : vector<16x16xf32>
    %cst_9 = arith.constant 0.000000e+00 : f32
    %cst_10 = arith.constant -1.000000e+09 : f32
    %37 = vector.broadcast %cst_9 : f32 to vector<16x16xf32>
    %38 = vector.broadcast %cst_10 : f32 to vector<16x16xf32>
    %39 = arith.select %36, %37, %38 : vector<16x16xi1>, vector<16x16xf32>
    %c0_11 = arith.constant 0 : index
    %c0_12 = arith.constant 0 : index
    %40 = vector.load %arg2[%c0_11, %c0_12] : memref<1x16xf32, #tpu.memory_space<vmem>>, vector<1x16xf32>
    %cst_13 = arith.constant 1.000000e+00 : f32
    %41 = vector.broadcast %cst_13 : f32 to vector<1x16xf32>
    %42 = arith.subf %40, %41 : vector<1x16xf32>
    %cst_14 = arith.constant 1.000000e+04 : f32
    %43 = vector.broadcast %cst_14 : f32 to vector<1x16xf32>
    %44 = arith.mulf %42, %43 : vector<1x16xf32>
    %45 = vector.broadcast %44 : vector<1x16xf32> to vector<16x16xf32>
    %46 = arith.addf %39, %45 : vector<16x16xf32>
    %c0_15 = arith.constant 0 : index
    %c0_16 = arith.constant 0 : index
    %c0_17 = arith.constant 0 : index
    %47 = vector.load %arg6[%c0_15, %c0_16, %c0_17] : memref<2x32x96xf32, #tpu.memory_space<vmem>>, vector<1x32x96xf32>
    %48 = vector.shape_cast %47 : vector<1x32x96xf32> to vector<32x96xf32>
    %cst_18 = arith.constant dense<0.000000e+00> : vector<16x96xf32>
    %49 = tpu.matmul %25, %48, %cst_18 {dimension_numbers = #tpu.dot_dimension_numbers<[1], [0], [0], [1], [0, 0, 1, 1], [], []>} : vector<16x32xf32>, vector<32x96xf32>, vector<16x96xf32> -> vector<16x96xf32>
    %c0_19 = arith.constant 0 : index
    %c0_20 = arith.constant 0 : index
    %c0_21 = arith.constant 0 : index
    %50 = vector.load %arg7[%c0_19, %c0_20, %c0_21] : memref<2x1x96xf32, #tpu.memory_space<vmem>>, vector<1x1x96xf32>
    %51 = vector.shape_cast %50 : vector<1x1x96xf32> to vector<1x96xf32>
    %52 = vector.broadcast %51 : vector<1x96xf32> to vector<16x96xf32>
    %53 = arith.addf %49, %52 : vector<16x96xf32>
    %54 = vector.extract_strided_slice %53 {offsets = [0, 0], sizes = [16, 16], strides = [1, 1]} : vector<16x96xf32> to vector<16x16xf32>
    %55 = vector.extract_strided_slice %53 {offsets = [0, 32], sizes = [16, 16], strides = [1, 1]} : vector<16x96xf32> to vector<16x16xf32>
    %56 = vector.extract_strided_slice %53 {offsets = [0, 64], sizes = [16, 16], strides = [1, 1]} : vector<16x96xf32> to vector<16x16xf32>
    %cst_22 = arith.constant dense<0.000000e+00> : vector<16x16xf32>
    %57 = tpu.matmul %54, %55, %cst_22 {dimension_numbers = #tpu.dot_dimension_numbers<[1], [1], [0], [0], [0, 0, 1, 0], [], []>} : vector<16x16xf32>, vector<16x16xf32>, vector<16x16xf32> -> vector<16x16xf32>
    %cst_23 = arith.constant 2.500000e-01 : f32
    %58 = vector.broadcast %cst_23 : f32 to vector<16x16xf32>
    %59 = arith.mulf %57, %58 : vector<16x16xf32>
    %60 = arith.addf %59, %46 : vector<16x16xf32>
    %cst_24 = arith.constant dense<0xFF800000> : vector<16xf32>
    %61 = vector.multi_reduction <maximumf>, %60, %cst_24 [1] : vector<16x16xf32> to vector<16xf32>
    %62 = vector.shape_cast %61 : vector<16xf32> to vector<16x1xf32>
    %63 = vector.broadcast %62 : vector<16x1xf32> to vector<16x16xf32>
    %64 = arith.subf %60, %63 : vector<16x16xf32>
    %65 = math.exp %64 : vector<16x16xf32>
    %cst_25 = arith.constant dense<0.000000e+00> : vector<16xf32>
    %66 = vector.multi_reduction <add>, %65, %cst_25 [1] : vector<16x16xf32> to vector<16xf32>
    %67 = vector.shape_cast %66 : vector<16xf32> to vector<16x1xf32>
    %68 = tpu.reciprocal %67 {approx = true} : vector<16x1xf32> -> vector<16x1xf32>
    %69 = vector.broadcast %68 : vector<16x1xf32> to vector<16x16xf32>
    %70 = arith.mulf %65, %69 : vector<16x16xf32>
    %cst_26 = arith.constant dense<0.000000e+00> : vector<16x16xf32>
    %71 = tpu.matmul %70, %56, %cst_26 {dimension_numbers = #tpu.dot_dimension_numbers<[1], [0], [0], [1], [0, 0, 1, 1], [], []>} : vector<16x16xf32>, vector<16x16xf32>, vector<16x16xf32> -> vector<16x16xf32>
    %72 = vector.extract_strided_slice %53 {offsets = [0, 16], sizes = [16, 16], strides = [1, 1]} : vector<16x96xf32> to vector<16x16xf32>
    %73 = vector.extract_strided_slice %53 {offsets = [0, 48], sizes = [16, 16], strides = [1, 1]} : vector<16x96xf32> to vector<16x16xf32>
    %74 = vector.extract_strided_slice %53 {offsets = [0, 80], sizes = [16, 16], strides = [1, 1]} : vector<16x96xf32> to vector<16x16xf32>
    %cst_27 = arith.constant dense<0.000000e+00> : vector<16x16xf32>
    %75 = tpu.matmul %72, %73, %cst_27 {dimension_numbers = #tpu.dot_dimension_numbers<[1], [1], [0], [0], [0, 0, 1, 0], [], []>} : vector<16x16xf32>, vector<16x16xf32>, vector<16x16xf32> -> vector<16x16xf32>
    %cst_28 = arith.constant 2.500000e-01 : f32
    %76 = vector.broadcast %cst_28 : f32 to vector<16x16xf32>
    %77 = arith.mulf %75, %76 : vector<16x16xf32>
    %78 = arith.addf %77, %46 : vector<16x16xf32>
    %cst_29 = arith.constant dense<0xFF800000> : vector<16xf32>
    %79 = vector.multi_reduction <maximumf>, %78, %cst_29 [1] : vector<16x16xf32> to vector<16xf32>
    %80 = vector.shape_cast %79 : vector<16xf32> to vector<16x1xf32>
    %81 = vector.broadcast %80 : vector<16x1xf32> to vector<16x16xf32>
    %82 = arith.subf %78, %81 : vector<16x16xf32>
    %83 = math.exp %82 : vector<16x16xf32>
    %cst_30 = arith.constant dense<0.000000e+00> : vector<16xf32>
    %84 = vector.multi_reduction <add>, %83, %cst_30 [1] : vector<16x16xf32> to vector<16xf32>
    %85 = vector.shape_cast %84 : vector<16xf32> to vector<16x1xf32>
    %86 = tpu.reciprocal %85 {approx = true} : vector<16x1xf32> -> vector<16x1xf32>
    %87 = vector.broadcast %86 : vector<16x1xf32> to vector<16x16xf32>
    %88 = arith.mulf %83, %87 : vector<16x16xf32>
    %cst_31 = arith.constant dense<0.000000e+00> : vector<16x16xf32>
    %89 = tpu.matmul %88, %74, %cst_31 {dimension_numbers = #tpu.dot_dimension_numbers<[1], [0], [0], [1], [0, 0, 1, 1], [], []>} : vector<16x16xf32>, vector<16x16xf32>, vector<16x16xf32> -> vector<16x16xf32>
    %90 = tpu.concatenate %71, %89 in 1 : vector<16x16xf32>, vector<16x16xf32> -> vector<16x32xf32>
    %c0_32 = arith.constant 0 : index
    %c0_33 = arith.constant 0 : index
    %c0_34 = arith.constant 0 : index
    %91 = vector.load %arg9[%c0_32, %c0_33, %c0_34] : memref<2x6x32xf32, #tpu.memory_space<vmem>>, vector<1x6x32xf32>
    %92 = vector.shape_cast %91 : vector<1x6x32xf32> to vector<6x32xf32>
    %c0_35 = arith.constant 0 : index
    %c0_36 = arith.constant 0 : index
    %c0_37 = arith.constant 0 : index
    %93 = vector.load %arg8[%c0_35, %c0_36, %c0_37] : memref<2x32x32xf32, #tpu.memory_space<vmem>>, vector<1x32x32xf32>
    %94 = vector.shape_cast %93 : vector<1x32x32xf32> to vector<32x32xf32>
    %cst_38 = arith.constant dense<0.000000e+00> : vector<16x32xf32>
    %95 = tpu.matmul %90, %94, %cst_38 {dimension_numbers = #tpu.dot_dimension_numbers<[1], [0], [0], [1], [0, 0, 1, 1], [], []>} : vector<16x32xf32>, vector<32x32xf32>, vector<16x32xf32> -> vector<16x32xf32>
    %96 = vector.extract_strided_slice %92 {offsets = [0, 0], sizes = [1, 32], strides = [1, 1]} : vector<6x32xf32> to vector<1x32xf32>
    %97 = vector.broadcast %96 : vector<1x32xf32> to vector<16x32xf32>
    %98 = arith.addf %95, %97 : vector<16x32xf32>
    %99 = arith.addf %98, %25 : vector<16x32xf32>
    %100 = vector.extract_strided_slice %92 {offsets = [1, 0], sizes = [1, 32], strides = [1, 1]} : vector<6x32xf32> to vector<1x32xf32>
    %101 = vector.extract_strided_slice %92 {offsets = [2, 0], sizes = [1, 32], strides = [1, 1]} : vector<6x32xf32> to vector<1x32xf32>
    %cst_39 = arith.constant dense<0.000000e+00> : vector<16xf32>
    %102 = vector.multi_reduction <add>, %99, %cst_39 [1] : vector<16x32xf32> to vector<16xf32>
    %103 = vector.shape_cast %102 : vector<16xf32> to vector<16x1xf32>
    %cst_40 = arith.constant 3.200000e+01 : f32
    %104 = vector.broadcast %cst_40 : f32 to vector<16x1xf32>
    %105 = arith.divf %103, %104 : vector<16x1xf32>
    %106 = vector.broadcast %105 : vector<16x1xf32> to vector<16x32xf32>
    %107 = arith.subf %99, %106 : vector<16x32xf32>
    %108 = arith.mulf %107, %107 : vector<16x32xf32>
    %cst_41 = arith.constant dense<0.000000e+00> : vector<16xf32>
    %109 = vector.multi_reduction <add>, %108, %cst_41 [1] : vector<16x32xf32> to vector<16xf32>
    %110 = vector.shape_cast %109 : vector<16xf32> to vector<16x1xf32>
    %cst_42 = arith.constant 3.200000e+01 : f32
    %111 = vector.broadcast %cst_42 : f32 to vector<16x1xf32>
    %112 = arith.divf %110, %111 : vector<16x1xf32>
    %113 = vector.broadcast %105 : vector<16x1xf32> to vector<16x32xf32>
    %114 = arith.subf %99, %113 : vector<16x32xf32>
    %cst_43 = arith.constant 9.99999996E-13 : f32
    %115 = vector.broadcast %cst_43 : f32 to vector<16x1xf32>
    %116 = arith.addf %112, %115 : vector<16x1xf32>
    %117 = math.rsqrt %116 : vector<16x1xf32>
    %118 = vector.broadcast %117 : vector<16x1xf32> to vector<16x32xf32>
    %119 = arith.mulf %114, %118 : vector<16x32xf32>
    %120 = vector.broadcast %100 : vector<1x32xf32> to vector<16x32xf32>
    %121 = arith.mulf %119, %120 : vector<16x32xf32>
    %122 = vector.broadcast %101 : vector<1x32xf32> to vector<16x32xf32>
    %123 = arith.addf %121, %122 : vector<16x32xf32>
    %c0_44 = arith.constant 0 : index
    %c0_45 = arith.constant 0 : index
    %c0_46 = arith.constant 0 : index
    %124 = vector.load %arg10[%c0_44, %c0_45, %c0_46] : memref<2x32x64xf32, #tpu.memory_space<vmem>>, vector<1x32x64xf32>
    %125 = vector.shape_cast %124 : vector<1x32x64xf32> to vector<32x64xf32>
    %cst_47 = arith.constant dense<0.000000e+00> : vector<16x64xf32>
    %126 = tpu.matmul %123, %125, %cst_47 {dimension_numbers = #tpu.dot_dimension_numbers<[1], [0], [0], [1], [0, 0, 1, 1], [], []>} : vector<16x32xf32>, vector<32x64xf32>, vector<16x64xf32> -> vector<16x64xf32>
    %c0_48 = arith.constant 0 : index
    %c0_49 = arith.constant 0 : index
    %c0_50 = arith.constant 0 : index
    %127 = vector.load %arg11[%c0_48, %c0_49, %c0_50] : memref<2x1x64xf32, #tpu.memory_space<vmem>>, vector<1x1x64xf32>
    %128 = vector.shape_cast %127 : vector<1x1x64xf32> to vector<1x64xf32>
    %129 = vector.broadcast %128 : vector<1x64xf32> to vector<16x64xf32>
    %130 = arith.addf %126, %129 : vector<16x64xf32>
    %131 = arith.mulf %130, %130 : vector<16x64xf32>
    %132 = arith.mulf %130, %131 : vector<16x64xf32>
    %cst_51 = arith.constant 4.471500e-02 : f32
    %133 = vector.broadcast %cst_51 : f32 to vector<16x64xf32>
    %134 = arith.mulf %133, %132 : vector<16x64xf32>
    %135 = arith.addf %130, %134 : vector<16x64xf32>
    %cst_52 = arith.constant 0.797884583 : f32
    %136 = vector.broadcast %cst_52 : f32 to vector<16x64xf32>
    %137 = arith.mulf %136, %135 : vector<16x64xf32>
    %138 = math.tanh %137 : vector<16x64xf32>
    %cst_53 = arith.constant 1.000000e+00 : f32
    %139 = vector.broadcast %cst_53 : f32 to vector<16x64xf32>
    %140 = arith.addf %139, %138 : vector<16x64xf32>
    %cst_54 = arith.constant 5.000000e-01 : f32
    %141 = vector.broadcast %cst_54 : f32 to vector<16x64xf32>
    %142 = arith.mulf %141, %140 : vector<16x64xf32>
    %143 = arith.mulf %130, %142 : vector<16x64xf32>
    %c0_55 = arith.constant 0 : index
    %c0_56 = arith.constant 0 : index
    %c0_57 = arith.constant 0 : index
    %144 = vector.load %arg12[%c0_55, %c0_56, %c0_57] : memref<2x64x32xf32, #tpu.memory_space<vmem>>, vector<1x64x32xf32>
    %145 = vector.shape_cast %144 : vector<1x64x32xf32> to vector<64x32xf32>
    %cst_58 = arith.constant dense<0.000000e+00> : vector<16x32xf32>
    %146 = tpu.matmul %143, %145, %cst_58 {dimension_numbers = #tpu.dot_dimension_numbers<[1], [0], [0], [1], [0, 0, 1, 1], [], []>} : vector<16x64xf32>, vector<64x32xf32>, vector<16x32xf32> -> vector<16x32xf32>
    %147 = vector.extract_strided_slice %92 {offsets = [3, 0], sizes = [1, 32], strides = [1, 1]} : vector<6x32xf32> to vector<1x32xf32>
    %148 = vector.broadcast %147 : vector<1x32xf32> to vector<16x32xf32>
    %149 = arith.addf %146, %148 : vector<16x32xf32>
    %150 = arith.addf %149, %123 : vector<16x32xf32>
    %151 = vector.extract_strided_slice %92 {offsets = [4, 0], sizes = [1, 32], strides = [1, 1]} : vector<6x32xf32> to vector<1x32xf32>
    %152 = vector.extract_strided_slice %92 {offsets = [5, 0], sizes = [1, 32], strides = [1, 1]} : vector<6x32xf32> to vector<1x32xf32>
    %cst_59 = arith.constant dense<0.000000e+00> : vector<16xf32>
    %153 = vector.multi_reduction <add>, %150, %cst_59 [1] : vector<16x32xf32> to vector<16xf32>
    %154 = vector.shape_cast %153 : vector<16xf32> to vector<16x1xf32>
    %cst_60 = arith.constant 3.200000e+01 : f32
    %155 = vector.broadcast %cst_60 : f32 to vector<16x1xf32>
    %156 = arith.divf %154, %155 : vector<16x1xf32>
    %157 = vector.broadcast %156 : vector<16x1xf32> to vector<16x32xf32>
    %158 = arith.subf %150, %157 : vector<16x32xf32>
    %159 = arith.mulf %158, %158 : vector<16x32xf32>
    %cst_61 = arith.constant dense<0.000000e+00> : vector<16xf32>
    %160 = vector.multi_reduction <add>, %159, %cst_61 [1] : vector<16x32xf32> to vector<16xf32>
    %161 = vector.shape_cast %160 : vector<16xf32> to vector<16x1xf32>
    %cst_62 = arith.constant 3.200000e+01 : f32
    %162 = vector.broadcast %cst_62 : f32 to vector<16x1xf32>
    %163 = arith.divf %161, %162 : vector<16x1xf32>
    %164 = vector.broadcast %156 : vector<16x1xf32> to vector<16x32xf32>
    %165 = arith.subf %150, %164 : vector<16x32xf32>
    %cst_63 = arith.constant 9.99999996E-13 : f32
    %166 = vector.broadcast %cst_63 : f32 to vector<16x1xf32>
    %167 = arith.addf %163, %166 : vector<16x1xf32>
    %168 = math.rsqrt %167 : vector<16x1xf32>
    %169 = vector.broadcast %168 : vector<16x1xf32> to vector<16x32xf32>
    %170 = arith.mulf %165, %169 : vector<16x32xf32>
    %171 = vector.broadcast %151 : vector<1x32xf32> to vector<16x32xf32>
    %172 = arith.mulf %170, %171 : vector<16x32xf32>
    %173 = vector.broadcast %152 : vector<1x32xf32> to vector<16x32xf32>
    %174 = arith.addf %172, %173 : vector<16x32xf32>
    %c1 = arith.constant 1 : index
    %c0_64 = arith.constant 0 : index
    %c0_65 = arith.constant 0 : index
    %175 = vector.load %arg6[%c1, %c0_64, %c0_65] : memref<2x32x96xf32, #tpu.memory_space<vmem>>, vector<1x32x96xf32>
    %176 = vector.shape_cast %175 : vector<1x32x96xf32> to vector<32x96xf32>
    %cst_66 = arith.constant dense<0.000000e+00> : vector<16x96xf32>
    %177 = tpu.matmul %174, %176, %cst_66 {dimension_numbers = #tpu.dot_dimension_numbers<[1], [0], [0], [1], [0, 0, 1, 1], [], []>} : vector<16x32xf32>, vector<32x96xf32>, vector<16x96xf32> -> vector<16x96xf32>
    %c1_67 = arith.constant 1 : index
    %c0_68 = arith.constant 0 : index
    %c0_69 = arith.constant 0 : index
    %178 = vector.load %arg7[%c1_67, %c0_68, %c0_69] : memref<2x1x96xf32, #tpu.memory_space<vmem>>, vector<1x1x96xf32>
    %179 = vector.shape_cast %178 : vector<1x1x96xf32> to vector<1x96xf32>
    %180 = vector.broadcast %179 : vector<1x96xf32> to vector<16x96xf32>
    %181 = arith.addf %177, %180 : vector<16x96xf32>
    %182 = vector.extract_strided_slice %181 {offsets = [0, 0], sizes = [16, 16], strides = [1, 1]} : vector<16x96xf32> to vector<16x16xf32>
    %183 = vector.extract_strided_slice %181 {offsets = [0, 32], sizes = [16, 16], strides = [1, 1]} : vector<16x96xf32> to vector<16x16xf32>
    %184 = vector.extract_strided_slice %181 {offsets = [0, 64], sizes = [16, 16], strides = [1, 1]} : vector<16x96xf32> to vector<16x16xf32>
    %cst_70 = arith.constant dense<0.000000e+00> : vector<16x16xf32>
    %185 = tpu.matmul %182, %183, %cst_70 {dimension_numbers = #tpu.dot_dimension_numbers<[1], [1], [0], [0], [0, 0, 1, 0], [], []>} : vector<16x16xf32>, vector<16x16xf32>, vector<16x16xf32> -> vector<16x16xf32>
    %cst_71 = arith.constant 2.500000e-01 : f32
    %186 = vector.broadcast %cst_71 : f32 to vector<16x16xf32>
    %187 = arith.mulf %185, %186 : vector<16x16xf32>
    %188 = arith.addf %187, %46 : vector<16x16xf32>
    %cst_72 = arith.constant dense<0xFF800000> : vector<16xf32>
    %189 = vector.multi_reduction <maximumf>, %188, %cst_72 [1] : vector<16x16xf32> to vector<16xf32>
    %190 = vector.shape_cast %189 : vector<16xf32> to vector<16x1xf32>
    %191 = vector.broadcast %190 : vector<16x1xf32> to vector<16x16xf32>
    %192 = arith.subf %188, %191 : vector<16x16xf32>
    %193 = math.exp %192 : vector<16x16xf32>
    %cst_73 = arith.constant dense<0.000000e+00> : vector<16xf32>
    %194 = vector.multi_reduction <add>, %193, %cst_73 [1] : vector<16x16xf32> to vector<16xf32>
    %195 = vector.shape_cast %194 : vector<16xf32> to vector<16x1xf32>
    %196 = tpu.reciprocal %195 {approx = true} : vector<16x1xf32> -> vector<16x1xf32>
    %197 = vector.broadcast %196 : vector<16x1xf32> to vector<16x16xf32>
    %198 = arith.mulf %193, %197 : vector<16x16xf32>
    %cst_74 = arith.constant dense<0.000000e+00> : vector<16x16xf32>
    %199 = tpu.matmul %198, %184, %cst_74 {dimension_numbers = #tpu.dot_dimension_numbers<[1], [0], [0], [1], [0, 0, 1, 1], [], []>} : vector<16x16xf32>, vector<16x16xf32>, vector<16x16xf32> -> vector<16x16xf32>
    %200 = vector.extract_strided_slice %181 {offsets = [0, 16], sizes = [16, 16], strides = [1, 1]} : vector<16x96xf32> to vector<16x16xf32>
    %201 = vector.extract_strided_slice %181 {offsets = [0, 48], sizes = [16, 16], strides = [1, 1]} : vector<16x96xf32> to vector<16x16xf32>
    %202 = vector.extract_strided_slice %181 {offsets = [0, 80], sizes = [16, 16], strides = [1, 1]} : vector<16x96xf32> to vector<16x16xf32>
    %cst_75 = arith.constant dense<0.000000e+00> : vector<16x16xf32>
    %203 = tpu.matmul %200, %201, %cst_75 {dimension_numbers = #tpu.dot_dimension_numbers<[1], [1], [0], [0], [0, 0, 1, 0], [], []>} : vector<16x16xf32>, vector<16x16xf32>, vector<16x16xf32> -> vector<16x16xf32>
    %cst_76 = arith.constant 2.500000e-01 : f32
    %204 = vector.broadcast %cst_76 : f32 to vector<16x16xf32>
    %205 = arith.mulf %203, %204 : vector<16x16xf32>
    %206 = arith.addf %205, %46 : vector<16x16xf32>
    %cst_77 = arith.constant dense<0xFF800000> : vector<16xf32>
    %207 = vector.multi_reduction <maximumf>, %206, %cst_77 [1] : vector<16x16xf32> to vector<16xf32>
    %208 = vector.shape_cast %207 : vector<16xf32> to vector<16x1xf32>
    %209 = vector.broadcast %208 : vector<16x1xf32> to vector<16x16xf32>
    %210 = arith.subf %206, %209 : vector<16x16xf32>
    %211 = math.exp %210 : vector<16x16xf32>
    %cst_78 = arith.constant dense<0.000000e+00> : vector<16xf32>
    %212 = vector.multi_reduction <add>, %211, %cst_78 [1] : vector<16x16xf32> to vector<16xf32>
    %213 = vector.shape_cast %212 : vector<16xf32> to vector<16x1xf32>
    %214 = tpu.reciprocal %213 {approx = true} : vector<16x1xf32> -> vector<16x1xf32>
    %215 = vector.broadcast %214 : vector<16x1xf32> to vector<16x16xf32>
    %216 = arith.mulf %211, %215 : vector<16x16xf32>
    %cst_79 = arith.constant dense<0.000000e+00> : vector<16x16xf32>
    %217 = tpu.matmul %216, %202, %cst_79 {dimension_numbers = #tpu.dot_dimension_numbers<[1], [0], [0], [1], [0, 0, 1, 1], [], []>} : vector<16x16xf32>, vector<16x16xf32>, vector<16x16xf32> -> vector<16x16xf32>
    %218 = tpu.concatenate %199, %217 in 1 : vector<16x16xf32>, vector<16x16xf32> -> vector<16x32xf32>
    %c1_80 = arith.constant 1 : index
    %c0_81 = arith.constant 0 : index
    %c0_82 = arith.constant 0 : index
    %219 = vector.load %arg9[%c1_80, %c0_81, %c0_82] : memref<2x6x32xf32, #tpu.memory_space<vmem>>, vector<1x6x32xf32>
    %220 = vector.shape_cast %219 : vector<1x6x32xf32> to vector<6x32xf32>
    %c1_83 = arith.constant 1 : index
    %c0_84 = arith.constant 0 : index
    %c0_85 = arith.constant 0 : index
    %221 = vector.load %arg8[%c1_83, %c0_84, %c0_85] : memref<2x32x32xf32, #tpu.memory_space<vmem>>, vector<1x32x32xf32>
    %222 = vector.shape_cast %221 : vector<1x32x32xf32> to vector<32x32xf32>
    %cst_86 = arith.constant dense<0.000000e+00> : vector<16x32xf32>
    %223 = tpu.matmul %218, %222, %cst_86 {dimension_numbers = #tpu.dot_dimension_numbers<[1], [0], [0], [1], [0, 0, 1, 1], [], []>} : vector<16x32xf32>, vector<32x32xf32>, vector<16x32xf32> -> vector<16x32xf32>
    %224 = vector.extract_strided_slice %220 {offsets = [0, 0], sizes = [1, 32], strides = [1, 1]} : vector<6x32xf32> to vector<1x32xf32>
    %225 = vector.broadcast %224 : vector<1x32xf32> to vector<16x32xf32>
    %226 = arith.addf %223, %225 : vector<16x32xf32>
    %227 = arith.addf %226, %174 : vector<16x32xf32>
    %228 = vector.extract_strided_slice %220 {offsets = [1, 0], sizes = [1, 32], strides = [1, 1]} : vector<6x32xf32> to vector<1x32xf32>
    %229 = vector.extract_strided_slice %220 {offsets = [2, 0], sizes = [1, 32], strides = [1, 1]} : vector<6x32xf32> to vector<1x32xf32>
    %cst_87 = arith.constant dense<0.000000e+00> : vector<16xf32>
    %230 = vector.multi_reduction <add>, %227, %cst_87 [1] : vector<16x32xf32> to vector<16xf32>
    %231 = vector.shape_cast %230 : vector<16xf32> to vector<16x1xf32>
    %cst_88 = arith.constant 3.200000e+01 : f32
    %232 = vector.broadcast %cst_88 : f32 to vector<16x1xf32>
    %233 = arith.divf %231, %232 : vector<16x1xf32>
    %234 = vector.broadcast %233 : vector<16x1xf32> to vector<16x32xf32>
    %235 = arith.subf %227, %234 : vector<16x32xf32>
    %236 = arith.mulf %235, %235 : vector<16x32xf32>
    %cst_89 = arith.constant dense<0.000000e+00> : vector<16xf32>
    %237 = vector.multi_reduction <add>, %236, %cst_89 [1] : vector<16x32xf32> to vector<16xf32>
    %238 = vector.shape_cast %237 : vector<16xf32> to vector<16x1xf32>
    %cst_90 = arith.constant 3.200000e+01 : f32
    %239 = vector.broadcast %cst_90 : f32 to vector<16x1xf32>
    %240 = arith.divf %238, %239 : vector<16x1xf32>
    %241 = vector.broadcast %233 : vector<16x1xf32> to vector<16x32xf32>
    %242 = arith.subf %227, %241 : vector<16x32xf32>
    %cst_91 = arith.constant 9.99999996E-13 : f32
    %243 = vector.broadcast %cst_91 : f32 to vector<16x1xf32>
    %244 = arith.addf %240, %243 : vector<16x1xf32>
    %245 = math.rsqrt %244 : vector<16x1xf32>
    %246 = vector.broadcast %245 : vector<16x1xf32> to vector<16x32xf32>
    %247 = arith.mulf %242, %246 : vector<16x32xf32>
    %248 = vector.broadcast %228 : vector<1x32xf32> to vector<16x32xf32>
    %249 = arith.mulf %247, %248 : vector<16x32xf32>
    %250 = vector.broadcast %229 : vector<1x32xf32> to vector<16x32xf32>
    %251 = arith.addf %249, %250 : vector<16x32xf32>
    %c1_92 = arith.constant 1 : index
    %c0_93 = arith.constant 0 : index
    %c0_94 = arith.constant 0 : index
    %252 = vector.load %arg10[%c1_92, %c0_93, %c0_94] : memref<2x32x64xf32, #tpu.memory_space<vmem>>, vector<1x32x64xf32>
    %253 = vector.shape_cast %252 : vector<1x32x64xf32> to vector<32x64xf32>
    %cst_95 = arith.constant dense<0.000000e+00> : vector<16x64xf32>
    %254 = tpu.matmul %251, %253, %cst_95 {dimension_numbers = #tpu.dot_dimension_numbers<[1], [0], [0], [1], [0, 0, 1, 1], [], []>} : vector<16x32xf32>, vector<32x64xf32>, vector<16x64xf32> -> vector<16x64xf32>
    %c1_96 = arith.constant 1 : index
    %c0_97 = arith.constant 0 : index
    %c0_98 = arith.constant 0 : index
    %255 = vector.load %arg11[%c1_96, %c0_97, %c0_98] : memref<2x1x64xf32, #tpu.memory_space<vmem>>, vector<1x1x64xf32>
    %256 = vector.shape_cast %255 : vector<1x1x64xf32> to vector<1x64xf32>
    %257 = vector.broadcast %256 : vector<1x64xf32> to vector<16x64xf32>
    %258 = arith.addf %254, %257 : vector<16x64xf32>
    %259 = arith.mulf %258, %258 : vector<16x64xf32>
    %260 = arith.mulf %258, %259 : vector<16x64xf32>
    %cst_99 = arith.constant 4.471500e-02 : f32
    %261 = vector.broadcast %cst_99 : f32 to vector<16x64xf32>
    %262 = arith.mulf %261, %260 : vector<16x64xf32>
    %263 = arith.addf %258, %262 : vector<16x64xf32>
    %cst_100 = arith.constant 0.797884583 : f32
    %264 = vector.broadcast %cst_100 : f32 to vector<16x64xf32>
    %265 = arith.mulf %264, %263 : vector<16x64xf32>
    %266 = math.tanh %265 : vector<16x64xf32>
    %cst_101 = arith.constant 1.000000e+00 : f32
    %267 = vector.broadcast %cst_101 : f32 to vector<16x64xf32>
    %268 = arith.addf %267, %266 : vector<16x64xf32>
    %cst_102 = arith.constant 5.000000e-01 : f32
    %269 = vector.broadcast %cst_102 : f32 to vector<16x64xf32>
    %270 = arith.mulf %269, %268 : vector<16x64xf32>
    %271 = arith.mulf %258, %270 : vector<16x64xf32>
    %c1_103 = arith.constant 1 : index
    %c0_104 = arith.constant 0 : index
    %c0_105 = arith.constant 0 : index
    %272 = vector.load %arg12[%c1_103, %c0_104, %c0_105] : memref<2x64x32xf32, #tpu.memory_space<vmem>>, vector<1x64x32xf32>
    %273 = vector.shape_cast %272 : vector<1x64x32xf32> to vector<64x32xf32>
    %cst_106 = arith.constant dense<0.000000e+00> : vector<16x32xf32>
    %274 = tpu.matmul %271, %273, %cst_106 {dimension_numbers = #tpu.dot_dimension_numbers<[1], [0], [0], [1], [0, 0, 1, 1], [], []>} : vector<16x64xf32>, vector<64x32xf32>, vector<16x32xf32> -> vector<16x32xf32>
    %275 = vector.extract_strided_slice %220 {offsets = [3, 0], sizes = [1, 32], strides = [1, 1]} : vector<6x32xf32> to vector<1x32xf32>
    %276 = vector.broadcast %275 : vector<1x32xf32> to vector<16x32xf32>
    %277 = arith.addf %274, %276 : vector<16x32xf32>
    %278 = arith.addf %277, %251 : vector<16x32xf32>
    %279 = vector.extract_strided_slice %220 {offsets = [4, 0], sizes = [1, 32], strides = [1, 1]} : vector<6x32xf32> to vector<1x32xf32>
    %280 = vector.extract_strided_slice %220 {offsets = [5, 0], sizes = [1, 32], strides = [1, 1]} : vector<6x32xf32> to vector<1x32xf32>
    %cst_107 = arith.constant dense<0.000000e+00> : vector<16xf32>
    %281 = vector.multi_reduction <add>, %278, %cst_107 [1] : vector<16x32xf32> to vector<16xf32>
    %282 = vector.shape_cast %281 : vector<16xf32> to vector<16x1xf32>
    %cst_108 = arith.constant 3.200000e+01 : f32
    %283 = vector.broadcast %cst_108 : f32 to vector<16x1xf32>
    %284 = arith.divf %282, %283 : vector<16x1xf32>
    %285 = vector.broadcast %284 : vector<16x1xf32> to vector<16x32xf32>
    %286 = arith.subf %278, %285 : vector<16x32xf32>
    %287 = arith.mulf %286, %286 : vector<16x32xf32>
    %cst_109 = arith.constant dense<0.000000e+00> : vector<16xf32>
    %288 = vector.multi_reduction <add>, %287, %cst_109 [1] : vector<16x32xf32> to vector<16xf32>
    %289 = vector.shape_cast %288 : vector<16xf32> to vector<16x1xf32>
    %cst_110 = arith.constant 3.200000e+01 : f32
    %290 = vector.broadcast %cst_110 : f32 to vector<16x1xf32>
    %291 = arith.divf %289, %290 : vector<16x1xf32>
    %292 = vector.broadcast %284 : vector<16x1xf32> to vector<16x32xf32>
    %293 = arith.subf %278, %292 : vector<16x32xf32>
    %cst_111 = arith.constant 9.99999996E-13 : f32
    %294 = vector.broadcast %cst_111 : f32 to vector<16x1xf32>
    %295 = arith.addf %291, %294 : vector<16x1xf32>
    %296 = math.rsqrt %295 : vector<16x1xf32>
    %297 = vector.broadcast %296 : vector<16x1xf32> to vector<16x32xf32>
    %298 = arith.mulf %293, %297 : vector<16x32xf32>
    %299 = vector.broadcast %279 : vector<1x32xf32> to vector<16x32xf32>
    %300 = arith.mulf %298, %299 : vector<16x32xf32>
    %301 = vector.broadcast %280 : vector<1x32xf32> to vector<16x32xf32>
    %302 = arith.addf %300, %301 : vector<16x32xf32>
    %303 = tpu.iota {dimensions = array<i32: 0>} : vector<2x16xi32>
    %304 = tpu.iota {dimensions = array<i32: 1>} : vector<2x16xi32>
    %c8_i32 = arith.constant 8 : i32
    %305 = vector.broadcast %c8_i32 : i32 to vector<2x16xi32>
    %306 = arith.muli %303, %305 : vector<2x16xi32>
    %307 = arith.cmpi eq, %304, %306 : vector<2x16xi32>
    %308 = arith.extui %307 : vector<2x16xi1> to vector<2x16xi32>
    %309 = arith.sitofp %308 : vector<2x16xi32> to vector<2x16xf32>
    %cst_112 = arith.constant dense<0.000000e+00> : vector<2x32xf32>
    %310 = tpu.matmul %309, %302, %cst_112 {dimension_numbers = #tpu.dot_dimension_numbers<[1], [0], [0], [1], [0, 0, 1, 1], [], []>} : vector<2x16xf32>, vector<16x32xf32>, vector<2x32xf32> -> vector<2x32xf32>
    %c0_113 = arith.constant 0 : index
    %c0_114 = arith.constant 0 : index
    %311 = vector.load %arg13[%c0_113, %c0_114] : memref<32x32xf32, #tpu.memory_space<vmem>>, vector<32x32xf32>
    %cst_115 = arith.constant dense<0.000000e+00> : vector<2x32xf32>
    %312 = tpu.matmul %310, %311, %cst_115 {dimension_numbers = #tpu.dot_dimension_numbers<[1], [0], [0], [1], [0, 0, 1, 1], [], []>} : vector<2x32xf32>, vector<32x32xf32>, vector<2x32xf32> -> vector<2x32xf32>
    %c0_116 = arith.constant 0 : index
    %c0_117 = arith.constant 0 : index
    %313 = vector.load %arg14[%c0_116, %c0_117] : memref<1x32xf32, #tpu.memory_space<vmem>>, vector<1x32xf32>
    %314 = vector.broadcast %313 : vector<1x32xf32> to vector<2x32xf32>
    %315 = arith.addf %312, %314 : vector<2x32xf32>
    %316 = math.tanh %315 : vector<2x32xf32>
    %317 = arith.mulf %316, %316 : vector<2x32xf32>
    %cst_118 = arith.constant dense<0.000000e+00> : vector<2xf32>
    %318 = vector.multi_reduction <add>, %317, %cst_118 [1] : vector<2x32xf32> to vector<2xf32>
    %319 = vector.shape_cast %318 : vector<2xf32> to vector<2x1xf32>
    %cst_119 = arith.constant 1.000000e-24 : f32
    %320 = vector.broadcast %cst_119 : f32 to vector<2x1xf32>
    %321 = arith.maximumf %319, %320 : vector<2x1xf32>
    %322 = math.rsqrt %321 : vector<2x1xf32>
    %323 = vector.broadcast %322 : vector<2x1xf32> to vector<2x32xf32>
    %324 = arith.mulf %316, %323 : vector<2x32xf32>
    %c0_120 = arith.constant 0 : index
    %c0_121 = arith.constant 0 : index
    %325 = vector.load %arg15[%c0_120, %c0_121] : memref<2x32xf32, #tpu.memory_space<vmem>>, vector<2x32xf32>
    tpu.vector_store %arg15[%c0_120, %c0_121], %324 {strides = array<i32>} : memref<2x32xf32, #tpu.memory_space<vmem>>, vector<2x32xf32>,
    %c0_122 = arith.constant 0 : index
    %c0_123 = arith.constant 0 : index
    %326 = vector.load %arg3[%c0_122, %c0_123] : memref<2x32xf32, #tpu.memory_space<vmem>>, vector<2x32xf32>
    %327 = arith.mulf %326, %324 : vector<2x32xf32>
    %cst_124 = arith.constant dense<0.000000e+00> : vector<2xf32>
    %328 = vector.multi_reduction <add>, %327, %cst_124 [1] : vector<2x32xf32> to vector<2xf32>
    %329 = vector.shape_cast %328 : vector<2xf32> to vector<2x1xf32>
    %cst_125 = arith.constant 14.2857141 : f32
    %330 = vector.broadcast %cst_125 : f32 to vector<2x1xf32>
    %331 = arith.mulf %329, %330 : vector<2x1xf32>
    %c0_126 = arith.constant 0 : index
    %c0_127 = arith.constant 0 : index
    %332 = vector.load %arg16[%c0_126, %c0_127] : memref<2x9xf32, #tpu.memory_space<vmem>>, vector<2x1xf32>
    tpu.vector_store %arg16[%c0_126, %c0_127], %331 {strides = array<i32>} : memref<2x9xf32, #tpu.memory_space<vmem>>, vector<2x1xf32>,
    %c0_128 = arith.constant 0 : index
    %c0_129 = arith.constant 0 : index
    %333 = vector.load %arg4[%c0_128, %c0_129] : memref<32x8xf32, #tpu.memory_space<vmem>>, vector<32x8xf32>
    %cst_130 = arith.constant dense<0.000000e+00> : vector<2x8xf32>
    %334 = tpu.matmul %326, %333, %cst_130 {dimension_numbers = #tpu.dot_dimension_numbers<[1], [0], [0], [1], [0, 0, 1, 1], [], []>} : vector<2x32xf32>, vector<32x8xf32>, vector<2x8xf32> -> vector<2x8xf32>
    %cst_131 = arith.constant 14.2857141 : f32
    %335 = vector.broadcast %cst_131 : f32 to vector<2x8xf32>
    %336 = arith.mulf %334, %335 : vector<2x8xf32>
    %c0_132 = arith.constant 0 : index
    %c1_133 = arith.constant 1 : index
    %337 = vector.load %arg16[%c0_132, %c1_133] : memref<2x9xf32, #tpu.memory_space<vmem>>, vector<2x8xf32>
    tpu.vector_store %arg16[%c0_132, %c1_133], %336 {strides = array<i32>} : memref<2x9xf32, #tpu.memory_space<vmem>>, vector<2x8xf32>,
    return
  }
  func.func @transform_0(%arg0: i32) -> (i32, i32) {
    %c0_i32 = arith.constant 0 : i32
    %c0_i32_0 = arith.constant 0 : i32
    %c0_i32_1 = arith.constant 0 : i32
    return %c0_i32, %c0_i32_0 : i32, i32
  }
  func.func @transform_1(%arg0: i32) -> (i32, i32) {
    %c0_i32 = arith.constant 0 : i32
    %c0_i32_0 = arith.constant 0 : i32
    %c0_i32_1 = arith.constant 0 : i32
    return %c0_i32, %c0_i32_0 : i32, i32
  }
  func.func @transform_2(%arg0: i32) -> (i32, i32) {
    %c0_i32 = arith.constant 0 : i32
    %c0_i32_0 = arith.constant 0 : i32
    %c0_i32_1 = arith.constant 0 : i32
    return %c0_i32, %c0_i32_0 : i32, i32
  }
  func.func @transform_3(%arg0: i32) -> (i32, i32) {
    %c0_i32 = arith.constant 0 : i32
    %c0_i32_0 = arith.constant 0 : i32
    %c0_i32_1 = arith.constant 0 : i32
    return %c0_i32, %c0_i32_0 : i32, i32
  }
  func.func @transform_4(%arg0: i32) -> (i32, i32) {
    %c0_i32 = arith.constant 0 : i32
    %c0_i32_0 = arith.constant 0 : i32
    %c0_i32_1 = arith.constant 0 : i32
    return %c0_i32, %c0_i32_0 : i32, i32
  }
  func.func @transform_5(%arg0: i32) -> (i32, i32, i32) {
    %c0_i32 = arith.constant 0 : i32
    %c0_i32_0 = arith.constant 0 : i32
    %c0_i32_1 = arith.constant 0 : i32
    %c0_i32_2 = arith.constant 0 : i32
    return %c0_i32, %c0_i32_0, %c0_i32_1 : i32, i32, i32
  }
  func.func @transform_6(%arg0: i32) -> (i32, i32, i32) {
    %c0_i32 = arith.constant 0 : i32
    %c0_i32_0 = arith.constant 0 : i32
    %c0_i32_1 = arith.constant 0 : i32
    %c0_i32_2 = arith.constant 0 : i32
    return %c0_i32, %c0_i32_0, %c0_i32_1 : i32, i32, i32
  }
  func.func @transform_7(%arg0: i32) -> (i32, i32, i32) {
    %c0_i32 = arith.constant 0 : i32
    %c0_i32_0 = arith.constant 0 : i32
    %c0_i32_1 = arith.constant 0 : i32
    %c0_i32_2 = arith.constant 0 : i32
    return %c0_i32, %c0_i32_0, %c0_i32_1 : i32, i32, i32
  }
  func.func @transform_8(%arg0: i32) -> (i32, i32, i32) {
    %c0_i32 = arith.constant 0 : i32
    %c0_i32_0 = arith.constant 0 : i32
    %c0_i32_1 = arith.constant 0 : i32
    %c0_i32_2 = arith.constant 0 : i32
    return %c0_i32, %c0_i32_0, %c0_i32_1 : i32, i32, i32
  }
  func.func @transform_9(%arg0: i32) -> (i32, i32, i32) {
    %c0_i32 = arith.constant 0 : i32
    %c0_i32_0 = arith.constant 0 : i32
    %c0_i32_1 = arith.constant 0 : i32
    %c0_i32_2 = arith.constant 0 : i32
    return %c0_i32, %c0_i32_0, %c0_i32_1 : i32, i32, i32
  }
  func.func @transform_10(%arg0: i32) -> (i32, i32, i32) {
    %c0_i32 = arith.constant 0 : i32
    %c0_i32_0 = arith.constant 0 : i32
    %c0_i32_1 = arith.constant 0 : i32
    %c0_i32_2 = arith.constant 0 : i32
    return %c0_i32, %c0_i32_0, %c0_i32_1 : i32, i32, i32
  }
  func.func @transform_11(%arg0: i32) -> (i32, i32, i32) {
    %c0_i32 = arith.constant 0 : i32
    %c0_i32_0 = arith.constant 0 : i32
    %c0_i32_1 = arith.constant 0 : i32
    %c0_i32_2 = arith.constant 0 : i32
    return %c0_i32, %c0_i32_0, %c0_i32_1 : i32, i32, i32
  }
  func.func @transform_12(%arg0: i32) -> (i32, i32) {
    %c0_i32 = arith.constant 0 : i32
    %c0_i32_0 = arith.constant 0 : i32
    %c0_i32_1 = arith.constant 0 : i32
    return %c0_i32, %c0_i32_0 : i32, i32
  }
  func.func @transform_13(%arg0: i32) -> (i32, i32) {
    %c0_i32 = arith.constant 0 : i32
    %c0_i32_0 = arith.constant 0 : i32
    %c0_i32_1 = arith.constant 0 : i32
    return %c0_i32, %c0_i32_0 : i32, i32
  }
  func.func @transform_14(%arg0: i32) -> (i32, i32) {
    %c0_i32 = arith.constant 0 : i32
    %c0_i32_0 = arith.constant 0 : i32
    %c0_i32_1 = arith.constant 0 : i32
    return %c0_i32, %c0_i32_0 : i32, i32
  }
  func.func @transform_15(%arg0: i32) -> (i32, i32) {
    %c0_i32 = arith.constant 0 : i32
    %c0_i32_0 = arith.constant 0 : i32
    %c0_i32_1 = arith.constant 0 : i32
    return %c0_i32, %c0_i32_0 : i32, i32
  }
}

</mosaic_0001>

<llo_original>
// kernel: forward.2
$region0: #{forward.2}
  #allocation0 [shape = 'u32[]', space=smem, size = 0x4, offset = 0x4, fixed_abs, tag = 'smem constant byte address 0x4 - core index']
  #allocation1 [shape = 'u32[144,128]{1,0:T(1,128)}', space=vmem, size = 0x12000, scoped, tag = 'internal scratch']
  %s0 = inlined_call_operand.vmem [shape: f32[64,32], index: 0, kind: input, shape index: {}]
  %s1 = inlined_call_operand.vmem [shape: f32[1,64], index: 1, kind: input, shape index: {}]
  %s2 = inlined_call_operand.vmem [shape: f32[2,32], index: 2, kind: input, shape index: {}]
  %s3 = inlined_call_operand.vmem [shape: f32[2,32,96], index: 3, kind: input, shape index: {}]
  %s4 = inlined_call_operand.vmem [shape: f32[2,1,96], index: 4, kind: input, shape index: {}]
  %s5 = inlined_call_operand.vmem [shape: f32[2,32,32], index: 5, kind: input, shape index: {}]
  %s6 = inlined_call_operand.vmem [shape: f32[2,6,32], index: 6, kind: input, shape index: {}]
  %s7 = inlined_call_operand.vmem [shape: f32[2,32,64], index: 7, kind: input, shape index: {}]
  %s8 = inlined_call_operand.vmem [shape: f32[2,1,64], index: 8, kind: input, shape index: {}]
  %s9 = inlined_call_operand.vmem [shape: f32[2,64,32], index: 9, kind: input, shape index: {}]
  %s10 = inlined_call_operand.vmem [shape: f32[32,32], index: 10, kind: input, shape index: {}]
  %s11 = inlined_call_operand.vmem [shape: f32[1,32], index: 11, kind: input, shape index: {}]
  %s12 = inlined_call_operand.vmem [shape: f32[8,32], index: 12, kind: output, shape index: {0}]
  %s13 = inlined_call_operand.vmem [shape: f32[6,1], index: 13, kind: output, shape index: {1}]
  %14 = xla_tuple %s12, %s13
  %s15 = sld [smem:[#allocation0]]
  $region66: #{forward.2} parent=0
    _
  %s17 = ssub.s32 1, %s15
  %s18 = scalar_select 0, %s17, %s15
  // Predicated region
  $region2: #{forward.2} parent=0 // pred_check
    _
  $region3: #{forward.2} parent=0 // pred_check_branch
    %20 = sbr.rel (0) target = $region5
  $region4: #{forward.2} parent=0 // pred_region
    _
  $region5: #{forward.2} parent=0 // pred_fallthru
    _
  // Predicated region
  $region6: #{forward.2} parent=0 // pred_check
    _
  $region7: #{forward.2} parent=0 // pred_check_branch
    %22 = sbr.rel (0) target = $region9
  $region8: #{forward.2} parent=0 // pred_region
    _
  $region9: #{forward.2} parent=0 // pred_fallthru
    _
  // Predicated region
  $region10: #{forward.2} parent=0 // pred_check
    _
  $region11: #{forward.2} parent=0 // pred_check_branch
    %24 = sbr.rel (0) target = $region13
  $region12: #{forward.2} parent=0 // pred_region
    _
  $region13: #{forward.2} parent=0 // pred_fallthru
    _
  // Predicated region
  $region14: #{forward.2} parent=0 // pred_check
    _
  $region15: #{forward.2} parent=0 // pred_check_branch
    %26 = sbr.rel (0) target = $region17
  $region16: #{forward.2} parent=0 // pred_region
    _
  $region17: #{forward.2} parent=0 // pred_fallthru
    _
  // Predicated region
  $region18: #{forward.2} parent=0 // pred_check
    _
  $region19: #{forward.2} parent=0 // pred_check_branch
    %28 = sbr.rel (0) target = $region21
  $region20: #{forward.2} parent=0 // pred_region
    _
  $region21: #{forward.2} parent=0 // pred_fallthru
    _
  // Predicated region
  $region22: #{forward.2} parent=0 // pred_check
    _
  $region23: #{forward.2} parent=0 // pred_check_branch
    %30 = sbr.rel (0) target = $region25
  $region24: #{forward.2} parent=0 // pred_region
    _
  $region25: #{forward.2} parent=0 // pred_fallthru
    _
  // Predicated region
  $region26: #{forward.2} parent=0 // pred_check
    _
  $region27: #{forward.2} parent=0 // pred_check_branch
    %32 = sbr.rel (0) target = $region29
  $region28: #{forward.2} parent=0 // pred_region
    _
  $region29: #{forward.2} parent=0 // pred_fallthru
    _
  // Predicated region
  $region30: #{forward.2} parent=0 // pred_check
    _
  $region31: #{forward.2} parent=0 // pred_check_branch
    %34 = sbr.rel (0) target = $region33
  $region32: #{forward.2} parent=0 // pred_region
    _
  $region33: #{forward.2} parent=0 // pred_fallthru
    _
  // Predicated region
  $region34: #{forward.2} parent=0 // pred_check
    _
  $region35: #{forward.2} parent=0 // pred_check_branch
    %36 = sbr.rel (0) target = $region37
  $region36: #{forward.2} parent=0 // pred_region
    _
  $region37: #{forward.2} parent=0 // pred_fallthru
    _
  // Predicated region
  $region38: #{forward.2} parent=0 // pred_check
    _
  $region39: #{forward.2} parent=0 // pred_check_branch
    %38 = sbr.rel (0) target = $region41
  $region40: #{forward.2} parent=0 // pred_region
    _
  $region41: #{forward.2} parent=0 // pred_fallthru
    _
  // Predicated region
  $region42: #{forward.2} parent=0 // pred_check
    _
  $region43: #{forward.2} parent=0 // pred_check_branch
    %40 = sbr.rel (0) target = $region45
  $region44: #{forward.2} parent=0 // pred_region
    _
  $region45: #{forward.2} parent=0 // pred_fallthru
    _
  // Predicated region
  $region46: #{forward.2} parent=0 // pred_check
    _
  $region47: #{forward.2} parent=0 // pred_check_branch
    %42 = sbr.rel (0) target = $region49
  $region48: #{forward.2} parent=0 // pred_region
    _
  $region49: #{forward.2} parent=0 // pred_fallthru
    _
  %v43 = vld [vmem:[%s2] sm:$0x3]
  %v44 = vld [vmem:[%s0] sm:$0xff]
  %v45 = vld [vmem:[%s0 + $0x8] sm:$0xff]
  %v46 = vld [vmem:[%s0 + $0x10] sm:$0xff]
  %v47 = vld [vmem:[%s0 + $0x18] sm:$0xff]
  %v48 = vld [vmem:[%s0 + $0x20] sm:$0xff]
  %v49 = vld [vmem:[%s0 + $0x28] sm:$0xff]
  %v50 = vld [vmem:[%s0 + $0x30] sm:$0xff]
  %v51 = vld [vmem:[%s0 + $0x38] sm:$0xff]
  %vm52 = vcmask 261120
  %v53 = vsel %vm52, %v44, 0.0
  %54 = vadd.xlane.f32.xlu0 %v53
  %v55 = vpop.xlane.xlu0 %54
  %v56 = vsel %vm52, %v45, 0.0
  %57 = vadd.xlane.f32.xlu0 %v56
  %v58 = vpop.xlane.xlu0 %57
  %v59 = vsel %vm52, %v46, 0.0
  %60 = vadd.xlane.f32.xlu0 %v59
  %v61 = vpop.xlane.xlu0 %60
  %v62 = vsel %vm52, %v47, 0.0
  %63 = vadd.xlane.f32.xlu0 %v62
  %v64 = vpop.xlane.xlu0 %63
  %v65 = vsel %vm52, %v48, 0.0
  %66 = vadd.xlane.f32.xlu0 %v65
  %v67 = vpop.xlane.xlu0 %66
  %v68 = vsel %vm52, %v49, 0.0
  %69 = vadd.xlane.f32.xlu0 %v68
  %v70 = vpop.xlane.xlu0 %69
  %v71 = vsel %vm52, %v50, 0.0
  %72 = vadd.xlane.f32.xlu0 %v71
  %v73 = vpop.xlane.xlu0 %72
  %v74 = vsel %vm52, %v51, 0.0
  %75 = vadd.xlane.f32.xlu0 %v74
  %v76 = vpop.xlane.xlu0 %75
  %v77 = vrcp.pop 32.0
  %v78 = vmul.f32 %v55, %v77
  %v79 = vmul.f32 %v58, %v77
  %v80 = vmul.f32 %v61, %v77
  %v81 = vmul.f32 %v64, %v77
  %v82 = vmul.f32 %v67, %v77
  %v83 = vmul.f32 %v70, %v77
  %v84 = vmul.f32 %v73, %v77
  %v85 = vmul.f32 %v76, %v77
  %v86 = vsub.f32 %v44, %v78
  %v87 = vsub.f32 %v45, %v79
  %v88 = vsub.f32 %v46, %v80
  %v89 = vsub.f32 %v47, %v81
  %v90 = vsub.f32 %v48, %v82
  %v91 = vsub.f32 %v49, %v83
  %v92 = vsub.f32 %v50, %v84
  %v93 = vsub.f32 %v51, %v85
  %v94 = vmul.f32 %v86, %v86
  %v95 = vmul.f32 %v87, %v87
  %v96 = vmul.f32 %v88, %v88
  %v97 = vmul.f32 %v89, %v89
  %v98 = vmul.f32 %v90, %v90
  %v99 = vmul.f32 %v91, %v91
  %v100 = vmul.f32 %v92, %v92
  %v101 = vmul.f32 %v93, %v93
  %v102 = vsel %vm52, %v94, 0.0
  %103 = vadd.xlane.f32.xlu0 %v102
  %v104 = vpop.xlane.xlu0 %103
  %v105 = vsel %vm52, %v95, 0.0
  %106 = vadd.xlane.f32.xlu0 %v105
  %v107 = vpop.xlane.xlu0 %106
  %v108 = vsel %vm52, %v96, 0.0
  %109 = vadd.xlane.f32.xlu0 %v108
  %v110 = vpop.xlane.xlu0 %109
  %v111 = vsel %vm52, %v97, 0.0
  %112 = vadd.xlane.f32.xlu0 %v111
  %v113 = vpop.xlane.xlu0 %112
  %v114 = vsel %vm52, %v98, 0.0
  %115 = vadd.xlane.f32.xlu0 %v114
  %v116 = vpop.xlane.xlu0 %115
  %v117 = vsel %vm52, %v99, 0.0
  %118 = vadd.xlane.f32.xlu0 %v117
  %v119 = vpop.xlane.xlu0 %118
  %v120 = vsel %vm52, %v100, 0.0
  %121 = vadd.xlane.f32.xlu0 %v120
  %v122 = vpop.xlane.xlu0 %121
  %v123 = vsel %vm52, %v101, 0.0
  %124 = vadd.xlane.f32.xlu0 %v123
  %v125 = vpop.xlane.xlu0 %124
  %v126 = vmul.f32 %v104, %v77
  %v127 = vmul.f32 %v107, %v77
  %v128 = vmul.f32 %v110, %v77
  %v129 = vmul.f32 %v113, %v77
  %v130 = vmul.f32 %v116, %v77
  %v131 = vmul.f32 %v119, %v77
  %v132 = vmul.f32 %v122, %v77
  %v133 = vmul.f32 %v125, %v77
  %v134 = vadd.f32 %v126, 1e-12
  %v135 = vadd.f32 %v127, 1e-12
  %v136 = vadd.f32 %v128, 1e-12
  %v137 = vadd.f32 %v129, 1e-12
  %v138 = vadd.f32 %v130, 1e-12
  %v139 = vadd.f32 %v131, 1e-12
  %v140 = vadd.f32 %v132, 1e-12
  %v141 = vadd.f32 %v133, 1e-12
  %v142 = vrsqrt.pop %v134
  %v143 = vrsqrt.pop %v135
  %v144 = vrsqrt.pop %v136
  %v145 = vrsqrt.pop %v137
  %v146 = vrsqrt.pop %v138
  %v147 = vrsqrt.pop %v139
  %v148 = vrsqrt.pop %v140
  %v149 = vrsqrt.pop %v141
  %v150 = vmul.f32 %v86, %v142
  %v151 = vmul.f32 %v87, %v143
  %v152 = vmul.f32 %v88, %v144
  %v153 = vmul.f32 %v89, %v145
  %v154 = vmul.f32 %v90, %v146
  %v155 = vmul.f32 %v91, %v147
  %v156 = vmul.f32 %v92, %v148
  %v157 = vmul.f32 %v93, %v149
  %v158 = vlaneseq
  %v159 = vshrl.u32 %v158, 7
  %v160 = vsub.s32 0, %v159
  %v161 = vrot.slane %v43, %v160
  %v162 = vmul.f32 %v150, %v161
  %v163 = vmul.f32 %v151, %v161
  %v164 = vmul.f32 %v152, %v161
  %v165 = vmul.f32 %v153, %v161
  %v166 = vmul.f32 %v154, %v161
  %v167 = vmul.f32 %v155, %v161
  %v168 = vmul.f32 %v156, %v161
  %v169 = vmul.f32 %v157, %v161
  %v170 = vlaneseq
  %v171 = vshrl.u32 %v170, 7
  %v172 = vsub.s32 1, %v171
  %v173 = vrot.slane %v43, %v172
  %v174 = vadd.f32 %v162, %v173
  %v175 = vadd.f32 %v163, %v173
  %v176 = vadd.f32 %v164, %v173
  %v177 = vadd.f32 %v165, %v173
  %v178 = vadd.f32 %v166, %v173
  %v179 = vadd.f32 %v167, %v173
  %v180 = vadd.f32 %v168, %v173
  %v181 = vadd.f32 %v169, %v173
  %v182 = vlaneseq
  %v183 = vshrl.u32 %v182, 7
  %v184 = vadd.s32 %v183, 8
  %v185 = vadd.s32 %v183, 16
  %v186 = vadd.s32 %v183, 24
  %v187 = vadd.s32 %v183, 32
  %v188 = vadd.s32 %v183, 40
  %v189 = vadd.s32 %v183, 48
  %v190 = vadd.s32 %v183, 56
  %v191 = vcvt.s32.f32 %v183
  %v192 = vcvt.s32.f32 %v184
  %v193 = vcvt.s32.f32 %v185
  %v194 = vcvt.s32.f32 %v186
  %v195 = vcvt.s32.f32 %v187
  %v196 = vcvt.s32.f32 %v188
  %v197 = vcvt.s32.f32 %v189
  %v198 = vcvt.s32.f32 %v190
  %v199 = vlaneseq
  %v200 = vand.u32 %v199, 127
  %v201 = vcvt.s32.f32 %v200
  %v202 = vmul.f32 %v191, 0.125
  %v203 = vmul.f32 %v192, 0.125
  %v204 = vmul.f32 %v193, 0.125
  %v205 = vmul.f32 %v194, 0.125
  %v206 = vmul.f32 %v195, 0.125
  %v207 = vmul.f32 %v196, 0.125
  %v208 = vmul.f32 %v197, 0.125
  %v209 = vmul.f32 %v198, 0.125
  %v210 = vfloor.f32 %v202
  %v211 = vfloor.f32 %v203
  %v212 = vfloor.f32 %v204
  %v213 = vfloor.f32 %v205
  %v214 = vfloor.f32 %v206
  %v215 = vfloor.f32 %v207
  %v216 = vfloor.f32 %v208
  %v217 = vfloor.f32 %v209
  %v218 = vmul.f32 %v201, 0.125
  %v219 = vfloor.f32 %v218
  %vm220 = vcmp.eq.f32.partialorder %v210, %v219
  %vm221 = vcmp.eq.f32.partialorder %v211, %v219
  %vm222 = vcmp.eq.f32.partialorder %v212, %v219
  %vm223 = vcmp.eq.f32.partialorder %v213, %v219
  %vm224 = vcmp.eq.f32.partialorder %v214, %v219
  %vm225 = vcmp.eq.f32.partialorder %v215, %v219
  %vm226 = vcmp.eq.f32.partialorder %v216, %v219
  %vm227 = vcmp.eq.f32.partialorder %v217, %v219
  %v228 = vsel %vm220, 0.0, -1e+09
  %v229 = vsel %vm221, 0.0, -1e+09
  %v230 = vsel %vm222, 0.0, -1e+09
  %v231 = vsel %vm223, 0.0, -1e+09
  %v232 = vsel %vm224, 0.0, -1e+09
  %v233 = vsel %vm225, 0.0, -1e+09
  %v234 = vsel %vm226, 0.0, -1e+09
  %v235 = vsel %vm227, 0.0, -1e+09
  %v236 = vld [vmem:[%s1] sm:$0x1]
  %v237 = vsub.f32 %v236, 1.0
  %v238 = vmul.f32 %v237, 10000.0
  %v240 = vlaneseq
  %v241 = vshrl.u32 %v240, 7
  %v242 = vsub.s32 0, %v241
  %v243 = vrot.slane %v238, %v242
  %v245 = vadd.f32 %v228, %v243
  %v246 = vadd.f32 %v229, %v243
  %v247 = vadd.f32 %v230, %v243
  %v248 = vadd.f32 %v231, %v243
  %v249 = vadd.f32 %v232, %v243
  %v250 = vadd.f32 %v233, %v243
  %v251 = vadd.f32 %v234, %v243
  %v252 = vadd.f32 %v235, %v243
  %v253 = vld [vmem:[%s3] sm:$0xff]
  %v254 = vld [vmem:[%s3 + $0x8] sm:$0xff]
  %v255 = vld [vmem:[%s3 + $0x10] sm:$0xff]
  %v256 = vld [vmem:[%s3 + $0x18] sm:$0xff]
  %v257 = vld [vmem:[%s4] sm:$0x1]
  %v259 = vlaneseq
  %v260 = vshrl.u32 %v259, 7
  %v261 = vsub.s32 0, %v260
  %v262 = vrot.slane %v257, %v261
  %v265 = vsel %vm52, %v174, 0
  %v268 = vsel %vm52, %v175, 0
  %v271 = vsel %vm52, %v176, 0
  %v274 = vsel %vm52, %v177, 0
  %v277 = vsel %vm52, %v178, 0
  %v280 = vsel %vm52, %v179, 0
  %v283 = vsel %vm52, %v180, 0
  %v286 = vsel %vm52, %v181, 0
  %288 = vmatprep.subr.mxu0 0.0
  %289 = vmatpush1.msra.mxu0 0.0
  %290 = vmatprep.subr.mxu0 0.0
  %291 = vmatpush1.msra.mxu0 0.0
  %292 = vmatprep.subr.mxu0 0.0
  %293 = vmatpush1.msra.mxu0 0.0
  %294 = vmatprep.subr.mxu0 0.0
  %295 = vmatpush1.msra.mxu0 0.0
  %296 = vmatprep.subr.mxu0 0.0
  %297 = vmatpush1.msra.mxu0 0.0
  %298 = vmatprep.subr.mxu0 0.0
  %299 = vmatpush1.msra.mxu0 0.0
  %300 = vmatprep.subr.mxu0 0.0
  %301 = vmatpush1.msra.mxu0 0.0
  %302 = vmatprep.subr.mxu0 0.0
  %303 = vmatpush1.msra.mxu0 0.0
  %304 = vmatprep.subr.mxu0 0.0
  %305 = vmatpush1.msra.mxu0 0.0
  %306 = vmatprep.subr.mxu0 0.0
  %307 = vmatpush1.msra.mxu0 0.0
  %308 = vmatprep.subr.mxu0 0.0
  %309 = vmatpush1.msra.mxu0 0.0
  %310 = vmatprep.subr.mxu0 0.0
  %311 = vmatpush1.msra.mxu0 0.0
  %312 = vmatprep.subr.mxu0 0.0
  %313 = vmatpush1.msra.mxu0 %v256
  %314 = vmatprep.subr.mxu0 0.0
  %315 = vmatpush1.msra.mxu0 %v255
  %316 = vmatprep.subr.mxu0 0.0
  %317 = vmatpush1.msra.mxu0 %v254
  %318 = vmatprep.subr.mxu0 0.0
  %319 = vmatpush1.msra.mxu0 %v253
  %320 = vmatprep.subr.mxu0 0.0
  %321 = vmatpush2.msra.mxu0 0.0
  %322 = vmatprep.subr.mxu0 0.0
  %323 = vmatpush2.msra.mxu0 0.0
  %324 = vmatprep.subr.mxu0 0.0
  %325 = vmatpush2.msra.mxu0 0.0
  %326 = vmatprep.subr.mxu0 0.0
  %327 = vmatpush2.msra.mxu0 0.0
  %328 = vmatprep.subr.mxu0 0.0
  %329 = vmatpush2.msra.mxu0 0.0
  %330 = vmatprep.subr.mxu0 0.0
  %331 = vmatpush2.msra.mxu0 0.0
  %332 = vmatprep.subr.mxu0 0.0
  %333 = vmatpush2.msra.mxu0 0.0
  %334 = vmatprep.subr.mxu0 0.0
  %335 = vmatpush2.msra.mxu0 0.0
  %336 = vmatprep.subr.mxu0 0.0
  %337 = vmatpush2.msra.mxu0 0.0
  %338 = vmatprep.subr.mxu0 0.0
  %339 = vmatpush2.msra.mxu0 0.0
  %340 = vmatprep.subr.mxu0 0.0
  %341 = vmatpush2.msra.mxu0 0.0
  %342 = vmatprep.subr.mxu0 0.0
  %343 = vmatpush2.msra.mxu0 0.0
  %344 = vmatprep.subr.mxu0 0.0
  %345 = vmatpush2.msra.mxu0 0.0
  %346 = vmatprep.subr.mxu0 0.0
  %347 = vmatpush2.msra.mxu0 0.0
  %348 = vmatprep.subr.mxu0 0.0
  %349 = vmatpush2.msra.mxu0 0.0
  %350 = vmatprep.subr.mxu0 0.0
  %351 = vmatpush2.msra.mxu0 0.0
  %352 = vmatprep.mubr.f32.mxu0 0.0
  %353 = vmatmul.mubr.f32.gmra.mxu0 %v265
  %v354 = vpop.f32.mrf.mxu0
  %v355 = vadd.f32 %v262, %v354
  %v356 = vpop.f32.mrf.mxu0
  %357 = vmatprep.mubr.f32.mxu0 0.0
  %358 = vmatmul.mubr.f32.gmra.mxu0 %v268
  %v359 = vpop.f32.mrf.mxu0
  %v360 = vadd.f32 %v262, %v359
  %v361 = vpop.f32.mrf.mxu0
  %362 = vmatprep.mubr.f32.mxu0 0.0
  %363 = vmatmul.mubr.f32.gmra.mxu0 %v271
  %v364 = vpop.f32.mrf.mxu0
  %v365 = vadd.f32 %v262, %v364
  %v366 = vpop.f32.mrf.mxu0
  %367 = vmatprep.mubr.f32.mxu0 0.0
  %368 = vmatmul.mubr.f32.gmra.mxu0 %v274
  %v369 = vpop.f32.mrf.mxu0
  %v370 = vadd.f32 %v262, %v369
  %v371 = vpop.f32.mrf.mxu0
  %372 = vmatprep.mubr.f32.mxu0 0.0
  %373 = vmatmul.mubr.f32.gmra.mxu0 %v277
  %v374 = vpop.f32.mrf.mxu0
  %v375 = vadd.f32 %v262, %v374
  %v376 = vpop.f32.mrf.mxu0
  %377 = vmatprep.mubr.f32.mxu0 0.0
  %378 = vmatmul.mubr.f32.gmra.mxu0 %v280
  %v379 = vpop.f32.mrf.mxu0
  %v380 = vadd.f32 %v262, %v379
  %v381 = vpop.f32.mrf.mxu0
  %382 = vmatprep.mubr.f32.mxu0 0.0
  %383 = vmatmul.mubr.f32.gmra.mxu0 %v283
  %v384 = vpop.f32.mrf.mxu0
  %v385 = vadd.f32 %v262, %v384
  %v386 = vpop.f32.mrf.mxu0
  %387 = vmatprep.mubr.f32.mxu0 0.0
  %388 = vmatmul.mubr.f32.gmra.mxu0 %v286
  %v389 = vpop.f32.mrf.mxu0
  %v390 = vadd.f32 %v262, %v389
  %v391 = vpop.f32.mrf.mxu0
  %392 = vdwg.mxu0
  %401 = vrot.lane.b32.xlu0 %v355, 96
  %v402 = vpop.permute.xlu0 %401
  %403 = vrot.lane.b32.xlu0 %v360, 96
  %v404 = vpop.permute.xlu0 %403
  %405 = vrot.lane.b32.xlu0 %v365, 96
  %v406 = vpop.permute.xlu0 %405
  %407 = vrot.lane.b32.xlu0 %v370, 96
  %v408 = vpop.permute.xlu0 %407
  %409 = vrot.lane.b32.xlu0 %v375, 96
  %v410 = vpop.permute.xlu0 %409
  %411 = vrot.lane.b32.xlu0 %v380, 96
  %v412 = vpop.permute.xlu0 %411
  %413 = vrot.lane.b32.xlu0 %v385, 96
  %v414 = vpop.permute.xlu0 %413
  %415 = vrot.lane.b32.xlu0 %v390, 96
  %v416 = vpop.permute.xlu0 %415
  %vm417 = vcmask 130048
  %v418 = vsel %vm417, %v355, 0
  %v420 = vsel %vm417, %v360, 0
  %v422 = vsel %vm417, %v365, 0
  %v424 = vsel %vm417, %v370, 0
  %v426 = vsel %vm417, %v375, 0
  %v428 = vsel %vm417, %v380, 0
  %v430 = vsel %vm417, %v385, 0
  %v432 = vsel %vm417, %v390, 0
  %v434 = vsel %vm417, %v402, 0
  %v436 = vsel %vm417, %v404, 0
  %v438 = vsel %vm417, %v406, 0
  %v440 = vsel %vm417, %v408, 0
  %v442 = vsel %vm417, %v410, 0
  %v444 = vsel %vm417, %v412, 0
  %v446 = vsel %vm417, %v414, 0
  %v448 = vsel %vm417, %v416, 0
  %450 = vmatprep.subr.mxu0 0.0
  %451 = vmatpush1.xpose.msra.mxu0 0.0
  %452 = vmatprep.subr.mxu0 0.0
  %453 = vmatpush1.xpose.msra.mxu0 0.0
  %454 = vmatprep.subr.mxu0 0.0
  %455 = vmatpush1.xpose.msra.mxu0 0.0
  %456 = vmatprep.subr.mxu0 0.0
  %457 = vmatpush1.xpose.msra.mxu0 0.0
  %458 = vmatprep.subr.mxu0 0.0
  %459 = vmatpush1.xpose.msra.mxu0 0.0
  %460 = vmatprep.subr.mxu0 0.0
  %461 = vmatpush1.xpose.msra.mxu0 0.0
  %462 = vmatprep.subr.mxu0 0.0
  %463 = vmatpush1.xpose.msra.mxu0 0.0
  %464 = vmatprep.subr.mxu0 0.0
  %465 = vmatpush1.xpose.msra.mxu0 0.0
  %466 = vmatprep.subr.mxu0 0.0
  %467 = vmatpush1.xpose.msra.mxu0 %v448
  %468 = vmatprep.subr.mxu0 0.0
  %469 = vmatpush1.xpose.msra.mxu0 %v446
  %470 = vmatprep.subr.mxu0 0.0
  %471 = vmatpush1.xpose.msra.mxu0 %v444
  %472 = vmatprep.subr.mxu0 0.0
  %473 = vmatpush1.xpose.msra.mxu0 %v442
  %474 = vmatprep.subr.mxu0 0.0
  %475 = vmatpush1.xpose.msra.mxu0 %v440
  %476 = vmatprep.subr.mxu0 0.0
  %477 = vmatpush1.xpose.msra.mxu0 %v438
  %478 = vmatprep.subr.mxu0 0.0
  %479 = vmatpush1.xpose.msra.mxu0 %v436
  %480 = vmatprep.subr.mxu0 0.0
  %481 = vmatpush1.xpose.msra.mxu0 %v434
  %482 = vmatprep.subr.mxu0 0.0
  %483 = vmatpush2.xpose.msra.mxu0 0.0
  %484 = vmatprep.subr.mxu0 0.0
  %485 = vmatpush2.xpose.msra.mxu0 0.0
  %486 = vmatprep.subr.mxu0 0.0
  %487 = vmatpush2.xpose.msra.mxu0 0.0
  %488 = vmatprep.subr.mxu0 0.0
  %489 = vmatpush2.xpose.msra.mxu0 0.0
  %490 = vmatprep.subr.mxu0 0.0
  %491 = vmatpush2.xpose.msra.mxu0 0.0
  %492 = vmatprep.subr.mxu0 0.0
  %493 = vmatpush2.xpose.msra.mxu0 0.0
  %494 = vmatprep.subr.mxu0 0.0
  %495 = vmatpush2.xpose.msra.mxu0 0.0
  %496 = vmatprep.subr.mxu0 0.0
  %497 = vmatpush2.xpose.msra.mxu0 0.0
  %498 = vmatprep.subr.mxu0 0.0
  %499 = vmatpush2.xpose.msra.mxu0 0.0
  %500 = vmatprep.subr.mxu0 0.0
  %501 = vmatpush2.xpose.msra.mxu0 0.0
  %502 = vmatprep.subr.mxu0 0.0
  %503 = vmatpush2.xpose.msra.mxu0 0.0
  %504 = vmatprep.subr.mxu0 0.0
  %505 = vmatpush2.xpose.msra.mxu0 0.0
  %506 = vmatprep.subr.mxu0 0.0
  %507 = vmatpush2.xpose.msra.mxu0 0.0
  %508 = vmatprep.subr.mxu0 0.0
  %509 = vmatpush2.xpose.msra.mxu0 0.0
  %510 = vmatprep.subr.mxu0 0.0
  %511 = vmatpush2.xpose.msra.mxu0 0.0
  %512 = vmatprep.subr.mxu0 0.0
  %513 = vmatpush2.xpose.msra.mxu0 0.0
  %514 = vmatprep.mubr.f32.mxu0 0.0
  %515 = vmatmul.mubr.f32.gmra.mxu0 %v418
  %v516 = vpop.f32.mrf.mxu0
  %v517 = vadd.f32 0.0, %v516
  %v518 = vpop.f32.mrf.mxu0
  %519 = vmatprep.mubr.f32.mxu0 0.0
  %520 = vmatmul.mubr.f32.gmra.mxu0 %v420
  %v521 = vpop.f32.mrf.mxu0
  %v522 = vadd.f32 0.0, %v521
  %v523 = vpop.f32.mrf.mxu0
  %524 = vmatprep.mubr.f32.mxu0 0.0
  %525 = vmatmul.mubr.f32.gmra.mxu0 %v422
  %v526 = vpop.f32.mrf.mxu0
  %v527 = vadd.f32 0.0, %v526
  %v528 = vpop.f32.mrf.mxu0
  %529 = vmatprep.mubr.f32.mxu0 0.0
  %530 = vmatmul.mubr.f32.gmra.mxu0 %v424
  %v531 = vpop.f32.mrf.mxu0
  %v532 = vadd.f32 0.0, %v531
  %v533 = vpop.f32.mrf.mxu0
  %534 = vmatprep.mubr.f32.mxu0 0.0
  %535 = vmatmul.mubr.f32.gmra.mxu0 %v426
  %v536 = vpop.f32.mrf.mxu0
  %v537 = vadd.f32 0.0, %v536
  %v538 = vpop.f32.mrf.mxu0
  %539 = vmatprep.mubr.f32.mxu0 0.0
  %540 = vmatmul.mubr.f32.gmra.mxu0 %v428
  %v541 = vpop.f32.mrf.mxu0
  %v542 = vadd.f32 0.0, %v541
  %v543 = vpop.f32.mrf.mxu0
  %544 = vmatprep.mubr.f32.mxu0 0.0
  %545 = vmatmul.mubr.f32.gmra.mxu0 %v430
  %v546 = vpop.f32.mrf.mxu0
  %v547 = vadd.f32 0.0, %v546
  %v548 = vpop.f32.mrf.mxu0
  %549 = vmatprep.mubr.f32.mxu0 0.0
  %550 = vmatmul.mubr.f32.gmra.mxu0 %v432
  %v551 = vpop.f32.mrf.mxu0
  %v552 = vadd.f32 0.0, %v551
  %v553 = vpop.f32.mrf.mxu0
  %554 = vdwg.mxu0
  %v555 = vmul.f32 %v517, 0.25
  %v556 = vmul.f32 %v522, 0.25
  %v557 = vmul.f32 %v527, 0.25
  %v558 = vmul.f32 %v532, 0.25
  %v559 = vmul.f32 %v537, 0.25
  %v560 = vmul.f32 %v542, 0.25
  %v561 = vmul.f32 %v547, 0.25
  %v562 = vmul.f32 %v552, 0.25
  %v563 = vadd.f32 %v555, %v245
  %v564 = vadd.f32 %v556, %v246
  %v565 = vadd.f32 %v557, %v247
  %v566 = vadd.f32 %v558, %v248
  %v567 = vadd.f32 %v559, %v249
  %v568 = vadd.f32 %v560, %v250
  %v569 = vadd.f32 %v561, %v251
  %v570 = vadd.f32 %v562, %v252
  %vm571 = vcmask 523264
  %v572 = vsel %vm571, %v563, -inf
  %573 = vmax.xlane.f32.xlu0 %v572
  %v574 = vpop.xlane.xlu0 %573
  %v575 = vsel %vm571, %v564, -inf
  %576 = vmax.xlane.f32.xlu0 %v575
  %v577 = vpop.xlane.xlu0 %576
  %v578 = vsel %vm571, %v565, -inf
  %579 = vmax.xlane.f32.xlu0 %v578
  %v580 = vpop.xlane.xlu0 %579
  %v581 = vsel %vm571, %v566, -inf
  %582 = vmax.xlane.f32.xlu0 %v581
  %v583 = vpop.xlane.xlu0 %582
  %v584 = vsel %vm571, %v567, -inf
  %585 = vmax.xlane.f32.xlu0 %v584
  %v586 = vpop.xlane.xlu0 %585
  %v587 = vsel %vm571, %v568, -inf
  %588 = vmax.xlane.f32.xlu0 %v587
  %v589 = vpop.xlane.xlu0 %588
  %v590 = vsel %vm571, %v569, -inf
  %591 = vmax.xlane.f32.xlu0 %v590
  %v592 = vpop.xlane.xlu0 %591
  %v593 = vsel %vm571, %v570, -inf
  %594 = vmax.xlane.f32.xlu0 %v593
  %v595 = vpop.xlane.xlu0 %594
  %v596 = vsub.f32 %v563, %v574
  %v597 = vsub.f32 %v564, %v577
  %v598 = vsub.f32 %v565, %v580
  %v599 = vsub.f32 %v566, %v583
  %v600 = vsub.f32 %v567, %v586
  %v601 = vsub.f32 %v568, %v589
  %v602 = vsub.f32 %v569, %v592
  %v603 = vsub.f32 %v570, %v595
  %v604 = vmul.f32 %v596, 1.442695
  %v605 = vpow.pop %v604
  %v606 = vmul.f32 %v597, 1.442695
  %v607 = vpow.pop %v606
  %v608 = vmul.f32 %v598, 1.442695
  %v609 = vpow.pop %v608
  %v610 = vmul.f32 %v599, 1.442695
  %v611 = vpow.pop %v610
  %v612 = vmul.f32 %v600, 1.442695
  %v613 = vpow.pop %v612
  %v614 = vmul.f32 %v601, 1.442695
  %v615 = vpow.pop %v614
  %v616 = vmul.f32 %v602, 1.442695
  %v617 = vpow.pop %v616
  %v618 = vmul.f32 %v603, 1.442695
  %v619 = vpow.pop %v618
  %v620 = vsel %vm571, %v605, 0.0
  %621 = vadd.xlane.f32.xlu0 %v620
  %v622 = vpop.xlane.xlu0 %621
  %v623 = vsel %vm571, %v607, 0.0
  %624 = vadd.xlane.f32.xlu0 %v623
  %v625 = vpop.xlane.xlu0 %624
  %v626 = vsel %vm571, %v609, 0.0
  %627 = vadd.xlane.f32.xlu0 %v626
  %v628 = vpop.xlane.xlu0 %627
  %v629 = vsel %vm571, %v611, 0.0
  %630 = vadd.xlane.f32.xlu0 %v629
  %v631 = vpop.xlane.xlu0 %630
  %v632 = vsel %vm571, %v613, 0.0
  %633 = vadd.xlane.f32.xlu0 %v632
  %v634 = vpop.xlane.xlu0 %633
  %v635 = vsel %vm571, %v615, 0.0
  %636 = vadd.xlane.f32.xlu0 %v635
  %v637 = vpop.xlane.xlu0 %636
  %v638 = vsel %vm571, %v617, 0.0
  %639 = vadd.xlane.f32.xlu0 %v638
  %v640 = vpop.xlane.xlu0 %639
  %v641 = vsel %vm571, %v619, 0.0
  %642 = vadd.xlane.f32.xlu0 %v641
  %v643 = vpop.xlane.xlu0 %642
  %v644 = vrcp.pop %v622
  %v645 = vrcp.pop %v625
  %v646 = vrcp.pop %v628
  %v647 = vrcp.pop %v631
  %v648 = vrcp.pop %v634
  %v649 = vrcp.pop %v637
  %v650 = vrcp.pop %v640
  %v651 = vrcp.pop %v643
  %v652 = vmul.f32 %v605, %v644
  %v653 = vmul.f32 %v607, %v645
  %v654 = vmul.f32 %v609, %v646
  %v655 = vmul.f32 %v611, %v647
  %v656 = vmul.f32 %v613, %v648
  %v657 = vmul.f32 %v615, %v649
  %v658 = vmul.f32 %v617, %v650
  %v659 = vmul.f32 %v619, %v651
  %660 = vrot.lane.b32.xlu0 %v355, 64
  %v661 = vpop.permute.xlu0 %660
  %662 = vrot.lane.b32.xlu0 %v360, 64
  %v663 = vpop.permute.xlu0 %662
  %664 = vrot.lane.b32.xlu0 %v365, 64
  %v665 = vpop.permute.xlu0 %664
  %666 = vrot.lane.b32.xlu0 %v370, 64
  %v667 = vpop.permute.xlu0 %666
  %668 = vrot.lane.b32.xlu0 %v375, 64
  %v669 = vpop.permute.xlu0 %668
  %670 = vrot.lane.b32.xlu0 %v380, 64
  %v671 = vpop.permute.xlu0 %670
  %672 = vrot.lane.b32.xlu0 %v385, 64
  %v673 = vpop.permute.xlu0 %672
  %674 = vrot.lane.b32.xlu0 %v390, 64
  %v675 = vpop.permute.xlu0 %674
  %v685 = vsel %vm571, %v652, 0
  %v688 = vsel %vm571, %v653, 0
  %v691 = vsel %vm571, %v654, 0
  %v694 = vsel %vm571, %v655, 0
  %v697 = vsel %vm571, %v656, 0
  %v700 = vsel %vm571, %v657, 0
  %v703 = vsel %vm571, %v658, 0
  %v706 = vsel %vm571, %v659, 0
  %708 = vmatprep.subr.mxu0 0.0
  %709 = vmatpush1.msra.mxu0 0.0
  %710 = vmatprep.subr.mxu0 0.0
  %711 = vmatpush1.msra.mxu0 0.0
  %712 = vmatprep.subr.mxu0 0.0
  %713 = vmatpush1.msra.mxu0 0.0
  %714 = vmatprep.subr.mxu0 0.0
  %715 = vmatpush1.msra.mxu0 0.0
  %716 = vmatprep.subr.mxu0 0.0
  %717 = vmatpush1.msra.mxu0 0.0
  %718 = vmatprep.subr.mxu0 0.0
  %719 = vmatpush1.msra.mxu0 0.0
  %720 = vmatprep.subr.mxu0 0.0
  %721 = vmatpush1.msra.mxu0 0.0
  %722 = vmatprep.subr.mxu0 0.0
  %723 = vmatpush1.msra.mxu0 0.0
  %724 = vmatprep.subr.mxu0 0.0
  %725 = vmatpush1.msra.mxu0 %v675
  %726 = vmatprep.subr.mxu0 0.0
  %727 = vmatpush1.msra.mxu0 %v673
  %728 = vmatprep.subr.mxu0 0.0
  %729 = vmatpush1.msra.mxu0 %v671
  %730 = vmatprep.subr.mxu0 0.0
  %731 = vmatpush1.msra.mxu0 %v669
  %732 = vmatprep.subr.mxu0 0.0
  %733 = vmatpush1.msra.mxu0 %v667
  %734 = vmatprep.subr.mxu0 0.0
  %735 = vmatpush1.msra.mxu0 %v665
  %736 = vmatprep.subr.mxu0 0.0
  %737 = vmatpush1.msra.mxu0 %v663
  %738 = vmatprep.subr.mxu0 0.0
  %739 = vmatpush1.msra.mxu0 %v661
  %740 = vmatprep.subr.mxu0 0.0
  %741 = vmatpush2.msra.mxu0 0.0
  %742 = vmatprep.subr.mxu0 0.0
  %743 = vmatpush2.msra.mxu0 0.0
  %744 = vmatprep.subr.mxu0 0.0
  %745 = vmatpush2.msra.mxu0 0.0
  %746 = vmatprep.subr.mxu0 0.0
  %747 = vmatpush2.msra.mxu0 0.0
  %748 = vmatprep.subr.mxu0 0.0
  %749 = vmatpush2.msra.mxu0 0.0
  %750 = vmatprep.subr.mxu0 0.0
  %751 = vmatpush2.msra.mxu0 0.0
  %752 = vmatprep.subr.mxu0 0.0
  %753 = vmatpush2.msra.mxu0 0.0
  %754 = vmatprep.subr.mxu0 0.0
  %755 = vmatpush2.msra.mxu0 0.0
  %756 = vmatprep.subr.mxu0 0.0
  %757 = vmatpush2.msra.mxu0 0.0
  %758 = vmatprep.subr.mxu0 0.0
  %759 = vmatpush2.msra.mxu0 0.0
  %760 = vmatprep.subr.mxu0 0.0
  %761 = vmatpush2.msra.mxu0 0.0
  %762 = vmatprep.subr.mxu0 0.0
  %763 = vmatpush2.msra.mxu0 0.0
  %764 = vmatprep.subr.mxu0 0.0
  %765 = vmatpush2.msra.mxu0 0.0
  %766 = vmatprep.subr.mxu0 0.0
  %767 = vmatpush2.msra.mxu0 0.0
  %768 = vmatprep.subr.mxu0 0.0
  %769 = vmatpush2.msra.mxu0 0.0
  %770 = vmatprep.subr.mxu0 0.0
  %771 = vmatpush2.msra.mxu0 0.0
  %772 = vmatprep.mubr.f32.mxu0 0.0
  %773 = vmatmul.mubr.f32.gmra.mxu0 %v685
  %v774 = vpop.f32.mrf.mxu0
  %v775 = vadd.f32 0.0, %v774
  %v776 = vpop.f32.mrf.mxu0
  %777 = vmatprep.mubr.f32.mxu0 0.0
  %778 = vmatmul.mubr.f32.gmra.mxu0 %v688
  %v779 = vpop.f32.mrf.mxu0
  %v780 = vadd.f32 0.0, %v779
  %v781 = vpop.f32.mrf.mxu0
  %782 = vmatprep.mubr.f32.mxu0 0.0
  %783 = vmatmul.mubr.f32.gmra.mxu0 %v691
  %v784 = vpop.f32.mrf.mxu0
  %v785 = vadd.f32 0.0, %v784
  %v786 = vpop.f32.mrf.mxu0
  %787 = vmatprep.mubr.f32.mxu0 0.0
  %788 = vmatmul.mubr.f32.gmra.mxu0 %v694
  %v789 = vpop.f32.mrf.mxu0
  %v790 = vadd.f32 0.0, %v789
  %v791 = vpop.f32.mrf.mxu0
  %792 = vmatprep.mubr.f32.mxu0 0.0
  %793 = vmatmul.mubr.f32.gmra.mxu0 %v697
  %v794 = vpop.f32.mrf.mxu0
  %v795 = vadd.f32 0.0, %v794
  %v796 = vpop.f32.mrf.mxu0
  %797 = vmatprep.mubr.f32.mxu0 0.0
  %798 = vmatmul.mubr.f32.gmra.mxu0 %v700
  %v799 = vpop.f32.mrf.mxu0
  %v800 = vadd.f32 0.0, %v799
  %v801 = vpop.f32.mrf.mxu0
  %802 = vmatprep.mubr.f32.mxu0 0.0
  %803 = vmatmul.mubr.f32.gmra.mxu0 %v703
  %v804 = vpop.f32.mrf.mxu0
  %v805 = vadd.f32 0.0, %v804
  %v806 = vpop.f32.mrf.mxu0
  %807 = vmatprep.mubr.f32.mxu0 0.0
  %808 = vmatmul.mubr.f32.gmra.mxu0 %v706
  %v809 = vpop.f32.mrf.mxu0
  %v810 = vadd.f32 0.0, %v809
  %v811 = vpop.f32.mrf.mxu0
  %812 = vdwg.mxu0
  %813 = vrot.lane.b32.xlu0 %v355, 112
  %v814 = vpop.permute.xlu0 %813
  %815 = vrot.lane.b32.xlu0 %v360, 112
  %v816 = vpop.permute.xlu0 %815
  %817 = vrot.lane.b32.xlu0 %v365, 112
  %v818 = vpop.permute.xlu0 %817
  %819 = vrot.lane.b32.xlu0 %v370, 112
  %v820 = vpop.permute.xlu0 %819
  %821 = vrot.lane.b32.xlu0 %v375, 112
  %v822 = vpop.permute.xlu0 %821
  %823 = vrot.lane.b32.xlu0 %v380, 112
  %v824 = vpop.permute.xlu0 %823
  %825 = vrot.lane.b32.xlu0 %v385, 112
  %v826 = vpop.permute.xlu0 %825
  %827 = vrot.lane.b32.xlu0 %v390, 112
  %v828 = vpop.permute.xlu0 %827
  %829 = vrot.lane.b32.xlu0 %v355, 80
  %v830 = vpop.permute.xlu0 %829
  %831 = vrot.lane.b32.xlu0 %v360, 80
  %v832 = vpop.permute.xlu0 %831
  %833 = vrot.lane.b32.xlu0 %v365, 80
  %v834 = vpop.permute.xlu0 %833
  %835 = vrot.lane.b32.xlu0 %v370, 80
  %v836 = vpop.permute.xlu0 %835
  %837 = vrot.lane.b32.xlu0 %v375, 80
  %v838 = vpop.permute.xlu0 %837
  %839 = vrot.lane.b32.xlu0 %v380, 80
  %v840 = vpop.permute.xlu0 %839
  %841 = vrot.lane.b32.xlu0 %v385, 80
  %v842 = vpop.permute.xlu0 %841
  %843 = vrot.lane.b32.xlu0 %v390, 80
  %v844 = vpop.permute.xlu0 %843
  %v845 = vsel %vm417, %v814, 0
  %v847 = vsel %vm417, %v816, 0
  %v849 = vsel %vm417, %v818, 0
  %v851 = vsel %vm417, %v820, 0
  %v853 = vsel %vm417, %v822, 0
  %v855 = vsel %vm417, %v824, 0
  %v857 = vsel %vm417, %v826, 0
  %v859 = vsel %vm417, %v828, 0
  %v861 = vsel %vm417, %v830, 0
  %v863 = vsel %vm417, %v832, 0
  %v865 = vsel %vm417, %v834, 0
  %v867 = vsel %vm417, %v836, 0
  %v869 = vsel %vm417, %v838, 0
  %v871 = vsel %vm417, %v840, 0
  %v873 = vsel %vm417, %v842, 0
  %v875 = vsel %vm417, %v844, 0
  %877 = vmatprep.subr.mxu0 0.0
  %878 = vmatpush1.xpose.msra.mxu0 0.0
  %879 = vmatprep.subr.mxu0 0.0
  %880 = vmatpush1.xpose.msra.mxu0 0.0
  %881 = vmatprep.subr.mxu0 0.0
  %882 = vmatpush1.xpose.msra.mxu0 0.0
  %883 = vmatprep.subr.mxu0 0.0
  %884 = vmatpush1.xpose.msra.mxu0 0.0
  %885 = vmatprep.subr.mxu0 0.0
  %886 = vmatpush1.xpose.msra.mxu0 0.0
  %887 = vmatprep.subr.mxu0 0.0
  %888 = vmatpush1.xpose.msra.mxu0 0.0
  %889 = vmatprep.subr.mxu0 0.0
  %890 = vmatpush1.xpose.msra.mxu0 0.0
  %891 = vmatprep.subr.mxu0 0.0
  %892 = vmatpush1.xpose.msra.mxu0 0.0
  %893 = vmatprep.subr.mxu0 0.0
  %894 = vmatpush1.xpose.msra.mxu0 %v875
  %895 = vmatprep.subr.mxu0 0.0
  %896 = vmatpush1.xpose.msra.mxu0 %v873
  %897 = vmatprep.subr.mxu0 0.0
  %898 = vmatpush1.xpose.msra.mxu0 %v871
  %899 = vmatprep.subr.mxu0 0.0
  %900 = vmatpush1.xpose.msra.mxu0 %v869
  %901 = vmatprep.subr.mxu0 0.0
  %902 = vmatpush1.xpose.msra.mxu0 %v867
  %903 = vmatprep.subr.mxu0 0.0
  %904 = vmatpush1.xpose.msra.mxu0 %v865
  %905 = vmatprep.subr.mxu0 0.0
  %906 = vmatpush1.xpose.msra.mxu0 %v863
  %907 = vmatprep.subr.mxu0 0.0
  %908 = vmatpush1.xpose.msra.mxu0 %v861
  %909 = vmatprep.subr.mxu0 0.0
  %910 = vmatpush2.xpose.msra.mxu0 0.0
  %911 = vmatprep.subr.mxu0 0.0
  %912 = vmatpush2.xpose.msra.mxu0 0.0
  %913 = vmatprep.subr.mxu0 0.0
  %914 = vmatpush2.xpose.msra.mxu0 0.0
  %915 = vmatprep.subr.mxu0 0.0
  %916 = vmatpush2.xpose.msra.mxu0 0.0
  %917 = vmatprep.subr.mxu0 0.0
  %918 = vmatpush2.xpose.msra.mxu0 0.0
  %919 = vmatprep.subr.mxu0 0.0
  %920 = vmatpush2.xpose.msra.mxu0 0.0
  %921 = vmatprep.subr.mxu0 0.0
  %922 = vmatpush2.xpose.msra.mxu0 0.0
  %923 = vmatprep.subr.mxu0 0.0
  %924 = vmatpush2.xpose.msra.mxu0 0.0
  %925 = vmatprep.subr.mxu0 0.0
  %926 = vmatpush2.xpose.msra.mxu0 0.0
  %927 = vmatprep.subr.mxu0 0.0
  %928 = vmatpush2.xpose.msra.mxu0 0.0
  %929 = vmatprep.subr.mxu0 0.0
  %930 = vmatpush2.xpose.msra.mxu0 0.0
  %931 = vmatprep.subr.mxu0 0.0
  %932 = vmatpush2.xpose.msra.mxu0 0.0
  %933 = vmatprep.subr.mxu0 0.0
  %934 = vmatpush2.xpose.msra.mxu0 0.0
  %935 = vmatprep.subr.mxu0 0.0
  %936 = vmatpush2.xpose.msra.mxu0 0.0
  %937 = vmatprep.subr.mxu0 0.0
  %938 = vmatpush2.xpose.msra.mxu0 0.0
  %939 = vmatprep.subr.mxu0 0.0
  %940 = vmatpush2.xpose.msra.mxu0 0.0
  %941 = vmatprep.mubr.f32.mxu0 0.0
  %942 = vmatmul.mubr.f32.gmra.mxu0 %v845
  %v943 = vpop.f32.mrf.mxu0
  %v944 = vadd.f32 0.0, %v943
  %v945 = vpop.f32.mrf.mxu0
  %946 = vmatprep.mubr.f32.mxu0 0.0
  %947 = vmatmul.mubr.f32.gmra.mxu0 %v847
  %v948 = vpop.f32.mrf.mxu0
  %v949 = vadd.f32 0.0, %v948
  %v950 = vpop.f32.mrf.mxu0
  %951 = vmatprep.mubr.f32.mxu0 0.0
  %952 = vmatmul.mubr.f32.gmra.mxu0 %v849
  %v953 = vpop.f32.mrf.mxu0
  %v954 = vadd.f32 0.0, %v953
  %v955 = vpop.f32.mrf.mxu0
  %956 = vmatprep.mubr.f32.mxu0 0.0
  %957 = vmatmul.mubr.f32.gmra.mxu0 %v851
  %v958 = vpop.f32.mrf.mxu0
  %v959 = vadd.f32 0.0, %v958
  %v960 = vpop.f32.mrf.mxu0
  %961 = vmatprep.mubr.f32.mxu0 0.0
  %962 = vmatmul.mubr.f32.gmra.mxu0 %v853
  %v963 = vpop.f32.mrf.mxu0
  %v964 = vadd.f32 0.0, %v963
  %v965 = vpop.f32.mrf.mxu0
  %966 = vmatprep.mubr.f32.mxu0 0.0
  %967 = vmatmul.mubr.f32.gmra.mxu0 %v855
  %v968 = vpop.f32.mrf.mxu0
  %v969 = vadd.f32 0.0, %v968
  %v970 = vpop.f32.mrf.mxu0
  %971 = vmatprep.mubr.f32.mxu0 0.0
  %972 = vmatmul.mubr.f32.gmra.mxu0 %v857
  %v973 = vpop.f32.mrf.mxu0
  %v974 = vadd.f32 0.0, %v973
  %v975 = vpop.f32.mrf.mxu0
  %976 = vmatprep.mubr.f32.mxu0 0.0
  %977 = vmatmul.mubr.f32.gmra.mxu0 %v859
  %v978 = vpop.f32.mrf.mxu0
  %v979 = vadd.f32 0.0, %v978
  %v980 = vpop.f32.mrf.mxu0
  %981 = vdwg.mxu0
  %v982 = vmul.f32 %v944, 0.25
  %v983 = vmul.f32 %v949, 0.25
  %v984 = vmul.f32 %v954, 0.25
  %v985 = vmul.f32 %v959, 0.25
  %v986 = vmul.f32 %v964, 0.25
  %v987 = vmul.f32 %v969, 0.25
  %v988 = vmul.f32 %v974, 0.25
  %v989 = vmul.f32 %v979, 0.25
  %v990 = vadd.f32 %v982, %v245
  %v991 = vadd.f32 %v983, %v246
  %v992 = vadd.f32 %v984, %v247
  %v993 = vadd.f32 %v985, %v248
  %v994 = vadd.f32 %v986, %v249
  %v995 = vadd.f32 %v987, %v250
  %v996 = vadd.f32 %v988, %v251
  %v997 = vadd.f32 %v989, %v252
  %v998 = vsel %vm571, %v990, -inf
  %999 = vmax.xlane.f32.xlu0 %v998
  %v1000 = vpop.xlane.xlu0 %999
  %v1001 = vsel %vm571, %v991, -inf
  %1002 = vmax.xlane.f32.xlu0 %v1001
  %v1003 = vpop.xlane.xlu0 %1002
  %v1004 = vsel %vm571, %v992, -inf
  %1005 = vmax.xlane.f32.xlu0 %v1004
  %v1006 = vpop.xlane.xlu0 %1005
  %v1007 = vsel %vm571, %v993, -inf
  %1008 = vmax.xlane.f32.xlu0 %v1007
  %v1009 = vpop.xlane.xlu0 %1008
  %v1010 = vsel %vm571, %v994, -inf
  %1011 = vmax.xlane.f32.xlu0 %v1010
  %v1012 = vpop.xlane.xlu0 %1011
  %v1013 = vsel %vm571, %v995, -inf
  %1014 = vmax.xlane.f32.xlu0 %v1013
  %v1015 = vpop.xlane.xlu0 %1014
  %v1016 = vsel %vm571, %v996, -inf
  %1017 = vmax.xlane.f32.xlu0 %v1016
  %v1018 = vpop.xlane.xlu0 %1017
  %v1019 = vsel %vm571, %v997, -inf
  %1020 = vmax.xlane.f32.xlu0 %v1019
  %v1021 = vpop.xlane.xlu0 %1020
  %v1022 = vsub.f32 %v990, %v1000
  %v1023 = vsub.f32 %v991, %v1003
  %v1024 = vsub.f32 %v992, %v1006
  %v1025 = vsub.f32 %v993, %v1009
  %v1026 = vsub.f32 %v994, %v1012
  %v1027 = vsub.f32 %v995, %v1015
  %v1028 = vsub.f32 %v996, %v1018
  %v1029 = vsub.f32 %v997, %v1021
  %v1030 = vmul.f32 %v1022, 1.442695
  %v1031 = vpow.pop %v1030
  %v1032 = vmul.f32 %v1023, 1.442695
  %v1033 = vpow.pop %v1032
  %v1034 = vmul.f32 %v1024, 1.442695
  %v1035 = vpow.pop %v1034
  %v1036 = vmul.f32 %v1025, 1.442695
  %v1037 = vpow.pop %v1036
  %v1038 = vmul.f32 %v1026, 1.442695
  %v1039 = vpow.pop %v1038
  %v1040 = vmul.f32 %v1027, 1.442695
  %v1041 = vpow.pop %v1040
  %v1042 = vmul.f32 %v1028, 1.442695
  %v1043 = vpow.pop %v1042
  %v1044 = vmul.f32 %v1029, 1.442695
  %v1045 = vpow.pop %v1044
  %v1046 = vsel %vm571, %v1031, 0.0
  %1047 = vadd.xlane.f32.xlu0 %v1046
  %v1048 = vpop.xlane.xlu0 %1047
  %v1049 = vsel %vm571, %v1033, 0.0
  %1050 = vadd.xlane.f32.xlu0 %v1049
  %v1051 = vpop.xlane.xlu0 %1050
  %v1052 = vsel %vm571, %v1035, 0.0
  %1053 = vadd.xlane.f32.xlu0 %v1052
  %v1054 = vpop.xlane.xlu0 %1053
  %v1055 = vsel %vm571, %v1037, 0.0
  %1056 = vadd.xlane.f32.xlu0 %v1055
  %v1057 = vpop.xlane.xlu0 %1056
  %v1058 = vsel %vm571, %v1039, 0.0
  %1059 = vadd.xlane.f32.xlu0 %v1058
  %v1060 = vpop.xlane.xlu0 %1059
  %v1061 = vsel %vm571, %v1041, 0.0
  %1062 = vadd.xlane.f32.xlu0 %v1061
  %v1063 = vpop.xlane.xlu0 %1062
  %v1064 = vsel %vm571, %v1043, 0.0
  %1065 = vadd.xlane.f32.xlu0 %v1064
  %v1066 = vpop.xlane.xlu0 %1065
  %v1067 = vsel %vm571, %v1045, 0.0
  %1068 = vadd.xlane.f32.xlu0 %v1067
  %v1069 = vpop.xlane.xlu0 %1068
  %v1070 = vrcp.pop %v1048
  %v1071 = vrcp.pop %v1051
  %v1072 = vrcp.pop %v1054
  %v1073 = vrcp.pop %v1057
  %v1074 = vrcp.pop %v1060
  %v1075 = vrcp.pop %v1063
  %v1076 = vrcp.pop %v1066
  %v1077 = vrcp.pop %v1069
  %v1078 = vmul.f32 %v1031, %v1070
  %v1079 = vmul.f32 %v1033, %v1071
  %v1080 = vmul.f32 %v1035, %v1072
  %v1081 = vmul.f32 %v1037, %v1073
  %v1082 = vmul.f32 %v1039, %v1074
  %v1083 = vmul.f32 %v1041, %v1075
  %v1084 = vmul.f32 %v1043, %v1076
  %v1085 = vmul.f32 %v1045, %v1077
  %1086 = vrot.lane.b32.xlu0 %v355, 48
  %v1087 = vpop.permute.xlu0 %1086
  %1088 = vrot.lane.b32.xlu0 %v360, 48
  %v1089 = vpop.permute.xlu0 %1088
  %1090 = vrot.lane.b32.xlu0 %v365, 48
  %v1091 = vpop.permute.xlu0 %1090
  %1092 = vrot.lane.b32.xlu0 %v370, 48
  %v1093 = vpop.permute.xlu0 %1092
  %1094 = vrot.lane.b32.xlu0 %v375, 48
  %v1095 = vpop.permute.xlu0 %1094
  %1096 = vrot.lane.b32.xlu0 %v380, 48
  %v1097 = vpop.permute.xlu0 %1096
  %1098 = vrot.lane.b32.xlu0 %v385, 48
  %v1099 = vpop.permute.xlu0 %1098
  %1100 = vrot.lane.b32.xlu0 %v390, 48
  %v1101 = vpop.permute.xlu0 %1100
  %v1111 = vsel %vm571, %v1078, 0
  %v1114 = vsel %vm571, %v1079, 0
  %v1117 = vsel %vm571, %v1080, 0
  %v1120 = vsel %vm571, %v1081, 0
  %v1123 = vsel %vm571, %v1082, 0
  %v1126 = vsel %vm571, %v1083, 0
  %v1129 = vsel %vm571, %v1084, 0
  %v1132 = vsel %vm571, %v1085, 0
  %1134 = vmatprep.subr.mxu0 0.0
  %1135 = vmatpush1.msra.mxu0 0.0
  %1136 = vmatprep.subr.mxu0 0.0
  %1137 = vmatpush1.msra.mxu0 0.0
  %1138 = vmatprep.subr.mxu0 0.0
  %1139 = vmatpush1.msra.mxu0 0.0
  %1140 = vmatprep.subr.mxu0 0.0
  %1141 = vmatpush1.msra.mxu0 0.0
  %1142 = vmatprep.subr.mxu0 0.0
  %1143 = vmatpush1.msra.mxu0 0.0
  %1144 = vmatprep.subr.mxu0 0.0
  %1145 = vmatpush1.msra.mxu0 0.0
  %1146 = vmatprep.subr.mxu0 0.0
  %1147 = vmatpush1.msra.mxu0 0.0
  %1148 = vmatprep.subr.mxu0 0.0
  %1149 = vmatpush1.msra.mxu0 0.0
  %1150 = vmatprep.subr.mxu0 0.0
  %1151 = vmatpush1.msra.mxu0 %v1101
  %1152 = vmatprep.subr.mxu0 0.0
  %1153 = vmatpush1.msra.mxu0 %v1099
  %1154 = vmatprep.subr.mxu0 0.0
  %1155 = vmatpush1.msra.mxu0 %v1097
  %1156 = vmatprep.subr.mxu0 0.0
  %1157 = vmatpush1.msra.mxu0 %v1095
  %1158 = vmatprep.subr.mxu0 0.0
  %1159 = vmatpush1.msra.mxu0 %v1093
  %1160 = vmatprep.subr.mxu0 0.0
  %1161 = vmatpush1.msra.mxu0 %v1091
  %1162 = vmatprep.subr.mxu0 0.0
  %1163 = vmatpush1.msra.mxu0 %v1089
  %1164 = vmatprep.subr.mxu0 0.0
  %1165 = vmatpush1.msra.mxu0 %v1087
  %1166 = vmatprep.subr.mxu0 0.0
  %1167 = vmatpush2.msra.mxu0 0.0
  %1168 = vmatprep.subr.mxu0 0.0
  %1169 = vmatpush2.msra.mxu0 0.0
  %1170 = vmatprep.subr.mxu0 0.0
  %1171 = vmatpush2.msra.mxu0 0.0
  %1172 = vmatprep.subr.mxu0 0.0
  %1173 = vmatpush2.msra.mxu0 0.0
  %1174 = vmatprep.subr.mxu0 0.0
  %1175 = vmatpush2.msra.mxu0 0.0
  %1176 = vmatprep.subr.mxu0 0.0
  %1177 = vmatpush2.msra.mxu0 0.0
  %1178 = vmatprep.subr.mxu0 0.0
  %1179 = vmatpush2.msra.mxu0 0.0
  %1180 = vmatprep.subr.mxu0 0.0
  %1181 = vmatpush2.msra.mxu0 0.0
  %1182 = vmatprep.subr.mxu0 0.0
  %1183 = vmatpush2.msra.mxu0 0.0
  %1184 = vmatprep.subr.mxu0 0.0
  %1185 = vmatpush2.msra.mxu0 0.0
  %1186 = vmatprep.subr.mxu0 0.0
  %1187 = vmatpush2.msra.mxu0 0.0
  %1188 = vmatprep.subr.mxu0 0.0
  %1189 = vmatpush2.msra.mxu0 0.0
  %1190 = vmatprep.subr.mxu0 0.0
  %1191 = vmatpush2.msra.mxu0 0.0
  %1192 = vmatprep.subr.mxu0 0.0
  %1193 = vmatpush2.msra.mxu0 0.0
  %1194 = vmatprep.subr.mxu0 0.0
  %1195 = vmatpush2.msra.mxu0 0.0
  %1196 = vmatprep.subr.mxu0 0.0
  %1197 = vmatpush2.msra.mxu0 0.0
  %1198 = vmatprep.mubr.f32.mxu0 0.0
  %1199 = vmatmul.mubr.f32.gmra.mxu0 %v1111
  %v1200 = vpop.f32.mrf.mxu0
  %v1201 = vadd.f32 0.0, %v1200
  %v1202 = vpop.f32.mrf.mxu0
  %1203 = vmatprep.mubr.f32.mxu0 0.0
  %1204 = vmatmul.mubr.f32.gmra.mxu0 %v1114
  %v1205 = vpop.f32.mrf.mxu0
  %v1206 = vadd.f32 0.0, %v1205
  %v1207 = vpop.f32.mrf.mxu0
  %1208 = vmatprep.mubr.f32.mxu0 0.0
  %1209 = vmatmul.mubr.f32.gmra.mxu0 %v1117
  %v1210 = vpop.f32.mrf.mxu0
  %v1211 = vadd.f32 0.0, %v1210
  %v1212 = vpop.f32.mrf.mxu0
  %1213 = vmatprep.mubr.f32.mxu0 0.0
  %1214 = vmatmul.mubr.f32.gmra.mxu0 %v1120
  %v1215 = vpop.f32.mrf.mxu0
  %v1216 = vadd.f32 0.0, %v1215
  %v1217 = vpop.f32.mrf.mxu0
  %1218 = vmatprep.mubr.f32.mxu0 0.0
  %1219 = vmatmul.mubr.f32.gmra.mxu0 %v1123
  %v1220 = vpop.f32.mrf.mxu0
  %v1221 = vadd.f32 0.0, %v1220
  %v1222 = vpop.f32.mrf.mxu0
  %1223 = vmatprep.mubr.f32.mxu0 0.0
  %1224 = vmatmul.mubr.f32.gmra.mxu0 %v1126
  %v1225 = vpop.f32.mrf.mxu0
  %v1226 = vadd.f32 0.0, %v1225
  %v1227 = vpop.f32.mrf.mxu0
  %1228 = vmatprep.mubr.f32.mxu0 0.0
  %1229 = vmatmul.mubr.f32.gmra.mxu0 %v1129
  %v1230 = vpop.f32.mrf.mxu0
  %v1231 = vadd.f32 0.0, %v1230
  %v1232 = vpop.f32.mrf.mxu0
  %1233 = vmatprep.mubr.f32.mxu0 0.0
  %1234 = vmatmul.mubr.f32.gmra.mxu0 %v1132
  %v1235 = vpop.f32.mrf.mxu0
  %v1236 = vadd.f32 0.0, %v1235
  %v1237 = vpop.f32.mrf.mxu0
  %1238 = vdwg.mxu0
  %1247 = vrot.lane.b32.xlu0 %v1201, 16
  %v1248 = vpop.permute.xlu0 %1247
  %1249 = vrot.lane.b32.xlu0 %v1206, 16
  %v1250 = vpop.permute.xlu0 %1249
  %1251 = vrot.lane.b32.xlu0 %v1211, 16
  %v1252 = vpop.permute.xlu0 %1251
  %1253 = vrot.lane.b32.xlu0 %v1216, 16
  %v1254 = vpop.permute.xlu0 %1253
  %1255 = vrot.lane.b32.xlu0 %v1221, 16
  %v1256 = vpop.permute.xlu0 %1255
  %1257 = vrot.lane.b32.xlu0 %v1226, 16
  %v1258 = vpop.permute.xlu0 %1257
  %1259 = vrot.lane.b32.xlu0 %v1231, 16
  %v1260 = vpop.permute.xlu0 %1259
  %1261 = vrot.lane.b32.xlu0 %v1236, 16
  %v1262 = vpop.permute.xlu0 %1261
  %v1271 = vsel %vm417, %v775, %v1248
  %v1272 = vsel %vm417, %v780, %v1250
  %v1273 = vsel %vm417, %v785, %v1252
  %v1274 = vsel %vm417, %v790, %v1254
  %v1275 = vsel %vm417, %v795, %v1256
  %v1276 = vsel %vm417, %v800, %v1258
  %v1277 = vsel %vm417, %v805, %v1260
  %v1278 = vsel %vm417, %v810, %v1262
  %v1279 = vld [vmem:[%s6] sm:$0x3f]
  %v1280 = vld [vmem:[%s5] sm:$0xff]
  %v1281 = vld [vmem:[%s5 + $0x8] sm:$0xff]
  %v1282 = vld [vmem:[%s5 + $0x10] sm:$0xff]
  %v1283 = vld [vmem:[%s5 + $0x18] sm:$0xff]
  %v1284 = vlaneseq
  %v1285 = vshrl.u32 %v1284, 7
  %v1286 = vsub.s32 0, %v1285
  %v1287 = vrot.slane %v1279, %v1286
  %v1289 = vsel %vm52, %v1271, 0
  %v1292 = vsel %vm52, %v1272, 0
  %v1295 = vsel %vm52, %v1273, 0
  %v1298 = vsel %vm52, %v1274, 0
  %v1301 = vsel %vm52, %v1275, 0
  %v1304 = vsel %vm52, %v1276, 0
  %v1307 = vsel %vm52, %v1277, 0
  %v1310 = vsel %vm52, %v1278, 0
  %1312 = vmatprep.subr.mxu0 0.0
  %1313 = vmatpush1.msra.mxu0 0.0
  %1314 = vmatprep.subr.mxu0 0.0
  %1315 = vmatpush1.msra.mxu0 0.0
  %1316 = vmatprep.subr.mxu0 0.0
  %1317 = vmatpush1.msra.mxu0 0.0
  %1318 = vmatprep.subr.mxu0 0.0
  %1319 = vmatpush1.msra.mxu0 0.0
  %1320 = vmatprep.subr.mxu0 0.0
  %1321 = vmatpush1.msra.mxu0 0.0
  %1322 = vmatprep.subr.mxu0 0.0
  %1323 = vmatpush1.msra.mxu0 0.0
  %1324 = vmatprep.subr.mxu0 0.0
  %1325 = vmatpush1.msra.mxu0 0.0
  %1326 = vmatprep.subr.mxu0 0.0
  %1327 = vmatpush1.msra.mxu0 0.0
  %1328 = vmatprep.subr.mxu0 0.0
  %1329 = vmatpush1.msra.mxu0 0.0
  %1330 = vmatprep.subr.mxu0 0.0
  %1331 = vmatpush1.msra.mxu0 0.0
  %1332 = vmatprep.subr.mxu0 0.0
  %1333 = vmatpush1.msra.mxu0 0.0
  %1334 = vmatprep.subr.mxu0 0.0
  %1335 = vmatpush1.msra.mxu0 0.0
  %1336 = vmatprep.subr.mxu0 0.0
  %1337 = vmatpush1.msra.mxu0 %v1283
  %1338 = vmatprep.subr.mxu0 0.0
  %1339 = vmatpush1.msra.mxu0 %v1282
  %1340 = vmatprep.subr.mxu0 0.0
  %1341 = vmatpush1.msra.mxu0 %v1281
  %1342 = vmatprep.subr.mxu0 0.0
  %1343 = vmatpush1.msra.mxu0 %v1280
  %1344 = vmatprep.subr.mxu0 0.0
  %1345 = vmatpush2.msra.mxu0 0.0
  %1346 = vmatprep.subr.mxu0 0.0
  %1347 = vmatpush2.msra.mxu0 0.0
  %1348 = vmatprep.subr.mxu0 0.0
  %1349 = vmatpush2.msra.mxu0 0.0
  %1350 = vmatprep.subr.mxu0 0.0
  %1351 = vmatpush2.msra.mxu0 0.0
  %1352 = vmatprep.subr.mxu0 0.0
  %1353 = vmatpush2.msra.mxu0 0.0
  %1354 = vmatprep.subr.mxu0 0.0
  %1355 = vmatpush2.msra.mxu0 0.0
  %1356 = vmatprep.subr.mxu0 0.0
  %1357 = vmatpush2.msra.mxu0 0.0
  %1358 = vmatprep.subr.mxu0 0.0
  %1359 = vmatpush2.msra.mxu0 0.0
  %1360 = vmatprep.subr.mxu0 0.0
  %1361 = vmatpush2.msra.mxu0 0.0
  %1362 = vmatprep.subr.mxu0 0.0
  %1363 = vmatpush2.msra.mxu0 0.0
  %1364 = vmatprep.subr.mxu0 0.0
  %1365 = vmatpush2.msra.mxu0 0.0
  %1366 = vmatprep.subr.mxu0 0.0
  %1367 = vmatpush2.msra.mxu0 0.0
  %1368 = vmatprep.subr.mxu0 0.0
  %1369 = vmatpush2.msra.mxu0 0.0
  %1370 = vmatprep.subr.mxu0 0.0
  %1371 = vmatpush2.msra.mxu0 0.0
  %1372 = vmatprep.subr.mxu0 0.0
  %1373 = vmatpush2.msra.mxu0 0.0
  %1374 = vmatprep.subr.mxu0 0.0
  %1375 = vmatpush2.msra.mxu0 0.0
  %1376 = vmatprep.mubr.f32.mxu0 0.0
  %1377 = vmatmul.mubr.f32.gmra.mxu0 %v1289
  %v1378 = vpop.f32.mrf.mxu0
  %v1379 = vadd.f32 %v1287, %v1378
  %v1380 = vpop.f32.mrf.mxu0
  %1381 = vmatprep.mubr.f32.mxu0 0.0
  %1382 = vmatmul.mubr.f32.gmra.mxu0 %v1292
  %v1383 = vpop.f32.mrf.mxu0
  %v1384 = vadd.f32 %v1287, %v1383
  %v1385 = vpop.f32.mrf.mxu0
  %1386 = vmatprep.mubr.f32.mxu0 0.0
  %1387 = vmatmul.mubr.f32.gmra.mxu0 %v1295
  %v1388 = vpop.f32.mrf.mxu0
  %v1389 = vadd.f32 %v1287, %v1388
  %v1390 = vpop.f32.mrf.mxu0
  %1391 = vmatprep.mubr.f32.mxu0 0.0
  %1392 = vmatmul.mubr.f32.gmra.mxu0 %v1298
  %v1393 = vpop.f32.mrf.mxu0
  %v1394 = vadd.f32 %v1287, %v1393
  %v1395 = vpop.f32.mrf.mxu0
  %1396 = vmatprep.mubr.f32.mxu0 0.0
  %1397 = vmatmul.mubr.f32.gmra.mxu0 %v1301
  %v1398 = vpop.f32.mrf.mxu0
  %v1399 = vadd.f32 %v1287, %v1398
  %v1400 = vpop.f32.mrf.mxu0
  %1401 = vmatprep.mubr.f32.mxu0 0.0
  %1402 = vmatmul.mubr.f32.gmra.mxu0 %v1304
  %v1403 = vpop.f32.mrf.mxu0
  %v1404 = vadd.f32 %v1287, %v1403
  %v1405 = vpop.f32.mrf.mxu0
  %1406 = vmatprep.mubr.f32.mxu0 0.0
  %1407 = vmatmul.mubr.f32.gmra.mxu0 %v1307
  %v1408 = vpop.f32.mrf.mxu0
  %v1409 = vadd.f32 %v1287, %v1408
  %v1410 = vpop.f32.mrf.mxu0
  %1411 = vmatprep.mubr.f32.mxu0 0.0
  %1412 = vmatmul.mubr.f32.gmra.mxu0 %v1310
  %v1413 = vpop.f32.mrf.mxu0
  %v1414 = vadd.f32 %v1287, %v1413
  %v1415 = vpop.f32.mrf.mxu0
  %1416 = vdwg.mxu0
  %v1417 = vadd.f32 %v1379, %v174
  %v1418 = vadd.f32 %v1384, %v175
  %v1419 = vadd.f32 %v1389, %v176
  %v1420 = vadd.f32 %v1394, %v177
  %v1421 = vadd.f32 %v1399, %v178
  %v1422 = vadd.f32 %v1404, %v179
  %v1423 = vadd.f32 %v1409, %v180
  %v1424 = vadd.f32 %v1414, %v181
  %v1425 = vsel %vm52, %v1417, 0.0
  %1426 = vadd.xlane.f32.xlu0 %v1425
  %v1427 = vpop.xlane.xlu0 %1426
  %v1428 = vsel %vm52, %v1418, 0.0
  %1429 = vadd.xlane.f32.xlu0 %v1428
  %v1430 = vpop.xlane.xlu0 %1429
  %v1431 = vsel %vm52, %v1419, 0.0
  %1432 = vadd.xlane.f32.xlu0 %v1431
  %v1433 = vpop.xlane.xlu0 %1432
  %v1434 = vsel %vm52, %v1420, 0.0
  %1435 = vadd.xlane.f32.xlu0 %v1434
  %v1436 = vpop.xlane.xlu0 %1435
  %v1437 = vsel %vm52, %v1421, 0.0
  %1438 = vadd.xlane.f32.xlu0 %v1437
  %v1439 = vpop.xlane.xlu0 %1438
  %v1440 = vsel %vm52, %v1422, 0.0
  %1441 = vadd.xlane.f32.xlu0 %v1440
  %v1442 = vpop.xlane.xlu0 %1441
  %v1443 = vsel %vm52, %v1423, 0.0
  %1444 = vadd.xlane.f32.xlu0 %v1443
  %v1445 = vpop.xlane.xlu0 %1444
  %v1446 = vsel %vm52, %v1424, 0.0
  %1447 = vadd.xlane.f32.xlu0 %v1446
  %v1448 = vpop.xlane.xlu0 %1447
  %v1449 = vmul.f32 %v1427, %v77
  %v1450 = vmul.f32 %v1430, %v77
  %v1451 = vmul.f32 %v1433, %v77
  %v1452 = vmul.f32 %v1436, %v77
  %v1453 = vmul.f32 %v1439, %v77
  %v1454 = vmul.f32 %v1442, %v77
  %v1455 = vmul.f32 %v1445, %v77
  %v1456 = vmul.f32 %v1448, %v77
  %v1457 = vsub.f32 %v1417, %v1449
  %v1458 = vsub.f32 %v1418, %v1450
  %v1459 = vsub.f32 %v1419, %v1451
  %v1460 = vsub.f32 %v1420, %v1452
  %v1461 = vsub.f32 %v1421, %v1453
  %v1462 = vsub.f32 %v1422, %v1454
  %v1463 = vsub.f32 %v1423, %v1455
  %v1464 = vsub.f32 %v1424, %v1456
  %v1465 = vmul.f32 %v1457, %v1457
  %v1466 = vmul.f32 %v1458, %v1458
  %v1467 = vmul.f32 %v1459, %v1459
  %v1468 = vmul.f32 %v1460, %v1460
  %v1469 = vmul.f32 %v1461, %v1461
  %v1470 = vmul.f32 %v1462, %v1462
  %v1471 = vmul.f32 %v1463, %v1463
  %v1472 = vmul.f32 %v1464, %v1464
  %v1473 = vsel %vm52, %v1465, 0.0
  %1474 = vadd.xlane.f32.xlu0 %v1473
  %v1475 = vpop.xlane.xlu0 %1474
  %v1476 = vsel %vm52, %v1466, 0.0
  %1477 = vadd.xlane.f32.xlu0 %v1476
  %v1478 = vpop.xlane.xlu0 %1477
  %v1479 = vsel %vm52, %v1467, 0.0
  %1480 = vadd.xlane.f32.xlu0 %v1479
  %v1481 = vpop.xlane.xlu0 %1480
  %v1482 = vsel %vm52, %v1468, 0.0
  %1483 = vadd.xlane.f32.xlu0 %v1482
  %v1484 = vpop.xlane.xlu0 %1483
  %v1485 = vsel %vm52, %v1469, 0.0
  %1486 = vadd.xlane.f32.xlu0 %v1485
  %v1487 = vpop.xlane.xlu0 %1486
  %v1488 = vsel %vm52, %v1470, 0.0
  %1489 = vadd.xlane.f32.xlu0 %v1488
  %v1490 = vpop.xlane.xlu0 %1489
  %v1491 = vsel %vm52, %v1471, 0.0
  %1492 = vadd.xlane.f32.xlu0 %v1491
  %v1493 = vpop.xlane.xlu0 %1492
  %v1494 = vsel %vm52, %v1472, 0.0
  %1495 = vadd.xlane.f32.xlu0 %v1494
  %v1496 = vpop.xlane.xlu0 %1495
  %v1497 = vmul.f32 %v1475, %v77
  %v1498 = vmul.f32 %v1478, %v77
  %v1499 = vmul.f32 %v1481, %v77
  %v1500 = vmul.f32 %v1484, %v77
  %v1501 = vmul.f32 %v1487, %v77
  %v1502 = vmul.f32 %v1490, %v77
  %v1503 = vmul.f32 %v1493, %v77
  %v1504 = vmul.f32 %v1496, %v77
  %v1505 = vadd.f32 %v1497, 1e-12
  %v1506 = vadd.f32 %v1498, 1e-12
  %v1507 = vadd.f32 %v1499, 1e-12
  %v1508 = vadd.f32 %v1500, 1e-12
  %v1509 = vadd.f32 %v1501, 1e-12
  %v1510 = vadd.f32 %v1502, 1e-12
  %v1511 = vadd.f32 %v1503, 1e-12
  %v1512 = vadd.f32 %v1504, 1e-12
  %v1513 = vrsqrt.pop %v1505
  %v1514 = vrsqrt.pop %v1506
  %v1515 = vrsqrt.pop %v1507
  %v1516 = vrsqrt.pop %v1508
  %v1517 = vrsqrt.pop %v1509
  %v1518 = vrsqrt.pop %v1510
  %v1519 = vrsqrt.pop %v1511
  %v1520 = vrsqrt.pop %v1512
  %v1521 = vmul.f32 %v1457, %v1513
  %v1522 = vmul.f32 %v1458, %v1514
  %v1523 = vmul.f32 %v1459, %v1515
  %v1524 = vmul.f32 %v1460, %v1516
  %v1525 = vmul.f32 %v1461, %v1517
  %v1526 = vmul.f32 %v1462, %v1518
  %v1527 = vmul.f32 %v1463, %v1519
  %v1528 = vmul.f32 %v1464, %v1520
  %v1529 = vlaneseq
  %v1530 = vshrl.u32 %v1529, 7
  %v1531 = vsub.s32 1, %v1530
  %v1532 = vrot.slane %v1279, %v1531
  %v1533 = vmul.f32 %v1521, %v1532
  %v1534 = vmul.f32 %v1522, %v1532
  %v1535 = vmul.f32 %v1523, %v1532
  %v1536 = vmul.f32 %v1524, %v1532
  %v1537 = vmul.f32 %v1525, %v1532
  %v1538 = vmul.f32 %v1526, %v1532
  %v1539 = vmul.f32 %v1527, %v1532
  %v1540 = vmul.f32 %v1528, %v1532
  %v1541 = vlaneseq
  %v1542 = vshrl.u32 %v1541, 7
  %v1543 = vsub.s32 2, %v1542
  %v1544 = vrot.slane %v1279, %v1543
  %v1545 = vadd.f32 %v1533, %v1544
  %v1546 = vadd.f32 %v1534, %v1544
  %v1547 = vadd.f32 %v1535, %v1544
  %v1548 = vadd.f32 %v1536, %v1544
  %v1549 = vadd.f32 %v1537, %v1544
  %v1550 = vadd.f32 %v1538, %v1544
  %v1551 = vadd.f32 %v1539, %v1544
  %v1552 = vadd.f32 %v1540, %v1544
  %v1553 = vld [vmem:[%s7] sm:$0xff]
  %v1554 = vld [vmem:[%s7 + $0x8] sm:$0xff]
  %v1555 = vld [vmem:[%s7 + $0x10] sm:$0xff]
  %v1556 = vld [vmem:[%s7 + $0x18] sm:$0xff]
  %v1557 = vld [vmem:[%s8] sm:$0x1]
  %v1559 = vlaneseq
  %v1560 = vshrl.u32 %v1559, 7
  %v1561 = vsub.s32 0, %v1560
  %v1562 = vrot.slane %v1557, %v1561
  %v1565 = vsel %vm52, %v1545, 0
  %v1568 = vsel %vm52, %v1546, 0
  %v1571 = vsel %vm52, %v1547, 0
  %v1574 = vsel %vm52, %v1548, 0
  %v1577 = vsel %vm52, %v1549, 0
  %v1580 = vsel %vm52, %v1550, 0
  %v1583 = vsel %vm52, %v1551, 0
  %v1586 = vsel %vm52, %v1552, 0
  %1588 = vmatprep.subr.mxu0 0.0
  %1589 = vmatpush1.msra.mxu0 0.0
  %1590 = vmatprep.subr.mxu0 0.0
  %1591 = vmatpush1.msra.mxu0 0.0
  %1592 = vmatprep.subr.mxu0 0.0
  %1593 = vmatpush1.msra.mxu0 0.0
  %1594 = vmatprep.subr.mxu0 0.0
  %1595 = vmatpush1.msra.mxu0 0.0
  %1596 = vmatprep.subr.mxu0 0.0
  %1597 = vmatpush1.msra.mxu0 0.0
  %1598 = vmatprep.subr.mxu0 0.0
  %1599 = vmatpush1.msra.mxu0 0.0
  %1600 = vmatprep.subr.mxu0 0.0
  %1601 = vmatpush1.msra.mxu0 0.0
  %1602 = vmatprep.subr.mxu0 0.0
  %1603 = vmatpush1.msra.mxu0 0.0
  %1604 = vmatprep.subr.mxu0 0.0
  %1605 = vmatpush1.msra.mxu0 0.0
  %1606 = vmatprep.subr.mxu0 0.0
  %1607 = vmatpush1.msra.mxu0 0.0
  %1608 = vmatprep.subr.mxu0 0.0
  %1609 = vmatpush1.msra.mxu0 0.0
  %1610 = vmatprep.subr.mxu0 0.0
  %1611 = vmatpush1.msra.mxu0 0.0
  %1612 = vmatprep.subr.mxu0 0.0
  %1613 = vmatpush1.msra.mxu0 %v1556
  %1614 = vmatprep.subr.mxu0 0.0
  %1615 = vmatpush1.msra.mxu0 %v1555
  %1616 = vmatprep.subr.mxu0 0.0
  %1617 = vmatpush1.msra.mxu0 %v1554
  %1618 = vmatprep.subr.mxu0 0.0
  %1619 = vmatpush1.msra.mxu0 %v1553
  %1620 = vmatprep.subr.mxu0 0.0
  %1621 = vmatpush2.msra.mxu0 0.0
  %1622 = vmatprep.subr.mxu0 0.0
  %1623 = vmatpush2.msra.mxu0 0.0
  %1624 = vmatprep.subr.mxu0 0.0
  %1625 = vmatpush2.msra.mxu0 0.0
  %1626 = vmatprep.subr.mxu0 0.0
  %1627 = vmatpush2.msra.mxu0 0.0
  %1628 = vmatprep.subr.mxu0 0.0
  %1629 = vmatpush2.msra.mxu0 0.0
  %1630 = vmatprep.subr.mxu0 0.0
  %1631 = vmatpush2.msra.mxu0 0.0
  %1632 = vmatprep.subr.mxu0 0.0
  %1633 = vmatpush2.msra.mxu0 0.0
  %1634 = vmatprep.subr.mxu0 0.0
  %1635 = vmatpush2.msra.mxu0 0.0
  %1636 = vmatprep.subr.mxu0 0.0
  %1637 = vmatpush2.msra.mxu0 0.0
  %1638 = vmatprep.subr.mxu0 0.0
  %1639 = vmatpush2.msra.mxu0 0.0
  %1640 = vmatprep.subr.mxu0 0.0
  %1641 = vmatpush2.msra.mxu0 0.0
  %1642 = vmatprep.subr.mxu0 0.0
  %1643 = vmatpush2.msra.mxu0 0.0
  %1644 = vmatprep.subr.mxu0 0.0
  %1645 = vmatpush2.msra.mxu0 0.0
  %1646 = vmatprep.subr.mxu0 0.0
  %1647 = vmatpush2.msra.mxu0 0.0
  %1648 = vmatprep.subr.mxu0 0.0
  %1649 = vmatpush2.msra.mxu0 0.0
  %1650 = vmatprep.subr.mxu0 0.0
  %1651 = vmatpush2.msra.mxu0 0.0
  %1652 = vmatprep.mubr.f32.mxu0 0.0
  %1653 = vmatmul.mubr.f32.gmra.mxu0 %v1565
  %v1654 = vpop.f32.mrf.mxu0
  %v1655 = vadd.f32 %v1562, %v1654
  %v1656 = vpop.f32.mrf.mxu0
  %1657 = vmatprep.mubr.f32.mxu0 0.0
  %1658 = vmatmul.mubr.f32.gmra.mxu0 %v1568
  %v1659 = vpop.f32.mrf.mxu0
  %v1660 = vadd.f32 %v1562, %v1659
  %v1661 = vpop.f32.mrf.mxu0
  %1662 = vmatprep.mubr.f32.mxu0 0.0
  %1663 = vmatmul.mubr.f32.gmra.mxu0 %v1571
  %v1664 = vpop.f32.mrf.mxu0
  %v1665 = vadd.f32 %v1562, %v1664
  %v1666 = vpop.f32.mrf.mxu0
  %1667 = vmatprep.mubr.f32.mxu0 0.0
  %1668 = vmatmul.mubr.f32.gmra.mxu0 %v1574
  %v1669 = vpop.f32.mrf.mxu0
  %v1670 = vadd.f32 %v1562, %v1669
  %v1671 = vpop.f32.mrf.mxu0
  %1672 = vmatprep.mubr.f32.mxu0 0.0
  %1673 = vmatmul.mubr.f32.gmra.mxu0 %v1577
  %v1674 = vpop.f32.mrf.mxu0
  %v1675 = vadd.f32 %v1562, %v1674
  %v1676 = vpop.f32.mrf.mxu0
  %1677 = vmatprep.mubr.f32.mxu0 0.0
  %1678 = vmatmul.mubr.f32.gmra.mxu0 %v1580
  %v1679 = vpop.f32.mrf.mxu0
  %v1680 = vadd.f32 %v1562, %v1679
  %v1681 = vpop.f32.mrf.mxu0
  %1682 = vmatprep.mubr.f32.mxu0 0.0
  %1683 = vmatmul.mubr.f32.gmra.mxu0 %v1583
  %v1684 = vpop.f32.mrf.mxu0
  %v1685 = vadd.f32 %v1562, %v1684
  %v1686 = vpop.f32.mrf.mxu0
  %1687 = vmatprep.mubr.f32.mxu0 0.0
  %1688 = vmatmul.mubr.f32.gmra.mxu0 %v1586
  %v1689 = vpop.f32.mrf.mxu0
  %v1690 = vadd.f32 %v1562, %v1689
  %v1691 = vpop.f32.mrf.mxu0
  %1692 = vdwg.mxu0
  %v1693 = vmul.f32 %v1655, %v1655
  %v1694 = vmul.f32 %v1660, %v1660
  %v1695 = vmul.f32 %v1665, %v1665
  %v1696 = vmul.f32 %v1670, %v1670
  %v1697 = vmul.f32 %v1675, %v1675
  %v1698 = vmul.f32 %v1680, %v1680
  %v1699 = vmul.f32 %v1685, %v1685
  %v1700 = vmul.f32 %v1690, %v1690
  %v1701 = vmul.f32 %v1655, %v1693
  %v1702 = vmul.f32 %v1660, %v1694
  %v1703 = vmul.f32 %v1665, %v1695
  %v1704 = vmul.f32 %v1670, %v1696
  %v1705 = vmul.f32 %v1675, %v1697
  %v1706 = vmul.f32 %v1680, %v1698
  %v1707 = vmul.f32 %v1685, %v1699
  %v1708 = vmul.f32 %v1690, %v1700
  %v1709 = vmul.f32 %v1701, 0.044715
  %v1710 = vmul.f32 %v1702, 0.044715
  %v1711 = vmul.f32 %v1703, 0.044715
  %v1712 = vmul.f32 %v1704, 0.044715
  %v1713 = vmul.f32 %v1705, 0.044715
  %v1714 = vmul.f32 %v1706, 0.044715
  %v1715 = vmul.f32 %v1707, 0.044715
  %v1716 = vmul.f32 %v1708, 0.044715
  %v1717 = vadd.f32 %v1655, %v1709
  %v1718 = vadd.f32 %v1660, %v1710
  %v1719 = vadd.f32 %v1665, %v1711
  %v1720 = vadd.f32 %v1670, %v1712
  %v1721 = vadd.f32 %v1675, %v1713
  %v1722 = vadd.f32 %v1680, %v1714
  %v1723 = vadd.f32 %v1685, %v1715
  %v1724 = vadd.f32 %v1690, %v1716
  %v1725 = vmul.f32 %v1717, 0.7978846
  %v1726 = vmul.f32 %v1718, 0.7978846
  %v1727 = vmul.f32 %v1719, 0.7978846
  %v1728 = vmul.f32 %v1720, 0.7978846
  %v1729 = vmul.f32 %v1721, 0.7978846
  %v1730 = vmul.f32 %v1722, 0.7978846
  %v1731 = vmul.f32 %v1723, 0.7978846
  %v1732 = vmul.f32 %v1724, 0.7978846
  %v1733 = vtanh.pop %v1725
  %v1734 = vtanh.pop %v1726
  %v1735 = vtanh.pop %v1727
  %v1736 = vtanh.pop %v1728
  %v1737 = vtanh.pop %v1729
  %v1738 = vtanh.pop %v1730
  %v1739 = vtanh.pop %v1731
  %v1740 = vtanh.pop %v1732
  %v1741 = vadd.f32 %v1733, 1.0
  %v1742 = vadd.f32 %v1734, 1.0
  %v1743 = vadd.f32 %v1735, 1.0
  %v1744 = vadd.f32 %v1736, 1.0
  %v1745 = vadd.f32 %v1737, 1.0
  %v1746 = vadd.f32 %v1738, 1.0
  %v1747 = vadd.f32 %v1739, 1.0
  %v1748 = vadd.f32 %v1740, 1.0
  %v1749 = vmul.f32 %v1741, 0.5
  %v1750 = vmul.f32 %v1742, 0.5
  %v1751 = vmul.f32 %v1743, 0.5
  %v1752 = vmul.f32 %v1744, 0.5
  %v1753 = vmul.f32 %v1745, 0.5
  %v1754 = vmul.f32 %v1746, 0.5
  %v1755 = vmul.f32 %v1747, 0.5
  %v1756 = vmul.f32 %v1748, 0.5
  %v1757 = vmul.f32 %v1655, %v1749
  %v1758 = vmul.f32 %v1660, %v1750
  %v1759 = vmul.f32 %v1665, %v1751
  %v1760 = vmul.f32 %v1670, %v1752
  %v1761 = vmul.f32 %v1675, %v1753
  %v1762 = vmul.f32 %v1680, %v1754
  %v1763 = vmul.f32 %v1685, %v1755
  %v1764 = vmul.f32 %v1690, %v1756
  %v1765 = vld [vmem:[%s9] sm:$0xff]
  %v1766 = vld [vmem:[%s9 + $0x8] sm:$0xff]
  %v1767 = vld [vmem:[%s9 + $0x10] sm:$0xff]
  %v1768 = vld [vmem:[%s9 + $0x18] sm:$0xff]
  %v1769 = vld [vmem:[%s9 + $0x20] sm:$0xff]
  %v1770 = vld [vmem:[%s9 + $0x28] sm:$0xff]
  %v1771 = vld [vmem:[%s9 + $0x30] sm:$0xff]
  %v1772 = vld [vmem:[%s9 + $0x38] sm:$0xff]
  %v1773 = vlaneseq
  %v1774 = vshrl.u32 %v1773, 7
  %v1775 = vsub.s32 3, %v1774
  %v1776 = vrot.slane %v1279, %v1775
  %v1778 = vsel %vm571, %v1757, 0
  %v1781 = vsel %vm571, %v1758, 0
  %v1784 = vsel %vm571, %v1759, 0
  %v1787 = vsel %vm571, %v1760, 0
  %v1790 = vsel %vm571, %v1761, 0
  %v1793 = vsel %vm571, %v1762, 0
  %v1796 = vsel %vm571, %v1763, 0
  %v1799 = vsel %vm571, %v1764, 0
  %1801 = vmatprep.subr.mxu0 0.0
  %1802 = vmatpush1.msra.mxu0 0.0
  %1803 = vmatprep.subr.mxu0 0.0
  %1804 = vmatpush1.msra.mxu0 0.0
  %1805 = vmatprep.subr.mxu0 0.0
  %1806 = vmatpush1.msra.mxu0 0.0
  %1807 = vmatprep.subr.mxu0 0.0
  %1808 = vmatpush1.msra.mxu0 0.0
  %1809 = vmatprep.subr.mxu0 0.0
  %1810 = vmatpush1.msra.mxu0 0.0
  %1811 = vmatprep.subr.mxu0 0.0
  %1812 = vmatpush1.msra.mxu0 0.0
  %1813 = vmatprep.subr.mxu0 0.0
  %1814 = vmatpush1.msra.mxu0 0.0
  %1815 = vmatprep.subr.mxu0 0.0
  %1816 = vmatpush1.msra.mxu0 0.0
  %1817 = vmatprep.subr.mxu0 0.0
  %1818 = vmatpush1.msra.mxu0 %v1772
  %1819 = vmatprep.subr.mxu0 0.0
  %1820 = vmatpush1.msra.mxu0 %v1771
  %1821 = vmatprep.subr.mxu0 0.0
  %1822 = vmatpush1.msra.mxu0 %v1770
  %1823 = vmatprep.subr.mxu0 0.0
  %1824 = vmatpush1.msra.mxu0 %v1769
  %1825 = vmatprep.subr.mxu0 0.0
  %1826 = vmatpush1.msra.mxu0 %v1768
  %1827 = vmatprep.subr.mxu0 0.0
  %1828 = vmatpush1.msra.mxu0 %v1767
  %1829 = vmatprep.subr.mxu0 0.0
  %1830 = vmatpush1.msra.mxu0 %v1766
  %1831 = vmatprep.subr.mxu0 0.0
  %1832 = vmatpush1.msra.mxu0 %v1765
  %1833 = vmatprep.subr.mxu0 0.0
  %1834 = vmatpush2.msra.mxu0 0.0
  %1835 = vmatprep.subr.mxu0 0.0
  %1836 = vmatpush2.msra.mxu0 0.0
  %1837 = vmatprep.subr.mxu0 0.0
  %1838 = vmatpush2.msra.mxu0 0.0
  %1839 = vmatprep.subr.mxu0 0.0
  %1840 = vmatpush2.msra.mxu0 0.0
  %1841 = vmatprep.subr.mxu0 0.0
  %1842 = vmatpush2.msra.mxu0 0.0
  %1843 = vmatprep.subr.mxu0 0.0
  %1844 = vmatpush2.msra.mxu0 0.0
  %1845 = vmatprep.subr.mxu0 0.0
  %1846 = vmatpush2.msra.mxu0 0.0
  %1847 = vmatprep.subr.mxu0 0.0
  %1848 = vmatpush2.msra.mxu0 0.0
  %1849 = vmatprep.subr.mxu0 0.0
  %1850 = vmatpush2.msra.mxu0 0.0
  %1851 = vmatprep.subr.mxu0 0.0
  %1852 = vmatpush2.msra.mxu0 0.0
  %1853 = vmatprep.subr.mxu0 0.0
  %1854 = vmatpush2.msra.mxu0 0.0
  %1855 = vmatprep.subr.mxu0 0.0
  %1856 = vmatpush2.msra.mxu0 0.0
  %1857 = vmatprep.subr.mxu0 0.0
  %1858 = vmatpush2.msra.mxu0 0.0
  %1859 = vmatprep.subr.mxu0 0.0
  %1860 = vmatpush2.msra.mxu0 0.0
  %1861 = vmatprep.subr.mxu0 0.0
  %1862 = vmatpush2.msra.mxu0 0.0
  %1863 = vmatprep.subr.mxu0 0.0
  %1864 = vmatpush2.msra.mxu0 0.0
  %1865 = vmatprep.mubr.f32.mxu0 0.0
  %1866 = vmatmul.mubr.f32.gmra.mxu0 %v1778
  %v1867 = vpop.f32.mrf.mxu0
  %v1868 = vadd.f32 %v1776, %v1867
  %v1869 = vpop.f32.mrf.mxu0
  %1870 = vmatprep.mubr.f32.mxu0 0.0
  %1871 = vmatmul.mubr.f32.gmra.mxu0 %v1781
  %v1872 = vpop.f32.mrf.mxu0
  %v1873 = vadd.f32 %v1776, %v1872
  %v1874 = vpop.f32.mrf.mxu0
  %1875 = vmatprep.mubr.f32.mxu0 0.0
  %1876 = vmatmul.mubr.f32.gmra.mxu0 %v1784
  %v1877 = vpop.f32.mrf.mxu0
  %v1878 = vadd.f32 %v1776, %v1877
  %v1879 = vpop.f32.mrf.mxu0
  %1880 = vmatprep.mubr.f32.mxu0 0.0
  %1881 = vmatmul.mubr.f32.gmra.mxu0 %v1787
  %v1882 = vpop.f32.mrf.mxu0
  %v1883 = vadd.f32 %v1776, %v1882
  %v1884 = vpop.f32.mrf.mxu0
  %1885 = vmatprep.mubr.f32.mxu0 0.0
  %1886 = vmatmul.mubr.f32.gmra.mxu0 %v1790
  %v1887 = vpop.f32.mrf.mxu0
  %v1888 = vadd.f32 %v1776, %v1887
  %v1889 = vpop.f32.mrf.mxu0
  %1890 = vmatprep.mubr.f32.mxu0 0.0
  %1891 = vmatmul.mubr.f32.gmra.mxu0 %v1793
  %v1892 = vpop.f32.mrf.mxu0
  %v1893 = vadd.f32 %v1776, %v1892
  %v1894 = vpop.f32.mrf.mxu0
  %1895 = vmatprep.mubr.f32.mxu0 0.0
  %1896 = vmatmul.mubr.f32.gmra.mxu0 %v1796
  %v1897 = vpop.f32.mrf.mxu0
  %v1898 = vadd.f32 %v1776, %v1897
  %v1899 = vpop.f32.mrf.mxu0
  %1900 = vmatprep.mubr.f32.mxu0 0.0
  %1901 = vmatmul.mubr.f32.gmra.mxu0 %v1799
  %v1902 = vpop.f32.mrf.mxu0
  %v1903 = vadd.f32 %v1776, %v1902
  %v1904 = vpop.f32.mrf.mxu0
  %1905 = vdwg.mxu0
  %v1906 = vadd.f32 %v1868, %v1545
  %v1907 = vadd.f32 %v1873, %v1546
  %v1908 = vadd.f32 %v1878, %v1547
  %v1909 = vadd.f32 %v1883, %v1548
  %v1910 = vadd.f32 %v1888, %v1549
  %v1911 = vadd.f32 %v1893, %v1550
  %v1912 = vadd.f32 %v1898, %v1551
  %v1913 = vadd.f32 %v1903, %v1552
  %v1914 = vsel %vm52, %v1906, 0.0
  %1915 = vadd.xlane.f32.xlu0 %v1914
  %v1916 = vpop.xlane.xlu0 %1915
  %v1917 = vsel %vm52, %v1907, 0.0
  %1918 = vadd.xlane.f32.xlu0 %v1917
  %v1919 = vpop.xlane.xlu0 %1918
  %v1920 = vsel %vm52, %v1908, 0.0
  %1921 = vadd.xlane.f32.xlu0 %v1920
  %v1922 = vpop.xlane.xlu0 %1921
  %v1923 = vsel %vm52, %v1909, 0.0
  %1924 = vadd.xlane.f32.xlu0 %v1923
  %v1925 = vpop.xlane.xlu0 %1924
  %v1926 = vsel %vm52, %v1910, 0.0
  %1927 = vadd.xlane.f32.xlu0 %v1926
  %v1928 = vpop.xlane.xlu0 %1927
  %v1929 = vsel %vm52, %v1911, 0.0
  %1930 = vadd.xlane.f32.xlu0 %v1929
  %v1931 = vpop.xlane.xlu0 %1930
  %v1932 = vsel %vm52, %v1912, 0.0
  %1933 = vadd.xlane.f32.xlu0 %v1932
  %v1934 = vpop.xlane.xlu0 %1933
  %v1935 = vsel %vm52, %v1913, 0.0
  %1936 = vadd.xlane.f32.xlu0 %v1935
  %v1937 = vpop.xlane.xlu0 %1936
  %v1938 = vmul.f32 %v1916, %v77
  %v1939 = vmul.f32 %v1919, %v77
  %v1940 = vmul.f32 %v1922, %v77
  %v1941 = vmul.f32 %v1925, %v77
  %v1942 = vmul.f32 %v1928, %v77
  %v1943 = vmul.f32 %v1931, %v77
  %v1944 = vmul.f32 %v1934, %v77
  %v1945 = vmul.f32 %v1937, %v77
  %v1946 = vsub.f32 %v1906, %v1938
  %v1947 = vsub.f32 %v1907, %v1939
  %v1948 = vsub.f32 %v1908, %v1940
  %v1949 = vsub.f32 %v1909, %v1941
  %v1950 = vsub.f32 %v1910, %v1942
  %v1951 = vsub.f32 %v1911, %v1943
  %v1952 = vsub.f32 %v1912, %v1944
  %v1953 = vsub.f32 %v1913, %v1945
  %v1954 = vmul.f32 %v1946, %v1946
  %v1955 = vmul.f32 %v1947, %v1947
  %v1956 = vmul.f32 %v1948, %v1948
  %v1957 = vmul.f32 %v1949, %v1949
  %v1958 = vmul.f32 %v1950, %v1950
  %v1959 = vmul.f32 %v1951, %v1951
  %v1960 = vmul.f32 %v1952, %v1952
  %v1961 = vmul.f32 %v1953, %v1953
  %v1962 = vsel %vm52, %v1954, 0.0
  %1963 = vadd.xlane.f32.xlu0 %v1962
  %v1964 = vpop.xlane.xlu0 %1963
  %v1965 = vsel %vm52, %v1955, 0.0
  %1966 = vadd.xlane.f32.xlu0 %v1965
  %v1967 = vpop.xlane.xlu0 %1966
  %v1968 = vsel %vm52, %v1956, 0.0
  %1969 = vadd.xlane.f32.xlu0 %v1968
  %v1970 = vpop.xlane.xlu0 %1969
  %v1971 = vsel %vm52, %v1957, 0.0
  %1972 = vadd.xlane.f32.xlu0 %v1971
  %v1973 = vpop.xlane.xlu0 %1972
  %v1974 = vsel %vm52, %v1958, 0.0
  %1975 = vadd.xlane.f32.xlu0 %v1974
  %v1976 = vpop.xlane.xlu0 %1975
  %v1977 = vsel %vm52, %v1959, 0.0
  %1978 = vadd.xlane.f32.xlu0 %v1977
  %v1979 = vpop.xlane.xlu0 %1978
  %v1980 = vsel %vm52, %v1960, 0.0
  %1981 = vadd.xlane.f32.xlu0 %v1980
  %v1982 = vpop.xlane.xlu0 %1981
  %v1983 = vsel %vm52, %v1961, 0.0
  %1984 = vadd.xlane.f32.xlu0 %v1983
  %v1985 = vpop.xlane.xlu0 %1984
  %v1986 = vmul.f32 %v1964, %v77
  %v1987 = vmul.f32 %v1967, %v77
  %v1988 = vmul.f32 %v1970, %v77
  %v1989 = vmul.f32 %v1973, %v77
  %v1990 = vmul.f32 %v1976, %v77
  %v1991 = vmul.f32 %v1979, %v77
  %v1992 = vmul.f32 %v1982, %v77
  %v1993 = vmul.f32 %v1985, %v77
  %v1994 = vadd.f32 %v1986, 1e-12
  %v1995 = vadd.f32 %v1987, 1e-12
  %v1996 = vadd.f32 %v1988, 1e-12
  %v1997 = vadd.f32 %v1989, 1e-12
  %v1998 = vadd.f32 %v1990, 1e-12
  %v1999 = vadd.f32 %v1991, 1e-12
  %v2000 = vadd.f32 %v1992, 1e-12
  %v2001 = vadd.f32 %v1993, 1e-12
  %v2002 = vrsqrt.pop %v1994
  %v2003 = vrsqrt.pop %v1995
  %v2004 = vrsqrt.pop %v1996
  %v2005 = vrsqrt.pop %v1997
  %v2006 = vrsqrt.pop %v1998
  %v2007 = vrsqrt.pop %v1999
  %v2008 = vrsqrt.pop %v2000
  %v2009 = vrsqrt.pop %v2001
  %v2010 = vmul.f32 %v1946, %v2002
  %v2011 = vmul.f32 %v1947, %v2003
  %v2012 = vmul.f32 %v1948, %v2004
  %v2013 = vmul.f32 %v1949, %v2005
  %v2014 = vmul.f32 %v1950, %v2006
  %v2015 = vmul.f32 %v1951, %v2007
  %v2016 = vmul.f32 %v1952, %v2008
  %v2017 = vmul.f32 %v1953, %v2009
  %v2018 = vlaneseq
  %v2019 = vshrl.u32 %v2018, 7
  %v2020 = vsub.s32 4, %v2019
  %v2021 = vrot.slane %v1279, %v2020
  %v2022 = vmul.f32 %v2010, %v2021
  %v2023 = vmul.f32 %v2011, %v2021
  %v2024 = vmul.f32 %v2012, %v2021
  %v2025 = vmul.f32 %v2013, %v2021
  %v2026 = vmul.f32 %v2014, %v2021
  %v2027 = vmul.f32 %v2015, %v2021
  %v2028 = vmul.f32 %v2016, %v2021
  %v2029 = vmul.f32 %v2017, %v2021
  %v2030 = vlaneseq
  %v2031 = vshrl.u32 %v2030, 7
  %v2032 = vsub.s32 5, %v2031
  %v2033 = vrot.slane %v1279, %v2032
  %v2034 = vadd.f32 %v2022, %v2033
  %v2035 = vadd.f32 %v2023, %v2033
  %v2036 = vadd.f32 %v2024, %v2033
  %v2037 = vadd.f32 %v2025, %v2033
  %v2038 = vadd.f32 %v2026, %v2033
  %v2039 = vadd.f32 %v2027, %v2033
  %v2040 = vadd.f32 %v2028, %v2033
  %v2041 = vadd.f32 %v2029, %v2033
  %s2042 = scalar_lea.vmem %s3, 32
  %v2043 = vld [vmem:[%s2042] sm:$0xff]
  %v2044 = vld [vmem:[%s2042 + $0x8] sm:$0xff]
  %v2045 = vld [vmem:[%s2042 + $0x10] sm:$0xff]
  %v2046 = vld [vmem:[%s2042 + $0x18] sm:$0xff]
  %s2047 = scalar_lea.vmem %s4, 1
  %v2048 = vld [vmem:[%s2047] sm:$0x1]
  %v2050 = vlaneseq
  %v2051 = vshrl.u32 %v2050, 7
  %v2052 = vsub.s32 0, %v2051
  %v2053 = vrot.slane %v2048, %v2052
  %v2056 = vsel %vm52, %v2034, 0
  %v2059 = vsel %vm52, %v2035, 0
  %v2062 = vsel %vm52, %v2036, 0
  %v2065 = vsel %vm52, %v2037, 0
  %v2068 = vsel %vm52, %v2038, 0
  %v2071 = vsel %vm52, %v2039, 0
  %v2074 = vsel %vm52, %v2040, 0
  %v2077 = vsel %vm52, %v2041, 0
  %2079 = vmatprep.subr.mxu0 0.0
  %2080 = vmatpush1.msra.mxu0 0.0
  %2081 = vmatprep.subr.mxu0 0.0
  %2082 = vmatpush1.msra.mxu0 0.0
  %2083 = vmatprep.subr.mxu0 0.0
  %2084 = vmatpush1.msra.mxu0 0.0
  %2085 = vmatprep.subr.mxu0 0.0
  %2086 = vmatpush1.msra.mxu0 0.0
  %2087 = vmatprep.subr.mxu0 0.0
  %2088 = vmatpush1.msra.mxu0 0.0
  %2089 = vmatprep.subr.mxu0 0.0
  %2090 = vmatpush1.msra.mxu0 0.0
  %2091 = vmatprep.subr.mxu0 0.0
  %2092 = vmatpush1.msra.mxu0 0.0
  %2093 = vmatprep.subr.mxu0 0.0
  %2094 = vmatpush1.msra.mxu0 0.0
  %2095 = vmatprep.subr.mxu0 0.0
  %2096 = vmatpush1.msra.mxu0 0.0
  %2097 = vmatprep.subr.mxu0 0.0
  %2098 = vmatpush1.msra.mxu0 0.0
  %2099 = vmatprep.subr.mxu0 0.0
  %2100 = vmatpush1.msra.mxu0 0.0
  %2101 = vmatprep.subr.mxu0 0.0
  %2102 = vmatpush1.msra.mxu0 0.0
  %2103 = vmatprep.subr.mxu0 0.0
  %2104 = vmatpush1.msra.mxu0 %v2046
  %2105 = vmatprep.subr.mxu0 0.0
  %2106 = vmatpush1.msra.mxu0 %v2045
  %2107 = vmatprep.subr.mxu0 0.0
  %2108 = vmatpush1.msra.mxu0 %v2044
  %2109 = vmatprep.subr.mxu0 0.0
  %2110 = vmatpush1.msra.mxu0 %v2043
  %2111 = vmatprep.subr.mxu0 0.0
  %2112 = vmatpush2.msra.mxu0 0.0
  %2113 = vmatprep.subr.mxu0 0.0
  %2114 = vmatpush2.msra.mxu0 0.0
  %2115 = vmatprep.subr.mxu0 0.0
  %2116 = vmatpush2.msra.mxu0 0.0
  %2117 = vmatprep.subr.mxu0 0.0
  %2118 = vmatpush2.msra.mxu0 0.0
  %2119 = vmatprep.subr.mxu0 0.0
  %2120 = vmatpush2.msra.mxu0 0.0
  %2121 = vmatprep.subr.mxu0 0.0
  %2122 = vmatpush2.msra.mxu0 0.0
  %2123 = vmatprep.subr.mxu0 0.0
  %2124 = vmatpush2.msra.mxu0 0.0
  %2125 = vmatprep.subr.mxu0 0.0
  %2126 = vmatpush2.msra.mxu0 0.0
  %2127 = vmatprep.subr.mxu0 0.0
  %2128 = vmatpush2.msra.mxu0 0.0
  %2129 = vmatprep.subr.mxu0 0.0
  %2130 = vmatpush2.msra.mxu0 0.0
  %2131 = vmatprep.subr.mxu0 0.0
  %2132 = vmatpush2.msra.mxu0 0.0
  %2133 = vmatprep.subr.mxu0 0.0
  %2134 = vmatpush2.msra.mxu0 0.0
  %2135 = vmatprep.subr.mxu0 0.0
  %2136 = vmatpush2.msra.mxu0 0.0
  %2137 = vmatprep.subr.mxu0 0.0
  %2138 = vmatpush2.msra.mxu0 0.0
  %2139 = vmatprep.subr.mxu0 0.0
  %2140 = vmatpush2.msra.mxu0 0.0
  %2141 = vmatprep.subr.mxu0 0.0
  %2142 = vmatpush2.msra.mxu0 0.0
  %2143 = vmatprep.mubr.f32.mxu0 0.0
  %2144 = vmatmul.mubr.f32.gmra.mxu0 %v2056
  %v2145 = vpop.f32.mrf.mxu0
  %v2146 = vadd.f32 %v2053, %v2145
  %v2147 = vpop.f32.mrf.mxu0
  %2148 = vmatprep.mubr.f32.mxu0 0.0
  %2149 = vmatmul.mubr.f32.gmra.mxu0 %v2059
  %v2150 = vpop.f32.mrf.mxu0
  %v2151 = vadd.f32 %v2053, %v2150
  %v2152 = vpop.f32.mrf.mxu0
  %2153 = vmatprep.mubr.f32.mxu0 0.0
  %2154 = vmatmul.mubr.f32.gmra.mxu0 %v2062
  %v2155 = vpop.f32.mrf.mxu0
  %v2156 = vadd.f32 %v2053, %v2155
  %v2157 = vpop.f32.mrf.mxu0
  %2158 = vmatprep.mubr.f32.mxu0 0.0
  %2159 = vmatmul.mubr.f32.gmra.mxu0 %v2065
  %v2160 = vpop.f32.mrf.mxu0
  %v2161 = vadd.f32 %v2053, %v2160
  %v2162 = vpop.f32.mrf.mxu0
  %2163 = vmatprep.mubr.f32.mxu0 0.0
  %2164 = vmatmul.mubr.f32.gmra.mxu0 %v2068
  %v2165 = vpop.f32.mrf.mxu0
  %v2166 = vadd.f32 %v2053, %v2165
  %v2167 = vpop.f32.mrf.mxu0
  %2168 = vmatprep.mubr.f32.mxu0 0.0
  %2169 = vmatmul.mubr.f32.gmra.mxu0 %v2071
  %v2170 = vpop.f32.mrf.mxu0
  %v2171 = vadd.f32 %v2053, %v2170
  %v2172 = vpop.f32.mrf.mxu0
  %2173 = vmatprep.mubr.f32.mxu0 0.0
  %2174 = vmatmul.mubr.f32.gmra.mxu0 %v2074
  %v2175 = vpop.f32.mrf.mxu0
  %v2176 = vadd.f32 %v2053, %v2175
  %v2177 = vpop.f32.mrf.mxu0
  %2178 = vmatprep.mubr.f32.mxu0 0.0
  %2179 = vmatmul.mubr.f32.gmra.mxu0 %v2077
  %v2180 = vpop.f32.mrf.mxu0
  %v2181 = vadd.f32 %v2053, %v2180
  %v2182 = vpop.f32.mrf.mxu0
  %2183 = vdwg.mxu0
  %2192 = vrot.lane.b32.xlu0 %v2146, 96
  %v2193 = vpop.permute.xlu0 %2192
  %2194 = vrot.lane.b32.xlu0 %v2151, 96
  %v2195 = vpop.permute.xlu0 %2194
  %2196 = vrot.lane.b32.xlu0 %v2156, 96
  %v2197 = vpop.permute.xlu0 %2196
  %2198 = vrot.lane.b32.xlu0 %v2161, 96
  %v2199 = vpop.permute.xlu0 %2198
  %2200 = vrot.lane.b32.xlu0 %v2166, 96
  %v2201 = vpop.permute.xlu0 %2200
  %2202 = vrot.lane.b32.xlu0 %v2171, 96
  %v2203 = vpop.permute.xlu0 %2202
  %2204 = vrot.lane.b32.xlu0 %v2176, 96
  %v2205 = vpop.permute.xlu0 %2204
  %2206 = vrot.lane.b32.xlu0 %v2181, 96
  %v2207 = vpop.permute.xlu0 %2206
  %v2208 = vsel %vm417, %v2146, 0
  %v2210 = vsel %vm417, %v2151, 0
  %v2212 = vsel %vm417, %v2156, 0
  %v2214 = vsel %vm417, %v2161, 0
  %v2216 = vsel %vm417, %v2166, 0
  %v2218 = vsel %vm417, %v2171, 0
  %v2220 = vsel %vm417, %v2176, 0
  %v2222 = vsel %vm417, %v2181, 0
  %v2224 = vsel %vm417, %v2193, 0
  %v2226 = vsel %vm417, %v2195, 0
  %v2228 = vsel %vm417, %v2197, 0
  %v2230 = vsel %vm417, %v2199, 0
  %v2232 = vsel %vm417, %v2201, 0
  %v2234 = vsel %vm417, %v2203, 0
  %v2236 = vsel %vm417, %v2205, 0
  %v2238 = vsel %vm417, %v2207, 0
  %2240 = vmatprep.subr.mxu0 0.0
  %2241 = vmatpush1.xpose.msra.mxu0 0.0
  %2242 = vmatprep.subr.mxu0 0.0
  %2243 = vmatpush1.xpose.msra.mxu0 0.0
  %2244 = vmatprep.subr.mxu0 0.0
  %2245 = vmatpush1.xpose.msra.mxu0 0.0
  %2246 = vmatprep.subr.mxu0 0.0
  %2247 = vmatpush1.xpose.msra.mxu0 0.0
  %2248 = vmatprep.subr.mxu0 0.0
  %2249 = vmatpush1.xpose.msra.mxu0 0.0
  %2250 = vmatprep.subr.mxu0 0.0
  %2251 = vmatpush1.xpose.msra.mxu0 0.0
  %2252 = vmatprep.subr.mxu0 0.0
  %2253 = vmatpush1.xpose.msra.mxu0 0.0
  %2254 = vmatprep.subr.mxu0 0.0
  %2255 = vmatpush1.xpose.msra.mxu0 0.0
  %2256 = vmatprep.subr.mxu0 0.0
  %2257 = vmatpush1.xpose.msra.mxu0 %v2238
  %2258 = vmatprep.subr.mxu0 0.0
  %2259 = vmatpush1.xpose.msra.mxu0 %v2236
  %2260 = vmatprep.subr.mxu0 0.0
  %2261 = vmatpush1.xpose.msra.mxu0 %v2234
  %2262 = vmatprep.subr.mxu0 0.0
  %2263 = vmatpush1.xpose.msra.mxu0 %v2232
  %2264 = vmatprep.subr.mxu0 0.0
  %2265 = vmatpush1.xpose.msra.mxu0 %v2230
  %2266 = vmatprep.subr.mxu0 0.0
  %2267 = vmatpush1.xpose.msra.mxu0 %v2228
  %2268 = vmatprep.subr.mxu0 0.0
  %2269 = vmatpush1.xpose.msra.mxu0 %v2226
  %2270 = vmatprep.subr.mxu0 0.0
  %2271 = vmatpush1.xpose.msra.mxu0 %v2224
  %2272 = vmatprep.subr.mxu0 0.0
  %2273 = vmatpush2.xpose.msra.mxu0 0.0
  %2274 = vmatprep.subr.mxu0 0.0
  %2275 = vmatpush2.xpose.msra.mxu0 0.0
  %2276 = vmatprep.subr.mxu0 0.0
  %2277 = vmatpush2.xpose.msra.mxu0 0.0
  %2278 = vmatprep.subr.mxu0 0.0
  %2279 = vmatpush2.xpose.msra.mxu0 0.0
  %2280 = vmatprep.subr.mxu0 0.0
  %2281 = vmatpush2.xpose.msra.mxu0 0.0
  %2282 = vmatprep.subr.mxu0 0.0
  %2283 = vmatpush2.xpose.msra.mxu0 0.0
  %2284 = vmatprep.subr.mxu0 0.0
  %2285 = vmatpush2.xpose.msra.mxu0 0.0
  %2286 = vmatprep.subr.mxu0 0.0
  %2287 = vmatpush2.xpose.msra.mxu0 0.0
  %2288 = vmatprep.subr.mxu0 0.0
  %2289 = vmatpush2.xpose.msra.mxu0 0.0
  %2290 = vmatprep.subr.mxu0 0.0
  %2291 = vmatpush2.xpose.msra.mxu0 0.0
  %2292 = vmatprep.subr.mxu0 0.0
  %2293 = vmatpush2.xpose.msra.mxu0 0.0
  %2294 = vmatprep.subr.mxu0 0.0
  %2295 = vmatpush2.xpose.msra.mxu0 0.0
  %2296 = vmatprep.subr.mxu0 0.0
  %2297 = vmatpush2.xpose.msra.mxu0 0.0
  %2298 = vmatprep.subr.mxu0 0.0
  %2299 = vmatpush2.xpose.msra.mxu0 0.0
  %2300 = vmatprep.subr.mxu0 0.0
  %2301 = vmatpush2.xpose.msra.mxu0 0.0
  %2302 = vmatprep.subr.mxu0 0.0
  %2303 = vmatpush2.xpose.msra.mxu0 0.0
  %2304 = vmatprep.mubr.f32.mxu0 0.0
  %2305 = vmatmul.mubr.f32.gmra.mxu0 %v2208
  %v2306 = vpop.f32.mrf.mxu0
  %v2307 = vadd.f32 0.0, %v2306
  %v2308 = vpop.f32.mrf.mxu0
  %2309 = vmatprep.mubr.f32.mxu0 0.0
  %2310 = vmatmul.mubr.f32.gmra.mxu0 %v2210
  %v2311 = vpop.f32.mrf.mxu0
  %v2312 = vadd.f32 0.0, %v2311
  %v2313 = vpop.f32.mrf.mxu0
  %2314 = vmatprep.mubr.f32.mxu0 0.0
  %2315 = vmatmul.mubr.f32.gmra.mxu0 %v2212
  %v2316 = vpop.f32.mrf.mxu0
  %v2317 = vadd.f32 0.0, %v2316
  %v2318 = vpop.f32.mrf.mxu0
  %2319 = vmatprep.mubr.f32.mxu0 0.0
  %2320 = vmatmul.mubr.f32.gmra.mxu0 %v2214
  %v2321 = vpop.f32.mrf.mxu0
  %v2322 = vadd.f32 0.0, %v2321
  %v2323 = vpop.f32.mrf.mxu0
  %2324 = vmatprep.mubr.f32.mxu0 0.0
  %2325 = vmatmul.mubr.f32.gmra.mxu0 %v2216
  %v2326 = vpop.f32.mrf.mxu0
  %v2327 = vadd.f32 0.0, %v2326
  %v2328 = vpop.f32.mrf.mxu0
  %2329 = vmatprep.mubr.f32.mxu0 0.0
  %2330 = vmatmul.mubr.f32.gmra.mxu0 %v2218
  %v2331 = vpop.f32.mrf.mxu0
  %v2332 = vadd.f32 0.0, %v2331
  %v2333 = vpop.f32.mrf.mxu0
  %2334 = vmatprep.mubr.f32.mxu0 0.0
  %2335 = vmatmul.mubr.f32.gmra.mxu0 %v2220
  %v2336 = vpop.f32.mrf.mxu0
  %v2337 = vadd.f32 0.0, %v2336
  %v2338 = vpop.f32.mrf.mxu0
  %2339 = vmatprep.mubr.f32.mxu0 0.0
  %2340 = vmatmul.mubr.f32.gmra.mxu0 %v2222
  %v2341 = vpop.f32.mrf.mxu0
  %v2342 = vadd.f32 0.0, %v2341
  %v2343 = vpop.f32.mrf.mxu0
  %2344 = vdwg.mxu0
  %v2345 = vmul.f32 %v2307, 0.25
  %v2346 = vmul.f32 %v2312, 0.25
  %v2347 = vmul.f32 %v2317, 0.25
  %v2348 = vmul.f32 %v2322, 0.25
  %v2349 = vmul.f32 %v2327, 0.25
  %v2350 = vmul.f32 %v2332, 0.25
  %v2351 = vmul.f32 %v2337, 0.25
  %v2352 = vmul.f32 %v2342, 0.25
  %v2353 = vadd.f32 %v2345, %v245
  %v2354 = vadd.f32 %v2346, %v246
  %v2355 = vadd.f32 %v2347, %v247
  %v2356 = vadd.f32 %v2348, %v248
  %v2357 = vadd.f32 %v2349, %v249
  %v2358 = vadd.f32 %v2350, %v250
  %v2359 = vadd.f32 %v2351, %v251
  %v2360 = vadd.f32 %v2352, %v252
  %v2361 = vsel %vm571, %v2353, -inf
  %2362 = vmax.xlane.f32.xlu0 %v2361
  %v2363 = vpop.xlane.xlu0 %2362
  %v2364 = vsel %vm571, %v2354, -inf
  %2365 = vmax.xlane.f32.xlu0 %v2364
  %v2366 = vpop.xlane.xlu0 %2365
  %v2367 = vsel %vm571, %v2355, -inf
  %2368 = vmax.xlane.f32.xlu0 %v2367
  %v2369 = vpop.xlane.xlu0 %2368
  %v2370 = vsel %vm571, %v2356, -inf
  %2371 = vmax.xlane.f32.xlu0 %v2370
  %v2372 = vpop.xlane.xlu0 %2371
  %v2373 = vsel %vm571, %v2357, -inf
  %2374 = vmax.xlane.f32.xlu0 %v2373
  %v2375 = vpop.xlane.xlu0 %2374
  %v2376 = vsel %vm571, %v2358, -inf
  %2377 = vmax.xlane.f32.xlu0 %v2376
  %v2378 = vpop.xlane.xlu0 %2377
  %v2379 = vsel %vm571, %v2359, -inf
  %2380 = vmax.xlane.f32.xlu0 %v2379
  %v2381 = vpop.xlane.xlu0 %2380
  %v2382 = vsel %vm571, %v2360, -inf
  %2383 = vmax.xlane.f32.xlu0 %v2382
  %v2384 = vpop.xlane.xlu0 %2383
  %v2385 = vsub.f32 %v2353, %v2363
  %v2386 = vsub.f32 %v2354, %v2366
  %v2387 = vsub.f32 %v2355, %v2369
  %v2388 = vsub.f32 %v2356, %v2372
  %v2389 = vsub.f32 %v2357, %v2375
  %v2390 = vsub.f32 %v2358, %v2378
  %v2391 = vsub.f32 %v2359, %v2381
  %v2392 = vsub.f32 %v2360, %v2384
  %v2393 = vmul.f32 %v2385, 1.442695
  %v2394 = vpow.pop %v2393
  %v2395 = vmul.f32 %v2386, 1.442695
  %v2396 = vpow.pop %v2395
  %v2397 = vmul.f32 %v2387, 1.442695
  %v2398 = vpow.pop %v2397
  %v2399 = vmul.f32 %v2388, 1.442695
  %v2400 = vpow.pop %v2399
  %v2401 = vmul.f32 %v2389, 1.442695
  %v2402 = vpow.pop %v2401
  %v2403 = vmul.f32 %v2390, 1.442695
  %v2404 = vpow.pop %v2403
  %v2405 = vmul.f32 %v2391, 1.442695
  %v2406 = vpow.pop %v2405
  %v2407 = vmul.f32 %v2392, 1.442695
  %v2408 = vpow.pop %v2407
  %v2409 = vsel %vm571, %v2394, 0.0
  %2410 = vadd.xlane.f32.xlu0 %v2409
  %v2411 = vpop.xlane.xlu0 %2410
  %v2412 = vsel %vm571, %v2396, 0.0
  %2413 = vadd.xlane.f32.xlu0 %v2412
  %v2414 = vpop.xlane.xlu0 %2413
  %v2415 = vsel %vm571, %v2398, 0.0
  %2416 = vadd.xlane.f32.xlu0 %v2415
  %v2417 = vpop.xlane.xlu0 %2416
  %v2418 = vsel %vm571, %v2400, 0.0
  %2419 = vadd.xlane.f32.xlu0 %v2418
  %v2420 = vpop.xlane.xlu0 %2419
  %v2421 = vsel %vm571, %v2402, 0.0
  %2422 = vadd.xlane.f32.xlu0 %v2421
  %v2423 = vpop.xlane.xlu0 %2422
  %v2424 = vsel %vm571, %v2404, 0.0
  %2425 = vadd.xlane.f32.xlu0 %v2424
  %v2426 = vpop.xlane.xlu0 %2425
  %v2427 = vsel %vm571, %v2406, 0.0
  %2428 = vadd.xlane.f32.xlu0 %v2427
  %v2429 = vpop.xlane.xlu0 %2428
  %v2430 = vsel %vm571, %v2408, 0.0
  %2431 = vadd.xlane.f32.xlu0 %v2430
  %v2432 = vpop.xlane.xlu0 %2431
  %v2433 = vrcp.pop %v2411
  %v2434 = vrcp.pop %v2414
  %v2435 = vrcp.pop %v2417
  %v2436 = vrcp.pop %v2420
  %v2437 = vrcp.pop %v2423
  %v2438 = vrcp.pop %v2426
  %v2439 = vrcp.pop %v2429
  %v2440 = vrcp.pop %v2432
  %v2441 = vmul.f32 %v2394, %v2433
  %v2442 = vmul.f32 %v2396, %v2434
  %v2443 = vmul.f32 %v2398, %v2435
  %v2444 = vmul.f32 %v2400, %v2436
  %v2445 = vmul.f32 %v2402, %v2437
  %v2446 = vmul.f32 %v2404, %v2438
  %v2447 = vmul.f32 %v2406, %v2439
  %v2448 = vmul.f32 %v2408, %v2440
  %2449 = vrot.lane.b32.xlu0 %v2146, 64
  %v2450 = vpop.permute.xlu0 %2449
  %2451 = vrot.lane.b32.xlu0 %v2151, 64
  %v2452 = vpop.permute.xlu0 %2451
  %2453 = vrot.lane.b32.xlu0 %v2156, 64
  %v2454 = vpop.permute.xlu0 %2453
  %2455 = vrot.lane.b32.xlu0 %v2161, 64
  %v2456 = vpop.permute.xlu0 %2455
  %2457 = vrot.lane.b32.xlu0 %v2166, 64
  %v2458 = vpop.permute.xlu0 %2457
  %2459 = vrot.lane.b32.xlu0 %v2171, 64
  %v2460 = vpop.permute.xlu0 %2459
  %2461 = vrot.lane.b32.xlu0 %v2176, 64
  %v2462 = vpop.permute.xlu0 %2461
  %2463 = vrot.lane.b32.xlu0 %v2181, 64
  %v2464 = vpop.permute.xlu0 %2463
  %v2474 = vsel %vm571, %v2441, 0
  %v2477 = vsel %vm571, %v2442, 0
  %v2480 = vsel %vm571, %v2443, 0
  %v2483 = vsel %vm571, %v2444, 0
  %v2486 = vsel %vm571, %v2445, 0
  %v2489 = vsel %vm571, %v2446, 0
  %v2492 = vsel %vm571, %v2447, 0
  %v2495 = vsel %vm571, %v2448, 0
  %2497 = vmatprep.subr.mxu0 0.0
  %2498 = vmatpush1.msra.mxu0 0.0
  %2499 = vmatprep.subr.mxu0 0.0
  %2500 = vmatpush1.msra.mxu0 0.0
  %2501 = vmatprep.subr.mxu0 0.0
  %2502 = vmatpush1.msra.mxu0 0.0
  %2503 = vmatprep.subr.mxu0 0.0
  %2504 = vmatpush1.msra.mxu0 0.0
  %2505 = vmatprep.subr.mxu0 0.0
  %2506 = vmatpush1.msra.mxu0 0.0
  %2507 = vmatprep.subr.mxu0 0.0
  %2508 = vmatpush1.msra.mxu0 0.0
  %2509 = vmatprep.subr.mxu0 0.0
  %2510 = vmatpush1.msra.mxu0 0.0
  %2511 = vmatprep.subr.mxu0 0.0
  %2512 = vmatpush1.msra.mxu0 0.0
  %2513 = vmatprep.subr.mxu0 0.0
  %2514 = vmatpush1.msra.mxu0 %v2464
  %2515 = vmatprep.subr.mxu0 0.0
  %2516 = vmatpush1.msra.mxu0 %v2462
  %2517 = vmatprep.subr.mxu0 0.0
  %2518 = vmatpush1.msra.mxu0 %v2460
  %2519 = vmatprep.subr.mxu0 0.0
  %2520 = vmatpush1.msra.mxu0 %v2458
  %2521 = vmatprep.subr.mxu0 0.0
  %2522 = vmatpush1.msra.mxu0 %v2456
  %2523 = vmatprep.subr.mxu0 0.0
  %2524 = vmatpush1.msra.mxu0 %v2454
  %2525 = vmatprep.subr.mxu0 0.0
  %2526 = vmatpush1.msra.mxu0 %v2452
  %2527 = vmatprep.subr.mxu0 0.0
  %2528 = vmatpush1.msra.mxu0 %v2450
  %2529 = vmatprep.subr.mxu0 0.0
  %2530 = vmatpush2.msra.mxu0 0.0
  %2531 = vmatprep.subr.mxu0 0.0
  %2532 = vmatpush2.msra.mxu0 0.0
  %2533 = vmatprep.subr.mxu0 0.0
  %2534 = vmatpush2.msra.mxu0 0.0
  %2535 = vmatprep.subr.mxu0 0.0
  %2536 = vmatpush2.msra.mxu0 0.0
  %2537 = vmatprep.subr.mxu0 0.0
  %2538 = vmatpush2.msra.mxu0 0.0
  %2539 = vmatprep.subr.mxu0 0.0
  %2540 = vmatpush2.msra.mxu0 0.0
  %2541 = vmatprep.subr.mxu0 0.0
  %2542 = vmatpush2.msra.mxu0 0.0
  %2543 = vmatprep.subr.mxu0 0.0
  %2544 = vmatpush2.msra.mxu0 0.0
  %2545 = vmatprep.subr.mxu0 0.0
  %2546 = vmatpush2.msra.mxu0 0.0
  %2547 = vmatprep.subr.mxu0 0.0
  %2548 = vmatpush2.msra.mxu0 0.0
  %2549 = vmatprep.subr.mxu0 0.0
  %2550 = vmatpush2.msra.mxu0 0.0
  %2551 = vmatprep.subr.mxu0 0.0
  %2552 = vmatpush2.msra.mxu0 0.0
  %2553 = vmatprep.subr.mxu0 0.0
  %2554 = vmatpush2.msra.mxu0 0.0
  %2555 = vmatprep.subr.mxu0 0.0
  %2556 = vmatpush2.msra.mxu0 0.0
  %2557 = vmatprep.subr.mxu0 0.0
  %2558 = vmatpush2.msra.mxu0 0.0
  %2559 = vmatprep.subr.mxu0 0.0
  %2560 = vmatpush2.msra.mxu0 0.0
  %2561 = vmatprep.mubr.f32.mxu0 0.0
  %2562 = vmatmul.mubr.f32.gmra.mxu0 %v2474
  %v2563 = vpop.f32.mrf.mxu0
  %v2564 = vadd.f32 0.0, %v2563
  %v2565 = vpop.f32.mrf.mxu0
  %2566 = vmatprep.mubr.f32.mxu0 0.0
  %2567 = vmatmul.mubr.f32.gmra.mxu0 %v2477
  %v2568 = vpop.f32.mrf.mxu0
  %v2569 = vadd.f32 0.0, %v2568
  %v2570 = vpop.f32.mrf.mxu0
  %2571 = vmatprep.mubr.f32.mxu0 0.0
  %2572 = vmatmul.mubr.f32.gmra.mxu0 %v2480
  %v2573 = vpop.f32.mrf.mxu0
  %v2574 = vadd.f32 0.0, %v2573
  %v2575 = vpop.f32.mrf.mxu0
  %2576 = vmatprep.mubr.f32.mxu0 0.0
  %2577 = vmatmul.mubr.f32.gmra.mxu0 %v2483
  %v2578 = vpop.f32.mrf.mxu0
  %v2579 = vadd.f32 0.0, %v2578
  %v2580 = vpop.f32.mrf.mxu0
  %2581 = vmatprep.mubr.f32.mxu0 0.0
  %2582 = vmatmul.mubr.f32.gmra.mxu0 %v2486
  %v2583 = vpop.f32.mrf.mxu0
  %v2584 = vadd.f32 0.0, %v2583
  %v2585 = vpop.f32.mrf.mxu0
  %2586 = vmatprep.mubr.f32.mxu0 0.0
  %2587 = vmatmul.mubr.f32.gmra.mxu0 %v2489
  %v2588 = vpop.f32.mrf.mxu0
  %v2589 = vadd.f32 0.0, %v2588
  %v2590 = vpop.f32.mrf.mxu0
  %2591 = vmatprep.mubr.f32.mxu0 0.0
  %2592 = vmatmul.mubr.f32.gmra.mxu0 %v2492
  %v2593 = vpop.f32.mrf.mxu0
  %v2594 = vadd.f32 0.0, %v2593
  %v2595 = vpop.f32.mrf.mxu0
  %2596 = vmatprep.mubr.f32.mxu0 0.0
  %2597 = vmatmul.mubr.f32.gmra.mxu0 %v2495
  %v2598 = vpop.f32.mrf.mxu0
  %v2599 = vadd.f32 0.0, %v2598
  %v2600 = vpop.f32.mrf.mxu0
  %2601 = vdwg.mxu0
  %2602 = vrot.lane.b32.xlu0 %v2146, 112
  %v2603 = vpop.permute.xlu0 %2602
  %2604 = vrot.lane.b32.xlu0 %v2151, 112
  %v2605 = vpop.permute.xlu0 %2604
  %2606 = vrot.lane.b32.xlu0 %v2156, 112
  %v2607 = vpop.permute.xlu0 %2606
  %2608 = vrot.lane.b32.xlu0 %v2161, 112
  %v2609 = vpop.permute.xlu0 %2608
  %2610 = vrot.lane.b32.xlu0 %v2166, 112
  %v2611 = vpop.permute.xlu0 %2610
  %2612 = vrot.lane.b32.xlu0 %v2171, 112
  %v2613 = vpop.permute.xlu0 %2612
  %2614 = vrot.lane.b32.xlu0 %v2176, 112
  %v2615 = vpop.permute.xlu0 %2614
  %2616 = vrot.lane.b32.xlu0 %v2181, 112
  %v2617 = vpop.permute.xlu0 %2616
  %2618 = vrot.lane.b32.xlu0 %v2146, 80
  %v2619 = vpop.permute.xlu0 %2618
  %2620 = vrot.lane.b32.xlu0 %v2151, 80
  %v2621 = vpop.permute.xlu0 %2620
  %2622 = vrot.lane.b32.xlu0 %v2156, 80
  %v2623 = vpop.permute.xlu0 %2622
  %2624 = vrot.lane.b32.xlu0 %v2161, 80
  %v2625 = vpop.permute.xlu0 %2624
  %2626 = vrot.lane.b32.xlu0 %v2166, 80
  %v2627 = vpop.permute.xlu0 %2626
  %2628 = vrot.lane.b32.xlu0 %v2171, 80
  %v2629 = vpop.permute.xlu0 %2628
  %2630 = vrot.lane.b32.xlu0 %v2176, 80
  %v2631 = vpop.permute.xlu0 %2630
  %2632 = vrot.lane.b32.xlu0 %v2181, 80
  %v2633 = vpop.permute.xlu0 %2632
  %v2634 = vsel %vm417, %v2603, 0
  %v2636 = vsel %vm417, %v2605, 0
  %v2638 = vsel %vm417, %v2607, 0
  %v2640 = vsel %vm417, %v2609, 0
  %v2642 = vsel %vm417, %v2611, 0
  %v2644 = vsel %vm417, %v2613, 0
  %v2646 = vsel %vm417, %v2615, 0
  %v2648 = vsel %vm417, %v2617, 0
  %v2650 = vsel %vm417, %v2619, 0
  %v2652 = vsel %vm417, %v2621, 0
  %v2654 = vsel %vm417, %v2623, 0
  %v2656 = vsel %vm417, %v2625, 0
  %v2658 = vsel %vm417, %v2627, 0
  %v2660 = vsel %vm417, %v2629, 0
  %v2662 = vsel %vm417, %v2631, 0
  %v2664 = vsel %vm417, %v2633, 0
  %2666 = vmatprep.subr.mxu0 0.0
  %2667 = vmatpush1.xpose.msra.mxu0 0.0
  %2668 = vmatprep.subr.mxu0 0.0
  %2669 = vmatpush1.xpose.msra.mxu0 0.0
  %2670 = vmatprep.subr.mxu0 0.0
  %2671 = vmatpush1.xpose.msra.mxu0 0.0
  %2672 = vmatprep.subr.mxu0 0.0
  %2673 = vmatpush1.xpose.msra.mxu0 0.0
  %2674 = vmatprep.subr.mxu0 0.0
  %2675 = vmatpush1.xpose.msra.mxu0 0.0
  %2676 = vmatprep.subr.mxu0 0.0
  %2677 = vmatpush1.xpose.msra.mxu0 0.0
  %2678 = vmatprep.subr.mxu0 0.0
  %2679 = vmatpush1.xpose.msra.mxu0 0.0
  %2680 = vmatprep.subr.mxu0 0.0
  %2681 = vmatpush1.xpose.msra.mxu0 0.0
  %2682 = vmatprep.subr.mxu0 0.0
  %2683 = vmatpush1.xpose.msra.mxu0 %v2664
  %2684 = vmatprep.subr.mxu0 0.0
  %2685 = vmatpush1.xpose.msra.mxu0 %v2662
  %2686 = vmatprep.subr.mxu0 0.0
  %2687 = vmatpush1.xpose.msra.mxu0 %v2660
  %2688 = vmatprep.subr.mxu0 0.0
  %2689 = vmatpush1.xpose.msra.mxu0 %v2658
  %2690 = vmatprep.subr.mxu0 0.0
  %2691 = vmatpush1.xpose.msra.mxu0 %v2656
  %2692 = vmatprep.subr.mxu0 0.0
  %2693 = vmatpush1.xpose.msra.mxu0 %v2654
  %2694 = vmatprep.subr.mxu0 0.0
  %2695 = vmatpush1.xpose.msra.mxu0 %v2652
  %2696 = vmatprep.subr.mxu0 0.0
  %2697 = vmatpush1.xpose.msra.mxu0 %v2650
  %2698 = vmatprep.subr.mxu0 0.0
  %2699 = vmatpush2.xpose.msra.mxu0 0.0
  %2700 = vmatprep.subr.mxu0 0.0
  %2701 = vmatpush2.xpose.msra.mxu0 0.0
  %2702 = vmatprep.subr.mxu0 0.0
  %2703 = vmatpush2.xpose.msra.mxu0 0.0
  %2704 = vmatprep.subr.mxu0 0.0
  %2705 = vmatpush2.xpose.msra.mxu0 0.0
  %2706 = vmatprep.subr.mxu0 0.0
  %2707 = vmatpush2.xpose.msra.mxu0 0.0
  %2708 = vmatprep.subr.mxu0 0.0
  %2709 = vmatpush2.xpose.msra.mxu0 0.0
  %2710 = vmatprep.subr.mxu0 0.0
  %2711 = vmatpush2.xpose.msra.mxu0 0.0
  %2712 = vmatprep.subr.mxu0 0.0
  %2713 = vmatpush2.xpose.msra.mxu0 0.0
  %2714 = vmatprep.subr.mxu0 0.0
  %2715 = vmatpush2.xpose.msra.mxu0 0.0
  %2716 = vmatprep.subr.mxu0 0.0
  %2717 = vmatpush2.xpose.msra.mxu0 0.0
  %2718 = vmatprep.subr.mxu0 0.0
  %2719 = vmatpush2.xpose.msra.mxu0 0.0
  %2720 = vmatprep.subr.mxu0 0.0
  %2721 = vmatpush2.xpose.msra.mxu0 0.0
  %2722 = vmatprep.subr.mxu0 0.0
  %2723 = vmatpush2.xpose.msra.mxu0 0.0
  %2724 = vmatprep.subr.mxu0 0.0
  %2725 = vmatpush2.xpose.msra.mxu0 0.0
  %2726 = vmatprep.subr.mxu0 0.0
  %2727 = vmatpush2.xpose.msra.mxu0 0.0
  %2728 = vmatprep.subr.mxu0 0.0
  %2729 = vmatpush2.xpose.msra.mxu0 0.0
  %2730 = vmatprep.mubr.f32.mxu0 0.0
  %2731 = vmatmul.mubr.f32.gmra.mxu0 %v2634
  %v2732 = vpop.f32.mrf.mxu0
  %v2733 = vadd.f32 0.0, %v2732
  %v2734 = vpop.f32.mrf.mxu0
  %2735 = vmatprep.mubr.f32.mxu0 0.0
  %2736 = vmatmul.mubr.f32.gmra.mxu0 %v2636
  %v2737 = vpop.f32.mrf.mxu0
  %v2738 = vadd.f32 0.0, %v2737
  %v2739 = vpop.f32.mrf.mxu0
  %2740 = vmatprep.mubr.f32.mxu0 0.0
  %2741 = vmatmul.mubr.f32.gmra.mxu0 %v2638
  %v2742 = vpop.f32.mrf.mxu0
  %v2743 = vadd.f32 0.0, %v2742
  %v2744 = vpop.f32.mrf.mxu0
  %2745 = vmatprep.mubr.f32.mxu0 0.0
  %2746 = vmatmul.mubr.f32.gmra.mxu0 %v2640
  %v2747 = vpop.f32.mrf.mxu0
  %v2748 = vadd.f32 0.0, %v2747
  %v2749 = vpop.f32.mrf.mxu0
  %2750 = vmatprep.mubr.f32.mxu0 0.0
  %2751 = vmatmul.mubr.f32.gmra.mxu0 %v2642
  %v2752 = vpop.f32.mrf.mxu0
  %v2753 = vadd.f32 0.0, %v2752
  %v2754 = vpop.f32.mrf.mxu0
  %2755 = vmatprep.mubr.f32.mxu0 0.0
  %2756 = vmatmul.mubr.f32.gmra.mxu0 %v2644
  %v2757 = vpop.f32.mrf.mxu0
  %v2758 = vadd.f32 0.0, %v2757
  %v2759 = vpop.f32.mrf.mxu0
  %2760 = vmatprep.mubr.f32.mxu0 0.0
  %2761 = vmatmul.mubr.f32.gmra.mxu0 %v2646
  %v2762 = vpop.f32.mrf.mxu0
  %v2763 = vadd.f32 0.0, %v2762
  %v2764 = vpop.f32.mrf.mxu0
  %2765 = vmatprep.mubr.f32.mxu0 0.0
  %2766 = vmatmul.mubr.f32.gmra.mxu0 %v2648
  %v2767 = vpop.f32.mrf.mxu0
  %v2768 = vadd.f32 0.0, %v2767
  %v2769 = vpop.f32.mrf.mxu0
  %2770 = vdwg.mxu0
  %v2771 = vmul.f32 %v2733, 0.25
  %v2772 = vmul.f32 %v2738, 0.25
  %v2773 = vmul.f32 %v2743, 0.25
  %v2774 = vmul.f32 %v2748, 0.25
  %v2775 = vmul.f32 %v2753, 0.25
  %v2776 = vmul.f32 %v2758, 0.25
  %v2777 = vmul.f32 %v2763, 0.25
  %v2778 = vmul.f32 %v2768, 0.25
  %v2779 = vadd.f32 %v2771, %v245
  %v2780 = vadd.f32 %v2772, %v246
  %v2781 = vadd.f32 %v2773, %v247
  %v2782 = vadd.f32 %v2774, %v248
  %v2783 = vadd.f32 %v2775, %v249
  %v2784 = vadd.f32 %v2776, %v250
  %v2785 = vadd.f32 %v2777, %v251
  %v2786 = vadd.f32 %v2778, %v252
  %v2787 = vsel %vm571, %v2779, -inf
  %2788 = vmax.xlane.f32.xlu0 %v2787
  %v2789 = vpop.xlane.xlu0 %2788
  %v2790 = vsel %vm571, %v2780, -inf
  %2791 = vmax.xlane.f32.xlu0 %v2790
  %v2792 = vpop.xlane.xlu0 %2791
  %v2793 = vsel %vm571, %v2781, -inf
  %2794 = vmax.xlane.f32.xlu0 %v2793
  %v2795 = vpop.xlane.xlu0 %2794
  %v2796 = vsel %vm571, %v2782, -inf
  %2797 = vmax.xlane.f32.xlu0 %v2796
  %v2798 = vpop.xlane.xlu0 %2797
  %v2799 = vsel %vm571, %v2783, -inf
  %2800 = vmax.xlane.f32.xlu0 %v2799
  %v2801 = vpop.xlane.xlu0 %2800
  %v2802 = vsel %vm571, %v2784, -inf
  %2803 = vmax.xlane.f32.xlu0 %v2802
  %v2804 = vpop.xlane.xlu0 %2803
  %v2805 = vsel %vm571, %v2785, -inf
  %2806 = vmax.xlane.f32.xlu0 %v2805
  %v2807 = vpop.xlane.xlu0 %2806
  %v2808 = vsel %vm571, %v2786, -inf
  %2809 = vmax.xlane.f32.xlu0 %v2808
  %v2810 = vpop.xlane.xlu0 %2809
  %v2811 = vsub.f32 %v2779, %v2789
  %v2812 = vsub.f32 %v2780, %v2792
  %v2813 = vsub.f32 %v2781, %v2795
  %v2814 = vsub.f32 %v2782, %v2798
  %v2815 = vsub.f32 %v2783, %v2801
  %v2816 = vsub.f32 %v2784, %v2804
  %v2817 = vsub.f32 %v2785, %v2807
  %v2818 = vsub.f32 %v2786, %v2810
  %v2819 = vmul.f32 %v2811, 1.442695
  %v2820 = vpow.pop %v2819
  %v2821 = vmul.f32 %v2812, 1.442695
  %v2822 = vpow.pop %v2821
  %v2823 = vmul.f32 %v2813, 1.442695
  %v2824 = vpow.pop %v2823
  %v2825 = vmul.f32 %v2814, 1.442695
  %v2826 = vpow.pop %v2825
  %v2827 = vmul.f32 %v2815, 1.442695
  %v2828 = vpow.pop %v2827
  %v2829 = vmul.f32 %v2816, 1.442695
  %v2830 = vpow.pop %v2829
  %v2831 = vmul.f32 %v2817, 1.442695
  %v2832 = vpow.pop %v2831
  %v2833 = vmul.f32 %v2818, 1.442695
  %v2834 = vpow.pop %v2833
  %v2835 = vsel %vm571, %v2820, 0.0
  %2836 = vadd.xlane.f32.xlu0 %v2835
  %v2837 = vpop.xlane.xlu0 %2836
  %v2838 = vsel %vm571, %v2822, 0.0
  %2839 = vadd.xlane.f32.xlu0 %v2838
  %v2840 = vpop.xlane.xlu0 %2839
  %v2841 = vsel %vm571, %v2824, 0.0
  %2842 = vadd.xlane.f32.xlu0 %v2841
  %v2843 = vpop.xlane.xlu0 %2842
  %v2844 = vsel %vm571, %v2826, 0.0
  %2845 = vadd.xlane.f32.xlu0 %v2844
  %v2846 = vpop.xlane.xlu0 %2845
  %v2847 = vsel %vm571, %v2828, 0.0
  %2848 = vadd.xlane.f32.xlu0 %v2847
  %v2849 = vpop.xlane.xlu0 %2848
  %v2850 = vsel %vm571, %v2830, 0.0
  %2851 = vadd.xlane.f32.xlu0 %v2850
  %v2852 = vpop.xlane.xlu0 %2851
  %v2853 = vsel %vm571, %v2832, 0.0
  %2854 = vadd.xlane.f32.xlu0 %v2853
  %v2855 = vpop.xlane.xlu0 %2854
  %v2856 = vsel %vm571, %v2834, 0.0
  %2857 = vadd.xlane.f32.xlu0 %v2856
  %v2858 = vpop.xlane.xlu0 %2857
  %v2859 = vrcp.pop %v2837
  %v2860 = vrcp.pop %v2840
  %v2861 = vrcp.pop %v2843
  %v2862 = vrcp.pop %v2846
  %v2863 = vrcp.pop %v2849
  %v2864 = vrcp.pop %v2852
  %v2865 = vrcp.pop %v2855
  %v2866 = vrcp.pop %v2858
  %v2867 = vmul.f32 %v2820, %v2859
  %v2868 = vmul.f32 %v2822, %v2860
  %v2869 = vmul.f32 %v2824, %v2861
  %v2870 = vmul.f32 %v2826, %v2862
  %v2871 = vmul.f32 %v2828, %v2863
  %v2872 = vmul.f32 %v2830, %v2864
  %v2873 = vmul.f32 %v2832, %v2865
  %v2874 = vmul.f32 %v2834, %v2866
  %2875 = vrot.lane.b32.xlu0 %v2146, 48
  %v2876 = vpop.permute.xlu0 %2875
  %2877 = vrot.lane.b32.xlu0 %v2151, 48
  %v2878 = vpop.permute.xlu0 %2877
  %2879 = vrot.lane.b32.xlu0 %v2156, 48
  %v2880 = vpop.permute.xlu0 %2879
  %2881 = vrot.lane.b32.xlu0 %v2161, 48
  %v2882 = vpop.permute.xlu0 %2881
  %2883 = vrot.lane.b32.xlu0 %v2166, 48
  %v2884 = vpop.permute.xlu0 %2883
  %2885 = vrot.lane.b32.xlu0 %v2171, 48
  %v2886 = vpop.permute.xlu0 %2885
  %2887 = vrot.lane.b32.xlu0 %v2176, 48
  %v2888 = vpop.permute.xlu0 %2887
  %2889 = vrot.lane.b32.xlu0 %v2181, 48
  %v2890 = vpop.permute.xlu0 %2889
  %v2900 = vsel %vm571, %v2867, 0
  %v2903 = vsel %vm571, %v2868, 0
  %v2906 = vsel %vm571, %v2869, 0
  %v2909 = vsel %vm571, %v2870, 0
  %v2912 = vsel %vm571, %v2871, 0
  %v2915 = vsel %vm571, %v2872, 0
  %v2918 = vsel %vm571, %v2873, 0
  %v2921 = vsel %vm571, %v2874, 0
  %2923 = vmatprep.subr.mxu0 0.0
  %2924 = vmatpush1.msra.mxu0 0.0
  %2925 = vmatprep.subr.mxu0 0.0
  %2926 = vmatpush1.msra.mxu0 0.0
  %2927 = vmatprep.subr.mxu0 0.0
  %2928 = vmatpush1.msra.mxu0 0.0
  %2929 = vmatprep.subr.mxu0 0.0
  %2930 = vmatpush1.msra.mxu0 0.0
  %2931 = vmatprep.subr.mxu0 0.0
  %2932 = vmatpush1.msra.mxu0 0.0
  %2933 = vmatprep.subr.mxu0 0.0
  %2934 = vmatpush1.msra.mxu0 0.0
  %2935 = vmatprep.subr.mxu0 0.0
  %2936 = vmatpush1.msra.mxu0 0.0
  %2937 = vmatprep.subr.mxu0 0.0
  %2938 = vmatpush1.msra.mxu0 0.0
  %2939 = vmatprep.subr.mxu0 0.0
  %2940 = vmatpush1.msra.mxu0 %v2890
  %2941 = vmatprep.subr.mxu0 0.0
  %2942 = vmatpush1.msra.mxu0 %v2888
  %2943 = vmatprep.subr.mxu0 0.0
  %2944 = vmatpush1.msra.mxu0 %v2886
  %2945 = vmatprep.subr.mxu0 0.0
  %2946 = vmatpush1.msra.mxu0 %v2884
  %2947 = vmatprep.subr.mxu0 0.0
  %2948 = vmatpush1.msra.mxu0 %v2882
  %2949 = vmatprep.subr.mxu0 0.0
  %2950 = vmatpush1.msra.mxu0 %v2880
  %2951 = vmatprep.subr.mxu0 0.0
  %2952 = vmatpush1.msra.mxu0 %v2878
  %2953 = vmatprep.subr.mxu0 0.0
  %2954 = vmatpush1.msra.mxu0 %v2876
  %2955 = vmatprep.subr.mxu0 0.0
  %2956 = vmatpush2.msra.mxu0 0.0
  %2957 = vmatprep.subr.mxu0 0.0
  %2958 = vmatpush2.msra.mxu0 0.0
  %2959 = vmatprep.subr.mxu0 0.0
  %2960 = vmatpush2.msra.mxu0 0.0
  %2961 = vmatprep.subr.mxu0 0.0
  %2962 = vmatpush2.msra.mxu0 0.0
  %2963 = vmatprep.subr.mxu0 0.0
  %2964 = vmatpush2.msra.mxu0 0.0
  %2965 = vmatprep.subr.mxu0 0.0
  %2966 = vmatpush2.msra.mxu0 0.0
  %2967 = vmatprep.subr.mxu0 0.0
  %2968 = vmatpush2.msra.mxu0 0.0
  %2969 = vmatprep.subr.mxu0 0.0
  %2970 = vmatpush2.msra.mxu0 0.0
  %2971 = vmatprep.subr.mxu0 0.0
  %2972 = vmatpush2.msra.mxu0 0.0
  %2973 = vmatprep.subr.mxu0 0.0
  %2974 = vmatpush2.msra.mxu0 0.0
  %2975 = vmatprep.subr.mxu0 0.0
  %2976 = vmatpush2.msra.mxu0 0.0
  %2977 = vmatprep.subr.mxu0 0.0
  %2978 = vmatpush2.msra.mxu0 0.0
  %2979 = vmatprep.subr.mxu0 0.0
  %2980 = vmatpush2.msra.mxu0 0.0
  %2981 = vmatprep.subr.mxu0 0.0
  %2982 = vmatpush2.msra.mxu0 0.0
  %2983 = vmatprep.subr.mxu0 0.0
  %2984 = vmatpush2.msra.mxu0 0.0
  %2985 = vmatprep.subr.mxu0 0.0
  %2986 = vmatpush2.msra.mxu0 0.0
  %2987 = vmatprep.mubr.f32.mxu0 0.0
  %2988 = vmatmul.mubr.f32.gmra.mxu0 %v2900
  %v2989 = vpop.f32.mrf.mxu0
  %v2990 = vadd.f32 0.0, %v2989
  %v2991 = vpop.f32.mrf.mxu0
  %2992 = vmatprep.mubr.f32.mxu0 0.0
  %2993 = vmatmul.mubr.f32.gmra.mxu0 %v2903
  %v2994 = vpop.f32.mrf.mxu0
  %v2995 = vadd.f32 0.0, %v2994
  %v2996 = vpop.f32.mrf.mxu0
  %2997 = vmatprep.mubr.f32.mxu0 0.0
  %2998 = vmatmul.mubr.f32.gmra.mxu0 %v2906
  %v2999 = vpop.f32.mrf.mxu0
  %v3000 = vadd.f32 0.0, %v2999
  %v3001 = vpop.f32.mrf.mxu0
  %3002 = vmatprep.mubr.f32.mxu0 0.0
  %3003 = vmatmul.mubr.f32.gmra.mxu0 %v2909
  %v3004 = vpop.f32.mrf.mxu0
  %v3005 = vadd.f32 0.0, %v3004
  %v3006 = vpop.f32.mrf.mxu0
  %3007 = vmatprep.mubr.f32.mxu0 0.0
  %3008 = vmatmul.mubr.f32.gmra.mxu0 %v2912
  %v3009 = vpop.f32.mrf.mxu0
  %v3010 = vadd.f32 0.0, %v3009
  %v3011 = vpop.f32.mrf.mxu0
  %3012 = vmatprep.mubr.f32.mxu0 0.0
  %3013 = vmatmul.mubr.f32.gmra.mxu0 %v2915
  %v3014 = vpop.f32.mrf.mxu0
  %v3015 = vadd.f32 0.0, %v3014
  %v3016 = vpop.f32.mrf.mxu0
  %3017 = vmatprep.mubr.f32.mxu0 0.0
  %3018 = vmatmul.mubr.f32.gmra.mxu0 %v2918
  %v3019 = vpop.f32.mrf.mxu0
  %v3020 = vadd.f32 0.0, %v3019
  %v3021 = vpop.f32.mrf.mxu0
  %3022 = vmatprep.mubr.f32.mxu0 0.0
  %3023 = vmatmul.mubr.f32.gmra.mxu0 %v2921
  %v3024 = vpop.f32.mrf.mxu0
  %v3025 = vadd.f32 0.0, %v3024
  %v3026 = vpop.f32.mrf.mxu0
  %3027 = vdwg.mxu0
  %3036 = vrot.lane.b32.xlu0 %v2990, 16
  %v3037 = vpop.permute.xlu0 %3036
  %3038 = vrot.lane.b32.xlu0 %v2995, 16
  %v3039 = vpop.permute.xlu0 %3038
  %3040 = vrot.lane.b32.xlu0 %v3000, 16
  %v3041 = vpop.permute.xlu0 %3040
  %3042 = vrot.lane.b32.xlu0 %v3005, 16
  %v3043 = vpop.permute.xlu0 %3042
  %3044 = vrot.lane.b32.xlu0 %v3010, 16
  %v3045 = vpop.permute.xlu0 %3044
  %3046 = vrot.lane.b32.xlu0 %v3015, 16
  %v3047 = vpop.permute.xlu0 %3046
  %3048 = vrot.lane.b32.xlu0 %v3020, 16
  %v3049 = vpop.permute.xlu0 %3048
  %3050 = vrot.lane.b32.xlu0 %v3025, 16
  %v3051 = vpop.permute.xlu0 %3050
  %v3060 = vsel %vm417, %v2564, %v3037
  %v3061 = vsel %vm417, %v2569, %v3039
  %v3062 = vsel %vm417, %v2574, %v3041
  %v3063 = vsel %vm417, %v2579, %v3043
  %v3064 = vsel %vm417, %v2584, %v3045
  %v3065 = vsel %vm417, %v2589, %v3047
  %v3066 = vsel %vm417, %v2594, %v3049
  %v3067 = vsel %vm417, %v2599, %v3051
  %s3068 = scalar_lea.vmem %s6, 8
  %v3069 = vld [vmem:[%s3068] sm:$0x3f]
  %s3070 = scalar_lea.vmem %s5, 32
  %v3071 = vld [vmem:[%s3070] sm:$0xff]
  %v3072 = vld [vmem:[%s3070 + $0x8] sm:$0xff]
  %v3073 = vld [vmem:[%s3070 + $0x10] sm:$0xff]
  %v3074 = vld [vmem:[%s3070 + $0x18] sm:$0xff]
  %v3075 = vlaneseq
  %v3076 = vshrl.u32 %v3075, 7
  %v3077 = vsub.s32 0, %v3076
  %v3078 = vrot.slane %v3069, %v3077
  %v3080 = vsel %vm52, %v3060, 0
  %v3083 = vsel %vm52, %v3061, 0
  %v3086 = vsel %vm52, %v3062, 0
  %v3089 = vsel %vm52, %v3063, 0
  %v3092 = vsel %vm52, %v3064, 0
  %v3095 = vsel %vm52, %v3065, 0
  %v3098 = vsel %vm52, %v3066, 0
  %v3101 = vsel %vm52, %v3067, 0
  %3103 = vmatprep.subr.mxu0 0.0
  %3104 = vmatpush1.msra.mxu0 0.0
  %3105 = vmatprep.subr.mxu0 0.0
  %3106 = vmatpush1.msra.mxu0 0.0
  %3107 = vmatprep.subr.mxu0 0.0
  %3108 = vmatpush1.msra.mxu0 0.0
  %3109 = vmatprep.subr.mxu0 0.0
  %3110 = vmatpush1.msra.mxu0 0.0
  %3111 = vmatprep.subr.mxu0 0.0
  %3112 = vmatpush1.msra.mxu0 0.0
  %3113 = vmatprep.subr.mxu0 0.0
  %3114 = vmatpush1.msra.mxu0 0.0
  %3115 = vmatprep.subr.mxu0 0.0
  %3116 = vmatpush1.msra.mxu0 0.0
  %3117 = vmatprep.subr.mxu0 0.0
  %3118 = vmatpush1.msra.mxu0 0.0
  %3119 = vmatprep.subr.mxu0 0.0
  %3120 = vmatpush1.msra.mxu0 0.0
  %3121 = vmatprep.subr.mxu0 0.0
  %3122 = vmatpush1.msra.mxu0 0.0
  %3123 = vmatprep.subr.mxu0 0.0
  %3124 = vmatpush1.msra.mxu0 0.0
  %3125 = vmatprep.subr.mxu0 0.0
  %3126 = vmatpush1.msra.mxu0 0.0
  %3127 = vmatprep.subr.mxu0 0.0
  %3128 = vmatpush1.msra.mxu0 %v3074
  %3129 = vmatprep.subr.mxu0 0.0
  %3130 = vmatpush1.msra.mxu0 %v3073
  %3131 = vmatprep.subr.mxu0 0.0
  %3132 = vmatpush1.msra.mxu0 %v3072
  %3133 = vmatprep.subr.mxu0 0.0
  %3134 = vmatpush1.msra.mxu0 %v3071
  %3135 = vmatprep.subr.mxu0 0.0
  %3136 = vmatpush2.msra.mxu0 0.0
  %3137 = vmatprep.subr.mxu0 0.0
  %3138 = vmatpush2.msra.mxu0 0.0
  %3139 = vmatprep.subr.mxu0 0.0
  %3140 = vmatpush2.msra.mxu0 0.0
  %3141 = vmatprep.subr.mxu0 0.0
  %3142 = vmatpush2.msra.mxu0 0.0
  %3143 = vmatprep.subr.mxu0 0.0
  %3144 = vmatpush2.msra.mxu0 0.0
  %3145 = vmatprep.subr.mxu0 0.0
  %3146 = vmatpush2.msra.mxu0 0.0
  %3147 = vmatprep.subr.mxu0 0.0
  %3148 = vmatpush2.msra.mxu0 0.0
  %3149 = vmatprep.subr.mxu0 0.0
  %3150 = vmatpush2.msra.mxu0 0.0
  %3151 = vmatprep.subr.mxu0 0.0
  %3152 = vmatpush2.msra.mxu0 0.0
  %3153 = vmatprep.subr.mxu0 0.0
  %3154 = vmatpush2.msra.mxu0 0.0
  %3155 = vmatprep.subr.mxu0 0.0
  %3156 = vmatpush2.msra.mxu0 0.0
  %3157 = vmatprep.subr.mxu0 0.0
  %3158 = vmatpush2.msra.mxu0 0.0
  %3159 = vmatprep.subr.mxu0 0.0
  %3160 = vmatpush2.msra.mxu0 0.0
  %3161 = vmatprep.subr.mxu0 0.0
  %3162 = vmatpush2.msra.mxu0 0.0
  %3163 = vmatprep.subr.mxu0 0.0
  %3164 = vmatpush2.msra.mxu0 0.0
  %3165 = vmatprep.subr.mxu0 0.0
  %3166 = vmatpush2.msra.mxu0 0.0
  %3167 = vmatprep.mubr.f32.mxu0 0.0
  %3168 = vmatmul.mubr.f32.gmra.mxu0 %v3080
  %v3169 = vpop.f32.mrf.mxu0
  %v3170 = vadd.f32 %v3078, %v3169
  %v3171 = vpop.f32.mrf.mxu0
  %3172 = vmatprep.mubr.f32.mxu0 0.0
  %3173 = vmatmul.mubr.f32.gmra.mxu0 %v3083
  %v3174 = vpop.f32.mrf.mxu0
  %v3175 = vadd.f32 %v3078, %v3174
  %v3176 = vpop.f32.mrf.mxu0
  %3177 = vmatprep.mubr.f32.mxu0 0.0
  %3178 = vmatmul.mubr.f32.gmra.mxu0 %v3086
  %v3179 = vpop.f32.mrf.mxu0
  %v3180 = vadd.f32 %v3078, %v3179
  %v3181 = vpop.f32.mrf.mxu0
  %3182 = vmatprep.mubr.f32.mxu0 0.0
  %3183 = vmatmul.mubr.f32.gmra.mxu0 %v3089
  %v3184 = vpop.f32.mrf.mxu0
  %v3185 = vadd.f32 %v3078, %v3184
  %v3186 = vpop.f32.mrf.mxu0
  %3187 = vmatprep.mubr.f32.mxu0 0.0
  %3188 = vmatmul.mubr.f32.gmra.mxu0 %v3092
  %v3189 = vpop.f32.mrf.mxu0
  %v3190 = vadd.f32 %v3078, %v3189
  %v3191 = vpop.f32.mrf.mxu0
  %3192 = vmatprep.mubr.f32.mxu0 0.0
  %3193 = vmatmul.mubr.f32.gmra.mxu0 %v3095
  %v3194 = vpop.f32.mrf.mxu0
  %v3195 = vadd.f32 %v3078, %v3194
  %v3196 = vpop.f32.mrf.mxu0
  %3197 = vmatprep.mubr.f32.mxu0 0.0
  %3198 = vmatmul.mubr.f32.gmra.mxu0 %v3098
  %v3199 = vpop.f32.mrf.mxu0
  %v3200 = vadd.f32 %v3078, %v3199
  %v3201 = vpop.f32.mrf.mxu0
  %3202 = vmatprep.mubr.f32.mxu0 0.0
  %3203 = vmatmul.mubr.f32.gmra.mxu0 %v3101
  %v3204 = vpop.f32.mrf.mxu0
  %v3205 = vadd.f32 %v3078, %v3204
  %v3206 = vpop.f32.mrf.mxu0
  %3207 = vdwg.mxu0
  %v3208 = vadd.f32 %v3170, %v2034
  %v3209 = vadd.f32 %v3175, %v2035
  %v3210 = vadd.f32 %v3180, %v2036
  %v3211 = vadd.f32 %v3185, %v2037
  %v3212 = vadd.f32 %v3190, %v2038
  %v3213 = vadd.f32 %v3195, %v2039
  %v3214 = vadd.f32 %v3200, %v2040
  %v3215 = vadd.f32 %v3205, %v2041
  %v3216 = vsel %vm52, %v3208, 0.0
  %3217 = vadd.xlane.f32.xlu0 %v3216
  %v3218 = vpop.xlane.xlu0 %3217
  %v3219 = vsel %vm52, %v3209, 0.0
  %3220 = vadd.xlane.f32.xlu0 %v3219
  %v3221 = vpop.xlane.xlu0 %3220
  %v3222 = vsel %vm52, %v3210, 0.0
  %3223 = vadd.xlane.f32.xlu0 %v3222
  %v3224 = vpop.xlane.xlu0 %3223
  %v3225 = vsel %vm52, %v3211, 0.0
  %3226 = vadd.xlane.f32.xlu0 %v3225
  %v3227 = vpop.xlane.xlu0 %3226
  %v3228 = vsel %vm52, %v3212, 0.0
  %3229 = vadd.xlane.f32.xlu0 %v3228
  %v3230 = vpop.xlane.xlu0 %3229
  %v3231 = vsel %vm52, %v3213, 0.0
  %3232 = vadd.xlane.f32.xlu0 %v3231
  %v3233 = vpop.xlane.xlu0 %3232
  %v3234 = vsel %vm52, %v3214, 0.0
  %3235 = vadd.xlane.f32.xlu0 %v3234
  %v3236 = vpop.xlane.xlu0 %3235
  %v3237 = vsel %vm52, %v3215, 0.0
  %3238 = vadd.xlane.f32.xlu0 %v3237
  %v3239 = vpop.xlane.xlu0 %3238
  %v3240 = vmul.f32 %v3218, %v77
  %v3241 = vmul.f32 %v3221, %v77
  %v3242 = vmul.f32 %v3224, %v77
  %v3243 = vmul.f32 %v3227, %v77
  %v3244 = vmul.f32 %v3230, %v77
  %v3245 = vmul.f32 %v3233, %v77
  %v3246 = vmul.f32 %v3236, %v77
  %v3247 = vmul.f32 %v3239, %v77
  %v3248 = vsub.f32 %v3208, %v3240
  %v3249 = vsub.f32 %v3209, %v3241
  %v3250 = vsub.f32 %v3210, %v3242
  %v3251 = vsub.f32 %v3211, %v3243
  %v3252 = vsub.f32 %v3212, %v3244
  %v3253 = vsub.f32 %v3213, %v3245
  %v3254 = vsub.f32 %v3214, %v3246
  %v3255 = vsub.f32 %v3215, %v3247
  %v3256 = vmul.f32 %v3248, %v3248
  %v3257 = vmul.f32 %v3249, %v3249
  %v3258 = vmul.f32 %v3250, %v3250
  %v3259 = vmul.f32 %v3251, %v3251
  %v3260 = vmul.f32 %v3252, %v3252
  %v3261 = vmul.f32 %v3253, %v3253
  %v3262 = vmul.f32 %v3254, %v3254
  %v3263 = vmul.f32 %v3255, %v3255
  %v3264 = vsel %vm52, %v3256, 0.0
  %3265 = vadd.xlane.f32.xlu0 %v3264
  %v3266 = vpop.xlane.xlu0 %3265
  %v3267 = vsel %vm52, %v3257, 0.0
  %3268 = vadd.xlane.f32.xlu0 %v3267
  %v3269 = vpop.xlane.xlu0 %3268
  %v3270 = vsel %vm52, %v3258, 0.0
  %3271 = vadd.xlane.f32.xlu0 %v3270
  %v3272 = vpop.xlane.xlu0 %3271
  %v3273 = vsel %vm52, %v3259, 0.0
  %3274 = vadd.xlane.f32.xlu0 %v3273
  %v3275 = vpop.xlane.xlu0 %3274
  %v3276 = vsel %vm52, %v3260, 0.0
  %3277 = vadd.xlane.f32.xlu0 %v3276
  %v3278 = vpop.xlane.xlu0 %3277
  %v3279 = vsel %vm52, %v3261, 0.0
  %3280 = vadd.xlane.f32.xlu0 %v3279
  %v3281 = vpop.xlane.xlu0 %3280
  %v3282 = vsel %vm52, %v3262, 0.0
  %3283 = vadd.xlane.f32.xlu0 %v3282
  %v3284 = vpop.xlane.xlu0 %3283
  %v3285 = vsel %vm52, %v3263, 0.0
  %3286 = vadd.xlane.f32.xlu0 %v3285
  %v3287 = vpop.xlane.xlu0 %3286
  %v3288 = vmul.f32 %v3266, %v77
  %v3289 = vmul.f32 %v3269, %v77
  %v3290 = vmul.f32 %v3272, %v77
  %v3291 = vmul.f32 %v3275, %v77
  %v3292 = vmul.f32 %v3278, %v77
  %v3293 = vmul.f32 %v3281, %v77
  %v3294 = vmul.f32 %v3284, %v77
  %v3295 = vmul.f32 %v3287, %v77
  %v3296 = vadd.f32 %v3288, 1e-12
  %v3297 = vadd.f32 %v3289, 1e-12
  %v3298 = vadd.f32 %v3290, 1e-12
  %v3299 = vadd.f32 %v3291, 1e-12
  %v3300 = vadd.f32 %v3292, 1e-12
  %v3301 = vadd.f32 %v3293, 1e-12
  %v3302 = vadd.f32 %v3294, 1e-12
  %v3303 = vadd.f32 %v3295, 1e-12
  %v3304 = vrsqrt.pop %v3296
  %v3305 = vrsqrt.pop %v3297
  %v3306 = vrsqrt.pop %v3298
  %v3307 = vrsqrt.pop %v3299
  %v3308 = vrsqrt.pop %v3300
  %v3309 = vrsqrt.pop %v3301
  %v3310 = vrsqrt.pop %v3302
  %v3311 = vrsqrt.pop %v3303
  %v3312 = vmul.f32 %v3248, %v3304
  %v3313 = vmul.f32 %v3249, %v3305
  %v3314 = vmul.f32 %v3250, %v3306
  %v3315 = vmul.f32 %v3251, %v3307
  %v3316 = vmul.f32 %v3252, %v3308
  %v3317 = vmul.f32 %v3253, %v3309
  %v3318 = vmul.f32 %v3254, %v3310
  %v3319 = vmul.f32 %v3255, %v3311
  %v3320 = vlaneseq
  %v3321 = vshrl.u32 %v3320, 7
  %v3322 = vsub.s32 1, %v3321
  %v3323 = vrot.slane %v3069, %v3322
  %v3324 = vmul.f32 %v3312, %v3323
  %v3325 = vmul.f32 %v3313, %v3323
  %v3326 = vmul.f32 %v3314, %v3323
  %v3327 = vmul.f32 %v3315, %v3323
  %v3328 = vmul.f32 %v3316, %v3323
  %v3329 = vmul.f32 %v3317, %v3323
  %v3330 = vmul.f32 %v3318, %v3323
  %v3331 = vmul.f32 %v3319, %v3323
  %v3332 = vlaneseq
  %v3333 = vshrl.u32 %v3332, 7
  %v3334 = vsub.s32 2, %v3333
  %v3335 = vrot.slane %v3069, %v3334
  %v3336 = vadd.f32 %v3324, %v3335
  %v3337 = vadd.f32 %v3325, %v3335
  %v3338 = vadd.f32 %v3326, %v3335
  %v3339 = vadd.f32 %v3327, %v3335
  %v3340 = vadd.f32 %v3328, %v3335
  %v3341 = vadd.f32 %v3329, %v3335
  %v3342 = vadd.f32 %v3330, %v3335
  %v3343 = vadd.f32 %v3331, %v3335
  %s3344 = scalar_lea.vmem %s7, 32
  %v3345 = vld [vmem:[%s3344] sm:$0xff]
  %v3346 = vld [vmem:[%s3344 + $0x8] sm:$0xff]
  %v3347 = vld [vmem:[%s3344 + $0x10] sm:$0xff]
  %v3348 = vld [vmem:[%s3344 + $0x18] sm:$0xff]
  %s3349 = scalar_lea.vmem %s8, 1
  %v3350 = vld [vmem:[%s3349] sm:$0x1]
  %v3352 = vlaneseq
  %v3353 = vshrl.u32 %v3352, 7
  %v3354 = vsub.s32 0, %v3353
  %v3355 = vrot.slane %v3350, %v3354
  %v3358 = vsel %vm52, %v3336, 0
  %v3361 = vsel %vm52, %v3337, 0
  %v3364 = vsel %vm52, %v3338, 0
  %v3367 = vsel %vm52, %v3339, 0
  %v3370 = vsel %vm52, %v3340, 0
  %v3373 = vsel %vm52, %v3341, 0
  %v3376 = vsel %vm52, %v3342, 0
  %v3379 = vsel %vm52, %v3343, 0
  %3381 = vmatprep.subr.mxu0 0.0
  %3382 = vmatpush1.msra.mxu0 0.0
  %3383 = vmatprep.subr.mxu0 0.0
  %3384 = vmatpush1.msra.mxu0 0.0
  %3385 = vmatprep.subr.mxu0 0.0
  %3386 = vmatpush1.msra.mxu0 0.0
  %3387 = vmatprep.subr.mxu0 0.0
  %3388 = vmatpush1.msra.mxu0 0.0
  %3389 = vmatprep.subr.mxu0 0.0
  %3390 = vmatpush1.msra.mxu0 0.0
  %3391 = vmatprep.subr.mxu0 0.0
  %3392 = vmatpush1.msra.mxu0 0.0
  %3393 = vmatprep.subr.mxu0 0.0
  %3394 = vmatpush1.msra.mxu0 0.0
  %3395 = vmatprep.subr.mxu0 0.0
  %3396 = vmatpush1.msra.mxu0 0.0
  %3397 = vmatprep.subr.mxu0 0.0
  %3398 = vmatpush1.msra.mxu0 0.0
  %3399 = vmatprep.subr.mxu0 0.0
  %3400 = vmatpush1.msra.mxu0 0.0
  %3401 = vmatprep.subr.mxu0 0.0
  %3402 = vmatpush1.msra.mxu0 0.0
  %3403 = vmatprep.subr.mxu0 0.0
  %3404 = vmatpush1.msra.mxu0 0.0
  %3405 = vmatprep.subr.mxu0 0.0
  %3406 = vmatpush1.msra.mxu0 %v3348
  %3407 = vmatprep.subr.mxu0 0.0
  %3408 = vmatpush1.msra.mxu0 %v3347
  %3409 = vmatprep.subr.mxu0 0.0
  %3410 = vmatpush1.msra.mxu0 %v3346
  %3411 = vmatprep.subr.mxu0 0.0
  %3412 = vmatpush1.msra.mxu0 %v3345
  %3413 = vmatprep.subr.mxu0 0.0
  %3414 = vmatpush2.msra.mxu0 0.0
  %3415 = vmatprep.subr.mxu0 0.0
  %3416 = vmatpush2.msra.mxu0 0.0
  %3417 = vmatprep.subr.mxu0 0.0
  %3418 = vmatpush2.msra.mxu0 0.0
  %3419 = vmatprep.subr.mxu0 0.0
  %3420 = vmatpush2.msra.mxu0 0.0
  %3421 = vmatprep.subr.mxu0 0.0
  %3422 = vmatpush2.msra.mxu0 0.0
  %3423 = vmatprep.subr.mxu0 0.0
  %3424 = vmatpush2.msra.mxu0 0.0
  %3425 = vmatprep.subr.mxu0 0.0
  %3426 = vmatpush2.msra.mxu0 0.0
  %3427 = vmatprep.subr.mxu0 0.0
  %3428 = vmatpush2.msra.mxu0 0.0
  %3429 = vmatprep.subr.mxu0 0.0
  %3430 = vmatpush2.msra.mxu0 0.0
  %3431 = vmatprep.subr.mxu0 0.0
  %3432 = vmatpush2.msra.mxu0 0.0
  %3433 = vmatprep.subr.mxu0 0.0
  %3434 = vmatpush2.msra.mxu0 0.0
  %3435 = vmatprep.subr.mxu0 0.0
  %3436 = vmatpush2.msra.mxu0 0.0
  %3437 = vmatprep.subr.mxu0 0.0
  %3438 = vmatpush2.msra.mxu0 0.0
  %3439 = vmatprep.subr.mxu0 0.0
  %3440 = vmatpush2.msra.mxu0 0.0
  %3441 = vmatprep.subr.mxu0 0.0
  %3442 = vmatpush2.msra.mxu0 0.0
  %3443 = vmatprep.subr.mxu0 0.0
  %3444 = vmatpush2.msra.mxu0 0.0
  %3445 = vmatprep.mubr.f32.mxu0 0.0
  %3446 = vmatmul.mubr.f32.gmra.mxu0 %v3358
  %v3447 = vpop.f32.mrf.mxu0
  %v3448 = vadd.f32 %v3355, %v3447
  %v3449 = vpop.f32.mrf.mxu0
  %3450 = vmatprep.mubr.f32.mxu0 0.0
  %3451 = vmatmul.mubr.f32.gmra.mxu0 %v3361
  %v3452 = vpop.f32.mrf.mxu0
  %v3453 = vadd.f32 %v3355, %v3452
  %v3454 = vpop.f32.mrf.mxu0
  %3455 = vmatprep.mubr.f32.mxu0 0.0
  %3456 = vmatmul.mubr.f32.gmra.mxu0 %v3364
  %v3457 = vpop.f32.mrf.mxu0
  %v3458 = vadd.f32 %v3355, %v3457
  %v3459 = vpop.f32.mrf.mxu0
  %3460 = vmatprep.mubr.f32.mxu0 0.0
  %3461 = vmatmul.mubr.f32.gmra.mxu0 %v3367
  %v3462 = vpop.f32.mrf.mxu0
  %v3463 = vadd.f32 %v3355, %v3462
  %v3464 = vpop.f32.mrf.mxu0
  %3465 = vmatprep.mubr.f32.mxu0 0.0
  %3466 = vmatmul.mubr.f32.gmra.mxu0 %v3370
  %v3467 = vpop.f32.mrf.mxu0
  %v3468 = vadd.f32 %v3355, %v3467
  %v3469 = vpop.f32.mrf.mxu0
  %3470 = vmatprep.mubr.f32.mxu0 0.0
  %3471 = vmatmul.mubr.f32.gmra.mxu0 %v3373
  %v3472 = vpop.f32.mrf.mxu0
  %v3473 = vadd.f32 %v3355, %v3472
  %v3474 = vpop.f32.mrf.mxu0
  %3475 = vmatprep.mubr.f32.mxu0 0.0
  %3476 = vmatmul.mubr.f32.gmra.mxu0 %v3376
  %v3477 = vpop.f32.mrf.mxu0
  %v3478 = vadd.f32 %v3355, %v3477
  %v3479 = vpop.f32.mrf.mxu0
  %3480 = vmatprep.mubr.f32.mxu0 0.0
  %3481 = vmatmul.mubr.f32.gmra.mxu0 %v3379
  %v3482 = vpop.f32.mrf.mxu0
  %v3483 = vadd.f32 %v3355, %v3482
  %v3484 = vpop.f32.mrf.mxu0
  %3485 = vdwg.mxu0
  %v3486 = vmul.f32 %v3448, %v3448
  %v3487 = vmul.f32 %v3453, %v3453
  %v3488 = vmul.f32 %v3458, %v3458
  %v3489 = vmul.f32 %v3463, %v3463
  %v3490 = vmul.f32 %v3468, %v3468
  %v3491 = vmul.f32 %v3473, %v3473
  %v3492 = vmul.f32 %v3478, %v3478
  %v3493 = vmul.f32 %v3483, %v3483
  %v3494 = vmul.f32 %v3448, %v3486
  %v3495 = vmul.f32 %v3453, %v3487
  %v3496 = vmul.f32 %v3458, %v3488
  %v3497 = vmul.f32 %v3463, %v3489
  %v3498 = vmul.f32 %v3468, %v3490
  %v3499 = vmul.f32 %v3473, %v3491
  %v3500 = vmul.f32 %v3478, %v3492
  %v3501 = vmul.f32 %v3483, %v3493
  %v3502 = vmul.f32 %v3494, 0.044715
  %v3503 = vmul.f32 %v3495, 0.044715
  %v3504 = vmul.f32 %v3496, 0.044715
  %v3505 = vmul.f32 %v3497, 0.044715
  %v3506 = vmul.f32 %v3498, 0.044715
  %v3507 = vmul.f32 %v3499, 0.044715
  %v3508 = vmul.f32 %v3500, 0.044715
  %v3509 = vmul.f32 %v3501, 0.044715
  %v3510 = vadd.f32 %v3448, %v3502
  %v3511 = vadd.f32 %v3453, %v3503
  %v3512 = vadd.f32 %v3458, %v3504
  %v3513 = vadd.f32 %v3463, %v3505
  %v3514 = vadd.f32 %v3468, %v3506
  %v3515 = vadd.f32 %v3473, %v3507
  %v3516 = vadd.f32 %v3478, %v3508
  %v3517 = vadd.f32 %v3483, %v3509
  %v3518 = vmul.f32 %v3510, 0.7978846
  %v3519 = vmul.f32 %v3511, 0.7978846
  %v3520 = vmul.f32 %v3512, 0.7978846
  %v3521 = vmul.f32 %v3513, 0.7978846
  %v3522 = vmul.f32 %v3514, 0.7978846
  %v3523 = vmul.f32 %v3515, 0.7978846
  %v3524 = vmul.f32 %v3516, 0.7978846
  %v3525 = vmul.f32 %v3517, 0.7978846
  %v3526 = vtanh.pop %v3518
  %v3527 = vtanh.pop %v3519
  %v3528 = vtanh.pop %v3520
  %v3529 = vtanh.pop %v3521
  %v3530 = vtanh.pop %v3522
  %v3531 = vtanh.pop %v3523
  %v3532 = vtanh.pop %v3524
  %v3533 = vtanh.pop %v3525
  %v3534 = vadd.f32 %v3526, 1.0
  %v3535 = vadd.f32 %v3527, 1.0
  %v3536 = vadd.f32 %v3528, 1.0
  %v3537 = vadd.f32 %v3529, 1.0
  %v3538 = vadd.f32 %v3530, 1.0
  %v3539 = vadd.f32 %v3531, 1.0
  %v3540 = vadd.f32 %v3532, 1.0
  %v3541 = vadd.f32 %v3533, 1.0
  %v3542 = vmul.f32 %v3534, 0.5
  %v3543 = vmul.f32 %v3535, 0.5
  %v3544 = vmul.f32 %v3536, 0.5
  %v3545 = vmul.f32 %v3537, 0.5
  %v3546 = vmul.f32 %v3538, 0.5
  %v3547 = vmul.f32 %v3539, 0.5
  %v3548 = vmul.f32 %v3540, 0.5
  %v3549 = vmul.f32 %v3541, 0.5
  %v3550 = vmul.f32 %v3448, %v3542
  %v3551 = vmul.f32 %v3453, %v3543
  %v3552 = vmul.f32 %v3458, %v3544
  %v3553 = vmul.f32 %v3463, %v3545
  %v3554 = vmul.f32 %v3468, %v3546
  %v3555 = vmul.f32 %v3473, %v3547
  %v3556 = vmul.f32 %v3478, %v3548
  %v3557 = vmul.f32 %v3483, %v3549
  %s3558 = scalar_lea.vmem %s9, 64
  %v3559 = vld [vmem:[%s3558] sm:$0xff]
  %v3560 = vld [vmem:[%s3558 + $0x8] sm:$0xff]
  %v3561 = vld [vmem:[%s3558 + $0x10] sm:$0xff]
  %v3562 = vld [vmem:[%s3558 + $0x18] sm:$0xff]
  %v3563 = vld [vmem:[%s3558 + $0x20] sm:$0xff]
  %v3564 = vld [vmem:[%s3558 + $0x28] sm:$0xff]
  %v3565 = vld [vmem:[%s3558 + $0x30] sm:$0xff]
  %v3566 = vld [vmem:[%s3558 + $0x38] sm:$0xff]
  %v3567 = vlaneseq
  %v3568 = vshrl.u32 %v3567, 7
  %v3569 = vsub.s32 3, %v3568
  %v3570 = vrot.slane %v3069, %v3569
  %v3572 = vsel %vm571, %v3550, 0
  %v3575 = vsel %vm571, %v3551, 0
  %v3578 = vsel %vm571, %v3552, 0
  %v3581 = vsel %vm571, %v3553, 0
  %v3584 = vsel %vm571, %v3554, 0
  %v3587 = vsel %vm571, %v3555, 0
  %v3590 = vsel %vm571, %v3556, 0
  %v3593 = vsel %vm571, %v3557, 0
  %3595 = vmatprep.subr.mxu0 0.0
  %3596 = vmatpush1.msra.mxu0 0.0
  %3597 = vmatprep.subr.mxu0 0.0
  %3598 = vmatpush1.msra.mxu0 0.0
  %3599 = vmatprep.subr.mxu0 0.0
  %3600 = vmatpush1.msra.mxu0 0.0
  %3601 = vmatprep.subr.mxu0 0.0
  %3602 = vmatpush1.msra.mxu0 0.0
  %3603 = vmatprep.subr.mxu0 0.0
  %3604 = vmatpush1.msra.mxu0 0.0
  %3605 = vmatprep.subr.mxu0 0.0
  %3606 = vmatpush1.msra.mxu0 0.0
  %3607 = vmatprep.subr.mxu0 0.0
  %3608 = vmatpush1.msra.mxu0 0.0
  %3609 = vmatprep.subr.mxu0 0.0
  %3610 = vmatpush1.msra.mxu0 0.0
  %3611 = vmatprep.subr.mxu0 0.0
  %3612 = vmatpush1.msra.mxu0 %v3566
  %3613 = vmatprep.subr.mxu0 0.0
  %3614 = vmatpush1.msra.mxu0 %v3565
  %3615 = vmatprep.subr.mxu0 0.0
  %3616 = vmatpush1.msra.mxu0 %v3564
  %3617 = vmatprep.subr.mxu0 0.0
  %3618 = vmatpush1.msra.mxu0 %v3563
  %3619 = vmatprep.subr.mxu0 0.0
  %3620 = vmatpush1.msra.mxu0 %v3562
  %3621 = vmatprep.subr.mxu0 0.0
  %3622 = vmatpush1.msra.mxu0 %v3561
  %3623 = vmatprep.subr.mxu0 0.0
  %3624 = vmatpush1.msra.mxu0 %v3560
  %3625 = vmatprep.subr.mxu0 0.0
  %3626 = vmatpush1.msra.mxu0 %v3559
  %3627 = vmatprep.subr.mxu0 0.0
  %3628 = vmatpush2.msra.mxu0 0.0
  %3629 = vmatprep.subr.mxu0 0.0
  %3630 = vmatpush2.msra.mxu0 0.0
  %3631 = vmatprep.subr.mxu0 0.0
  %3632 = vmatpush2.msra.mxu0 0.0
  %3633 = vmatprep.subr.mxu0 0.0
  %3634 = vmatpush2.msra.mxu0 0.0
  %3635 = vmatprep.subr.mxu0 0.0
  %3636 = vmatpush2.msra.mxu0 0.0
  %3637 = vmatprep.subr.mxu0 0.0
  %3638 = vmatpush2.msra.mxu0 0.0
  %3639 = vmatprep.subr.mxu0 0.0
  %3640 = vmatpush2.msra.mxu0 0.0
  %3641 = vmatprep.subr.mxu0 0.0
  %3642 = vmatpush2.msra.mxu0 0.0
  %3643 = vmatprep.subr.mxu0 0.0
  %3644 = vmatpush2.msra.mxu0 0.0
  %3645 = vmatprep.subr.mxu0 0.0
  %3646 = vmatpush2.msra.mxu0 0.0
  %3647 = vmatprep.subr.mxu0 0.0
  %3648 = vmatpush2.msra.mxu0 0.0
  %3649 = vmatprep.subr.mxu0 0.0
  %3650 = vmatpush2.msra.mxu0 0.0
  %3651 = vmatprep.subr.mxu0 0.0
  %3652 = vmatpush2.msra.mxu0 0.0
  %3653 = vmatprep.subr.mxu0 0.0
  %3654 = vmatpush2.msra.mxu0 0.0
  %3655 = vmatprep.subr.mxu0 0.0
  %3656 = vmatpush2.msra.mxu0 0.0
  %3657 = vmatprep.subr.mxu0 0.0
  %3658 = vmatpush2.msra.mxu0 0.0
  %3659 = vmatprep.mubr.f32.mxu0 0.0
  %3660 = vmatmul.mubr.f32.gmra.mxu0 %v3572
  %v3661 = vpop.f32.mrf.mxu0
  %v3662 = vadd.f32 %v3570, %v3661
  %v3663 = vpop.f32.mrf.mxu0
  %3664 = vmatprep.mubr.f32.mxu0 0.0
  %3665 = vmatmul.mubr.f32.gmra.mxu0 %v3575
  %v3666 = vpop.f32.mrf.mxu0
  %v3667 = vadd.f32 %v3570, %v3666
  %v3668 = vpop.f32.mrf.mxu0
  %3669 = vmatprep.mubr.f32.mxu0 0.0
  %3670 = vmatmul.mubr.f32.gmra.mxu0 %v3578
  %v3671 = vpop.f32.mrf.mxu0
  %v3672 = vadd.f32 %v3570, %v3671
  %v3673 = vpop.f32.mrf.mxu0
  %3674 = vmatprep.mubr.f32.mxu0 0.0
  %3675 = vmatmul.mubr.f32.gmra.mxu0 %v3581
  %v3676 = vpop.f32.mrf.mxu0
  %v3677 = vadd.f32 %v3570, %v3676
  %v3678 = vpop.f32.mrf.mxu0
  %3679 = vmatprep.mubr.f32.mxu0 0.0
  %3680 = vmatmul.mubr.f32.gmra.mxu0 %v3584
  %v3681 = vpop.f32.mrf.mxu0
  %v3682 = vadd.f32 %v3570, %v3681
  %v3683 = vpop.f32.mrf.mxu0
  %3684 = vmatprep.mubr.f32.mxu0 0.0
  %3685 = vmatmul.mubr.f32.gmra.mxu0 %v3587
  %v3686 = vpop.f32.mrf.mxu0
  %v3687 = vadd.f32 %v3570, %v3686
  %v3688 = vpop.f32.mrf.mxu0
  %3689 = vmatprep.mubr.f32.mxu0 0.0
  %3690 = vmatmul.mubr.f32.gmra.mxu0 %v3590
  %v3691 = vpop.f32.mrf.mxu0
  %v3692 = vadd.f32 %v3570, %v3691
  %v3693 = vpop.f32.mrf.mxu0
  %3694 = vmatprep.mubr.f32.mxu0 0.0
  %3695 = vmatmul.mubr.f32.gmra.mxu0 %v3593
  %v3696 = vpop.f32.mrf.mxu0
  %v3697 = vadd.f32 %v3570, %v3696
  %v3698 = vpop.f32.mrf.mxu0
  %3699 = vdwg.mxu0
  %v3700 = vadd.f32 %v3662, %v3336
  %v3701 = vadd.f32 %v3667, %v3337
  %v3702 = vadd.f32 %v3672, %v3338
  %v3703 = vadd.f32 %v3677, %v3339
  %v3704 = vadd.f32 %v3682, %v3340
  %v3705 = vadd.f32 %v3687, %v3341
  %v3706 = vadd.f32 %v3692, %v3342
  %v3707 = vadd.f32 %v3697, %v3343
  %v3708 = vsel %vm52, %v3700, 0.0
  %3709 = vadd.xlane.f32.xlu0 %v3708
  %v3710 = vpop.xlane.xlu0 %3709
  %v3711 = vsel %vm52, %v3701, 0.0
  %3712 = vadd.xlane.f32.xlu0 %v3711
  %v3713 = vpop.xlane.xlu0 %3712
  %v3714 = vsel %vm52, %v3702, 0.0
  %3715 = vadd.xlane.f32.xlu0 %v3714
  %v3716 = vpop.xlane.xlu0 %3715
  %v3717 = vsel %vm52, %v3703, 0.0
  %3718 = vadd.xlane.f32.xlu0 %v3717
  %v3719 = vpop.xlane.xlu0 %3718
  %v3720 = vsel %vm52, %v3704, 0.0
  %3721 = vadd.xlane.f32.xlu0 %v3720
  %v3722 = vpop.xlane.xlu0 %3721
  %v3723 = vsel %vm52, %v3705, 0.0
  %3724 = vadd.xlane.f32.xlu0 %v3723
  %v3725 = vpop.xlane.xlu0 %3724
  %v3726 = vsel %vm52, %v3706, 0.0
  %3727 = vadd.xlane.f32.xlu0 %v3726
  %v3728 = vpop.xlane.xlu0 %3727
  %v3729 = vsel %vm52, %v3707, 0.0
  %3730 = vadd.xlane.f32.xlu0 %v3729
  %v3731 = vpop.xlane.xlu0 %3730
  %v3732 = vmul.f32 %v3710, %v77
  %v3733 = vmul.f32 %v3713, %v77
  %v3734 = vmul.f32 %v3716, %v77
  %v3735 = vmul.f32 %v3719, %v77
  %v3736 = vmul.f32 %v3722, %v77
  %v3737 = vmul.f32 %v3725, %v77
  %v3738 = vmul.f32 %v3728, %v77
  %v3739 = vmul.f32 %v3731, %v77
  %v3740 = vsub.f32 %v3700, %v3732
  %v3741 = vsub.f32 %v3701, %v3733
  %v3742 = vsub.f32 %v3702, %v3734
  %v3743 = vsub.f32 %v3703, %v3735
  %v3744 = vsub.f32 %v3704, %v3736
  %v3745 = vsub.f32 %v3705, %v3737
  %v3746 = vsub.f32 %v3706, %v3738
  %v3747 = vsub.f32 %v3707, %v3739
  %v3748 = vmul.f32 %v3740, %v3740
  %v3749 = vmul.f32 %v3741, %v3741
  %v3750 = vmul.f32 %v3742, %v3742
  %v3751 = vmul.f32 %v3743, %v3743
  %v3752 = vmul.f32 %v3744, %v3744
  %v3753 = vmul.f32 %v3745, %v3745
  %v3754 = vmul.f32 %v3746, %v3746
  %v3755 = vmul.f32 %v3747, %v3747
  %v3756 = vsel %vm52, %v3748, 0.0
  %3757 = vadd.xlane.f32.xlu0 %v3756
  %v3758 = vpop.xlane.xlu0 %3757
  %v3759 = vsel %vm52, %v3749, 0.0
  %3760 = vadd.xlane.f32.xlu0 %v3759
  %v3761 = vpop.xlane.xlu0 %3760
  %v3762 = vsel %vm52, %v3750, 0.0
  %3763 = vadd.xlane.f32.xlu0 %v3762
  %v3764 = vpop.xlane.xlu0 %3763
  %v3765 = vsel %vm52, %v3751, 0.0
  %3766 = vadd.xlane.f32.xlu0 %v3765
  %v3767 = vpop.xlane.xlu0 %3766
  %v3768 = vsel %vm52, %v3752, 0.0
  %3769 = vadd.xlane.f32.xlu0 %v3768
  %v3770 = vpop.xlane.xlu0 %3769
  %v3771 = vsel %vm52, %v3753, 0.0
  %3772 = vadd.xlane.f32.xlu0 %v3771
  %v3773 = vpop.xlane.xlu0 %3772
  %v3774 = vsel %vm52, %v3754, 0.0
  %3775 = vadd.xlane.f32.xlu0 %v3774
  %v3776 = vpop.xlane.xlu0 %3775
  %v3777 = vsel %vm52, %v3755, 0.0
  %3778 = vadd.xlane.f32.xlu0 %v3777
  %v3779 = vpop.xlane.xlu0 %3778
  %v3780 = vmul.f32 %v3758, %v77
  %v3781 = vmul.f32 %v3761, %v77
  %v3782 = vmul.f32 %v3764, %v77
  %v3783 = vmul.f32 %v3767, %v77
  %v3784 = vmul.f32 %v3770, %v77
  %v3785 = vmul.f32 %v3773, %v77
  %v3786 = vmul.f32 %v3776, %v77
  %v3787 = vmul.f32 %v3779, %v77
  %v3788 = vadd.f32 %v3780, 1e-12
  %v3789 = vadd.f32 %v3781, 1e-12
  %v3790 = vadd.f32 %v3782, 1e-12
  %v3791 = vadd.f32 %v3783, 1e-12
  %v3792 = vadd.f32 %v3784, 1e-12
  %v3793 = vadd.f32 %v3785, 1e-12
  %v3794 = vadd.f32 %v3786, 1e-12
  %v3795 = vadd.f32 %v3787, 1e-12
  %v3796 = vrsqrt.pop %v3788
  %v3797 = vrsqrt.pop %v3789
  %v3798 = vrsqrt.pop %v3790
  %v3799 = vrsqrt.pop %v3791
  %v3800 = vrsqrt.pop %v3792
  %v3801 = vrsqrt.pop %v3793
  %v3802 = vrsqrt.pop %v3794
  %v3803 = vrsqrt.pop %v3795
  %v3804 = vmul.f32 %v3740, %v3796
  %v3805 = vmul.f32 %v3741, %v3797
  %v3806 = vmul.f32 %v3742, %v3798
  %v3807 = vmul.f32 %v3743, %v3799
  %v3808 = vmul.f32 %v3744, %v3800
  %v3809 = vmul.f32 %v3745, %v3801
  %v3810 = vmul.f32 %v3746, %v3802
  %v3811 = vmul.f32 %v3747, %v3803
  %v3812 = vlaneseq
  %v3813 = vshrl.u32 %v3812, 7
  %v3814 = vsub.s32 4, %v3813
  %v3815 = vrot.slane %v3069, %v3814
  %v3816 = vmul.f32 %v3804, %v3815
  %v3817 = vmul.f32 %v3805, %v3815
  %v3818 = vmul.f32 %v3806, %v3815
  %v3819 = vmul.f32 %v3807, %v3815
  %v3820 = vmul.f32 %v3808, %v3815
  %v3821 = vmul.f32 %v3809, %v3815
  %v3822 = vmul.f32 %v3810, %v3815
  %v3823 = vmul.f32 %v3811, %v3815
  %v3824 = vlaneseq
  %v3825 = vshrl.u32 %v3824, 7
  %v3826 = vsub.s32 5, %v3825
  %v3827 = vrot.slane %v3069, %v3826
  %v3828 = vadd.f32 %v3816, %v3827
  %v3829 = vadd.f32 %v3817, %v3827
  %v3830 = vadd.f32 %v3818, %v3827
  %v3831 = vadd.f32 %v3819, %v3827
  %v3832 = vadd.f32 %v3820, %v3827
  %v3833 = vadd.f32 %v3821, %v3827
  %v3834 = vadd.f32 %v3822, %v3827
  %v3835 = vadd.f32 %v3823, %v3827
  %v3836 = vmul.u32 %v183, 8
  %vm3837 = vcmp.eq.s32.totalorder %v200, %v3836
  %v3838 = vsel %vm3837, 1, 0
  %v3839 = vcvt.s32.f32 %v3838
  %v3841 = vsel %vm571, %v3839, 0
  %3843 = vmatprep.subr.mxu0 0.0
  %3844 = vmatpush1.msra.mxu0 0.0
  %3845 = vmatprep.subr.mxu0 0.0
  %3846 = vmatpush1.msra.mxu0 0.0
  %3847 = vmatprep.subr.mxu0 0.0
  %3848 = vmatpush1.msra.mxu0 0.0
  %3849 = vmatprep.subr.mxu0 0.0
  %3850 = vmatpush1.msra.mxu0 0.0
  %3851 = vmatprep.subr.mxu0 0.0
  %3852 = vmatpush1.msra.mxu0 0.0
  %3853 = vmatprep.subr.mxu0 0.0
  %3854 = vmatpush1.msra.mxu0 0.0
  %3855 = vmatprep.subr.mxu0 0.0
  %3856 = vmatpush1.msra.mxu0 0.0
  %3857 = vmatprep.subr.mxu0 0.0
  %3858 = vmatpush1.msra.mxu0 0.0
  %3859 = vmatprep.subr.mxu0 0.0
  %3860 = vmatpush1.msra.mxu0 %v3835
  %3861 = vmatprep.subr.mxu0 0.0
  %3862 = vmatpush1.msra.mxu0 %v3834
  %3863 = vmatprep.subr.mxu0 0.0
  %3864 = vmatpush1.msra.mxu0 %v3833
  %3865 = vmatprep.subr.mxu0 0.0
  %3866 = vmatpush1.msra.mxu0 %v3832
  %3867 = vmatprep.subr.mxu0 0.0
  %3868 = vmatpush1.msra.mxu0 %v3831
  %3869 = vmatprep.subr.mxu0 0.0
  %3870 = vmatpush1.msra.mxu0 %v3830
  %3871 = vmatprep.subr.mxu0 0.0
  %3872 = vmatpush1.msra.mxu0 %v3829
  %3873 = vmatprep.subr.mxu0 0.0
  %3874 = vmatpush1.msra.mxu0 %v3828
  %3875 = vmatprep.subr.mxu0 0.0
  %3876 = vmatpush2.msra.mxu0 0.0
  %3877 = vmatprep.subr.mxu0 0.0
  %3878 = vmatpush2.msra.mxu0 0.0
  %3879 = vmatprep.subr.mxu0 0.0
  %3880 = vmatpush2.msra.mxu0 0.0
  %3881 = vmatprep.subr.mxu0 0.0
  %3882 = vmatpush2.msra.mxu0 0.0
  %3883 = vmatprep.subr.mxu0 0.0
  %3884 = vmatpush2.msra.mxu0 0.0
  %3885 = vmatprep.subr.mxu0 0.0
  %3886 = vmatpush2.msra.mxu0 0.0
  %3887 = vmatprep.subr.mxu0 0.0
  %3888 = vmatpush2.msra.mxu0 0.0
  %3889 = vmatprep.subr.mxu0 0.0
  %3890 = vmatpush2.msra.mxu0 0.0
  %3891 = vmatprep.subr.mxu0 0.0
  %3892 = vmatpush2.msra.mxu0 0.0
  %3893 = vmatprep.subr.mxu0 0.0
  %3894 = vmatpush2.msra.mxu0 0.0
  %3895 = vmatprep.subr.mxu0 0.0
  %3896 = vmatpush2.msra.mxu0 0.0
  %3897 = vmatprep.subr.mxu0 0.0
  %3898 = vmatpush2.msra.mxu0 0.0
  %3899 = vmatprep.subr.mxu0 0.0
  %3900 = vmatpush2.msra.mxu0 0.0
  %3901 = vmatprep.subr.mxu0 0.0
  %3902 = vmatpush2.msra.mxu0 0.0
  %3903 = vmatprep.subr.mxu0 0.0
  %3904 = vmatpush2.msra.mxu0 0.0
  %3905 = vmatprep.subr.mxu0 0.0
  %3906 = vmatpush2.msra.mxu0 0.0
  %3907 = vmatprep.mubr.f32.mxu0 0.0
  %3908 = vmatmul.mubr.f32.gmra.mxu0 %v3841
  %v3909 = vpop.f32.mrf.mxu0
  %v3910 = vadd.f32 0.0, %v3909
  %v3911 = vpop.f32.mrf.mxu0
  %3912 = vdwg.mxu0
  %v3913 = vld [vmem:[%s10] sm:$0xff]
  %v3914 = vld [vmem:[%s10 + $0x8] sm:$0xff]
  %v3915 = vld [vmem:[%s10 + $0x10] sm:$0xff]
  %v3916 = vld [vmem:[%s10 + $0x18] sm:$0xff]
  %v3917 = vld [vmem:[%s11] sm:$0x1]
  %v3919 = vlaneseq
  %v3920 = vshrl.u32 %v3919, 7
  %v3921 = vsub.s32 0, %v3920
  %v3922 = vrot.slane %v3917, %v3921
  %v3925 = vsel %vm52, %v3910, 0
  %3927 = vmatprep.subr.mxu0 0.0
  %3928 = vmatpush1.msra.mxu0 0.0
  %3929 = vmatprep.subr.mxu0 0.0
  %3930 = vmatpush1.msra.mxu0 0.0
  %3931 = vmatprep.subr.mxu0 0.0
  %3932 = vmatpush1.msra.mxu0 0.0
  %3933 = vmatprep.subr.mxu0 0.0
  %3934 = vmatpush1.msra.mxu0 0.0
  %3935 = vmatprep.subr.mxu0 0.0
  %3936 = vmatpush1.msra.mxu0 0.0
  %3937 = vmatprep.subr.mxu0 0.0
  %3938 = vmatpush1.msra.mxu0 0.0
  %3939 = vmatprep.subr.mxu0 0.0
  %3940 = vmatpush1.msra.mxu0 0.0
  %3941 = vmatprep.subr.mxu0 0.0
  %3942 = vmatpush1.msra.mxu0 0.0
  %3943 = vmatprep.subr.mxu0 0.0
  %3944 = vmatpush1.msra.mxu0 0.0
  %3945 = vmatprep.subr.mxu0 0.0
  %3946 = vmatpush1.msra.mxu0 0.0
  %3947 = vmatprep.subr.mxu0 0.0
  %3948 = vmatpush1.msra.mxu0 0.0
  %3949 = vmatprep.subr.mxu0 0.0
  %3950 = vmatpush1.msra.mxu0 0.0
  %3951 = vmatprep.subr.mxu0 0.0
  %3952 = vmatpush1.msra.mxu0 %v3916
  %3953 = vmatprep.subr.mxu0 0.0
  %3954 = vmatpush1.msra.mxu0 %v3915
  %3955 = vmatprep.subr.mxu0 0.0
  %3956 = vmatpush1.msra.mxu0 %v3914
  %3957 = vmatprep.subr.mxu0 0.0
  %3958 = vmatpush1.msra.mxu0 %v3913
  %3959 = vmatprep.subr.mxu0 0.0
  %3960 = vmatpush2.msra.mxu0 0.0
  %3961 = vmatprep.subr.mxu0 0.0
  %3962 = vmatpush2.msra.mxu0 0.0
  %3963 = vmatprep.subr.mxu0 0.0
  %3964 = vmatpush2.msra.mxu0 0.0
  %3965 = vmatprep.subr.mxu0 0.0
  %3966 = vmatpush2.msra.mxu0 0.0
  %3967 = vmatprep.subr.mxu0 0.0
  %3968 = vmatpush2.msra.mxu0 0.0
  %3969 = vmatprep.subr.mxu0 0.0
  %3970 = vmatpush2.msra.mxu0 0.0
  %3971 = vmatprep.subr.mxu0 0.0
  %3972 = vmatpush2.msra.mxu0 0.0
  %3973 = vmatprep.subr.mxu0 0.0
  %3974 = vmatpush2.msra.mxu0 0.0
  %3975 = vmatprep.subr.mxu0 0.0
  %3976 = vmatpush2.msra.mxu0 0.0
  %3977 = vmatprep.subr.mxu0 0.0
  %3978 = vmatpush2.msra.mxu0 0.0
  %3979 = vmatprep.subr.mxu0 0.0
  %3980 = vmatpush2.msra.mxu0 0.0
  %3981 = vmatprep.subr.mxu0 0.0
  %3982 = vmatpush2.msra.mxu0 0.0
  %3983 = vmatprep.subr.mxu0 0.0
  %3984 = vmatpush2.msra.mxu0 0.0
  %3985 = vmatprep.subr.mxu0 0.0
  %3986 = vmatpush2.msra.mxu0 0.0
  %3987 = vmatprep.subr.mxu0 0.0
  %3988 = vmatpush2.msra.mxu0 0.0
  %3989 = vmatprep.subr.mxu0 0.0
  %3990 = vmatpush2.msra.mxu0 0.0
  %3991 = vmatprep.mubr.f32.mxu0 0.0
  %3992 = vmatmul.mubr.f32.gmra.mxu0 %v3925
  %v3993 = vpop.f32.mrf.mxu0
  %v3994 = vadd.f32 %v3922, %v3993
  %v3995 = vpop.f32.mrf.mxu0
  %3996 = vdwg.mxu0
  %v3997 = vtanh.pop %v3994
  %v3998 = vmul.f32 %v3997, %v3997
  %v3999 = vsel %vm52, %v3998, 0.0
  %4000 = vadd.xlane.f32.xlu0 %v3999
  %v4001 = vpop.xlane.xlu0 %4000
  %v4002 = vmax.f32 %v4001, 1e-24
  %v4003 = vrsqrt.pop %v4002
  %v4004 = vmul.f32 %v3997, %v4003
  %4005 = vst.msk [vmem:[%s12] sm:$0xff] %vm52, %v4004
  %v4007 = vrot.slane %v4004, 2
  %v4008 = vsel %vm52, %v4007, 0
  %v4010 = vsel %vm52, %v4004, 0
  %4012 = vmatprep.subr.mxu0 0.0
  %4013 = vmatpush1.xpose.msra.mxu0 0.0
  %4014 = vmatprep.subr.mxu0 0.0
  %4015 = vmatpush1.xpose.msra.mxu0 0.0
  %4016 = vmatprep.subr.mxu0 0.0
  %4017 = vmatpush1.xpose.msra.mxu0 0.0
  %4018 = vmatprep.subr.mxu0 0.0
  %4019 = vmatpush1.xpose.msra.mxu0 0.0
  %4020 = vmatprep.subr.mxu0 0.0
  %4021 = vmatpush1.xpose.msra.mxu0 0.0
  %4022 = vmatprep.subr.mxu0 0.0
  %4023 = vmatpush1.xpose.msra.mxu0 0.0
  %4024 = vmatprep.subr.mxu0 0.0
  %4025 = vmatpush1.xpose.msra.mxu0 0.0
  %4026 = vmatprep.subr.mxu0 0.0
  %4027 = vmatpush1.xpose.msra.mxu0 0.0
  %4028 = vmatprep.subr.mxu0 0.0
  %4029 = vmatpush1.xpose.msra.mxu0 0.0
  %4030 = vmatprep.subr.mxu0 0.0
  %4031 = vmatpush1.xpose.msra.mxu0 0.0
  %4032 = vmatprep.subr.mxu0 0.0
  %4033 = vmatpush1.xpose.msra.mxu0 0.0
  %4034 = vmatprep.subr.mxu0 0.0
  %4035 = vmatpush1.xpose.msra.mxu0 0.0
  %4036 = vmatprep.subr.mxu0 0.0
  %4037 = vmatpush1.xpose.msra.mxu0 0.0
  %4038 = vmatprep.subr.mxu0 0.0
  %4039 = vmatpush1.xpose.msra.mxu0 0.0
  %4040 = vmatprep.subr.mxu0 0.0
  %4041 = vmatpush1.xpose.msra.mxu0 0.0
  %4042 = vmatprep.subr.mxu0 0.0
  %4043 = vmatpush1.xpose.msra.mxu0 %v4010
  %4044 = vmatprep.subr.mxu0 0.0
  %4045 = vmatpush2.xpose.msra.mxu0 0.0
  %4046 = vmatprep.subr.mxu0 0.0
  %4047 = vmatpush2.xpose.msra.mxu0 0.0
  %4048 = vmatprep.subr.mxu0 0.0
  %4049 = vmatpush2.xpose.msra.mxu0 0.0
  %4050 = vmatprep.subr.mxu0 0.0
  %4051 = vmatpush2.xpose.msra.mxu0 0.0
  %4052 = vmatprep.subr.mxu0 0.0
  %4053 = vmatpush2.xpose.msra.mxu0 0.0
  %4054 = vmatprep.subr.mxu0 0.0
  %4055 = vmatpush2.xpose.msra.mxu0 0.0
  %4056 = vmatprep.subr.mxu0 0.0
  %4057 = vmatpush2.xpose.msra.mxu0 0.0
  %4058 = vmatprep.subr.mxu0 0.0
  %4059 = vmatpush2.xpose.msra.mxu0 0.0
  %4060 = vmatprep.subr.mxu0 0.0
  %4061 = vmatpush2.xpose.msra.mxu0 0.0
  %4062 = vmatprep.subr.mxu0 0.0
  %4063 = vmatpush2.xpose.msra.mxu0 0.0
  %4064 = vmatprep.subr.mxu0 0.0
  %4065 = vmatpush2.xpose.msra.mxu0 0.0
  %4066 = vmatprep.subr.mxu0 0.0
  %4067 = vmatpush2.xpose.msra.mxu0 0.0
  %4068 = vmatprep.subr.mxu0 0.0
  %4069 = vmatpush2.xpose.msra.mxu0 0.0
  %4070 = vmatprep.subr.mxu0 0.0
  %4071 = vmatpush2.xpose.msra.mxu0 0.0
  %4072 = vmatprep.subr.mxu0 0.0
  %4073 = vmatpush2.xpose.msra.mxu0 0.0
  %4074 = vmatprep.subr.mxu0 0.0
  %4075 = vmatpush2.xpose.msra.mxu0 0.0
  %4076 = vmatprep.mubr.f32.mxu0 0.0
  %4077 = vmatmul.mubr.f32.gmra.mxu0 %v4008
  %v4078 = vpop.f32.mrf.mxu0
  %v4079 = vadd.f32 0.0, %v4078
  %v4080 = vpop.f32.mrf.mxu0
  %4081 = vdwg.mxu0
  %v4082 = vmul.u32 %v200, 3
  %vm4083 = vcmp.ge.s32.totalorder %v183, %v4082
  %v4084 = vadd.s32 %v200, 1
  %v4085 = vmul.u32 %v4084, 3
  %vm4086 = vcmp.lt.s32.totalorder %v183, %v4085
  %vm4087 = vmand %vm4083, %vm4086
  %v4088 = vsel %vm4087, %v4079, 0.0
  %vm4089 = vcmask 13312
  %v4090 = vsel %vm4089, %v4088, 0.0
  %4091 = vadd.xlane.f32.xlu0 %v4090
  %v4092 = vpop.xlane.xlu0 %4091
  %vm4093 = vcmask 5120
  %4094 = vst.msk [vmem:[%s13] sm:$0x3f] %vm4093, %v4092
  // Predicated region
  $region50: #{forward.2} parent=0 // pred_check
    _
  $region51: #{forward.2} parent=0 // pred_check_branch
    %4096 = sbr.rel (0) target = $region53
  $region52: #{forward.2} parent=0 // pred_region
    _
  $region53: #{forward.2} parent=0 // pred_fallthru
    _
  // Predicated region
  $region54: #{forward.2} parent=0 // pred_check
    _
  $region55: #{forward.2} parent=0 // pred_check_branch
    %4098 = sbr.rel (0) target = $region57
  $region56: #{forward.2} parent=0 // pred_region
    _
  $region57: #{forward.2} parent=0 // pred_fallthru
    _
  // Predicated region
  $region58: #{forward.2} parent=0 // pred_check
    _
  $region59: #{forward.2} parent=0 // pred_check_branch
    %4100 = sbr.rel (0) target = $region61
  $region60: #{forward.2} parent=0 // pred_region
    _
  $region61: #{forward.2} parent=0 // pred_fallthru
    _
  // Predicated region
  $region62: #{forward.2} parent=0 // pred_check
    _
  $region63: #{forward.2} parent=0 // pred_check_branch
    %4102 = sbr.rel (0) target = $region65
  $region64: #{forward.2} parent=0 // pred_region
    _
  $region65: #{forward.2} parent=0 // pred_fallthru
    _

// kernel: forward.3
$region0: #{forward.3}
  #allocation0 [shape = 'u32[]', space=smem, size = 0x4, offset = 0x4, fixed_abs, tag = 'smem constant byte address 0x4 - core index']
  #allocation1 [shape = 'u32[144,128]{1,0:T(1,128)}', space=vmem, size = 0x12000, scoped, tag = 'internal scratch']
  %s0 = inlined_call_operand.vmem [shape: f32[16,32], index: 0, kind: input, shape index: {}]
  %s1 = inlined_call_operand.vmem [shape: f32[1,16], index: 1, kind: input, shape index: {}]
  %s2 = inlined_call_operand.vmem [shape: f32[2,32], index: 2, kind: input, shape index: {}]
  %s3 = inlined_call_operand.vmem [shape: f32[32,8], index: 3, kind: input, shape index: {}]
  %s4 = inlined_call_operand.vmem [shape: f32[2,32], index: 4, kind: input, shape index: {}]
  %s5 = inlined_call_operand.vmem [shape: f32[2,32,96], index: 5, kind: input, shape index: {}]
  %s6 = inlined_call_operand.vmem [shape: f32[2,1,96], index: 6, kind: input, shape index: {}]
  %s7 = inlined_call_operand.vmem [shape: f32[2,32,32], index: 7, kind: input, shape index: {}]
  %s8 = inlined_call_operand.vmem [shape: f32[2,6,32], index: 8, kind: input, shape index: {}]
  %s9 = inlined_call_operand.vmem [shape: f32[2,32,64], index: 9, kind: input, shape index: {}]
  %s10 = inlined_call_operand.vmem [shape: f32[2,1,64], index: 10, kind: input, shape index: {}]
  %s11 = inlined_call_operand.vmem [shape: f32[2,64,32], index: 11, kind: input, shape index: {}]
  %s12 = inlined_call_operand.vmem [shape: f32[32,32], index: 12, kind: input, shape index: {}]
  %s13 = inlined_call_operand.vmem [shape: f32[1,32], index: 13, kind: input, shape index: {}]
  %s14 = inlined_call_operand.vmem [shape: f32[2,32], index: 14, kind: output, shape index: {0}]
  %s15 = inlined_call_operand.hbm [shape: f32[2,9], index: 15, kind: output, shape index: {1}]
  %16 = xla_tuple %s14, %s15
  %s17 = sld [smem:[#allocation0]]
  $region74: #{forward.3} parent=0
    _
  %s19 = ssub.s32 1, %s17
  %s20 = scalar_select 0, %s19, %s17
  $region1: #{forward.3} parent=0
    #allocation2 [shape = 'u8[1024]{0}', space=vmem, size = 0x400, scoped, tag = 'output window, operand 1, single buffered']
    #allocation3 [shape = 's32[1]{0}', space=sflag, size = 0x4, scoped, tag = 'scoped memory for forward.3']
    %21 = vsyncpa [#allocation3], 0
    // Predicated region
    $region2: #{forward.3} parent=1 // pred_check
      _
    $region3: #{forward.3} parent=1 // pred_check_branch
      %23 = sbr.rel (0) target = $region5
    $region4: #{forward.3} parent=1 // pred_region
      _
    $region5: #{forward.3} parent=1 // pred_fallthru
      _
    // Predicated region
    $region6: #{forward.3} parent=1 // pred_check
      _
    $region7: #{forward.3} parent=1 // pred_check_branch
      %25 = sbr.rel (0) target = $region9
    $region8: #{forward.3} parent=1 // pred_region
      _
    $region9: #{forward.3} parent=1 // pred_fallthru
      _
    // Predicated region
    $region10: #{forward.3} parent=1 // pred_check
      _
    $region11: #{forward.3} parent=1 // pred_check_branch
      %27 = sbr.rel (0) target = $region13
    $region12: #{forward.3} parent=1 // pred_region
      _
    $region13: #{forward.3} parent=1 // pred_fallthru
      _
    // Predicated region
    $region14: #{forward.3} parent=1 // pred_check
      _
    $region15: #{forward.3} parent=1 // pred_check_branch
      %29 = sbr.rel (0) target = $region17
    $region16: #{forward.3} parent=1 // pred_region
      _
    $region17: #{forward.3} parent=1 // pred_fallthru
      _
    // Predicated region
    $region18: #{forward.3} parent=1 // pred_check
      _
    $region19: #{forward.3} parent=1 // pred_check_branch
      %31 = sbr.rel (0) target = $region21
    $region20: #{forward.3} parent=1 // pred_region
      _
    $region21: #{forward.3} parent=1 // pred_fallthru
      _
    // Predicated region
    $region22: #{forward.3} parent=1 // pred_check
      _
    $region23: #{forward.3} parent=1 // pred_check_branch
      %33 = sbr.rel (0) target = $region25
    $region24: #{forward.3} parent=1 // pred_region
      _
    $region25: #{forward.3} parent=1 // pred_fallthru
      _
    // Predicated region
    $region26: #{forward.3} parent=1 // pred_check
      _
    $region27: #{forward.3} parent=1 // pred_check_branch
      %35 = sbr.rel (0) target = $region29
    $region28: #{forward.3} parent=1 // pred_region
      _
    $region29: #{forward.3} parent=1 // pred_fallthru
      _
    // Predicated region
    $region30: #{forward.3} parent=1 // pred_check
      _
    $region31: #{forward.3} parent=1 // pred_check_branch
      %37 = sbr.rel (0) target = $region33
    $region32: #{forward.3} parent=1 // pred_region
      _
    $region33: #{forward.3} parent=1 // pred_fallthru
      _
    // Predicated region
    $region34: #{forward.3} parent=1 // pred_check
      _
    $region35: #{forward.3} parent=1 // pred_check_branch
      %39 = sbr.rel (0) target = $region37
    $region36: #{forward.3} parent=1 // pred_region
      _
    $region37: #{forward.3} parent=1 // pred_fallthru
      _
    // Predicated region
    $region38: #{forward.3} parent=1 // pred_check
      _
    $region39: #{forward.3} parent=1 // pred_check_branch
      %41 = sbr.rel (0) target = $region41
    $region40: #{forward.3} parent=1 // pred_region
      _
    $region41: #{forward.3} parent=1 // pred_fallthru
      _
    // Predicated region
    $region42: #{forward.3} parent=1 // pred_check
      _
    $region43: #{forward.3} parent=1 // pred_check_branch
      %43 = sbr.rel (0) target = $region45
    $region44: #{forward.3} parent=1 // pred_region
      _
    $region45: #{forward.3} parent=1 // pred_fallthru
      _
    // Predicated region
    $region46: #{forward.3} parent=1 // pred_check
      _
    $region47: #{forward.3} parent=1 // pred_check_branch
      %45 = sbr.rel (0) target = $region49
    $region48: #{forward.3} parent=1 // pred_region
      _
    $region49: #{forward.3} parent=1 // pred_fallthru
      _
    // Predicated region
    $region50: #{forward.3} parent=1 // pred_check
      _
    $region51: #{forward.3} parent=1 // pred_check_branch
      %47 = sbr.rel (0) target = $region53
    $region52: #{forward.3} parent=1 // pred_region
      _
    $region53: #{forward.3} parent=1 // pred_fallthru
      _
    // Predicated region
    $region54: #{forward.3} parent=1 // pred_check
      _
    $region55: #{forward.3} parent=1 // pred_check_branch
      %49 = sbr.rel (0) target = $region57
    $region56: #{forward.3} parent=1 // pred_region
      _
    $region57: #{forward.3} parent=1 // pred_fallthru
      _
    %v50 = vld [vmem:[%s4] sm:$0x3]
    %v51 = vld [vmem:[%s0] sm:$0xff]
    %v52 = vld [vmem:[%s0 + $0x8] sm:$0xff]
    %vm53 = vcmask 261120
    %v54 = vsel %vm53, %v51, 0.0
    %55 = vadd.xlane.f32.xlu0 %v54
    %v56 = vpop.xlane.xlu0 %55
    %v57 = vsel %vm53, %v52, 0.0
    %58 = vadd.xlane.f32.xlu0 %v57
    %v59 = vpop.xlane.xlu0 %58
    %v60 = vrcp.pop 32.0
    %v61 = vmul.f32 %v56, %v60
    %v62 = vmul.f32 %v59, %v60
    %v63 = vsub.f32 %v51, %v61
    %v64 = vsub.f32 %v52, %v62
    %v65 = vmul.f32 %v63, %v63
    %v66 = vmul.f32 %v64, %v64
    %v67 = vsel %vm53, %v65, 0.0
    %68 = vadd.xlane.f32.xlu0 %v67
    %v69 = vpop.xlane.xlu0 %68
    %v70 = vsel %vm53, %v66, 0.0
    %71 = vadd.xlane.f32.xlu0 %v70
    %v72 = vpop.xlane.xlu0 %71
    %v73 = vmul.f32 %v69, %v60
    %v74 = vmul.f32 %v72, %v60
    %v75 = vadd.f32 %v73, 1e-12
    %v76 = vadd.f32 %v74, 1e-12
    %v77 = vrsqrt.pop %v75
    %v78 = vrsqrt.pop %v76
    %v79 = vmul.f32 %v63, %v77
    %v80 = vmul.f32 %v64, %v78
    %v81 = vlaneseq
    %v82 = vshrl.u32 %v81, 7
    %v83 = vsub.s32 0, %v82
    %v84 = vrot.slane %v50, %v83
    %v85 = vmul.f32 %v79, %v84
    %v86 = vmul.f32 %v80, %v84
    %v87 = vlaneseq
    %v88 = vshrl.u32 %v87, 7
    %v89 = vsub.s32 1, %v88
    %v90 = vrot.slane %v50, %v89
    %v91 = vadd.f32 %v85, %v90
    %v92 = vadd.f32 %v86, %v90
    %v93 = vlaneseq
    %v94 = vshrl.u32 %v93, 7
    %v95 = vadd.s32 %v94, 8
    %v96 = vcvt.s32.f32 %v94
    %v97 = vcvt.s32.f32 %v95
    %v98 = vlaneseq
    %v99 = vand.u32 %v98, 127
    %v100 = vcvt.s32.f32 %v99
    %v101 = vmul.f32 %v96, 0.125
    %v102 = vmul.f32 %v97, 0.125
    %v103 = vfloor.f32 %v101
    %v104 = vfloor.f32 %v102
    %v105 = vmul.f32 %v100, 0.125
    %v106 = vfloor.f32 %v105
    %vm107 = vcmp.eq.f32.partialorder %v103, %v106
    %vm108 = vcmp.eq.f32.partialorder %v104, %v106
    %v109 = vsel %vm107, 0.0, -1e+09
    %v110 = vsel %vm108, 0.0, -1e+09
    %v111 = vld [vmem:[%s1] sm:$0x1]
    %v112 = vsub.f32 %v111, 1.0
    %v113 = vmul.f32 %v112, 10000.0
    %v115 = vlaneseq
    %v116 = vshrl.u32 %v115, 7
    %v117 = vsub.s32 0, %v116
    %v118 = vrot.slane %v113, %v117
    %v120 = vadd.f32 %v109, %v118
    %v121 = vadd.f32 %v110, %v118
    %v122 = vld [vmem:[%s5] sm:$0xff]
    %v123 = vld [vmem:[%s5 + $0x8] sm:$0xff]
    %v124 = vld [vmem:[%s5 + $0x10] sm:$0xff]
    %v125 = vld [vmem:[%s5 + $0x18] sm:$0xff]
    %v126 = vld [vmem:[%s6] sm:$0x1]
    %v128 = vlaneseq
    %v129 = vshrl.u32 %v128, 7
    %v130 = vsub.s32 0, %v129
    %v131 = vrot.slane %v126, %v130
    %v134 = vsel %vm53, %v91, 0
    %v137 = vsel %vm53, %v92, 0
    %139 = vmatprep.subr.mxu0 0.0
    %140 = vmatpush1.msra.mxu0 0.0
    %141 = vmatprep.subr.mxu0 0.0
    %142 = vmatpush1.msra.mxu0 0.0
    %143 = vmatprep.subr.mxu0 0.0
    %144 = vmatpush1.msra.mxu0 0.0
    %145 = vmatprep.subr.mxu0 0.0
    %146 = vmatpush1.msra.mxu0 0.0
    %147 = vmatprep.subr.mxu0 0.0
    %148 = vmatpush1.msra.mxu0 0.0
    %149 = vmatprep.subr.mxu0 0.0
    %150 = vmatpush1.msra.mxu0 0.0
    %151 = vmatprep.subr.mxu0 0.0
    %152 = vmatpush1.msra.mxu0 0.0
    %153 = vmatprep.subr.mxu0 0.0
    %154 = vmatpush1.msra.mxu0 0.0
    %155 = vmatprep.subr.mxu0 0.0
    %156 = vmatpush1.msra.mxu0 0.0
    %157 = vmatprep.subr.mxu0 0.0
    %158 = vmatpush1.msra.mxu0 0.0
    %159 = vmatprep.subr.mxu0 0.0
    %160 = vmatpush1.msra.mxu0 0.0
    %161 = vmatprep.subr.mxu0 0.0
    %162 = vmatpush1.msra.mxu0 0.0
    %163 = vmatprep.subr.mxu0 0.0
    %164 = vmatpush1.msra.mxu0 %v125
    %165 = vmatprep.subr.mxu0 0.0
    %166 = vmatpush1.msra.mxu0 %v124
    %167 = vmatprep.subr.mxu0 0.0
    %168 = vmatpush1.msra.mxu0 %v123
    %169 = vmatprep.subr.mxu0 0.0
    %170 = vmatpush1.msra.mxu0 %v122
    %171 = vmatprep.subr.mxu0 0.0
    %172 = vmatpush2.msra.mxu0 0.0
    %173 = vmatprep.subr.mxu0 0.0
    %174 = vmatpush2.msra.mxu0 0.0
    %175 = vmatprep.subr.mxu0 0.0
    %176 = vmatpush2.msra.mxu0 0.0
    %177 = vmatprep.subr.mxu0 0.0
    %178 = vmatpush2.msra.mxu0 0.0
    %179 = vmatprep.subr.mxu0 0.0
    %180 = vmatpush2.msra.mxu0 0.0
    %181 = vmatprep.subr.mxu0 0.0
    %182 = vmatpush2.msra.mxu0 0.0
    %183 = vmatprep.subr.mxu0 0.0
    %184 = vmatpush2.msra.mxu0 0.0
    %185 = vmatprep.subr.mxu0 0.0
    %186 = vmatpush2.msra.mxu0 0.0
    %187 = vmatprep.subr.mxu0 0.0
    %188 = vmatpush2.msra.mxu0 0.0
    %189 = vmatprep.subr.mxu0 0.0
    %190 = vmatpush2.msra.mxu0 0.0
    %191 = vmatprep.subr.mxu0 0.0
    %192 = vmatpush2.msra.mxu0 0.0
    %193 = vmatprep.subr.mxu0 0.0
    %194 = vmatpush2.msra.mxu0 0.0
    %195 = vmatprep.subr.mxu0 0.0
    %196 = vmatpush2.msra.mxu0 0.0
    %197 = vmatprep.subr.mxu0 0.0
    %198 = vmatpush2.msra.mxu0 0.0
    %199 = vmatprep.subr.mxu0 0.0
    %200 = vmatpush2.msra.mxu0 0.0
    %201 = vmatprep.subr.mxu0 0.0
    %202 = vmatpush2.msra.mxu0 0.0
    %203 = vmatprep.mubr.f32.mxu0 0.0
    %204 = vmatmul.mubr.f32.gmra.mxu0 %v134
    %v205 = vpop.f32.mrf.mxu0
    %v206 = vadd.f32 %v131, %v205
    %v207 = vpop.f32.mrf.mxu0
    %208 = vmatprep.mubr.f32.mxu0 0.0
    %209 = vmatmul.mubr.f32.gmra.mxu0 %v137
    %v210 = vpop.f32.mrf.mxu0
    %v211 = vadd.f32 %v131, %v210
    %v212 = vpop.f32.mrf.mxu0
    %213 = vdwg.mxu0
    %216 = vrot.lane.b32.xlu0 %v206, 96
    %v217 = vpop.permute.xlu0 %216
    %218 = vrot.lane.b32.xlu0 %v211, 96
    %v219 = vpop.permute.xlu0 %218
    %vm220 = vcmask 130048
    %v221 = vsel %vm220, %v206, 0
    %v223 = vsel %vm220, %v211, 0
    %v225 = vsel %vm220, %v217, 0
    %v227 = vsel %vm220, %v219, 0
    %229 = vmatprep.subr.mxu0 0.0
    %230 = vmatpush1.xpose.msra.mxu0 0.0
    %231 = vmatprep.subr.mxu0 0.0
    %232 = vmatpush1.xpose.msra.mxu0 0.0
    %233 = vmatprep.subr.mxu0 0.0
    %234 = vmatpush1.xpose.msra.mxu0 0.0
    %235 = vmatprep.subr.mxu0 0.0
    %236 = vmatpush1.xpose.msra.mxu0 0.0
    %237 = vmatprep.subr.mxu0 0.0
    %238 = vmatpush1.xpose.msra.mxu0 0.0
    %239 = vmatprep.subr.mxu0 0.0
    %240 = vmatpush1.xpose.msra.mxu0 0.0
    %241 = vmatprep.subr.mxu0 0.0
    %242 = vmatpush1.xpose.msra.mxu0 0.0
    %243 = vmatprep.subr.mxu0 0.0
    %244 = vmatpush1.xpose.msra.mxu0 0.0
    %245 = vmatprep.subr.mxu0 0.0
    %246 = vmatpush1.xpose.msra.mxu0 0.0
    %247 = vmatprep.subr.mxu0 0.0
    %248 = vmatpush1.xpose.msra.mxu0 0.0
    %249 = vmatprep.subr.mxu0 0.0
    %250 = vmatpush1.xpose.msra.mxu0 0.0
    %251 = vmatprep.subr.mxu0 0.0
    %252 = vmatpush1.xpose.msra.mxu0 0.0
    %253 = vmatprep.subr.mxu0 0.0
    %254 = vmatpush1.xpose.msra.mxu0 0.0
    %255 = vmatprep.subr.mxu0 0.0
    %256 = vmatpush1.xpose.msra.mxu0 0.0
    %257 = vmatprep.subr.mxu0 0.0
    %258 = vmatpush1.xpose.msra.mxu0 %v227
    %259 = vmatprep.subr.mxu0 0.0
    %260 = vmatpush1.xpose.msra.mxu0 %v225
    %261 = vmatprep.subr.mxu0 0.0
    %262 = vmatpush2.xpose.msra.mxu0 0.0
    %263 = vmatprep.subr.mxu0 0.0
    %264 = vmatpush2.xpose.msra.mxu0 0.0
    %265 = vmatprep.subr.mxu0 0.0
    %266 = vmatpush2.xpose.msra.mxu0 0.0
    %267 = vmatprep.subr.mxu0 0.0
    %268 = vmatpush2.xpose.msra.mxu0 0.0
    %269 = vmatprep.subr.mxu0 0.0
    %270 = vmatpush2.xpose.msra.mxu0 0.0
    %271 = vmatprep.subr.mxu0 0.0
    %272 = vmatpush2.xpose.msra.mxu0 0.0
    %273 = vmatprep.subr.mxu0 0.0
    %274 = vmatpush2.xpose.msra.mxu0 0.0
    %275 = vmatprep.subr.mxu0 0.0
    %276 = vmatpush2.xpose.msra.mxu0 0.0
    %277 = vmatprep.subr.mxu0 0.0
    %278 = vmatpush2.xpose.msra.mxu0 0.0
    %279 = vmatprep.subr.mxu0 0.0
    %280 = vmatpush2.xpose.msra.mxu0 0.0
    %281 = vmatprep.subr.mxu0 0.0
    %282 = vmatpush2.xpose.msra.mxu0 0.0
    %283 = vmatprep.subr.mxu0 0.0
    %284 = vmatpush2.xpose.msra.mxu0 0.0
    %285 = vmatprep.subr.mxu0 0.0
    %286 = vmatpush2.xpose.msra.mxu0 0.0
    %287 = vmatprep.subr.mxu0 0.0
    %288 = vmatpush2.xpose.msra.mxu0 0.0
    %289 = vmatprep.subr.mxu0 0.0
    %290 = vmatpush2.xpose.msra.mxu0 0.0
    %291 = vmatprep.subr.mxu0 0.0
    %292 = vmatpush2.xpose.msra.mxu0 0.0
    %293 = vmatprep.mubr.f32.mxu0 0.0
    %294 = vmatmul.mubr.f32.gmra.mxu0 %v221
    %v295 = vpop.f32.mrf.mxu0
    %v296 = vadd.f32 0.0, %v295
    %v297 = vpop.f32.mrf.mxu0
    %298 = vmatprep.mubr.f32.mxu0 0.0
    %299 = vmatmul.mubr.f32.gmra.mxu0 %v223
    %v300 = vpop.f32.mrf.mxu0
    %v301 = vadd.f32 0.0, %v300
    %v302 = vpop.f32.mrf.mxu0
    %303 = vdwg.mxu0
    %v304 = vmul.f32 %v296, 0.25
    %v305 = vmul.f32 %v301, 0.25
    %v306 = vadd.f32 %v304, %v120
    %v307 = vadd.f32 %v305, %v121
    %v308 = vsel %vm220, %v306, -inf
    %309 = vmax.xlane.f32.xlu0 %v308
    %v310 = vpop.xlane.xlu0 %309
    %v311 = vsel %vm220, %v307, -inf
    %312 = vmax.xlane.f32.xlu0 %v311
    %v313 = vpop.xlane.xlu0 %312
    %v314 = vsub.f32 %v306, %v310
    %v315 = vsub.f32 %v307, %v313
    %v316 = vmul.f32 %v314, 1.442695
    %v317 = vpow.pop %v316
    %v318 = vmul.f32 %v315, 1.442695
    %v319 = vpow.pop %v318
    %v320 = vsel %vm220, %v317, 0.0
    %321 = vadd.xlane.f32.xlu0 %v320
    %v322 = vpop.xlane.xlu0 %321
    %v323 = vsel %vm220, %v319, 0.0
    %324 = vadd.xlane.f32.xlu0 %v323
    %v325 = vpop.xlane.xlu0 %324
    %v326 = vrcp.pop %v322
    %v327 = vrcp.pop %v325
    %v328 = vmul.f32 %v317, %v326
    %v329 = vmul.f32 %v319, %v327
    %330 = vrot.lane.b32.xlu0 %v206, 64
    %v331 = vpop.permute.xlu0 %330
    %332 = vrot.lane.b32.xlu0 %v211, 64
    %v333 = vpop.permute.xlu0 %332
    %v337 = vsel %vm220, %v328, 0
    %v340 = vsel %vm220, %v329, 0
    %342 = vmatprep.subr.mxu0 0.0
    %343 = vmatpush1.msra.mxu0 0.0
    %344 = vmatprep.subr.mxu0 0.0
    %345 = vmatpush1.msra.mxu0 0.0
    %346 = vmatprep.subr.mxu0 0.0
    %347 = vmatpush1.msra.mxu0 0.0
    %348 = vmatprep.subr.mxu0 0.0
    %349 = vmatpush1.msra.mxu0 0.0
    %350 = vmatprep.subr.mxu0 0.0
    %351 = vmatpush1.msra.mxu0 0.0
    %352 = vmatprep.subr.mxu0 0.0
    %353 = vmatpush1.msra.mxu0 0.0
    %354 = vmatprep.subr.mxu0 0.0
    %355 = vmatpush1.msra.mxu0 0.0
    %356 = vmatprep.subr.mxu0 0.0
    %357 = vmatpush1.msra.mxu0 0.0
    %358 = vmatprep.subr.mxu0 0.0
    %359 = vmatpush1.msra.mxu0 0.0
    %360 = vmatprep.subr.mxu0 0.0
    %361 = vmatpush1.msra.mxu0 0.0
    %362 = vmatprep.subr.mxu0 0.0
    %363 = vmatpush1.msra.mxu0 0.0
    %364 = vmatprep.subr.mxu0 0.0
    %365 = vmatpush1.msra.mxu0 0.0
    %366 = vmatprep.subr.mxu0 0.0
    %367 = vmatpush1.msra.mxu0 0.0
    %368 = vmatprep.subr.mxu0 0.0
    %369 = vmatpush1.msra.mxu0 0.0
    %370 = vmatprep.subr.mxu0 0.0
    %371 = vmatpush1.msra.mxu0 %v333
    %372 = vmatprep.subr.mxu0 0.0
    %373 = vmatpush1.msra.mxu0 %v331
    %374 = vmatprep.subr.mxu0 0.0
    %375 = vmatpush2.msra.mxu0 0.0
    %376 = vmatprep.subr.mxu0 0.0
    %377 = vmatpush2.msra.mxu0 0.0
    %378 = vmatprep.subr.mxu0 0.0
    %379 = vmatpush2.msra.mxu0 0.0
    %380 = vmatprep.subr.mxu0 0.0
    %381 = vmatpush2.msra.mxu0 0.0
    %382 = vmatprep.subr.mxu0 0.0
    %383 = vmatpush2.msra.mxu0 0.0
    %384 = vmatprep.subr.mxu0 0.0
    %385 = vmatpush2.msra.mxu0 0.0
    %386 = vmatprep.subr.mxu0 0.0
    %387 = vmatpush2.msra.mxu0 0.0
    %388 = vmatprep.subr.mxu0 0.0
    %389 = vmatpush2.msra.mxu0 0.0
    %390 = vmatprep.subr.mxu0 0.0
    %391 = vmatpush2.msra.mxu0 0.0
    %392 = vmatprep.subr.mxu0 0.0
    %393 = vmatpush2.msra.mxu0 0.0
    %394 = vmatprep.subr.mxu0 0.0
    %395 = vmatpush2.msra.mxu0 0.0
    %396 = vmatprep.subr.mxu0 0.0
    %397 = vmatpush2.msra.mxu0 0.0
    %398 = vmatprep.subr.mxu0 0.0
    %399 = vmatpush2.msra.mxu0 0.0
    %400 = vmatprep.subr.mxu0 0.0
    %401 = vmatpush2.msra.mxu0 0.0
    %402 = vmatprep.subr.mxu0 0.0
    %403 = vmatpush2.msra.mxu0 0.0
    %404 = vmatprep.subr.mxu0 0.0
    %405 = vmatpush2.msra.mxu0 0.0
    %406 = vmatprep.mubr.f32.mxu0 0.0
    %407 = vmatmul.mubr.f32.gmra.mxu0 %v337
    %v408 = vpop.f32.mrf.mxu0
    %v409 = vadd.f32 0.0, %v408
    %v410 = vpop.f32.mrf.mxu0
    %411 = vmatprep.mubr.f32.mxu0 0.0
    %412 = vmatmul.mubr.f32.gmra.mxu0 %v340
    %v413 = vpop.f32.mrf.mxu0
    %v414 = vadd.f32 0.0, %v413
    %v415 = vpop.f32.mrf.mxu0
    %416 = vdwg.mxu0
    %417 = vrot.lane.b32.xlu0 %v206, 112
    %v418 = vpop.permute.xlu0 %417
    %419 = vrot.lane.b32.xlu0 %v211, 112
    %v420 = vpop.permute.xlu0 %419
    %421 = vrot.lane.b32.xlu0 %v206, 80
    %v422 = vpop.permute.xlu0 %421
    %423 = vrot.lane.b32.xlu0 %v211, 80
    %v424 = vpop.permute.xlu0 %423
    %v425 = vsel %vm220, %v418, 0
    %v427 = vsel %vm220, %v420, 0
    %v429 = vsel %vm220, %v422, 0
    %v431 = vsel %vm220, %v424, 0
    %433 = vmatprep.subr.mxu0 0.0
    %434 = vmatpush1.xpose.msra.mxu0 0.0
    %435 = vmatprep.subr.mxu0 0.0
    %436 = vmatpush1.xpose.msra.mxu0 0.0
    %437 = vmatprep.subr.mxu0 0.0
    %438 = vmatpush1.xpose.msra.mxu0 0.0
    %439 = vmatprep.subr.mxu0 0.0
    %440 = vmatpush1.xpose.msra.mxu0 0.0
    %441 = vmatprep.subr.mxu0 0.0
    %442 = vmatpush1.xpose.msra.mxu0 0.0
    %443 = vmatprep.subr.mxu0 0.0
    %444 = vmatpush1.xpose.msra.mxu0 0.0
    %445 = vmatprep.subr.mxu0 0.0
    %446 = vmatpush1.xpose.msra.mxu0 0.0
    %447 = vmatprep.subr.mxu0 0.0
    %448 = vmatpush1.xpose.msra.mxu0 0.0
    %449 = vmatprep.subr.mxu0 0.0
    %450 = vmatpush1.xpose.msra.mxu0 0.0
    %451 = vmatprep.subr.mxu0 0.0
    %452 = vmatpush1.xpose.msra.mxu0 0.0
    %453 = vmatprep.subr.mxu0 0.0
    %454 = vmatpush1.xpose.msra.mxu0 0.0
    %455 = vmatprep.subr.mxu0 0.0
    %456 = vmatpush1.xpose.msra.mxu0 0.0
    %457 = vmatprep.subr.mxu0 0.0
    %458 = vmatpush1.xpose.msra.mxu0 0.0
    %459 = vmatprep.subr.mxu0 0.0
    %460 = vmatpush1.xpose.msra.mxu0 0.0
    %461 = vmatprep.subr.mxu0 0.0
    %462 = vmatpush1.xpose.msra.mxu0 %v431
    %463 = vmatprep.subr.mxu0 0.0
    %464 = vmatpush1.xpose.msra.mxu0 %v429
    %465 = vmatprep.subr.mxu0 0.0
    %466 = vmatpush2.xpose.msra.mxu0 0.0
    %467 = vmatprep.subr.mxu0 0.0
    %468 = vmatpush2.xpose.msra.mxu0 0.0
    %469 = vmatprep.subr.mxu0 0.0
    %470 = vmatpush2.xpose.msra.mxu0 0.0
    %471 = vmatprep.subr.mxu0 0.0
    %472 = vmatpush2.xpose.msra.mxu0 0.0
    %473 = vmatprep.subr.mxu0 0.0
    %474 = vmatpush2.xpose.msra.mxu0 0.0
    %475 = vmatprep.subr.mxu0 0.0
    %476 = vmatpush2.xpose.msra.mxu0 0.0
    %477 = vmatprep.subr.mxu0 0.0
    %478 = vmatpush2.xpose.msra.mxu0 0.0
    %479 = vmatprep.subr.mxu0 0.0
    %480 = vmatpush2.xpose.msra.mxu0 0.0
    %481 = vmatprep.subr.mxu0 0.0
    %482 = vmatpush2.xpose.msra.mxu0 0.0
    %483 = vmatprep.subr.mxu0 0.0
    %484 = vmatpush2.xpose.msra.mxu0 0.0
    %485 = vmatprep.subr.mxu0 0.0
    %486 = vmatpush2.xpose.msra.mxu0 0.0
    %487 = vmatprep.subr.mxu0 0.0
    %488 = vmatpush2.xpose.msra.mxu0 0.0
    %489 = vmatprep.subr.mxu0 0.0
    %490 = vmatpush2.xpose.msra.mxu0 0.0
    %491 = vmatprep.subr.mxu0 0.0
    %492 = vmatpush2.xpose.msra.mxu0 0.0
    %493 = vmatprep.subr.mxu0 0.0
    %494 = vmatpush2.xpose.msra.mxu0 0.0
    %495 = vmatprep.subr.mxu0 0.0
    %496 = vmatpush2.xpose.msra.mxu0 0.0
    %497 = vmatprep.mubr.f32.mxu0 0.0
    %498 = vmatmul.mubr.f32.gmra.mxu0 %v425
    %v499 = vpop.f32.mrf.mxu0
    %v500 = vadd.f32 0.0, %v499
    %v501 = vpop.f32.mrf.mxu0
    %502 = vmatprep.mubr.f32.mxu0 0.0
    %503 = vmatmul.mubr.f32.gmra.mxu0 %v427
    %v504 = vpop.f32.mrf.mxu0
    %v505 = vadd.f32 0.0, %v504
    %v506 = vpop.f32.mrf.mxu0
    %507 = vdwg.mxu0
    %v508 = vmul.f32 %v500, 0.25
    %v509 = vmul.f32 %v505, 0.25
    %v510 = vadd.f32 %v508, %v120
    %v511 = vadd.f32 %v509, %v121
    %v512 = vsel %vm220, %v510, -inf
    %513 = vmax.xlane.f32.xlu0 %v512
    %v514 = vpop.xlane.xlu0 %513
    %v515 = vsel %vm220, %v511, -inf
    %516 = vmax.xlane.f32.xlu0 %v515
    %v517 = vpop.xlane.xlu0 %516
    %v518 = vsub.f32 %v510, %v514
    %v519 = vsub.f32 %v511, %v517
    %v520 = vmul.f32 %v518, 1.442695
    %v521 = vpow.pop %v520
    %v522 = vmul.f32 %v519, 1.442695
    %v523 = vpow.pop %v522
    %v524 = vsel %vm220, %v521, 0.0
    %525 = vadd.xlane.f32.xlu0 %v524
    %v526 = vpop.xlane.xlu0 %525
    %v527 = vsel %vm220, %v523, 0.0
    %528 = vadd.xlane.f32.xlu0 %v527
    %v529 = vpop.xlane.xlu0 %528
    %v530 = vrcp.pop %v526
    %v531 = vrcp.pop %v529
    %v532 = vmul.f32 %v521, %v530
    %v533 = vmul.f32 %v523, %v531
    %534 = vrot.lane.b32.xlu0 %v206, 48
    %v535 = vpop.permute.xlu0 %534
    %536 = vrot.lane.b32.xlu0 %v211, 48
    %v537 = vpop.permute.xlu0 %536
    %v541 = vsel %vm220, %v532, 0
    %v544 = vsel %vm220, %v533, 0
    %546 = vmatprep.subr.mxu0 0.0
    %547 = vmatpush1.msra.mxu0 0.0
    %548 = vmatprep.subr.mxu0 0.0
    %549 = vmatpush1.msra.mxu0 0.0
    %550 = vmatprep.subr.mxu0 0.0
    %551 = vmatpush1.msra.mxu0 0.0
    %552 = vmatprep.subr.mxu0 0.0
    %553 = vmatpush1.msra.mxu0 0.0
    %554 = vmatprep.subr.mxu0 0.0
    %555 = vmatpush1.msra.mxu0 0.0
    %556 = vmatprep.subr.mxu0 0.0
    %557 = vmatpush1.msra.mxu0 0.0
    %558 = vmatprep.subr.mxu0 0.0
    %559 = vmatpush1.msra.mxu0 0.0
    %560 = vmatprep.subr.mxu0 0.0
    %561 = vmatpush1.msra.mxu0 0.0
    %562 = vmatprep.subr.mxu0 0.0
    %563 = vmatpush1.msra.mxu0 0.0
    %564 = vmatprep.subr.mxu0 0.0
    %565 = vmatpush1.msra.mxu0 0.0
    %566 = vmatprep.subr.mxu0 0.0
    %567 = vmatpush1.msra.mxu0 0.0
    %568 = vmatprep.subr.mxu0 0.0
    %569 = vmatpush1.msra.mxu0 0.0
    %570 = vmatprep.subr.mxu0 0.0
    %571 = vmatpush1.msra.mxu0 0.0
    %572 = vmatprep.subr.mxu0 0.0
    %573 = vmatpush1.msra.mxu0 0.0
    %574 = vmatprep.subr.mxu0 0.0
    %575 = vmatpush1.msra.mxu0 %v537
    %576 = vmatprep.subr.mxu0 0.0
    %577 = vmatpush1.msra.mxu0 %v535
    %578 = vmatprep.subr.mxu0 0.0
    %579 = vmatpush2.msra.mxu0 0.0
    %580 = vmatprep.subr.mxu0 0.0
    %581 = vmatpush2.msra.mxu0 0.0
    %582 = vmatprep.subr.mxu0 0.0
    %583 = vmatpush2.msra.mxu0 0.0
    %584 = vmatprep.subr.mxu0 0.0
    %585 = vmatpush2.msra.mxu0 0.0
    %586 = vmatprep.subr.mxu0 0.0
    %587 = vmatpush2.msra.mxu0 0.0
    %588 = vmatprep.subr.mxu0 0.0
    %589 = vmatpush2.msra.mxu0 0.0
    %590 = vmatprep.subr.mxu0 0.0
    %591 = vmatpush2.msra.mxu0 0.0
    %592 = vmatprep.subr.mxu0 0.0
    %593 = vmatpush2.msra.mxu0 0.0
    %594 = vmatprep.subr.mxu0 0.0
    %595 = vmatpush2.msra.mxu0 0.0
    %596 = vmatprep.subr.mxu0 0.0
    %597 = vmatpush2.msra.mxu0 0.0
    %598 = vmatprep.subr.mxu0 0.0
    %599 = vmatpush2.msra.mxu0 0.0
    %600 = vmatprep.subr.mxu0 0.0
    %601 = vmatpush2.msra.mxu0 0.0
    %602 = vmatprep.subr.mxu0 0.0
    %603 = vmatpush2.msra.mxu0 0.0
    %604 = vmatprep.subr.mxu0 0.0
    %605 = vmatpush2.msra.mxu0 0.0
    %606 = vmatprep.subr.mxu0 0.0
    %607 = vmatpush2.msra.mxu0 0.0
    %608 = vmatprep.subr.mxu0 0.0
    %609 = vmatpush2.msra.mxu0 0.0
    %610 = vmatprep.mubr.f32.mxu0 0.0
    %611 = vmatmul.mubr.f32.gmra.mxu0 %v541
    %v612 = vpop.f32.mrf.mxu0
    %v613 = vadd.f32 0.0, %v612
    %v614 = vpop.f32.mrf.mxu0
    %615 = vmatprep.mubr.f32.mxu0 0.0
    %616 = vmatmul.mubr.f32.gmra.mxu0 %v544
    %v617 = vpop.f32.mrf.mxu0
    %v618 = vadd.f32 0.0, %v617
    %v619 = vpop.f32.mrf.mxu0
    %620 = vdwg.mxu0
    %623 = vrot.lane.b32.xlu0 %v613, 16
    %v624 = vpop.permute.xlu0 %623
    %625 = vrot.lane.b32.xlu0 %v618, 16
    %v626 = vpop.permute.xlu0 %625
    %v629 = vsel %vm220, %v409, %v624
    %v630 = vsel %vm220, %v414, %v626
    %v631 = vld [vmem:[%s8] sm:$0x3f]
    %v632 = vld [vmem:[%s7] sm:$0xff]
    %v633 = vld [vmem:[%s7 + $0x8] sm:$0xff]
    %v634 = vld [vmem:[%s7 + $0x10] sm:$0xff]
    %v635 = vld [vmem:[%s7 + $0x18] sm:$0xff]
    %v636 = vlaneseq
    %v637 = vshrl.u32 %v636, 7
    %v638 = vsub.s32 0, %v637
    %v639 = vrot.slane %v631, %v638
    %v641 = vsel %vm53, %v629, 0
    %v644 = vsel %vm53, %v630, 0
    %646 = vmatprep.subr.mxu0 0.0
    %647 = vmatpush1.msra.mxu0 0.0
    %648 = vmatprep.subr.mxu0 0.0
    %649 = vmatpush1.msra.mxu0 0.0
    %650 = vmatprep.subr.mxu0 0.0
    %651 = vmatpush1.msra.mxu0 0.0
    %652 = vmatprep.subr.mxu0 0.0
    %653 = vmatpush1.msra.mxu0 0.0
    %654 = vmatprep.subr.mxu0 0.0
    %655 = vmatpush1.msra.mxu0 0.0
    %656 = vmatprep.subr.mxu0 0.0
    %657 = vmatpush1.msra.mxu0 0.0
    %658 = vmatprep.subr.mxu0 0.0
    %659 = vmatpush1.msra.mxu0 0.0
    %660 = vmatprep.subr.mxu0 0.0
    %661 = vmatpush1.msra.mxu0 0.0
    %662 = vmatprep.subr.mxu0 0.0
    %663 = vmatpush1.msra.mxu0 0.0
    %664 = vmatprep.subr.mxu0 0.0
    %665 = vmatpush1.msra.mxu0 0.0
    %666 = vmatprep.subr.mxu0 0.0
    %667 = vmatpush1.msra.mxu0 0.0
    %668 = vmatprep.subr.mxu0 0.0
    %669 = vmatpush1.msra.mxu0 0.0
    %670 = vmatprep.subr.mxu0 0.0
    %671 = vmatpush1.msra.mxu0 %v635
    %672 = vmatprep.subr.mxu0 0.0
    %673 = vmatpush1.msra.mxu0 %v634
    %674 = vmatprep.subr.mxu0 0.0
    %675 = vmatpush1.msra.mxu0 %v633
    %676 = vmatprep.subr.mxu0 0.0
    %677 = vmatpush1.msra.mxu0 %v632
    %678 = vmatprep.subr.mxu0 0.0
    %679 = vmatpush2.msra.mxu0 0.0
    %680 = vmatprep.subr.mxu0 0.0
    %681 = vmatpush2.msra.mxu0 0.0
    %682 = vmatprep.subr.mxu0 0.0
    %683 = vmatpush2.msra.mxu0 0.0
    %684 = vmatprep.subr.mxu0 0.0
    %685 = vmatpush2.msra.mxu0 0.0
    %686 = vmatprep.subr.mxu0 0.0
    %687 = vmatpush2.msra.mxu0 0.0
    %688 = vmatprep.subr.mxu0 0.0
    %689 = vmatpush2.msra.mxu0 0.0
    %690 = vmatprep.subr.mxu0 0.0
    %691 = vmatpush2.msra.mxu0 0.0
    %692 = vmatprep.subr.mxu0 0.0
    %693 = vmatpush2.msra.mxu0 0.0
    %694 = vmatprep.subr.mxu0 0.0
    %695 = vmatpush2.msra.mxu0 0.0
    %696 = vmatprep.subr.mxu0 0.0
    %697 = vmatpush2.msra.mxu0 0.0
    %698 = vmatprep.subr.mxu0 0.0
    %699 = vmatpush2.msra.mxu0 0.0
    %700 = vmatprep.subr.mxu0 0.0
    %701 = vmatpush2.msra.mxu0 0.0
    %702 = vmatprep.subr.mxu0 0.0
    %703 = vmatpush2.msra.mxu0 0.0
    %704 = vmatprep.subr.mxu0 0.0
    %705 = vmatpush2.msra.mxu0 0.0
    %706 = vmatprep.subr.mxu0 0.0
    %707 = vmatpush2.msra.mxu0 0.0
    %708 = vmatprep.subr.mxu0 0.0
    %709 = vmatpush2.msra.mxu0 0.0
    %710 = vmatprep.mubr.f32.mxu0 0.0
    %711 = vmatmul.mubr.f32.gmra.mxu0 %v641
    %v712 = vpop.f32.mrf.mxu0
    %v713 = vadd.f32 %v639, %v712
    %v714 = vpop.f32.mrf.mxu0
    %715 = vmatprep.mubr.f32.mxu0 0.0
    %716 = vmatmul.mubr.f32.gmra.mxu0 %v644
    %v717 = vpop.f32.mrf.mxu0
    %v718 = vadd.f32 %v639, %v717
    %v719 = vpop.f32.mrf.mxu0
    %720 = vdwg.mxu0
    %v721 = vadd.f32 %v713, %v91
    %v722 = vadd.f32 %v718, %v92
    %v723 = vsel %vm53, %v721, 0.0
    %724 = vadd.xlane.f32.xlu0 %v723
    %v725 = vpop.xlane.xlu0 %724
    %v726 = vsel %vm53, %v722, 0.0
    %727 = vadd.xlane.f32.xlu0 %v726
    %v728 = vpop.xlane.xlu0 %727
    %v729 = vmul.f32 %v725, %v60
    %v730 = vmul.f32 %v728, %v60
    %v731 = vsub.f32 %v721, %v729
    %v732 = vsub.f32 %v722, %v730
    %v733 = vmul.f32 %v731, %v731
    %v734 = vmul.f32 %v732, %v732
    %v735 = vsel %vm53, %v733, 0.0
    %736 = vadd.xlane.f32.xlu0 %v735
    %v737 = vpop.xlane.xlu0 %736
    %v738 = vsel %vm53, %v734, 0.0
    %739 = vadd.xlane.f32.xlu0 %v738
    %v740 = vpop.xlane.xlu0 %739
    %v741 = vmul.f32 %v737, %v60
    %v742 = vmul.f32 %v740, %v60
    %v743 = vadd.f32 %v741, 1e-12
    %v744 = vadd.f32 %v742, 1e-12
    %v745 = vrsqrt.pop %v743
    %v746 = vrsqrt.pop %v744
    %v747 = vmul.f32 %v731, %v745
    %v748 = vmul.f32 %v732, %v746
    %v749 = vlaneseq
    %v750 = vshrl.u32 %v749, 7
    %v751 = vsub.s32 1, %v750
    %v752 = vrot.slane %v631, %v751
    %v753 = vmul.f32 %v747, %v752
    %v754 = vmul.f32 %v748, %v752
    %v755 = vlaneseq
    %v756 = vshrl.u32 %v755, 7
    %v757 = vsub.s32 2, %v756
    %v758 = vrot.slane %v631, %v757
    %v759 = vadd.f32 %v753, %v758
    %v760 = vadd.f32 %v754, %v758
    %v761 = vld [vmem:[%s9] sm:$0xff]
    %v762 = vld [vmem:[%s9 + $0x8] sm:$0xff]
    %v763 = vld [vmem:[%s9 + $0x10] sm:$0xff]
    %v764 = vld [vmem:[%s9 + $0x18] sm:$0xff]
    %v765 = vld [vmem:[%s10] sm:$0x1]
    %v767 = vlaneseq
    %v768 = vshrl.u32 %v767, 7
    %v769 = vsub.s32 0, %v768
    %v770 = vrot.slane %v765, %v769
    %v773 = vsel %vm53, %v759, 0
    %v776 = vsel %vm53, %v760, 0
    %778 = vmatprep.subr.mxu0 0.0
    %779 = vmatpush1.msra.mxu0 0.0
    %780 = vmatprep.subr.mxu0 0.0
    %781 = vmatpush1.msra.mxu0 0.0
    %782 = vmatprep.subr.mxu0 0.0
    %783 = vmatpush1.msra.mxu0 0.0
    %784 = vmatprep.subr.mxu0 0.0
    %785 = vmatpush1.msra.mxu0 0.0
    %786 = vmatprep.subr.mxu0 0.0
    %787 = vmatpush1.msra.mxu0 0.0
    %788 = vmatprep.subr.mxu0 0.0
    %789 = vmatpush1.msra.mxu0 0.0
    %790 = vmatprep.subr.mxu0 0.0
    %791 = vmatpush1.msra.mxu0 0.0
    %792 = vmatprep.subr.mxu0 0.0
    %793 = vmatpush1.msra.mxu0 0.0
    %794 = vmatprep.subr.mxu0 0.0
    %795 = vmatpush1.msra.mxu0 0.0
    %796 = vmatprep.subr.mxu0 0.0
    %797 = vmatpush1.msra.mxu0 0.0
    %798 = vmatprep.subr.mxu0 0.0
    %799 = vmatpush1.msra.mxu0 0.0
    %800 = vmatprep.subr.mxu0 0.0
    %801 = vmatpush1.msra.mxu0 0.0
    %802 = vmatprep.subr.mxu0 0.0
    %803 = vmatpush1.msra.mxu0 %v764
    %804 = vmatprep.subr.mxu0 0.0
    %805 = vmatpush1.msra.mxu0 %v763
    %806 = vmatprep.subr.mxu0 0.0
    %807 = vmatpush1.msra.mxu0 %v762
    %808 = vmatprep.subr.mxu0 0.0
    %809 = vmatpush1.msra.mxu0 %v761
    %810 = vmatprep.subr.mxu0 0.0
    %811 = vmatpush2.msra.mxu0 0.0
    %812 = vmatprep.subr.mxu0 0.0
    %813 = vmatpush2.msra.mxu0 0.0
    %814 = vmatprep.subr.mxu0 0.0
    %815 = vmatpush2.msra.mxu0 0.0
    %816 = vmatprep.subr.mxu0 0.0
    %817 = vmatpush2.msra.mxu0 0.0
    %818 = vmatprep.subr.mxu0 0.0
    %819 = vmatpush2.msra.mxu0 0.0
    %820 = vmatprep.subr.mxu0 0.0
    %821 = vmatpush2.msra.mxu0 0.0
    %822 = vmatprep.subr.mxu0 0.0
    %823 = vmatpush2.msra.mxu0 0.0
    %824 = vmatprep.subr.mxu0 0.0
    %825 = vmatpush2.msra.mxu0 0.0
    %826 = vmatprep.subr.mxu0 0.0
    %827 = vmatpush2.msra.mxu0 0.0
    %828 = vmatprep.subr.mxu0 0.0
    %829 = vmatpush2.msra.mxu0 0.0
    %830 = vmatprep.subr.mxu0 0.0
    %831 = vmatpush2.msra.mxu0 0.0
    %832 = vmatprep.subr.mxu0 0.0
    %833 = vmatpush2.msra.mxu0 0.0
    %834 = vmatprep.subr.mxu0 0.0
    %835 = vmatpush2.msra.mxu0 0.0
    %836 = vmatprep.subr.mxu0 0.0
    %837 = vmatpush2.msra.mxu0 0.0
    %838 = vmatprep.subr.mxu0 0.0
    %839 = vmatpush2.msra.mxu0 0.0
    %840 = vmatprep.subr.mxu0 0.0
    %841 = vmatpush2.msra.mxu0 0.0
    %842 = vmatprep.mubr.f32.mxu0 0.0
    %843 = vmatmul.mubr.f32.gmra.mxu0 %v773
    %v844 = vpop.f32.mrf.mxu0
    %v845 = vadd.f32 %v770, %v844
    %v846 = vpop.f32.mrf.mxu0
    %847 = vmatprep.mubr.f32.mxu0 0.0
    %848 = vmatmul.mubr.f32.gmra.mxu0 %v776
    %v849 = vpop.f32.mrf.mxu0
    %v850 = vadd.f32 %v770, %v849
    %v851 = vpop.f32.mrf.mxu0
    %852 = vdwg.mxu0
    %v853 = vmul.f32 %v845, %v845
    %v854 = vmul.f32 %v850, %v850
    %v855 = vmul.f32 %v845, %v853
    %v856 = vmul.f32 %v850, %v854
    %v857 = vmul.f32 %v855, 0.044715
    %v858 = vmul.f32 %v856, 0.044715
    %v859 = vadd.f32 %v845, %v857
    %v860 = vadd.f32 %v850, %v858
    %v861 = vmul.f32 %v859, 0.7978846
    %v862 = vmul.f32 %v860, 0.7978846
    %v863 = vtanh.pop %v861
    %v864 = vtanh.pop %v862
    %v865 = vadd.f32 %v863, 1.0
    %v866 = vadd.f32 %v864, 1.0
    %v867 = vmul.f32 %v865, 0.5
    %v868 = vmul.f32 %v866, 0.5
    %v869 = vmul.f32 %v845, %v867
    %v870 = vmul.f32 %v850, %v868
    %v871 = vld [vmem:[%s11] sm:$0xff]
    %v872 = vld [vmem:[%s11 + $0x8] sm:$0xff]
    %v873 = vld [vmem:[%s11 + $0x10] sm:$0xff]
    %v874 = vld [vmem:[%s11 + $0x18] sm:$0xff]
    %v875 = vld [vmem:[%s11 + $0x20] sm:$0xff]
    %v876 = vld [vmem:[%s11 + $0x28] sm:$0xff]
    %v877 = vld [vmem:[%s11 + $0x30] sm:$0xff]
    %v878 = vld [vmem:[%s11 + $0x38] sm:$0xff]
    %v879 = vlaneseq
    %v880 = vshrl.u32 %v879, 7
    %v881 = vsub.s32 3, %v880
    %v882 = vrot.slane %v631, %v881
    %vm883 = vcmask 523264
    %v885 = vsel %vm883, %v869, 0
    %v888 = vsel %vm883, %v870, 0
    %890 = vmatprep.subr.mxu0 0.0
    %891 = vmatpush1.msra.mxu0 0.0
    %892 = vmatprep.subr.mxu0 0.0
    %893 = vmatpush1.msra.mxu0 0.0
    %894 = vmatprep.subr.mxu0 0.0
    %895 = vmatpush1.msra.mxu0 0.0
    %896 = vmatprep.subr.mxu0 0.0
    %897 = vmatpush1.msra.mxu0 0.0
    %898 = vmatprep.subr.mxu0 0.0
    %899 = vmatpush1.msra.mxu0 0.0
    %900 = vmatprep.subr.mxu0 0.0
    %901 = vmatpush1.msra.mxu0 0.0
    %902 = vmatprep.subr.mxu0 0.0
    %903 = vmatpush1.msra.mxu0 0.0
    %904 = vmatprep.subr.mxu0 0.0
    %905 = vmatpush1.msra.mxu0 0.0
    %906 = vmatprep.subr.mxu0 0.0
    %907 = vmatpush1.msra.mxu0 %v878
    %908 = vmatprep.subr.mxu0 0.0
    %909 = vmatpush1.msra.mxu0 %v877
    %910 = vmatprep.subr.mxu0 0.0
    %911 = vmatpush1.msra.mxu0 %v876
    %912 = vmatprep.subr.mxu0 0.0
    %913 = vmatpush1.msra.mxu0 %v875
    %914 = vmatprep.subr.mxu0 0.0
    %915 = vmatpush1.msra.mxu0 %v874
    %916 = vmatprep.subr.mxu0 0.0
    %917 = vmatpush1.msra.mxu0 %v873
    %918 = vmatprep.subr.mxu0 0.0
    %919 = vmatpush1.msra.mxu0 %v872
    %920 = vmatprep.subr.mxu0 0.0
    %921 = vmatpush1.msra.mxu0 %v871
    %922 = vmatprep.subr.mxu0 0.0
    %923 = vmatpush2.msra.mxu0 0.0
    %924 = vmatprep.subr.mxu0 0.0
    %925 = vmatpush2.msra.mxu0 0.0
    %926 = vmatprep.subr.mxu0 0.0
    %927 = vmatpush2.msra.mxu0 0.0
    %928 = vmatprep.subr.mxu0 0.0
    %929 = vmatpush2.msra.mxu0 0.0
    %930 = vmatprep.subr.mxu0 0.0
    %931 = vmatpush2.msra.mxu0 0.0
    %932 = vmatprep.subr.mxu0 0.0
    %933 = vmatpush2.msra.mxu0 0.0
    %934 = vmatprep.subr.mxu0 0.0
    %935 = vmatpush2.msra.mxu0 0.0
    %936 = vmatprep.subr.mxu0 0.0
    %937 = vmatpush2.msra.mxu0 0.0
    %938 = vmatprep.subr.mxu0 0.0
    %939 = vmatpush2.msra.mxu0 0.0
    %940 = vmatprep.subr.mxu0 0.0
    %941 = vmatpush2.msra.mxu0 0.0
    %942 = vmatprep.subr.mxu0 0.0
    %943 = vmatpush2.msra.mxu0 0.0
    %944 = vmatprep.subr.mxu0 0.0
    %945 = vmatpush2.msra.mxu0 0.0
    %946 = vmatprep.subr.mxu0 0.0
    %947 = vmatpush2.msra.mxu0 0.0
    %948 = vmatprep.subr.mxu0 0.0
    %949 = vmatpush2.msra.mxu0 0.0
    %950 = vmatprep.subr.mxu0 0.0
    %951 = vmatpush2.msra.mxu0 0.0
    %952 = vmatprep.subr.mxu0 0.0
    %953 = vmatpush2.msra.mxu0 0.0
    %954 = vmatprep.mubr.f32.mxu0 0.0
    %955 = vmatmul.mubr.f32.gmra.mxu0 %v885
    %v956 = vpop.f32.mrf.mxu0
    %v957 = vadd.f32 %v882, %v956
    %v958 = vpop.f32.mrf.mxu0
    %959 = vmatprep.mubr.f32.mxu0 0.0
    %960 = vmatmul.mubr.f32.gmra.mxu0 %v888
    %v961 = vpop.f32.mrf.mxu0
    %v962 = vadd.f32 %v882, %v961
    %v963 = vpop.f32.mrf.mxu0
    %964 = vdwg.mxu0
    %v965 = vadd.f32 %v957, %v759
    %v966 = vadd.f32 %v962, %v760
    %v967 = vsel %vm53, %v965, 0.0
    %968 = vadd.xlane.f32.xlu0 %v967
    %v969 = vpop.xlane.xlu0 %968
    %v970 = vsel %vm53, %v966, 0.0
    %971 = vadd.xlane.f32.xlu0 %v970
    %v972 = vpop.xlane.xlu0 %971
    %v973 = vmul.f32 %v969, %v60
    %v974 = vmul.f32 %v972, %v60
    %v975 = vsub.f32 %v965, %v973
    %v976 = vsub.f32 %v966, %v974
    %v977 = vmul.f32 %v975, %v975
    %v978 = vmul.f32 %v976, %v976
    %v979 = vsel %vm53, %v977, 0.0
    %980 = vadd.xlane.f32.xlu0 %v979
    %v981 = vpop.xlane.xlu0 %980
    %v982 = vsel %vm53, %v978, 0.0
    %983 = vadd.xlane.f32.xlu0 %v982
    %v984 = vpop.xlane.xlu0 %983
    %v985 = vmul.f32 %v981, %v60
    %v986 = vmul.f32 %v984, %v60
    %v987 = vadd.f32 %v985, 1e-12
    %v988 = vadd.f32 %v986, 1e-12
    %v989 = vrsqrt.pop %v987
    %v990 = vrsqrt.pop %v988
    %v991 = vmul.f32 %v975, %v989
    %v992 = vmul.f32 %v976, %v990
    %v993 = vlaneseq
    %v994 = vshrl.u32 %v993, 7
    %v995 = vsub.s32 4, %v994
    %v996 = vrot.slane %v631, %v995
    %v997 = vmul.f32 %v991, %v996
    %v998 = vmul.f32 %v992, %v996
    %v999 = vlaneseq
    %v1000 = vshrl.u32 %v999, 7
    %v1001 = vsub.s32 5, %v1000
    %v1002 = vrot.slane %v631, %v1001
    %v1003 = vadd.f32 %v997, %v1002
    %v1004 = vadd.f32 %v998, %v1002
    %s1005 = scalar_lea.vmem %s5, 32
    %v1006 = vld [vmem:[%s1005] sm:$0xff]
    %v1007 = vld [vmem:[%s1005 + $0x8] sm:$0xff]
    %v1008 = vld [vmem:[%s1005 + $0x10] sm:$0xff]
    %v1009 = vld [vmem:[%s1005 + $0x18] sm:$0xff]
    %s1010 = scalar_lea.vmem %s6, 1
    %v1011 = vld [vmem:[%s1010] sm:$0x1]
    %v1013 = vlaneseq
    %v1014 = vshrl.u32 %v1013, 7
    %v1015 = vsub.s32 0, %v1014
    %v1016 = vrot.slane %v1011, %v1015
    %v1019 = vsel %vm53, %v1003, 0
    %v1022 = vsel %vm53, %v1004, 0
    %1024 = vmatprep.subr.mxu0 0.0
    %1025 = vmatpush1.msra.mxu0 0.0
    %1026 = vmatprep.subr.mxu0 0.0
    %1027 = vmatpush1.msra.mxu0 0.0
    %1028 = vmatprep.subr.mxu0 0.0
    %1029 = vmatpush1.msra.mxu0 0.0
    %1030 = vmatprep.subr.mxu0 0.0
    %1031 = vmatpush1.msra.mxu0 0.0
    %1032 = vmatprep.subr.mxu0 0.0
    %1033 = vmatpush1.msra.mxu0 0.0
    %1034 = vmatprep.subr.mxu0 0.0
    %1035 = vmatpush1.msra.mxu0 0.0
    %1036 = vmatprep.subr.mxu0 0.0
    %1037 = vmatpush1.msra.mxu0 0.0
    %1038 = vmatprep.subr.mxu0 0.0
    %1039 = vmatpush1.msra.mxu0 0.0
    %1040 = vmatprep.subr.mxu0 0.0
    %1041 = vmatpush1.msra.mxu0 0.0
    %1042 = vmatprep.subr.mxu0 0.0
    %1043 = vmatpush1.msra.mxu0 0.0
    %1044 = vmatprep.subr.mxu0 0.0
    %1045 = vmatpush1.msra.mxu0 0.0
    %1046 = vmatprep.subr.mxu0 0.0
    %1047 = vmatpush1.msra.mxu0 0.0
    %1048 = vmatprep.subr.mxu0 0.0
    %1049 = vmatpush1.msra.mxu0 %v1009
    %1050 = vmatprep.subr.mxu0 0.0
    %1051 = vmatpush1.msra.mxu0 %v1008
    %1052 = vmatprep.subr.mxu0 0.0
    %1053 = vmatpush1.msra.mxu0 %v1007
    %1054 = vmatprep.subr.mxu0 0.0
    %1055 = vmatpush1.msra.mxu0 %v1006
    %1056 = vmatprep.subr.mxu0 0.0
    %1057 = vmatpush2.msra.mxu0 0.0
    %1058 = vmatprep.subr.mxu0 0.0
    %1059 = vmatpush2.msra.mxu0 0.0
    %1060 = vmatprep.subr.mxu0 0.0
    %1061 = vmatpush2.msra.mxu0 0.0
    %1062 = vmatprep.subr.mxu0 0.0
    %1063 = vmatpush2.msra.mxu0 0.0
    %1064 = vmatprep.subr.mxu0 0.0
    %1065 = vmatpush2.msra.mxu0 0.0
    %1066 = vmatprep.subr.mxu0 0.0
    %1067 = vmatpush2.msra.mxu0 0.0
    %1068 = vmatprep.subr.mxu0 0.0
    %1069 = vmatpush2.msra.mxu0 0.0
    %1070 = vmatprep.subr.mxu0 0.0
    %1071 = vmatpush2.msra.mxu0 0.0
    %1072 = vmatprep.subr.mxu0 0.0
    %1073 = vmatpush2.msra.mxu0 0.0
    %1074 = vmatprep.subr.mxu0 0.0
    %1075 = vmatpush2.msra.mxu0 0.0
    %1076 = vmatprep.subr.mxu0 0.0
    %1077 = vmatpush2.msra.mxu0 0.0
    %1078 = vmatprep.subr.mxu0 0.0
    %1079 = vmatpush2.msra.mxu0 0.0
    %1080 = vmatprep.subr.mxu0 0.0
    %1081 = vmatpush2.msra.mxu0 0.0
    %1082 = vmatprep.subr.mxu0 0.0
    %1083 = vmatpush2.msra.mxu0 0.0
    %1084 = vmatprep.subr.mxu0 0.0
    %1085 = vmatpush2.msra.mxu0 0.0
    %1086 = vmatprep.subr.mxu0 0.0
    %1087 = vmatpush2.msra.mxu0 0.0
    %1088 = vmatprep.mubr.f32.mxu0 0.0
    %1089 = vmatmul.mubr.f32.gmra.mxu0 %v1019
    %v1090 = vpop.f32.mrf.mxu0
    %v1091 = vadd.f32 %v1016, %v1090
    %v1092 = vpop.f32.mrf.mxu0
    %1093 = vmatprep.mubr.f32.mxu0 0.0
    %1094 = vmatmul.mubr.f32.gmra.mxu0 %v1022
    %v1095 = vpop.f32.mrf.mxu0
    %v1096 = vadd.f32 %v1016, %v1095
    %v1097 = vpop.f32.mrf.mxu0
    %1098 = vdwg.mxu0
    %1101 = vrot.lane.b32.xlu0 %v1091, 96
    %v1102 = vpop.permute.xlu0 %1101
    %1103 = vrot.lane.b32.xlu0 %v1096, 96
    %v1104 = vpop.permute.xlu0 %1103
    %v1105 = vsel %vm220, %v1091, 0
    %v1107 = vsel %vm220, %v1096, 0
    %v1109 = vsel %vm220, %v1102, 0
    %v1111 = vsel %vm220, %v1104, 0
    %1113 = vmatprep.subr.mxu0 0.0
    %1114 = vmatpush1.xpose.msra.mxu0 0.0
    %1115 = vmatprep.subr.mxu0 0.0
    %1116 = vmatpush1.xpose.msra.mxu0 0.0
    %1117 = vmatprep.subr.mxu0 0.0
    %1118 = vmatpush1.xpose.msra.mxu0 0.0
    %1119 = vmatprep.subr.mxu0 0.0
    %1120 = vmatpush1.xpose.msra.mxu0 0.0
    %1121 = vmatprep.subr.mxu0 0.0
    %1122 = vmatpush1.xpose.msra.mxu0 0.0
    %1123 = vmatprep.subr.mxu0 0.0
    %1124 = vmatpush1.xpose.msra.mxu0 0.0
    %1125 = vmatprep.subr.mxu0 0.0
    %1126 = vmatpush1.xpose.msra.mxu0 0.0
    %1127 = vmatprep.subr.mxu0 0.0
    %1128 = vmatpush1.xpose.msra.mxu0 0.0
    %1129 = vmatprep.subr.mxu0 0.0
    %1130 = vmatpush1.xpose.msra.mxu0 0.0
    %1131 = vmatprep.subr.mxu0 0.0
    %1132 = vmatpush1.xpose.msra.mxu0 0.0
    %1133 = vmatprep.subr.mxu0 0.0
    %1134 = vmatpush1.xpose.msra.mxu0 0.0
    %1135 = vmatprep.subr.mxu0 0.0
    %1136 = vmatpush1.xpose.msra.mxu0 0.0
    %1137 = vmatprep.subr.mxu0 0.0
    %1138 = vmatpush1.xpose.msra.mxu0 0.0
    %1139 = vmatprep.subr.mxu0 0.0
    %1140 = vmatpush1.xpose.msra.mxu0 0.0
    %1141 = vmatprep.subr.mxu0 0.0
    %1142 = vmatpush1.xpose.msra.mxu0 %v1111
    %1143 = vmatprep.subr.mxu0 0.0
    %1144 = vmatpush1.xpose.msra.mxu0 %v1109
    %1145 = vmatprep.subr.mxu0 0.0
    %1146 = vmatpush2.xpose.msra.mxu0 0.0
    %1147 = vmatprep.subr.mxu0 0.0
    %1148 = vmatpush2.xpose.msra.mxu0 0.0
    %1149 = vmatprep.subr.mxu0 0.0
    %1150 = vmatpush2.xpose.msra.mxu0 0.0
    %1151 = vmatprep.subr.mxu0 0.0
    %1152 = vmatpush2.xpose.msra.mxu0 0.0
    %1153 = vmatprep.subr.mxu0 0.0
    %1154 = vmatpush2.xpose.msra.mxu0 0.0
    %1155 = vmatprep.subr.mxu0 0.0
    %1156 = vmatpush2.xpose.msra.mxu0 0.0
    %1157 = vmatprep.subr.mxu0 0.0
    %1158 = vmatpush2.xpose.msra.mxu0 0.0
    %1159 = vmatprep.subr.mxu0 0.0
    %1160 = vmatpush2.xpose.msra.mxu0 0.0
    %1161 = vmatprep.subr.mxu0 0.0
    %1162 = vmatpush2.xpose.msra.mxu0 0.0
    %1163 = vmatprep.subr.mxu0 0.0
    %1164 = vmatpush2.xpose.msra.mxu0 0.0
    %1165 = vmatprep.subr.mxu0 0.0
    %1166 = vmatpush2.xpose.msra.mxu0 0.0
    %1167 = vmatprep.subr.mxu0 0.0
    %1168 = vmatpush2.xpose.msra.mxu0 0.0
    %1169 = vmatprep.subr.mxu0 0.0
    %1170 = vmatpush2.xpose.msra.mxu0 0.0
    %1171 = vmatprep.subr.mxu0 0.0
    %1172 = vmatpush2.xpose.msra.mxu0 0.0
    %1173 = vmatprep.subr.mxu0 0.0
    %1174 = vmatpush2.xpose.msra.mxu0 0.0
    %1175 = vmatprep.subr.mxu0 0.0
    %1176 = vmatpush2.xpose.msra.mxu0 0.0
    %1177 = vmatprep.mubr.f32.mxu0 0.0
    %1178 = vmatmul.mubr.f32.gmra.mxu0 %v1105
    %v1179 = vpop.f32.mrf.mxu0
    %v1180 = vadd.f32 0.0, %v1179
    %v1181 = vpop.f32.mrf.mxu0
    %1182 = vmatprep.mubr.f32.mxu0 0.0
    %1183 = vmatmul.mubr.f32.gmra.mxu0 %v1107
    %v1184 = vpop.f32.mrf.mxu0
    %v1185 = vadd.f32 0.0, %v1184
    %v1186 = vpop.f32.mrf.mxu0
    %1187 = vdwg.mxu0
    %v1188 = vmul.f32 %v1180, 0.25
    %v1189 = vmul.f32 %v1185, 0.25
    %v1190 = vadd.f32 %v1188, %v120
    %v1191 = vadd.f32 %v1189, %v121
    %v1192 = vsel %vm220, %v1190, -inf
    %1193 = vmax.xlane.f32.xlu0 %v1192
    %v1194 = vpop.xlane.xlu0 %1193
    %v1195 = vsel %vm220, %v1191, -inf
    %1196 = vmax.xlane.f32.xlu0 %v1195
    %v1197 = vpop.xlane.xlu0 %1196
    %v1198 = vsub.f32 %v1190, %v1194
    %v1199 = vsub.f32 %v1191, %v1197
    %v1200 = vmul.f32 %v1198, 1.442695
    %v1201 = vpow.pop %v1200
    %v1202 = vmul.f32 %v1199, 1.442695
    %v1203 = vpow.pop %v1202
    %v1204 = vsel %vm220, %v1201, 0.0
    %1205 = vadd.xlane.f32.xlu0 %v1204
    %v1206 = vpop.xlane.xlu0 %1205
    %v1207 = vsel %vm220, %v1203, 0.0
    %1208 = vadd.xlane.f32.xlu0 %v1207
    %v1209 = vpop.xlane.xlu0 %1208
    %v1210 = vrcp.pop %v1206
    %v1211 = vrcp.pop %v1209
    %v1212 = vmul.f32 %v1201, %v1210
    %v1213 = vmul.f32 %v1203, %v1211
    %1214 = vrot.lane.b32.xlu0 %v1091, 64
    %v1215 = vpop.permute.xlu0 %1214
    %1216 = vrot.lane.b32.xlu0 %v1096, 64
    %v1217 = vpop.permute.xlu0 %1216
    %v1221 = vsel %vm220, %v1212, 0
    %v1224 = vsel %vm220, %v1213, 0
    %1226 = vmatprep.subr.mxu0 0.0
    %1227 = vmatpush1.msra.mxu0 0.0
    %1228 = vmatprep.subr.mxu0 0.0
    %1229 = vmatpush1.msra.mxu0 0.0
    %1230 = vmatprep.subr.mxu0 0.0
    %1231 = vmatpush1.msra.mxu0 0.0
    %1232 = vmatprep.subr.mxu0 0.0
    %1233 = vmatpush1.msra.mxu0 0.0
    %1234 = vmatprep.subr.mxu0 0.0
    %1235 = vmatpush1.msra.mxu0 0.0
    %1236 = vmatprep.subr.mxu0 0.0
    %1237 = vmatpush1.msra.mxu0 0.0
    %1238 = vmatprep.subr.mxu0 0.0
    %1239 = vmatpush1.msra.mxu0 0.0
    %1240 = vmatprep.subr.mxu0 0.0
    %1241 = vmatpush1.msra.mxu0 0.0
    %1242 = vmatprep.subr.mxu0 0.0
    %1243 = vmatpush1.msra.mxu0 0.0
    %1244 = vmatprep.subr.mxu0 0.0
    %1245 = vmatpush1.msra.mxu0 0.0
    %1246 = vmatprep.subr.mxu0 0.0
    %1247 = vmatpush1.msra.mxu0 0.0
    %1248 = vmatprep.subr.mxu0 0.0
    %1249 = vmatpush1.msra.mxu0 0.0
    %1250 = vmatprep.subr.mxu0 0.0
    %1251 = vmatpush1.msra.mxu0 0.0
    %1252 = vmatprep.subr.mxu0 0.0
    %1253 = vmatpush1.msra.mxu0 0.0
    %1254 = vmatprep.subr.mxu0 0.0
    %1255 = vmatpush1.msra.mxu0 %v1217
    %1256 = vmatprep.subr.mxu0 0.0
    %1257 = vmatpush1.msra.mxu0 %v1215
    %1258 = vmatprep.subr.mxu0 0.0
    %1259 = vmatpush2.msra.mxu0 0.0
    %1260 = vmatprep.subr.mxu0 0.0
    %1261 = vmatpush2.msra.mxu0 0.0
    %1262 = vmatprep.subr.mxu0 0.0
    %1263 = vmatpush2.msra.mxu0 0.0
    %1264 = vmatprep.subr.mxu0 0.0
    %1265 = vmatpush2.msra.mxu0 0.0
    %1266 = vmatprep.subr.mxu0 0.0
    %1267 = vmatpush2.msra.mxu0 0.0
    %1268 = vmatprep.subr.mxu0 0.0
    %1269 = vmatpush2.msra.mxu0 0.0
    %1270 = vmatprep.subr.mxu0 0.0
    %1271 = vmatpush2.msra.mxu0 0.0
    %1272 = vmatprep.subr.mxu0 0.0
    %1273 = vmatpush2.msra.mxu0 0.0
    %1274 = vmatprep.subr.mxu0 0.0
    %1275 = vmatpush2.msra.mxu0 0.0
    %1276 = vmatprep.subr.mxu0 0.0
    %1277 = vmatpush2.msra.mxu0 0.0
    %1278 = vmatprep.subr.mxu0 0.0
    %1279 = vmatpush2.msra.mxu0 0.0
    %1280 = vmatprep.subr.mxu0 0.0
    %1281 = vmatpush2.msra.mxu0 0.0
    %1282 = vmatprep.subr.mxu0 0.0
    %1283 = vmatpush2.msra.mxu0 0.0
    %1284 = vmatprep.subr.mxu0 0.0
    %1285 = vmatpush2.msra.mxu0 0.0
    %1286 = vmatprep.subr.mxu0 0.0
    %1287 = vmatpush2.msra.mxu0 0.0
    %1288 = vmatprep.subr.mxu0 0.0
    %1289 = vmatpush2.msra.mxu0 0.0
    %1290 = vmatprep.mubr.f32.mxu0 0.0
    %1291 = vmatmul.mubr.f32.gmra.mxu0 %v1221
    %v1292 = vpop.f32.mrf.mxu0
    %v1293 = vadd.f32 0.0, %v1292
    %v1294 = vpop.f32.mrf.mxu0
    %1295 = vmatprep.mubr.f32.mxu0 0.0
    %1296 = vmatmul.mubr.f32.gmra.mxu0 %v1224
    %v1297 = vpop.f32.mrf.mxu0
    %v1298 = vadd.f32 0.0, %v1297
    %v1299 = vpop.f32.mrf.mxu0
    %1300 = vdwg.mxu0
    %1301 = vrot.lane.b32.xlu0 %v1091, 112
    %v1302 = vpop.permute.xlu0 %1301
    %1303 = vrot.lane.b32.xlu0 %v1096, 112
    %v1304 = vpop.permute.xlu0 %1303
    %1305 = vrot.lane.b32.xlu0 %v1091, 80
    %v1306 = vpop.permute.xlu0 %1305
    %1307 = vrot.lane.b32.xlu0 %v1096, 80
    %v1308 = vpop.permute.xlu0 %1307
    %v1309 = vsel %vm220, %v1302, 0
    %v1311 = vsel %vm220, %v1304, 0
    %v1313 = vsel %vm220, %v1306, 0
    %v1315 = vsel %vm220, %v1308, 0
    %1317 = vmatprep.subr.mxu0 0.0
    %1318 = vmatpush1.xpose.msra.mxu0 0.0
    %1319 = vmatprep.subr.mxu0 0.0
    %1320 = vmatpush1.xpose.msra.mxu0 0.0
    %1321 = vmatprep.subr.mxu0 0.0
    %1322 = vmatpush1.xpose.msra.mxu0 0.0
    %1323 = vmatprep.subr.mxu0 0.0
    %1324 = vmatpush1.xpose.msra.mxu0 0.0
    %1325 = vmatprep.subr.mxu0 0.0
    %1326 = vmatpush1.xpose.msra.mxu0 0.0
    %1327 = vmatprep.subr.mxu0 0.0
    %1328 = vmatpush1.xpose.msra.mxu0 0.0
    %1329 = vmatprep.subr.mxu0 0.0
    %1330 = vmatpush1.xpose.msra.mxu0 0.0
    %1331 = vmatprep.subr.mxu0 0.0
    %1332 = vmatpush1.xpose.msra.mxu0 0.0
    %1333 = vmatprep.subr.mxu0 0.0
    %1334 = vmatpush1.xpose.msra.mxu0 0.0
    %1335 = vmatprep.subr.mxu0 0.0
    %1336 = vmatpush1.xpose.msra.mxu0 0.0
    %1337 = vmatprep.subr.mxu0 0.0
    %1338 = vmatpush1.xpose.msra.mxu0 0.0
    %1339 = vmatprep.subr.mxu0 0.0
    %1340 = vmatpush1.xpose.msra.mxu0 0.0
    %1341 = vmatprep.subr.mxu0 0.0
    %1342 = vmatpush1.xpose.msra.mxu0 0.0
    %1343 = vmatprep.subr.mxu0 0.0
    %1344 = vmatpush1.xpose.msra.mxu0 0.0
    %1345 = vmatprep.subr.mxu0 0.0
    %1346 = vmatpush1.xpose.msra.mxu0 %v1315
    %1347 = vmatprep.subr.mxu0 0.0
    %1348 = vmatpush1.xpose.msra.mxu0 %v1313
    %1349 = vmatprep.subr.mxu0 0.0
    %1350 = vmatpush2.xpose.msra.mxu0 0.0
    %1351 = vmatprep.subr.mxu0 0.0
    %1352 = vmatpush2.xpose.msra.mxu0 0.0
    %1353 = vmatprep.subr.mxu0 0.0
    %1354 = vmatpush2.xpose.msra.mxu0 0.0
    %1355 = vmatprep.subr.mxu0 0.0
    %1356 = vmatpush2.xpose.msra.mxu0 0.0
    %1357 = vmatprep.subr.mxu0 0.0
    %1358 = vmatpush2.xpose.msra.mxu0 0.0
    %1359 = vmatprep.subr.mxu0 0.0
    %1360 = vmatpush2.xpose.msra.mxu0 0.0
    %1361 = vmatprep.subr.mxu0 0.0
    %1362 = vmatpush2.xpose.msra.mxu0 0.0
    %1363 = vmatprep.subr.mxu0 0.0
    %1364 = vmatpush2.xpose.msra.mxu0 0.0
    %1365 = vmatprep.subr.mxu0 0.0
    %1366 = vmatpush2.xpose.msra.mxu0 0.0
    %1367 = vmatprep.subr.mxu0 0.0
    %1368 = vmatpush2.xpose.msra.mxu0 0.0
    %1369 = vmatprep.subr.mxu0 0.0
    %1370 = vmatpush2.xpose.msra.mxu0 0.0
    %1371 = vmatprep.subr.mxu0 0.0
    %1372 = vmatpush2.xpose.msra.mxu0 0.0
    %1373 = vmatprep.subr.mxu0 0.0
    %1374 = vmatpush2.xpose.msra.mxu0 0.0
    %1375 = vmatprep.subr.mxu0 0.0
    %1376 = vmatpush2.xpose.msra.mxu0 0.0
    %1377 = vmatprep.subr.mxu0 0.0
    %1378 = vmatpush2.xpose.msra.mxu0 0.0
    %1379 = vmatprep.subr.mxu0 0.0
    %1380 = vmatpush2.xpose.msra.mxu0 0.0
    %1381 = vmatprep.mubr.f32.mxu0 0.0
    %1382 = vmatmul.mubr.f32.gmra.mxu0 %v1309
    %v1383 = vpop.f32.mrf.mxu0
    %v1384 = vadd.f32 0.0, %v1383
    %v1385 = vpop.f32.mrf.mxu0
    %1386 = vmatprep.mubr.f32.mxu0 0.0
    %1387 = vmatmul.mubr.f32.gmra.mxu0 %v1311
    %v1388 = vpop.f32.mrf.mxu0
    %v1389 = vadd.f32 0.0, %v1388
    %v1390 = vpop.f32.mrf.mxu0
    %1391 = vdwg.mxu0
    %v1392 = vmul.f32 %v1384, 0.25
    %v1393 = vmul.f32 %v1389, 0.25
    %v1394 = vadd.f32 %v1392, %v120
    %v1395 = vadd.f32 %v1393, %v121
    %v1396 = vsel %vm220, %v1394, -inf
    %1397 = vmax.xlane.f32.xlu0 %v1396
    %v1398 = vpop.xlane.xlu0 %1397
    %v1399 = vsel %vm220, %v1395, -inf
    %1400 = vmax.xlane.f32.xlu0 %v1399
    %v1401 = vpop.xlane.xlu0 %1400
    %v1402 = vsub.f32 %v1394, %v1398
    %v1403 = vsub.f32 %v1395, %v1401
    %v1404 = vmul.f32 %v1402, 1.442695
    %v1405 = vpow.pop %v1404
    %v1406 = vmul.f32 %v1403, 1.442695
    %v1407 = vpow.pop %v1406
    %v1408 = vsel %vm220, %v1405, 0.0
    %1409 = vadd.xlane.f32.xlu0 %v1408
    %v1410 = vpop.xlane.xlu0 %1409
    %v1411 = vsel %vm220, %v1407, 0.0
    %1412 = vadd.xlane.f32.xlu0 %v1411
    %v1413 = vpop.xlane.xlu0 %1412
    %v1414 = vrcp.pop %v1410
    %v1415 = vrcp.pop %v1413
    %v1416 = vmul.f32 %v1405, %v1414
    %v1417 = vmul.f32 %v1407, %v1415
    %1418 = vrot.lane.b32.xlu0 %v1091, 48
    %v1419 = vpop.permute.xlu0 %1418
    %1420 = vrot.lane.b32.xlu0 %v1096, 48
    %v1421 = vpop.permute.xlu0 %1420
    %v1425 = vsel %vm220, %v1416, 0
    %v1428 = vsel %vm220, %v1417, 0
    %1430 = vmatprep.subr.mxu0 0.0
    %1431 = vmatpush1.msra.mxu0 0.0
    %1432 = vmatprep.subr.mxu0 0.0
    %1433 = vmatpush1.msra.mxu0 0.0
    %1434 = vmatprep.subr.mxu0 0.0
    %1435 = vmatpush1.msra.mxu0 0.0
    %1436 = vmatprep.subr.mxu0 0.0
    %1437 = vmatpush1.msra.mxu0 0.0
    %1438 = vmatprep.subr.mxu0 0.0
    %1439 = vmatpush1.msra.mxu0 0.0
    %1440 = vmatprep.subr.mxu0 0.0
    %1441 = vmatpush1.msra.mxu0 0.0
    %1442 = vmatprep.subr.mxu0 0.0
    %1443 = vmatpush1.msra.mxu0 0.0
    %1444 = vmatprep.subr.mxu0 0.0
    %1445 = vmatpush1.msra.mxu0 0.0
    %1446 = vmatprep.subr.mxu0 0.0
    %1447 = vmatpush1.msra.mxu0 0.0
    %1448 = vmatprep.subr.mxu0 0.0
    %1449 = vmatpush1.msra.mxu0 0.0
    %1450 = vmatprep.subr.mxu0 0.0
    %1451 = vmatpush1.msra.mxu0 0.0
    %1452 = vmatprep.subr.mxu0 0.0
    %1453 = vmatpush1.msra.mxu0 0.0
    %1454 = vmatprep.subr.mxu0 0.0
    %1455 = vmatpush1.msra.mxu0 0.0
    %1456 = vmatprep.subr.mxu0 0.0
    %1457 = vmatpush1.msra.mxu0 0.0
    %1458 = vmatprep.subr.mxu0 0.0
    %1459 = vmatpush1.msra.mxu0 %v1421
    %1460 = vmatprep.subr.mxu0 0.0
    %1461 = vmatpush1.msra.mxu0 %v1419
    %1462 = vmatprep.subr.mxu0 0.0
    %1463 = vmatpush2.msra.mxu0 0.0
    %1464 = vmatprep.subr.mxu0 0.0
    %1465 = vmatpush2.msra.mxu0 0.0
    %1466 = vmatprep.subr.mxu0 0.0
    %1467 = vmatpush2.msra.mxu0 0.0
    %1468 = vmatprep.subr.mxu0 0.0
    %1469 = vmatpush2.msra.mxu0 0.0
    %1470 = vmatprep.subr.mxu0 0.0
    %1471 = vmatpush2.msra.mxu0 0.0
    %1472 = vmatprep.subr.mxu0 0.0
    %1473 = vmatpush2.msra.mxu0 0.0
    %1474 = vmatprep.subr.mxu0 0.0
    %1475 = vmatpush2.msra.mxu0 0.0
    %1476 = vmatprep.subr.mxu0 0.0
    %1477 = vmatpush2.msra.mxu0 0.0
    %1478 = vmatprep.subr.mxu0 0.0
    %1479 = vmatpush2.msra.mxu0 0.0
    %1480 = vmatprep.subr.mxu0 0.0
    %1481 = vmatpush2.msra.mxu0 0.0
    %1482 = vmatprep.subr.mxu0 0.0
    %1483 = vmatpush2.msra.mxu0 0.0
    %1484 = vmatprep.subr.mxu0 0.0
    %1485 = vmatpush2.msra.mxu0 0.0
    %1486 = vmatprep.subr.mxu0 0.0
    %1487 = vmatpush2.msra.mxu0 0.0
    %1488 = vmatprep.subr.mxu0 0.0
    %1489 = vmatpush2.msra.mxu0 0.0
    %1490 = vmatprep.subr.mxu0 0.0
    %1491 = vmatpush2.msra.mxu0 0.0
    %1492 = vmatprep.subr.mxu0 0.0
    %1493 = vmatpush2.msra.mxu0 0.0
    %1494 = vmatprep.mubr.f32.mxu0 0.0
    %1495 = vmatmul.mubr.f32.gmra.mxu0 %v1425
    %v1496 = vpop.f32.mrf.mxu0
    %v1497 = vadd.f32 0.0, %v1496
    %v1498 = vpop.f32.mrf.mxu0
    %1499 = vmatprep.mubr.f32.mxu0 0.0
    %1500 = vmatmul.mubr.f32.gmra.mxu0 %v1428
    %v1501 = vpop.f32.mrf.mxu0
    %v1502 = vadd.f32 0.0, %v1501
    %v1503 = vpop.f32.mrf.mxu0
    %1504 = vdwg.mxu0
    %1507 = vrot.lane.b32.xlu0 %v1497, 16
    %v1508 = vpop.permute.xlu0 %1507
    %1509 = vrot.lane.b32.xlu0 %v1502, 16
    %v1510 = vpop.permute.xlu0 %1509
    %v1513 = vsel %vm220, %v1293, %v1508
    %v1514 = vsel %vm220, %v1298, %v1510
    %s1515 = scalar_lea.vmem %s8, 8
    %v1516 = vld [vmem:[%s1515] sm:$0x3f]
    %s1517 = scalar_lea.vmem %s7, 32
    %v1518 = vld [vmem:[%s1517] sm:$0xff]
    %v1519 = vld [vmem:[%s1517 + $0x8] sm:$0xff]
    %v1520 = vld [vmem:[%s1517 + $0x10] sm:$0xff]
    %v1521 = vld [vmem:[%s1517 + $0x18] sm:$0xff]
    %v1522 = vlaneseq
    %v1523 = vshrl.u32 %v1522, 7
    %v1524 = vsub.s32 0, %v1523
    %v1525 = vrot.slane %v1516, %v1524
    %v1527 = vsel %vm53, %v1513, 0
    %v1530 = vsel %vm53, %v1514, 0
    %1532 = vmatprep.subr.mxu0 0.0
    %1533 = vmatpush1.msra.mxu0 0.0
    %1534 = vmatprep.subr.mxu0 0.0
    %1535 = vmatpush1.msra.mxu0 0.0
    %1536 = vmatprep.subr.mxu0 0.0
    %1537 = vmatpush1.msra.mxu0 0.0
    %1538 = vmatprep.subr.mxu0 0.0
    %1539 = vmatpush1.msra.mxu0 0.0
    %1540 = vmatprep.subr.mxu0 0.0
    %1541 = vmatpush1.msra.mxu0 0.0
    %1542 = vmatprep.subr.mxu0 0.0
    %1543 = vmatpush1.msra.mxu0 0.0
    %1544 = vmatprep.subr.mxu0 0.0
    %1545 = vmatpush1.msra.mxu0 0.0
    %1546 = vmatprep.subr.mxu0 0.0
    %1547 = vmatpush1.msra.mxu0 0.0
    %1548 = vmatprep.subr.mxu0 0.0
    %1549 = vmatpush1.msra.mxu0 0.0
    %1550 = vmatprep.subr.mxu0 0.0
    %1551 = vmatpush1.msra.mxu0 0.0
    %1552 = vmatprep.subr.mxu0 0.0
    %1553 = vmatpush1.msra.mxu0 0.0
    %1554 = vmatprep.subr.mxu0 0.0
    %1555 = vmatpush1.msra.mxu0 0.0
    %1556 = vmatprep.subr.mxu0 0.0
    %1557 = vmatpush1.msra.mxu0 %v1521
    %1558 = vmatprep.subr.mxu0 0.0
    %1559 = vmatpush1.msra.mxu0 %v1520
    %1560 = vmatprep.subr.mxu0 0.0
    %1561 = vmatpush1.msra.mxu0 %v1519
    %1562 = vmatprep.subr.mxu0 0.0
    %1563 = vmatpush1.msra.mxu0 %v1518
    %1564 = vmatprep.subr.mxu0 0.0
    %1565 = vmatpush2.msra.mxu0 0.0
    %1566 = vmatprep.subr.mxu0 0.0
    %1567 = vmatpush2.msra.mxu0 0.0
    %1568 = vmatprep.subr.mxu0 0.0
    %1569 = vmatpush2.msra.mxu0 0.0
    %1570 = vmatprep.subr.mxu0 0.0
    %1571 = vmatpush2.msra.mxu0 0.0
    %1572 = vmatprep.subr.mxu0 0.0
    %1573 = vmatpush2.msra.mxu0 0.0
    %1574 = vmatprep.subr.mxu0 0.0
    %1575 = vmatpush2.msra.mxu0 0.0
    %1576 = vmatprep.subr.mxu0 0.0
    %1577 = vmatpush2.msra.mxu0 0.0
    %1578 = vmatprep.subr.mxu0 0.0
    %1579 = vmatpush2.msra.mxu0 0.0
    %1580 = vmatprep.subr.mxu0 0.0
    %1581 = vmatpush2.msra.mxu0 0.0
    %1582 = vmatprep.subr.mxu0 0.0
    %1583 = vmatpush2.msra.mxu0 0.0
    %1584 = vmatprep.subr.mxu0 0.0
    %1585 = vmatpush2.msra.mxu0 0.0
    %1586 = vmatprep.subr.mxu0 0.0
    %1587 = vmatpush2.msra.mxu0 0.0
    %1588 = vmatprep.subr.mxu0 0.0
    %1589 = vmatpush2.msra.mxu0 0.0
    %1590 = vmatprep.subr.mxu0 0.0
    %1591 = vmatpush2.msra.mxu0 0.0
    %1592 = vmatprep.subr.mxu0 0.0
    %1593 = vmatpush2.msra.mxu0 0.0
    %1594 = vmatprep.subr.mxu0 0.0
    %1595 = vmatpush2.msra.mxu0 0.0
    %1596 = vmatprep.mubr.f32.mxu0 0.0
    %1597 = vmatmul.mubr.f32.gmra.mxu0 %v1527
    %v1598 = vpop.f32.mrf.mxu0
    %v1599 = vadd.f32 %v1525, %v1598
    %v1600 = vpop.f32.mrf.mxu0
    %1601 = vmatprep.mubr.f32.mxu0 0.0
    %1602 = vmatmul.mubr.f32.gmra.mxu0 %v1530
    %v1603 = vpop.f32.mrf.mxu0
    %v1604 = vadd.f32 %v1525, %v1603
    %v1605 = vpop.f32.mrf.mxu0
    %1606 = vdwg.mxu0
    %v1607 = vadd.f32 %v1599, %v1003
    %v1608 = vadd.f32 %v1604, %v1004
    %v1609 = vsel %vm53, %v1607, 0.0
    %1610 = vadd.xlane.f32.xlu0 %v1609
    %v1611 = vpop.xlane.xlu0 %1610
    %v1612 = vsel %vm53, %v1608, 0.0
    %1613 = vadd.xlane.f32.xlu0 %v1612
    %v1614 = vpop.xlane.xlu0 %1613
    %v1615 = vmul.f32 %v1611, %v60
    %v1616 = vmul.f32 %v1614, %v60
    %v1617 = vsub.f32 %v1607, %v1615
    %v1618 = vsub.f32 %v1608, %v1616
    %v1619 = vmul.f32 %v1617, %v1617
    %v1620 = vmul.f32 %v1618, %v1618
    %v1621 = vsel %vm53, %v1619, 0.0
    %1622 = vadd.xlane.f32.xlu0 %v1621
    %v1623 = vpop.xlane.xlu0 %1622
    %v1624 = vsel %vm53, %v1620, 0.0
    %1625 = vadd.xlane.f32.xlu0 %v1624
    %v1626 = vpop.xlane.xlu0 %1625
    %v1627 = vmul.f32 %v1623, %v60
    %v1628 = vmul.f32 %v1626, %v60
    %v1629 = vadd.f32 %v1627, 1e-12
    %v1630 = vadd.f32 %v1628, 1e-12
    %v1631 = vrsqrt.pop %v1629
    %v1632 = vrsqrt.pop %v1630
    %v1633 = vmul.f32 %v1617, %v1631
    %v1634 = vmul.f32 %v1618, %v1632
    %v1635 = vlaneseq
    %v1636 = vshrl.u32 %v1635, 7
    %v1637 = vsub.s32 1, %v1636
    %v1638 = vrot.slane %v1516, %v1637
    %v1639 = vmul.f32 %v1633, %v1638
    %v1640 = vmul.f32 %v1634, %v1638
    %v1641 = vlaneseq
    %v1642 = vshrl.u32 %v1641, 7
    %v1643 = vsub.s32 2, %v1642
    %v1644 = vrot.slane %v1516, %v1643
    %v1645 = vadd.f32 %v1639, %v1644
    %v1646 = vadd.f32 %v1640, %v1644
    %s1647 = scalar_lea.vmem %s9, 32
    %v1648 = vld [vmem:[%s1647] sm:$0xff]
    %v1649 = vld [vmem:[%s1647 + $0x8] sm:$0xff]
    %v1650 = vld [vmem:[%s1647 + $0x10] sm:$0xff]
    %v1651 = vld [vmem:[%s1647 + $0x18] sm:$0xff]
    %s1652 = scalar_lea.vmem %s10, 1
    %v1653 = vld [vmem:[%s1652] sm:$0x1]
    %v1655 = vlaneseq
    %v1656 = vshrl.u32 %v1655, 7
    %v1657 = vsub.s32 0, %v1656
    %v1658 = vrot.slane %v1653, %v1657
    %v1661 = vsel %vm53, %v1645, 0
    %v1664 = vsel %vm53, %v1646, 0
    %1666 = vmatprep.subr.mxu0 0.0
    %1667 = vmatpush1.msra.mxu0 0.0
    %1668 = vmatprep.subr.mxu0 0.0
    %1669 = vmatpush1.msra.mxu0 0.0
    %1670 = vmatprep.subr.mxu0 0.0
    %1671 = vmatpush1.msra.mxu0 0.0
    %1672 = vmatprep.subr.mxu0 0.0
    %1673 = vmatpush1.msra.mxu0 0.0
    %1674 = vmatprep.subr.mxu0 0.0
    %1675 = vmatpush1.msra.mxu0 0.0
    %1676 = vmatprep.subr.mxu0 0.0
    %1677 = vmatpush1.msra.mxu0 0.0
    %1678 = vmatprep.subr.mxu0 0.0
    %1679 = vmatpush1.msra.mxu0 0.0
    %1680 = vmatprep.subr.mxu0 0.0
    %1681 = vmatpush1.msra.mxu0 0.0
    %1682 = vmatprep.subr.mxu0 0.0
    %1683 = vmatpush1.msra.mxu0 0.0
    %1684 = vmatprep.subr.mxu0 0.0
    %1685 = vmatpush1.msra.mxu0 0.0
    %1686 = vmatprep.subr.mxu0 0.0
    %1687 = vmatpush1.msra.mxu0 0.0
    %1688 = vmatprep.subr.mxu0 0.0
    %1689 = vmatpush1.msra.mxu0 0.0
    %1690 = vmatprep.subr.mxu0 0.0
    %1691 = vmatpush1.msra.mxu0 %v1651
    %1692 = vmatprep.subr.mxu0 0.0
    %1693 = vmatpush1.msra.mxu0 %v1650
    %1694 = vmatprep.subr.mxu0 0.0
    %1695 = vmatpush1.msra.mxu0 %v1649
    %1696 = vmatprep.subr.mxu0 0.0
    %1697 = vmatpush1.msra.mxu0 %v1648
    %1698 = vmatprep.subr.mxu0 0.0
    %1699 = vmatpush2.msra.mxu0 0.0
    %1700 = vmatprep.subr.mxu0 0.0
    %1701 = vmatpush2.msra.mxu0 0.0
    %1702 = vmatprep.subr.mxu0 0.0
    %1703 = vmatpush2.msra.mxu0 0.0
    %1704 = vmatprep.subr.mxu0 0.0
    %1705 = vmatpush2.msra.mxu0 0.0
    %1706 = vmatprep.subr.mxu0 0.0
    %1707 = vmatpush2.msra.mxu0 0.0
    %1708 = vmatprep.subr.mxu0 0.0
    %1709 = vmatpush2.msra.mxu0 0.0
    %1710 = vmatprep.subr.mxu0 0.0
    %1711 = vmatpush2.msra.mxu0 0.0
    %1712 = vmatprep.subr.mxu0 0.0
    %1713 = vmatpush2.msra.mxu0 0.0
    %1714 = vmatprep.subr.mxu0 0.0
    %1715 = vmatpush2.msra.mxu0 0.0
    %1716 = vmatprep.subr.mxu0 0.0
    %1717 = vmatpush2.msra.mxu0 0.0
    %1718 = vmatprep.subr.mxu0 0.0
    %1719 = vmatpush2.msra.mxu0 0.0
    %1720 = vmatprep.subr.mxu0 0.0
    %1721 = vmatpush2.msra.mxu0 0.0
    %1722 = vmatprep.subr.mxu0 0.0
    %1723 = vmatpush2.msra.mxu0 0.0
    %1724 = vmatprep.subr.mxu0 0.0
    %1725 = vmatpush2.msra.mxu0 0.0
    %1726 = vmatprep.subr.mxu0 0.0
    %1727 = vmatpush2.msra.mxu0 0.0
    %1728 = vmatprep.subr.mxu0 0.0
    %1729 = vmatpush2.msra.mxu0 0.0
    %1730 = vmatprep.mubr.f32.mxu0 0.0
    %1731 = vmatmul.mubr.f32.gmra.mxu0 %v1661
    %v1732 = vpop.f32.mrf.mxu0
    %v1733 = vadd.f32 %v1658, %v1732
    %v1734 = vpop.f32.mrf.mxu0
    %1735 = vmatprep.mubr.f32.mxu0 0.0
    %1736 = vmatmul.mubr.f32.gmra.mxu0 %v1664
    %v1737 = vpop.f32.mrf.mxu0
    %v1738 = vadd.f32 %v1658, %v1737
    %v1739 = vpop.f32.mrf.mxu0
    %1740 = vdwg.mxu0
    %v1741 = vmul.f32 %v1733, %v1733
    %v1742 = vmul.f32 %v1738, %v1738
    %v1743 = vmul.f32 %v1733, %v1741
    %v1744 = vmul.f32 %v1738, %v1742
    %v1745 = vmul.f32 %v1743, 0.044715
    %v1746 = vmul.f32 %v1744, 0.044715
    %v1747 = vadd.f32 %v1733, %v1745
    %v1748 = vadd.f32 %v1738, %v1746
    %v1749 = vmul.f32 %v1747, 0.7978846
    %v1750 = vmul.f32 %v1748, 0.7978846
    %v1751 = vtanh.pop %v1749
    %v1752 = vtanh.pop %v1750
    %v1753 = vadd.f32 %v1751, 1.0
    %v1754 = vadd.f32 %v1752, 1.0
    %v1755 = vmul.f32 %v1753, 0.5
    %v1756 = vmul.f32 %v1754, 0.5
    %v1757 = vmul.f32 %v1733, %v1755
    %v1758 = vmul.f32 %v1738, %v1756
    %s1759 = scalar_lea.vmem %s11, 64
    %v1760 = vld [vmem:[%s1759] sm:$0xff]
    %v1761 = vld [vmem:[%s1759 + $0x8] sm:$0xff]
    %v1762 = vld [vmem:[%s1759 + $0x10] sm:$0xff]
    %v1763 = vld [vmem:[%s1759 + $0x18] sm:$0xff]
    %v1764 = vld [vmem:[%s1759 + $0x20] sm:$0xff]
    %v1765 = vld [vmem:[%s1759 + $0x28] sm:$0xff]
    %v1766 = vld [vmem:[%s1759 + $0x30] sm:$0xff]
    %v1767 = vld [vmem:[%s1759 + $0x38] sm:$0xff]
    %v1768 = vlaneseq
    %v1769 = vshrl.u32 %v1768, 7
    %v1770 = vsub.s32 3, %v1769
    %v1771 = vrot.slane %v1516, %v1770
    %v1773 = vsel %vm883, %v1757, 0
    %v1776 = vsel %vm883, %v1758, 0
    %1778 = vmatprep.subr.mxu0 0.0
    %1779 = vmatpush1.msra.mxu0 0.0
    %1780 = vmatprep.subr.mxu0 0.0
    %1781 = vmatpush1.msra.mxu0 0.0
    %1782 = vmatprep.subr.mxu0 0.0
    %1783 = vmatpush1.msra.mxu0 0.0
    %1784 = vmatprep.subr.mxu0 0.0
    %1785 = vmatpush1.msra.mxu0 0.0
    %1786 = vmatprep.subr.mxu0 0.0
    %1787 = vmatpush1.msra.mxu0 0.0
    %1788 = vmatprep.subr.mxu0 0.0
    %1789 = vmatpush1.msra.mxu0 0.0
    %1790 = vmatprep.subr.mxu0 0.0
    %1791 = vmatpush1.msra.mxu0 0.0
    %1792 = vmatprep.subr.mxu0 0.0
    %1793 = vmatpush1.msra.mxu0 0.0
    %1794 = vmatprep.subr.mxu0 0.0
    %1795 = vmatpush1.msra.mxu0 %v1767
    %1796 = vmatprep.subr.mxu0 0.0
    %1797 = vmatpush1.msra.mxu0 %v1766
    %1798 = vmatprep.subr.mxu0 0.0
    %1799 = vmatpush1.msra.mxu0 %v1765
    %1800 = vmatprep.subr.mxu0 0.0
    %1801 = vmatpush1.msra.mxu0 %v1764
    %1802 = vmatprep.subr.mxu0 0.0
    %1803 = vmatpush1.msra.mxu0 %v1763
    %1804 = vmatprep.subr.mxu0 0.0
    %1805 = vmatpush1.msra.mxu0 %v1762
    %1806 = vmatprep.subr.mxu0 0.0
    %1807 = vmatpush1.msra.mxu0 %v1761
    %1808 = vmatprep.subr.mxu0 0.0
    %1809 = vmatpush1.msra.mxu0 %v1760
    %1810 = vmatprep.subr.mxu0 0.0
    %1811 = vmatpush2.msra.mxu0 0.0
    %1812 = vmatprep.subr.mxu0 0.0
    %1813 = vmatpush2.msra.mxu0 0.0
    %1814 = vmatprep.subr.mxu0 0.0
    %1815 = vmatpush2.msra.mxu0 0.0
    %1816 = vmatprep.subr.mxu0 0.0
    %1817 = vmatpush2.msra.mxu0 0.0
    %1818 = vmatprep.subr.mxu0 0.0
    %1819 = vmatpush2.msra.mxu0 0.0
    %1820 = vmatprep.subr.mxu0 0.0
    %1821 = vmatpush2.msra.mxu0 0.0
    %1822 = vmatprep.subr.mxu0 0.0
    %1823 = vmatpush2.msra.mxu0 0.0
    %1824 = vmatprep.subr.mxu0 0.0
    %1825 = vmatpush2.msra.mxu0 0.0
    %1826 = vmatprep.subr.mxu0 0.0
    %1827 = vmatpush2.msra.mxu0 0.0
    %1828 = vmatprep.subr.mxu0 0.0
    %1829 = vmatpush2.msra.mxu0 0.0
    %1830 = vmatprep.subr.mxu0 0.0
    %1831 = vmatpush2.msra.mxu0 0.0
    %1832 = vmatprep.subr.mxu0 0.0
    %1833 = vmatpush2.msra.mxu0 0.0
    %1834 = vmatprep.subr.mxu0 0.0
    %1835 = vmatpush2.msra.mxu0 0.0
    %1836 = vmatprep.subr.mxu0 0.0
    %1837 = vmatpush2.msra.mxu0 0.0
    %1838 = vmatprep.subr.mxu0 0.0
    %1839 = vmatpush2.msra.mxu0 0.0
    %1840 = vmatprep.subr.mxu0 0.0
    %1841 = vmatpush2.msra.mxu0 0.0
    %1842 = vmatprep.mubr.f32.mxu0 0.0
    %1843 = vmatmul.mubr.f32.gmra.mxu0 %v1773
    %v1844 = vpop.f32.mrf.mxu0
    %v1845 = vadd.f32 %v1771, %v1844
    %v1846 = vpop.f32.mrf.mxu0
    %1847 = vmatprep.mubr.f32.mxu0 0.0
    %1848 = vmatmul.mubr.f32.gmra.mxu0 %v1776
    %v1849 = vpop.f32.mrf.mxu0
    %v1850 = vadd.f32 %v1771, %v1849
    %v1851 = vpop.f32.mrf.mxu0
    %1852 = vdwg.mxu0
    %v1853 = vadd.f32 %v1845, %v1645
    %v1854 = vadd.f32 %v1850, %v1646
    %v1855 = vsel %vm53, %v1853, 0.0
    %1856 = vadd.xlane.f32.xlu0 %v1855
    %v1857 = vpop.xlane.xlu0 %1856
    %v1858 = vsel %vm53, %v1854, 0.0
    %1859 = vadd.xlane.f32.xlu0 %v1858
    %v1860 = vpop.xlane.xlu0 %1859
    %v1861 = vmul.f32 %v1857, %v60
    %v1862 = vmul.f32 %v1860, %v60
    %v1863 = vsub.f32 %v1853, %v1861
    %v1864 = vsub.f32 %v1854, %v1862
    %v1865 = vmul.f32 %v1863, %v1863
    %v1866 = vmul.f32 %v1864, %v1864
    %v1867 = vsel %vm53, %v1865, 0.0
    %1868 = vadd.xlane.f32.xlu0 %v1867
    %v1869 = vpop.xlane.xlu0 %1868
    %v1870 = vsel %vm53, %v1866, 0.0
    %1871 = vadd.xlane.f32.xlu0 %v1870
    %v1872 = vpop.xlane.xlu0 %1871
    %v1873 = vmul.f32 %v1869, %v60
    %v1874 = vmul.f32 %v1872, %v60
    %v1875 = vadd.f32 %v1873, 1e-12
    %v1876 = vadd.f32 %v1874, 1e-12
    %v1877 = vrsqrt.pop %v1875
    %v1878 = vrsqrt.pop %v1876
    %v1879 = vmul.f32 %v1863, %v1877
    %v1880 = vmul.f32 %v1864, %v1878
    %v1881 = vlaneseq
    %v1882 = vshrl.u32 %v1881, 7
    %v1883 = vsub.s32 4, %v1882
    %v1884 = vrot.slane %v1516, %v1883
    %v1885 = vmul.f32 %v1879, %v1884
    %v1886 = vmul.f32 %v1880, %v1884
    %v1887 = vlaneseq
    %v1888 = vshrl.u32 %v1887, 7
    %v1889 = vsub.s32 5, %v1888
    %v1890 = vrot.slane %v1516, %v1889
    %v1891 = vadd.f32 %v1885, %v1890
    %v1892 = vadd.f32 %v1886, %v1890
    %v1893 = vmul.u32 %v94, 8
    %vm1894 = vcmp.eq.s32.totalorder %v99, %v1893
    %v1895 = vsel %vm1894, 1, 0
    %v1896 = vcvt.s32.f32 %v1895
    %v1898 = vsel %vm220, %v1896, 0
    %1900 = vmatprep.subr.mxu0 0.0
    %1901 = vmatpush1.msra.mxu0 0.0
    %1902 = vmatprep.subr.mxu0 0.0
    %1903 = vmatpush1.msra.mxu0 0.0
    %1904 = vmatprep.subr.mxu0 0.0
    %1905 = vmatpush1.msra.mxu0 0.0
    %1906 = vmatprep.subr.mxu0 0.0
    %1907 = vmatpush1.msra.mxu0 0.0
    %1908 = vmatprep.subr.mxu0 0.0
    %1909 = vmatpush1.msra.mxu0 0.0
    %1910 = vmatprep.subr.mxu0 0.0
    %1911 = vmatpush1.msra.mxu0 0.0
    %1912 = vmatprep.subr.mxu0 0.0
    %1913 = vmatpush1.msra.mxu0 0.0
    %1914 = vmatprep.subr.mxu0 0.0
    %1915 = vmatpush1.msra.mxu0 0.0
    %1916 = vmatprep.subr.mxu0 0.0
    %1917 = vmatpush1.msra.mxu0 0.0
    %1918 = vmatprep.subr.mxu0 0.0
    %1919 = vmatpush1.msra.mxu0 0.0
    %1920 = vmatprep.subr.mxu0 0.0
    %1921 = vmatpush1.msra.mxu0 0.0
    %1922 = vmatprep.subr.mxu0 0.0
    %1923 = vmatpush1.msra.mxu0 0.0
    %1924 = vmatprep.subr.mxu0 0.0
    %1925 = vmatpush1.msra.mxu0 0.0
    %1926 = vmatprep.subr.mxu0 0.0
    %1927 = vmatpush1.msra.mxu0 0.0
    %1928 = vmatprep.subr.mxu0 0.0
    %1929 = vmatpush1.msra.mxu0 %v1892
    %1930 = vmatprep.subr.mxu0 0.0
    %1931 = vmatpush1.msra.mxu0 %v1891
    %1932 = vmatprep.subr.mxu0 0.0
    %1933 = vmatpush2.msra.mxu0 0.0
    %1934 = vmatprep.subr.mxu0 0.0
    %1935 = vmatpush2.msra.mxu0 0.0
    %1936 = vmatprep.subr.mxu0 0.0
    %1937 = vmatpush2.msra.mxu0 0.0
    %1938 = vmatprep.subr.mxu0 0.0
    %1939 = vmatpush2.msra.mxu0 0.0
    %1940 = vmatprep.subr.mxu0 0.0
    %1941 = vmatpush2.msra.mxu0 0.0
    %1942 = vmatprep.subr.mxu0 0.0
    %1943 = vmatpush2.msra.mxu0 0.0
    %1944 = vmatprep.subr.mxu0 0.0
    %1945 = vmatpush2.msra.mxu0 0.0
    %1946 = vmatprep.subr.mxu0 0.0
    %1947 = vmatpush2.msra.mxu0 0.0
    %1948 = vmatprep.subr.mxu0 0.0
    %1949 = vmatpush2.msra.mxu0 0.0
    %1950 = vmatprep.subr.mxu0 0.0
    %1951 = vmatpush2.msra.mxu0 0.0
    %1952 = vmatprep.subr.mxu0 0.0
    %1953 = vmatpush2.msra.mxu0 0.0
    %1954 = vmatprep.subr.mxu0 0.0
    %1955 = vmatpush2.msra.mxu0 0.0
    %1956 = vmatprep.subr.mxu0 0.0
    %1957 = vmatpush2.msra.mxu0 0.0
    %1958 = vmatprep.subr.mxu0 0.0
    %1959 = vmatpush2.msra.mxu0 0.0
    %1960 = vmatprep.subr.mxu0 0.0
    %1961 = vmatpush2.msra.mxu0 0.0
    %1962 = vmatprep.subr.mxu0 0.0
    %1963 = vmatpush2.msra.mxu0 0.0
    %1964 = vmatprep.mubr.f32.mxu0 0.0
    %1965 = vmatmul.mubr.f32.gmra.mxu0 %v1898
    %v1966 = vpop.f32.mrf.mxu0
    %v1967 = vadd.f32 0.0, %v1966
    %v1968 = vpop.f32.mrf.mxu0
    %1969 = vdwg.mxu0
    %v1970 = vld [vmem:[%s12] sm:$0xff]
    %v1971 = vld [vmem:[%s12 + $0x8] sm:$0xff]
    %v1972 = vld [vmem:[%s12 + $0x10] sm:$0xff]
    %v1973 = vld [vmem:[%s12 + $0x18] sm:$0xff]
    %v1974 = vld [vmem:[%s13] sm:$0x1]
    %v1976 = vlaneseq
    %v1977 = vshrl.u32 %v1976, 7
    %v1978 = vsub.s32 0, %v1977
    %v1979 = vrot.slane %v1974, %v1978
    %v1982 = vsel %vm53, %v1967, 0
    %1984 = vmatprep.subr.mxu0 0.0
    %1985 = vmatpush1.msra.mxu0 0.0
    %1986 = vmatprep.subr.mxu0 0.0
    %1987 = vmatpush1.msra.mxu0 0.0
    %1988 = vmatprep.subr.mxu0 0.0
    %1989 = vmatpush1.msra.mxu0 0.0
    %1990 = vmatprep.subr.mxu0 0.0
    %1991 = vmatpush1.msra.mxu0 0.0
    %1992 = vmatprep.subr.mxu0 0.0
    %1993 = vmatpush1.msra.mxu0 0.0
    %1994 = vmatprep.subr.mxu0 0.0
    %1995 = vmatpush1.msra.mxu0 0.0
    %1996 = vmatprep.subr.mxu0 0.0
    %1997 = vmatpush1.msra.mxu0 0.0
    %1998 = vmatprep.subr.mxu0 0.0
    %1999 = vmatpush1.msra.mxu0 0.0
    %2000 = vmatprep.subr.mxu0 0.0
    %2001 = vmatpush1.msra.mxu0 0.0
    %2002 = vmatprep.subr.mxu0 0.0
    %2003 = vmatpush1.msra.mxu0 0.0
    %2004 = vmatprep.subr.mxu0 0.0
    %2005 = vmatpush1.msra.mxu0 0.0
    %2006 = vmatprep.subr.mxu0 0.0
    %2007 = vmatpush1.msra.mxu0 0.0
    %2008 = vmatprep.subr.mxu0 0.0
    %2009 = vmatpush1.msra.mxu0 %v1973
    %2010 = vmatprep.subr.mxu0 0.0
    %2011 = vmatpush1.msra.mxu0 %v1972
    %2012 = vmatprep.subr.mxu0 0.0
    %2013 = vmatpush1.msra.mxu0 %v1971
    %2014 = vmatprep.subr.mxu0 0.0
    %2015 = vmatpush1.msra.mxu0 %v1970
    %2016 = vmatprep.subr.mxu0 0.0
    %2017 = vmatpush2.msra.mxu0 0.0
    %2018 = vmatprep.subr.mxu0 0.0
    %2019 = vmatpush2.msra.mxu0 0.0
    %2020 = vmatprep.subr.mxu0 0.0
    %2021 = vmatpush2.msra.mxu0 0.0
    %2022 = vmatprep.subr.mxu0 0.0
    %2023 = vmatpush2.msra.mxu0 0.0
    %2024 = vmatprep.subr.mxu0 0.0
    %2025 = vmatpush2.msra.mxu0 0.0
    %2026 = vmatprep.subr.mxu0 0.0
    %2027 = vmatpush2.msra.mxu0 0.0
    %2028 = vmatprep.subr.mxu0 0.0
    %2029 = vmatpush2.msra.mxu0 0.0
    %2030 = vmatprep.subr.mxu0 0.0
    %2031 = vmatpush2.msra.mxu0 0.0
    %2032 = vmatprep.subr.mxu0 0.0
    %2033 = vmatpush2.msra.mxu0 0.0
    %2034 = vmatprep.subr.mxu0 0.0
    %2035 = vmatpush2.msra.mxu0 0.0
    %2036 = vmatprep.subr.mxu0 0.0
    %2037 = vmatpush2.msra.mxu0 0.0
    %2038 = vmatprep.subr.mxu0 0.0
    %2039 = vmatpush2.msra.mxu0 0.0
    %2040 = vmatprep.subr.mxu0 0.0
    %2041 = vmatpush2.msra.mxu0 0.0
    %2042 = vmatprep.subr.mxu0 0.0
    %2043 = vmatpush2.msra.mxu0 0.0
    %2044 = vmatprep.subr.mxu0 0.0
    %2045 = vmatpush2.msra.mxu0 0.0
    %2046 = vmatprep.subr.mxu0 0.0
    %2047 = vmatpush2.msra.mxu0 0.0
    %2048 = vmatprep.mubr.f32.mxu0 0.0
    %2049 = vmatmul.mubr.f32.gmra.mxu0 %v1982
    %v2050 = vpop.f32.mrf.mxu0
    %v2051 = vadd.f32 %v1979, %v2050
    %v2052 = vpop.f32.mrf.mxu0
    %2053 = vdwg.mxu0
    %v2054 = vtanh.pop %v2051
    %v2055 = vmul.f32 %v2054, %v2054
    %vm2056 = vcmask 254976
    %v2057 = vsel %vm2056, %v2055, 0.0
    %2058 = vadd.xlane.f32.xlu0 %v2057
    %v2059 = vpop.xlane.xlu0 %2058
    %v2060 = vmax.f32 %v2059, 1e-24
    %v2061 = vrsqrt.pop %v2060
    %v2062 = vmul.f32 %v2054, %v2061
    %2063 = vst.msk [vmem:[%s14] sm:$0x3] %vm2056, %v2062
    %v2064 = vld [vmem:[%s2] sm:$0x3]
    %v2065 = vmul.f32 %v2064, %v2062
    %v2066 = vsel %vm2056, %v2065, 0.0
    %2067 = vadd.xlane.f32.xlu0 %v2066
    %v2068 = vpop.xlane.xlu0 %2067
    %v2069 = vmul.f32 %v2068, 14.285714
    %vm2070 = vcmask 1024
    %2071 = vst.msk [vmem:[#allocation2] sm:$0x3] %vm2070, %v2069
    %v2072 = vld [vmem:[%s3] sm:$0xff]
    %v2073 = vld [vmem:[%s3 + $0x8] sm:$0xff]
    %v2074 = vld [vmem:[%s3 + $0x10] sm:$0xff]
    %v2075 = vld [vmem:[%s3 + $0x18] sm:$0xff]
    %v2077 = vsel %vm53, %v2064, 0
    %2079 = vmatprep.subr.mxu0 0.0
    %2080 = vmatpush1.msra.mxu0 0.0
    %2081 = vmatprep.subr.mxu0 0.0
    %2082 = vmatpush1.msra.mxu0 0.0
    %2083 = vmatprep.subr.mxu0 0.0
    %2084 = vmatpush1.msra.mxu0 0.0
    %2085 = vmatprep.subr.mxu0 0.0
    %2086 = vmatpush1.msra.mxu0 0.0
    %2087 = vmatprep.subr.mxu0 0.0
    %2088 = vmatpush1.msra.mxu0 0.0
    %2089 = vmatprep.subr.mxu0 0.0
    %2090 = vmatpush1.msra.mxu0 0.0
    %2091 = vmatprep.subr.mxu0 0.0
    %2092 = vmatpush1.msra.mxu0 0.0
    %2093 = vmatprep.subr.mxu0 0.0
    %2094 = vmatpush1.msra.mxu0 0.0
    %2095 = vmatprep.subr.mxu0 0.0
    %2096 = vmatpush1.msra.mxu0 0.0
    %2097 = vmatprep.subr.mxu0 0.0
    %2098 = vmatpush1.msra.mxu0 0.0
    %2099 = vmatprep.subr.mxu0 0.0
    %2100 = vmatpush1.msra.mxu0 0.0
    %2101 = vmatprep.subr.mxu0 0.0
    %2102 = vmatpush1.msra.mxu0 0.0
    %2103 = vmatprep.subr.mxu0 0.0
    %2104 = vmatpush1.msra.mxu0 %v2075
    %2105 = vmatprep.subr.mxu0 0.0
    %2106 = vmatpush1.msra.mxu0 %v2074
    %2107 = vmatprep.subr.mxu0 0.0
    %2108 = vmatpush1.msra.mxu0 %v2073
    %2109 = vmatprep.subr.mxu0 0.0
    %2110 = vmatpush1.msra.mxu0 %v2072
    %2111 = vmatprep.subr.mxu0 0.0
    %2112 = vmatpush2.msra.mxu0 0.0
    %2113 = vmatprep.subr.mxu0 0.0
    %2114 = vmatpush2.msra.mxu0 0.0
    %2115 = vmatprep.subr.mxu0 0.0
    %2116 = vmatpush2.msra.mxu0 0.0
    %2117 = vmatprep.subr.mxu0 0.0
    %2118 = vmatpush2.msra.mxu0 0.0
    %2119 = vmatprep.subr.mxu0 0.0
    %2120 = vmatpush2.msra.mxu0 0.0
    %2121 = vmatprep.subr.mxu0 0.0
    %2122 = vmatpush2.msra.mxu0 0.0
    %2123 = vmatprep.subr.mxu0 0.0
    %2124 = vmatpush2.msra.mxu0 0.0
    %2125 = vmatprep.subr.mxu0 0.0
    %2126 = vmatpush2.msra.mxu0 0.0
    %2127 = vmatprep.subr.mxu0 0.0
    %2128 = vmatpush2.msra.mxu0 0.0
    %2129 = vmatprep.subr.mxu0 0.0
    %2130 = vmatpush2.msra.mxu0 0.0
    %2131 = vmatprep.subr.mxu0 0.0
    %2132 = vmatpush2.msra.mxu0 0.0
    %2133 = vmatprep.subr.mxu0 0.0
    %2134 = vmatpush2.msra.mxu0 0.0
    %2135 = vmatprep.subr.mxu0 0.0
    %2136 = vmatpush2.msra.mxu0 0.0
    %2137 = vmatprep.subr.mxu0 0.0
    %2138 = vmatpush2.msra.mxu0 0.0
    %2139 = vmatprep.subr.mxu0 0.0
    %2140 = vmatpush2.msra.mxu0 0.0
    %2141 = vmatprep.subr.mxu0 0.0
    %2142 = vmatpush2.msra.mxu0 0.0
    %2143 = vmatprep.mubr.f32.mxu0 0.0
    %2144 = vmatmul.mubr.f32.gmra.mxu0 %v2077
    %v2145 = vpop.f32.mrf.mxu0
    %v2146 = vadd.f32 0.0, %v2145
    %v2147 = vpop.f32.mrf.mxu0
    %2148 = vdwg.mxu0
    %v2149 = vmul.f32 %v2146, 14.285714
    %2151 = vrot.lane.b32.xlu0 %v2149, 1
    %v2152 = vpop.permute.xlu0 %2151
    %vm2154 = vcmask 66568
    %2155 = vst.msk [vmem:[#allocation2] sm:$0x3] %vm2154, %v2152
    // Predicated region
    $region58: #{forward.3} parent=1 // pred_check
      _
    $region59: #{forward.3} parent=1 // pred_check_branch
      %2157 = sbr.rel (0) target = $region61
    $region60: #{forward.3} parent=1 // pred_region
      _
    $region61: #{forward.3} parent=1 // pred_fallthru
      _
    // Predicated region
    $region62: #{forward.3} parent=1 // pred_check
      _
    $region63: #{forward.3} parent=1 // pred_check_branch
      %2159 = sbr.rel (0) target = $region65
    $region64: #{forward.3} parent=1 // pred_region
      %s2161 = ssub.s32 32, 32
      %2162 = vsyncadd [#allocation3], %s2161
      %s2164 = sshll.u32 [#allocation2], 4
      %s2165 = int_to_ptr.vmem [resolvable:$true] %s2164
      %2167 = dma.vmem_to_hbm [thread:$0]  %s2165, 32, %s15, [#allocation3]
    $region65: #{forward.3} parent=1 // pred_fallthru
      _
    // Predicated region
    $region66: #{forward.3} parent=1 // pred_check
      _
    $region67: #{forward.3} parent=1 // pred_check_branch
      %2169 = sbr.rel (0) target = $region69
    $region68: #{forward.3} parent=1 // pred_region
      _
    $region69: #{forward.3} parent=1 // pred_fallthru
      _
    // Predicated region
    $region70: #{forward.3} parent=1 // pred_check
      _
    $region71: #{forward.3} parent=1 // pred_check_branch
      %2171 = sbr.rel (0) target = $region73
    $region72: #{forward.3} parent=1 // pred_region
      %2172 = dma.done [#allocation3], 32
    $region73: #{forward.3} parent=1 // pred_fallthru
      _
    %2173 = vsyncpa [#allocation3], 1

</llo_original>
